<compile_context>
chip_gen: v7x
topology: tpu7x:2x2x1
jax: 0.10.0
libtpu: 0.0.40
codegen_flags: <defaults>
</compile_context>

<pallas_src>
import functools

import jax
import jax.numpy as jnp
from jax import lax
from jax.experimental import pallas as pl
from jax.experimental.pallas import tpu as pltpu

EPS = 1e-5
_VMEM_LIMIT = 32 * 1024 * 1024  # scoped-VMEM guard for the grid=(1,) full-batch calls


@functools.lru_cache(maxsize=None)
def _num_tensorcores() -> int:
    """Best-effort TensorCore count (2 on v7x megacore, 1 on v5e/v6e).

    Falls back to 1 (no grid split) if it cannot be determined, which is the
    safe/fast choice on single-core chips and only noise on v7x at these sizes.
    """
    n = 1
    try:
        info = pltpu.get_tpu_info()
        for attr in ("num_cores", "core_count", "num_tensorcores", "tensorcore_count"):
            v = getattr(info, attr, None)
            if isinstance(v, int) and v > n:
                n = v
    except Exception:
        pass
    try:
        v = getattr(jax.devices()[0], "num_cores", None)
        if isinstance(v, int) and v > n:
            n = v
    except Exception:
        pass
    return n


# ----------------------------------------------------------------------------
# in-kernel helpers
# ----------------------------------------------------------------------------
def _bn_rows(h, gamma, beta):
    """Training-mode BatchNorm (biased variance) over axis 0 of a 2-D block."""
    mean = jnp.mean(h, axis=0, keepdims=True)
    var = jnp.mean((h - mean) ** 2, axis=0, keepdims=True)
    scale = gamma * lax.rsqrt(var + EPS)
    return (h - mean) * scale + beta


# ----------------------------------------------------------------------------
# Pallas kernels
# ----------------------------------------------------------------------------
def _conv_bn_relu_kernel(a_ref, w_ref, p_ref, o_ref):
    """im2col GEMM + bias + full-batch (in-block) BatchNorm + ReLU.
    Packed params rows: 0=bias, 1=gamma, 2=beta."""
    p = p_ref[...]
    h = jnp.dot(a_ref[...], w_ref[...], preferred_element_type=jnp.float32)
    h = h + p[0:1, :]
    h = _bn_rows(h, p[1:2, :], p[2:3, :])
    o_ref[...] = jnp.maximum(h, 0.0)


def _resblock_kernel(a_ref, w1_ref, w2_ref, x_ref, p_ref, o_ref, *,
                     internal_bn, post_bn):
    """Whole ResBlock (+ optional internal BN and trailing BN) in one kernel.
    Packed params rows: 0=b1, 1=g1, 2=be1, 3=b2, 4=g2, 5=be2."""
    p = p_ref[...]
    a = jnp.maximum(a_ref[...], 0)                       # ReLU prologue (pad-safe)
    h = jnp.dot(a, w1_ref[...], preferred_element_type=jnp.float32) + p[0:1, :]
    if internal_bn:
        h = _bn_rows(h, p[1:2, :], p[2:3, :])
    h = jnp.maximum(h, 0.0)
    h = jnp.dot(h.astype(jnp.bfloat16), w2_ref[...],     # bf16 x bf16, f32 acc
                preferred_element_type=jnp.float32) + p[3:4, :]
    out = x_ref[...] + h                                  # residual add (f32)
    if post_bn:                                           # the BN that follows the block
        out = _bn_rows(out, p[4:5, :], p[5:6, :])
    o_ref[...] = out


def _convt_bn_relu_kernel(a_ref, w_ref, p_ref, o_ref, *, c):
    """Sub-pixel ConvTranspose GEMM + bias with fused BatchNorm(batch-stats)+ReLU.

    Output columns are 4 sub-pixel groups x c channels; BN stats are per channel
    over all rows x 4 groups (= every N*2H*2W output position), computed fully
    in-block (grid=(1,)).  Packed params rows: 0=bias, 1=gamma, 2=beta."""
    p = p_ref[...]
    b, g, be = p[0:1, :], p[1:2, :], p[2:3, :]
    h = jnp.dot(a_ref[...], w_ref[...], preferred_element_type=jnp.float32)
    h = h + jnp.concatenate([b, b, b, b], axis=1)
    s = jnp.sum(h, axis=0, keepdims=True)                 # (1, 4c)
    ss = jnp.sum(h * h, axis=0, keepdims=True)
    s_c = s[:, 0:c] + s[:, c:2 * c] + s[:, 2 * c:3 * c] + s[:, 3 * c:4 * c]
    ss_c = ss[:, 0:c] + ss[:, c:2 * c] + ss[:, 2 * c:3 * c] + ss[:, 3 * c:4 * c]
    inv_cnt = 1.0 / float(h.shape[0] * 4)
    mean = s_c * inv_cnt
    var = jnp.maximum(ss_c * inv_cnt - mean * mean, 0.0)
    scale = g * lax.rsqrt(var + EPS)
    shift = be - mean * scale
    scale4 = jnp.concatenate([scale] * 4, axis=1)
    shift4 = jnp.concatenate([shift] * 4, axis=1)
    o_ref[...] = jnp.maximum(h * scale4 + shift4, 0.0)


def _gemm_bias_act_kernel(a_ref, w_ref, b_ref, o_ref, *, act):
    h = jnp.dot(a_ref[...], w_ref[...], preferred_element_type=jnp.float32)
    h = h + b_ref[...]
    if act == "relu":
        h = jnp.maximum(h, 0.0)
    elif act == "tanh":
        h = jnp.tanh(h)
    o_ref[...] = h


def _vq_kernel(z_ref, e_ref, e2_ref, zq_ref, am_ref):
    """NearestEmbed: first-occurrence argmin over the codebook + one-hot gather.
    Kept in f32 so tie-breaking / code indices stay stable."""
    z = z_ref[...]                                        # (tm, d)
    e = e_ref[...]                                        # (k, d) codebook rows
    ze = lax.dot_general(z, e, (((1,), (1,)), ((), ())),
                         preferred_element_type=jnp.float32)        # (tm, k)
    dist = e2_ref[...] - 2.0 * ze                         # ||z||^2 dropped (argmin-invariant)
    k = dist.shape[-1]
    iota_k = lax.broadcasted_iota(jnp.int32, dist.shape, 1)
    min_d = jnp.min(dist, axis=-1, keepdims=True)
    idx = jnp.min(jnp.where(dist <= min_d, iota_k, k), axis=-1, keepdims=True)
    onehot = (iota_k == idx).astype(jnp.float32)
    zq_ref[...] = jnp.dot(onehot, e, preferred_element_type=jnp.float32)
    am_ref[...] = idx


# ----------------------------------------------------------------------------
# plain-JAX glue: im2col, sub-pixel weight matrix, packing helpers
# ----------------------------------------------------------------------------
def _im2col(x, kh, kw, stride, pad, dtype=jnp.bfloat16):
    """Patch extraction (one XLA fusion).  The cast to the GEMM operand dtype is
    fused here, so the 9x-expanded patch buffer is materialized at half width."""
    x = x.astype(dtype)
    n, h, w, c = x.shape
    xp = jnp.pad(x, ((0, 0), (pad, pad), (pad, pad), (0, 0)))
    ho = (h + 2 * pad - kh) // stride + 1
    wo = (w + 2 * pad - kw) // stride + 1
    patches = []
    for i in range(kh):
        for j in range(kw):
            patches.append(
                xp[:, i:i + (ho - 1) * stride + 1:stride,
                      j:j + (wo - 1) * stride + 1:stride, :]
            )
    cols = jnp.stack(patches, axis=3)                     # (N, Ho, Wo, kh*kw, C)
    return cols.reshape(n * ho * wo, kh * kw * c), (n, ho, wo)


def _convt_wmat(w):
    """ConvTranspose2d(k=4, s=2, p=1) weight (Cin, Cout, 4, 4) -> (9*Cin, 4*Cout)
    sub-pixel GEMM matrix: output sub-pixel (a, b) of coarse position (r, c) is a
    2x2 conv over the pad-1 input; all four sub-pixels packed into one
    3x3/stride-1 GEMM."""
    cin, cout = w.shape[0], w.shape[1]
    kmap = {(0, 0): 3, (0, 1): 1, (1, 1): 2, (1, 2): 0}   # (subpix, patch offset) -> tap
    zero = jnp.zeros((cin, cout), w.dtype)
    rows = []
    for u in range(3):
        for v in range(3):
            cols = []
            for a in range(2):
                for b in range(2):
                    ky = kmap.get((a, u))
                    kx = kmap.get((b, v))
                    cols.append(zero if ky is None or kx is None else w[:, :, ky, kx])
            rows.append(jnp.concatenate(cols, axis=1))    # (cin, 4*cout)
    return jnp.concatenate(rows, axis=0)                  # (9*cin, 4*cout)


def _pack_rows(vectors, c):
    """Pack per-channel epilogue vectors into ONE small (rows, c) f32 operand."""
    return jnp.stack([jnp.reshape(v, (c,)).astype(jnp.float32) for v in vectors], axis=0)


def _subpix_interleave(out, n, hi, wi, cout):
    """(N*Hi*Wi, 4*Cout) sub-pixel layout -> NHWC (N, 2Hi, 2Wi, Cout)."""
    y = out.reshape(n, hi, wi, 2, 2, cout)
    return jnp.transpose(y, (0, 1, 3, 2, 4, 5)).reshape(n, 2 * hi, 2 * wi, cout)


# ----------------------------------------------------------------------------
# Pallas wrappers
# ----------------------------------------------------------------------------
def conv_bn_relu(x, w, b, gamma, beta, *, stride, pad):
    """Conv2d (PyTorch OIHW weight) + BatchNorm2d(batch stats) + ReLU, one kernel."""
    cout, cin, kh, kw = w.shape
    cols, (n, ho, wo) = _im2col(x, kh, kw, stride, pad)
    wmat = jnp.transpose(w, (2, 3, 1, 0)).reshape(kh * kw * cin, cout)
    m, kk = cols.shape
    params = _pack_rows([b, gamma, beta], cout)
    out = pl.pallas_call(
        _conv_bn_relu_kernel,
        out_shape=jax.ShapeDtypeStruct((m, cout), jnp.float32),
        grid=(1,),  # full batch in one block so BN stats are computed in-kernel
        in_specs=[pl.BlockSpec((m, kk), lambda i: (0, 0)),
                  pl.BlockSpec((kk, cout), lambda i: (0, 0)),
                  pl.BlockSpec((3, cout), lambda i: (0, 0))],
        out_specs=pl.BlockSpec((m, cout), lambda i: (0, 0)),
        compiler_params=pltpu.CompilerParams(vmem_limit_bytes=_VMEM_LIMIT),
    )(cols, wmat.astype(jnp.bfloat16), params)
    return out.reshape(n, ho, wo, cout)


def resblock_fused(x, rp, *, internal_bn, post_g=None, post_b=None):
    """ReLU -> 3x3 conv -> [BN] -> ReLU -> 1x1 conv -> +x -> [trailing BN], one kernel."""
    n, hh, ww, c = x.shape
    cols, _ = _im2col(x, 3, 3, stride=1, pad=1)           # pre-ReLU patches (ReLU in-kernel)
    w1 = jnp.transpose(rp["w1"], (2, 3, 1, 0)).reshape(9 * c, c)
    w2 = jnp.transpose(rp["w2"], (2, 3, 1, 0)).reshape(c, c)
    x2 = x.reshape(-1, c).astype(jnp.float32)
    m, kk = cols.shape
    one = jnp.ones((c,), jnp.float32)
    zero = jnp.zeros((c,), jnp.float32)
    post_bn = post_g is not None
    params = _pack_rows(
        [rp["b1"],
         rp["bn_g"] if internal_bn else one,
         rp["bn_b"] if internal_bn else zero,
         rp["b2"],
         post_g if post_bn else one,
         post_b if post_bn else zero], c)
    out = pl.pallas_call(
        functools.partial(_resblock_kernel, internal_bn=internal_bn, post_bn=post_bn),
        out_shape=jax.ShapeDtypeStruct((m, c), jnp.float32),
        grid=(1,),  # full batch in one block (in-kernel BN stats)
        in_specs=[pl.BlockSpec((m, kk), lambda i: (0, 0)),   # patches (bf16)
                  pl.BlockSpec((kk, c), lambda i: (0, 0)),   # w1 (3x3, bf16)
                  pl.BlockSpec((c, c), lambda i: (0, 0)),    # w2 (1x1, bf16)
                  pl.BlockSpec((m, c), lambda i: (0, 0)),    # residual (f32)
                  pl.BlockSpec((6, c), lambda i: (0, 0))],   # packed epilogue params
        out_specs=pl.BlockSpec((m, c), lambda i: (0, 0)),
        compiler_params=pltpu.CompilerParams(vmem_limit_bytes=_VMEM_LIMIT),
    )(cols, w1.astype(jnp.bfloat16), w2.astype(jnp.bfloat16), x2, params)
    return out.reshape(n, hh, ww, c)


def conv_transpose_bn_relu(x, w, b, gamma, beta):
    """ConvTranspose2d(4,2,1) via sub-pixel GEMM with fused BatchNorm(batch stats)+ReLU."""
    cout = w.shape[1]
    n, hi, wi, _ = x.shape
    cols, _ = _im2col(x, 3, 3, stride=1, pad=1)           # (n*hi*wi, 9*cin) bf16
    wmat = _convt_wmat(w).astype(jnp.bfloat16)            # (9*cin, 4*cout)
    params = _pack_rows([b, gamma, beta], cout)
    m, kk = cols.shape
    out = pl.pallas_call(
        functools.partial(_convt_bn_relu_kernel, c=cout),
        out_shape=jax.ShapeDtypeStruct((m, 4 * cout), jnp.float32),
        grid=(1,),  # full batch in one block (BN stats over all rows x 4 sub-pixels)
        in_specs=[pl.BlockSpec((m, kk), lambda i: (0, 0)),
                  pl.BlockSpec((kk, 4 * cout), lambda i: (0, 0)),
                  pl.BlockSpec((3, cout), lambda i: (0, 0))],
        out_specs=pl.BlockSpec((m, 4 * cout), lambda i: (0, 0)),
        compiler_params=pltpu.CompilerParams(vmem_limit_bytes=_VMEM_LIMIT),
    )(cols, wmat, params)
    # Pure data movement: fuses with the next layer's patch extraction (no extra
    # kernel / HBM round-trip for BN+ReLU anymore).
    return _subpix_interleave(out, n, hi, wi, cout)


def conv_transpose_act(x, w, b, *, act=None):
    """ConvTranspose2d(4,2,1) via sub-pixel GEMM + bias + optional activation."""
    cout = w.shape[1]
    n, hi, wi, _ = x.shape
    cols, _ = _im2col(x, 3, 3, stride=1, pad=1)
    wmat = _convt_wmat(w).astype(jnp.bfloat16)
    bias4 = jnp.tile(b, 4).reshape(1, 4 * cout).astype(jnp.float32)
    m, kk = cols.shape
    split = _num_tensorcores() > 1 and m % 16 == 0        # split only on megacore chips
    tm = m // 2 if split else m
    out = pl.pallas_call(
        functools.partial(_gemm_bias_act_kernel, act=act),
        out_shape=jax.ShapeDtypeStruct((m, 4 * cout), jnp.float32),
        grid=(m // tm,),
        in_specs=[pl.BlockSpec((tm, kk), lambda i: (i, 0)),
                  pl.BlockSpec((kk, 4 * cout), lambda i: (0, 0)),
                  pl.BlockSpec((1, 4 * cout), lambda i: (0, 0))],
        out_specs=pl.BlockSpec((tm, 4 * cout), lambda i: (i, 0)),
        compiler_params=pltpu.CompilerParams(
            dimension_semantics=("parallel",) if split else ("arbitrary",),
            vmem_limit_bytes=_VMEM_LIMIT),
    )(cols, wmat, bias4)
    return _subpix_interleave(out, n, hi, wi, cout)


def nearest_embed(z_nhwc, emb_w):
    """NearestEmbed forward.  emb_w: (d, k) as in the PyTorch module.  f32 throughout."""
    n, h, w, d = z_nhwc.shape
    z2d = z_nhwc.reshape(-1, d).astype(jnp.float32)
    code = emb_w.T.astype(jnp.float32)                    # (k, d)
    k = code.shape[0]
    e2 = jnp.sum(code * code, axis=1).reshape(1, k)       # codebook norms, once
    m = z2d.shape[0]
    split = _num_tensorcores() > 1 and m % 16 == 0
    tm = m // 2 if split else m
    zq, am = pl.pallas_call(
        _vq_kernel,
        out_shape=(jax.ShapeDtypeStruct((m, d), jnp.float32),
                   jax.ShapeDtypeStruct((m, 1), jnp.int32)),
        grid=(m // tm,),
        in_specs=[pl.BlockSpec((tm, d), lambda i: (i, 0)),
                  pl.BlockSpec((k, d), lambda i: (0, 0)),
                  pl.BlockSpec((1, k), lambda i: (0, 0))],
        out_specs=(pl.BlockSpec((tm, d), lambda i: (i, 0)),
                   pl.BlockSpec((tm, 1), lambda i: (i, 0))),
        compiler_params=pltpu.CompilerParams(
            dimension_semantics=("parallel",) if split else ("arbitrary",),
            vmem_limit_bytes=_VMEM_LIMIT),
    )(z2d, code, e2)
    return zq.reshape(n, h, w, d), am[:, 0].reshape(n, h, w)


# ----------------------------------------------------------------------------
# full VQ_CVAE forward
# ----------------------------------------------------------------------------
def vq_cvae_forward(p, x_nchw):
    x = jnp.transpose(x_nchw, (0, 2, 3, 1)).astype(jnp.float32)    # NCHW -> NHWC

    # ---- encoder ----
    h = conv_bn_relu(x, p["enc_c1_w"], p["enc_c1_b"],
                     p["enc_bn1_g"], p["enc_bn1_b"], stride=2, pad=1)
    h = conv_bn_relu(h, p["enc_c2_w"], p["enc_c2_b"],
                     p["enc_bn2_g"], p["enc_bn2_b"], stride=2, pad=1)
    h = resblock_fused(h, p["enc_res1"], internal_bn=True,
                       post_g=p["enc_bn3_g"], post_b=p["enc_bn3_b"])
    z_e = resblock_fused(h, p["enc_res2"], internal_bn=True,
                         post_g=p["enc_bn4_g"], post_b=p["enc_bn4_b"])   # gamma = 1/40

    # ---- vector quantization ----
    z_q, argmin = nearest_embed(z_e, p["emb_w"])
    emb = z_q   # emb(z_e.detach()) is numerically identical in the forward pass

    # ---- decoder ----
    h = resblock_fused(z_q, p["dec_res1"], internal_bn=False,
                       post_g=p["dec_bn1_g"], post_b=p["dec_bn1_b"])
    h = resblock_fused(h, p["dec_res2"], internal_bn=False)
    h = conv_transpose_bn_relu(h, p["dec_ct1_w"], p["dec_ct1_b"],
                               p["dec_bn2_g"], p["dec_bn2_b"])
    recon = conv_transpose_act(h, p["dec_ct2_w"], p["dec_ct2_b"], act="tanh")

    to_nchw = lambda t: jnp.transpose(t, (0, 3, 1, 2))
    return to_nchw(recon), to_nchw(z_e), to_nchw(emb), argmin


# ----------------------------------------------------------------------------
# f32 references used only for the ConvTranspose sub-pixel mapping unit test
# ----------------------------------------------------------------------------
def _convt_ref_nhwc(x, w, b):
    """PyTorch ConvTranspose2d(k=4, s=2, p=1) as a dilated direct conv (f32)."""
    cin, cout, kh, kw = w.shape
    w_flip = jnp.transpose(w[:, :, ::-1, ::-1], (2, 3, 0, 1))       # (kh, kw, Cin, Cout)
    y = lax.conv_general_dilated(
        x, w_flip, window_strides=(1, 1),
        padding=((kh - 2, kh - 2), (kw - 2, kw - 2)),
        lhs_dilation=(2, 2),
        dimension_numbers=("NHWC", "HWIO", "NHWC"),
        precision=lax.Precision.HIGHEST)
    return y + b.reshape(1, 1, 1, cout)


def _convt_subpix_ref_nhwc(x, w, b):
    """Same op via the sub-pixel GEMM decomposition (pure f32 JAX, no Pallas)."""
    cout = w.shape[1]
    cols, (n, hi, wi) = _im2col(x, 3, 3, stride=1, pad=1, dtype=jnp.float32)
    out = jnp.dot(cols, _convt_wmat(w).astype(jnp.float32),
                  precision=lax.Precision.HIGHEST) + jnp.tile(b, 4)[None, :]
    return _subpix_interleave(out, n, hi, wi, cout)


# ----------------------------------------------------------------------------
# Deterministic parameter init (shapes follow the PyTorch __init__)
# ----------------------------------------------------------------------------
def init_params(key, d=16, k=10, nc=3):
    keys = iter(jax.random.split(key, 64))
    nrm = lambda s: jax.random.normal(next(keys), s, jnp.float32) * 0.02
    zeros = lambda s: jnp.zeros(s, jnp.float32)
    ones = lambda s: jnp.ones(s, jnp.float32)

    def res(bn):
        rp = dict(w1=nrm((d, d, 3, 3)), b1=zeros((d,)),
                  w2=nrm((d, d, 1, 1)), b2=zeros((d,)))
        if bn:
            rp.update(bn_g=ones((d,)), bn_b=zeros((d,)))
        return rp

    return dict(
        enc_c1_w=nrm((d, nc, 4, 4)), enc_c1_b=zeros((d,)),
        enc_bn1_g=ones((d,)), enc_bn1_b=zeros((d,)),
        enc_c2_w=nrm((d, d, 4, 4)), enc_c2_b=zeros((d,)),
        enc_bn2_g=ones((d,)), enc_bn2_b=zeros((d,)),
        enc_res1=res(True),
        enc_bn3_g=ones((d,)), enc_bn3_b=zeros((d,)),
        enc_res2=res(True),
        enc_bn4_g=jnp.full((d,), 1.0 / 40.0, jnp.float32),   # encoder[-1].weight = 1/40
        enc_bn4_b=zeros((d,)),
        emb_w=nrm((d, k)),                                    # NearestEmbed weight (d, k)
        dec_res1=res(False),
        dec_bn1_g=ones((d,)), dec_bn1_b=zeros((d,)),
        dec_res2=res(False),
        dec_ct1_w=nrm((d, d, 4, 4)), dec_ct1_b=zeros((d,)),   # ConvTranspose2d (Cin,Cout,kh,kw)
        dec_bn2_g=ones((d,)), dec_bn2_b=zeros((d,)),
        dec_ct2_w=nrm((d, nc, 4, 4)), dec_ct2_b=zeros((nc,)),
    )


# ----------------------------------------------------------------------------
if __name__ == "__main__":
    d, k, nc = 16, 10, 3
    key = jax.random.PRNGKey(0)
    pkey, xkey, k1, k2, k3 = jax.random.split(key, 5)

    # unit test: sub-pixel ConvTranspose weight mapping vs a dilated-conv reference (f32)
    wt = jax.random.normal(k1, (5, 7, 4, 4), jnp.float32) * 0.1
    bt = jax.random.normal(k2, (7,), jnp.float32) * 0.1
    xt = jax.random.normal(k3, (2, 5, 5, 5), jnp.float32)
    ref = _convt_ref_nhwc(xt, wt, bt)
    sub = _convt_subpix_ref_nhwc(xt, wt, bt)
    assert ref.shape == sub.shape == (2, 10, 10, 7)
    assert bool(jnp.allclose(ref, sub, atol=1e-4, rtol=1e-4))

    params = init_params(pkey, d=d, k=k, nc=nc)
    x = jax.random.normal(xkey, (2, nc, 32, 32), jnp.float32)   # NCHW like PyTorch

    fwd = jax.jit(vq_cvae_forward)
    recon, z_e, emb, argmin = fwd(params, x)
    for t in (recon, z_e, emb, argmin):
        jax.block_until_ready(t)

    assert recon.shape == (2, nc, 32, 32)
    assert z_e.shape == (2, d, 8, 8)
    assert emb.shape == (2, d, 8, 8)
    assert argmin.shape == (2, 8, 8)
    assert bool(jnp.all(jnp.isfinite(recon)))
    assert bool(jnp.all(jnp.isfinite(z_e)))
    assert bool(jnp.all((argmin >= 0) & (argmin < k)))
    print("KERNEL_OK")
</pallas_src>

<mosaic_0001>
module attributes {stable_mosaic.version = 11 : i64} {
  func.func @_conv_bn_relu_kernel(%arg0: i32, %arg1: memref<512x48xbf16, #tpu.memory_space<vmem>>, %arg2: memref<48x16xbf16, #tpu.memory_space<vmem>>, %arg3: memref<3x16xf32, #tpu.memory_space<vmem>>, %arg4: memref<512x16xf32, #tpu.memory_space<vmem>>) attributes {dimension_semantics = [#tpu.dimension_semantics<arbitrary>], iteration_bounds = array<i64: 1>, scalar_prefetch = 0 : i64, scratch_operands = 0 : i64, tpu.core_type = #tpu.core_type<tc>, window_params = [{pipeline_mode = #tpu.pipeline_mode<synchronous>, transform_indices = @transform_0, window_bounds = array<i64: 512, 48>}, {pipeline_mode = #tpu.pipeline_mode<synchronous>, transform_indices = @transform_1, window_bounds = array<i64: 48, 16>}, {pipeline_mode = #tpu.pipeline_mode<synchronous>, transform_indices = @transform_2, window_bounds = array<i64: 3, 16>}, {pipeline_mode = #tpu.pipeline_mode<synchronous>, transform_indices = @transform_3, window_bounds = array<i64: 512, 16>}]} {
    %c0 = arith.constant 0 : index
    %c0_0 = arith.constant 0 : index
    %0 = vector.load %arg3[%c0, %c0_0] : memref<3x16xf32, #tpu.memory_space<vmem>>, vector<3x16xf32>
    %c0_1 = arith.constant 0 : index
    %c0_2 = arith.constant 0 : index
    %1 = vector.load %arg1[%c0_1, %c0_2] : memref<512x48xbf16, #tpu.memory_space<vmem>>, vector<512x48xbf16>
    %c0_3 = arith.constant 0 : index
    %c0_4 = arith.constant 0 : index
    %2 = vector.load %arg2[%c0_3, %c0_4] : memref<48x16xbf16, #tpu.memory_space<vmem>>, vector<48x16xbf16>
    %cst = arith.constant dense<0.000000e+00> : vector<512x16xf32>
    %3 = tpu.matmul %1, %2, %cst {dimension_numbers = #tpu.dot_dimension_numbers<[1], [0], [0], [1], [0, 0, 1, 1], [], []>} : vector<512x48xbf16>, vector<48x16xbf16>, vector<512x16xf32> -> vector<512x16xf32>
    %4 = vector.extract_strided_slice %0 {offsets = [0, 0], sizes = [1, 16], strides = [1, 1]} : vector<3x16xf32> to vector<1x16xf32>
    %5 = vector.broadcast %4 : vector<1x16xf32> to vector<512x16xf32>
    %6 = arith.addf %3, %5 : vector<512x16xf32>
    %7 = vector.extract_strided_slice %0 {offsets = [1, 0], sizes = [1, 16], strides = [1, 1]} : vector<3x16xf32> to vector<1x16xf32>
    %8 = vector.extract_strided_slice %0 {offsets = [2, 0], sizes = [1, 16], strides = [1, 1]} : vector<3x16xf32> to vector<1x16xf32>
    %cst_5 = arith.constant dense<0.000000e+00> : vector<16xf32>
    %9 = vector.multi_reduction <add>, %6, %cst_5 [0] : vector<512x16xf32> to vector<16xf32>
    %10 = vector.shape_cast %9 : vector<16xf32> to vector<1x16xf32>
    %cst_6 = arith.constant 5.120000e+02 : f32
    %11 = vector.broadcast %cst_6 : f32 to vector<1x16xf32>
    %12 = arith.divf %10, %11 : vector<1x16xf32>
    %13 = vector.broadcast %12 : vector<1x16xf32> to vector<512x16xf32>
    %14 = arith.subf %6, %13 : vector<512x16xf32>
    %15 = arith.mulf %14, %14 : vector<512x16xf32>
    %cst_7 = arith.constant dense<0.000000e+00> : vector<16xf32>
    %16 = vector.multi_reduction <add>, %15, %cst_7 [0] : vector<512x16xf32> to vector<16xf32>
    %17 = vector.shape_cast %16 : vector<16xf32> to vector<1x16xf32>
    %cst_8 = arith.constant 5.120000e+02 : f32
    %18 = vector.broadcast %cst_8 : f32 to vector<1x16xf32>
    %19 = arith.divf %17, %18 : vector<1x16xf32>
    %cst_9 = arith.constant 9.99999974E-6 : f32
    %20 = vector.broadcast %cst_9 : f32 to vector<1x16xf32>
    %21 = arith.addf %19, %20 : vector<1x16xf32>
    %22 = math.rsqrt %21 : vector<1x16xf32>
    %23 = arith.mulf %7, %22 : vector<1x16xf32>
    %24 = vector.broadcast %12 : vector<1x16xf32> to vector<512x16xf32>
    %25 = arith.subf %6, %24 : vector<512x16xf32>
    %26 = vector.broadcast %23 : vector<1x16xf32> to vector<512x16xf32>
    %27 = arith.mulf %25, %26 : vector<512x16xf32>
    %28 = vector.broadcast %8 : vector<1x16xf32> to vector<512x16xf32>
    %29 = arith.addf %27, %28 : vector<512x16xf32>
    %cst_10 = arith.constant 0.000000e+00 : f32
    %30 = vector.broadcast %cst_10 : f32 to vector<512x16xf32>
    %31 = arith.maximumf %29, %30 : vector<512x16xf32>
    %c0_11 = arith.constant 0 : index
    %c0_12 = arith.constant 0 : index
    %32 = vector.load %arg4[%c0_11, %c0_12] : memref<512x16xf32, #tpu.memory_space<vmem>>, vector<512x16xf32>
    tpu.vector_store %arg4[%c0_11, %c0_12], %31 {strides = array<i32>} : memref<512x16xf32, #tpu.memory_space<vmem>>, vector<512x16xf32>,
    return
  }
  func.func @transform_0(%arg0: i32) -> (i32, i32) {
    %c0_i32 = arith.constant 0 : i32
    %c0_i32_0 = arith.constant 0 : i32
    %c0_i32_1 = arith.constant 0 : i32
    return %c0_i32, %c0_i32_0 : i32, i32
  }
  func.func @transform_1(%arg0: i32) -> (i32, i32) {
    %c0_i32 = arith.constant 0 : i32
    %c0_i32_0 = arith.constant 0 : i32
    %c0_i32_1 = arith.constant 0 : i32
    return %c0_i32, %c0_i32_0 : i32, i32
  }
  func.func @transform_2(%arg0: i32) -> (i32, i32) {
    %c0_i32 = arith.constant 0 : i32
    %c0_i32_0 = arith.constant 0 : i32
    %c0_i32_1 = arith.constant 0 : i32
    return %c0_i32, %c0_i32_0 : i32, i32
  }
  func.func @transform_3(%arg0: i32) -> (i32, i32) {
    %c0_i32 = arith.constant 0 : i32
    %c0_i32_0 = arith.constant 0 : i32
    %c0_i32_1 = arith.constant 0 : i32
    return %c0_i32, %c0_i32_0 : i32, i32
  }
}

module attributes {stable_mosaic.version = 11 : i64} {
  func.func @_conv_bn_relu_kernel(%arg0: i32, %arg1: memref<128x256xbf16, #tpu.memory_space<vmem>>, %arg2: memref<256x16xbf16, #tpu.memory_space<vmem>>, %arg3: memref<3x16xf32, #tpu.memory_space<vmem>>, %arg4: memref<128x16xf32, #tpu.memory_space<vmem>>) attributes {dimension_semantics = [#tpu.dimension_semantics<arbitrary>], iteration_bounds = array<i64: 1>, scalar_prefetch = 0 : i64, scratch_operands = 0 : i64, tpu.core_type = #tpu.core_type<tc>, window_params = [{pipeline_mode = #tpu.pipeline_mode<synchronous>, transform_indices = @transform_0, window_bounds = array<i64: 128, 256>}, {pipeline_mode = #tpu.pipeline_mode<synchronous>, transform_indices = @transform_1, window_bounds = array<i64: 256, 16>}, {pipeline_mode = #tpu.pipeline_mode<synchronous>, transform_indices = @transform_2, window_bounds = array<i64: 3, 16>}, {pipeline_mode = #tpu.pipeline_mode<synchronous>, transform_indices = @transform_3, window_bounds = array<i64: 128, 16>}]} {
    %c0 = arith.constant 0 : index
    %c0_0 = arith.constant 0 : index
    %0 = vector.load %arg3[%c0, %c0_0] : memref<3x16xf32, #tpu.memory_space<vmem>>, vector<3x16xf32>
    %c0_1 = arith.constant 0 : index
    %c0_2 = arith.constant 0 : index
    %1 = vector.load %arg1[%c0_1, %c0_2] : memref<128x256xbf16, #tpu.memory_space<vmem>>, vector<128x256xbf16>
    %c0_3 = arith.constant 0 : index
    %c0_4 = arith.constant 0 : index
    %2 = vector.load %arg2[%c0_3, %c0_4] : memref<256x16xbf16, #tpu.memory_space<vmem>>, vector<256x16xbf16>
    %cst = arith.constant dense<0.000000e+00> : vector<128x16xf32>
    %3 = tpu.matmul %1, %2, %cst {dimension_numbers = #tpu.dot_dimension_numbers<[1], [0], [0], [1], [0, 0, 1, 1], [], []>} : vector<128x256xbf16>, vector<256x16xbf16>, vector<128x16xf32> -> vector<128x16xf32>
    %4 = vector.extract_strided_slice %0 {offsets = [0, 0], sizes = [1, 16], strides = [1, 1]} : vector<3x16xf32> to vector<1x16xf32>
    %5 = vector.broadcast %4 : vector<1x16xf32> to vector<128x16xf32>
    %6 = arith.addf %3, %5 : vector<128x16xf32>
    %7 = vector.extract_strided_slice %0 {offsets = [1, 0], sizes = [1, 16], strides = [1, 1]} : vector<3x16xf32> to vector<1x16xf32>
    %8 = vector.extract_strided_slice %0 {offsets = [2, 0], sizes = [1, 16], strides = [1, 1]} : vector<3x16xf32> to vector<1x16xf32>
    %cst_5 = arith.constant dense<0.000000e+00> : vector<16xf32>
    %9 = vector.multi_reduction <add>, %6, %cst_5 [0] : vector<128x16xf32> to vector<16xf32>
    %10 = vector.shape_cast %9 : vector<16xf32> to vector<1x16xf32>
    %cst_6 = arith.constant 1.280000e+02 : f32
    %11 = vector.broadcast %cst_6 : f32 to vector<1x16xf32>
    %12 = arith.divf %10, %11 : vector<1x16xf32>
    %13 = vector.broadcast %12 : vector<1x16xf32> to vector<128x16xf32>
    %14 = arith.subf %6, %13 : vector<128x16xf32>
    %15 = arith.mulf %14, %14 : vector<128x16xf32>
    %cst_7 = arith.constant dense<0.000000e+00> : vector<16xf32>
    %16 = vector.multi_reduction <add>, %15, %cst_7 [0] : vector<128x16xf32> to vector<16xf32>
    %17 = vector.shape_cast %16 : vector<16xf32> to vector<1x16xf32>
    %cst_8 = arith.constant 1.280000e+02 : f32
    %18 = vector.broadcast %cst_8 : f32 to vector<1x16xf32>
    %19 = arith.divf %17, %18 : vector<1x16xf32>
    %cst_9 = arith.constant 9.99999974E-6 : f32
    %20 = vector.broadcast %cst_9 : f32 to vector<1x16xf32>
    %21 = arith.addf %19, %20 : vector<1x16xf32>
    %22 = math.rsqrt %21 : vector<1x16xf32>
    %23 = arith.mulf %7, %22 : vector<1x16xf32>
    %24 = vector.broadcast %12 : vector<1x16xf32> to vector<128x16xf32>
    %25 = arith.subf %6, %24 : vector<128x16xf32>
    %26 = vector.broadcast %23 : vector<1x16xf32> to vector<128x16xf32>
    %27 = arith.mulf %25, %26 : vector<128x16xf32>
    %28 = vector.broadcast %8 : vector<1x16xf32> to vector<128x16xf32>
    %29 = arith.addf %27, %28 : vector<128x16xf32>
    %cst_10 = arith.constant 0.000000e+00 : f32
    %30 = vector.broadcast %cst_10 : f32 to vector<128x16xf32>
    %31 = arith.maximumf %29, %30 : vector<128x16xf32>
    %c0_11 = arith.constant 0 : index
    %c0_12 = arith.constant 0 : index
    %32 = vector.load %arg4[%c0_11, %c0_12] : memref<128x16xf32, #tpu.memory_space<vmem>>, vector<128x16xf32>
    tpu.vector_store %arg4[%c0_11, %c0_12], %31 {strides = array<i32>} : memref<128x16xf32, #tpu.memory_space<vmem>>, vector<128x16xf32>,
    return
  }
  func.func @transform_0(%arg0: i32) -> (i32, i32) {
    %c0_i32 = arith.constant 0 : i32
    %c0_i32_0 = arith.constant 0 : i32
    %c0_i32_1 = arith.constant 0 : i32
    return %c0_i32, %c0_i32_0 : i32, i32
  }
  func.func @transform_1(%arg0: i32) -> (i32, i32) {
    %c0_i32 = arith.constant 0 : i32
    %c0_i32_0 = arith.constant 0 : i32
    %c0_i32_1 = arith.constant 0 : i32
    return %c0_i32, %c0_i32_0 : i32, i32
  }
  func.func @transform_2(%arg0: i32) -> (i32, i32) {
    %c0_i32 = arith.constant 0 : i32
    %c0_i32_0 = arith.constant 0 : i32
    %c0_i32_1 = arith.constant 0 : i32
    return %c0_i32, %c0_i32_0 : i32, i32
  }
  func.func @transform_3(%arg0: i32) -> (i32, i32) {
    %c0_i32 = arith.constant 0 : i32
    %c0_i32_0 = arith.constant 0 : i32
    %c0_i32_1 = arith.constant 0 : i32
    return %c0_i32, %c0_i32_0 : i32, i32
  }
}

module attributes {stable_mosaic.version = 11 : i64} {
  func.func @_resblock_kernel(%arg0: i32, %arg1: memref<128x144xbf16, #tpu.memory_space<vmem>>, %arg2: memref<144x16xbf16, #tpu.memory_space<vmem>>, %arg3: memref<16x16xbf16, #tpu.memory_space<vmem>>, %arg4: memref<128x16xf32, #tpu.memory_space<vmem>>, %arg5: memref<6x16xf32, #tpu.memory_space<vmem>>, %arg6: memref<128x16xf32, #tpu.memory_space<vmem>>) attributes {dimension_semantics = [#tpu.dimension_semantics<arbitrary>], iteration_bounds = array<i64: 1>, scalar_prefetch = 0 : i64, scratch_operands = 0 : i64, tpu.core_type = #tpu.core_type<tc>, window_params = [{pipeline_mode = #tpu.pipeline_mode<synchronous>, transform_indices = @transform_0, window_bounds = array<i64: 128, 144>}, {pipeline_mode = #tpu.pipeline_mode<synchronous>, transform_indices = @transform_1, window_bounds = array<i64: 144, 16>}, {pipeline_mode = #tpu.pipeline_mode<synchronous>, transform_indices = @transform_2, window_bounds = array<i64: 16, 16>}, {pipeline_mode = #tpu.pipeline_mode<synchronous>, transform_indices = @transform_3, window_bounds = array<i64: 128, 16>}, {pipeline_mode = #tpu.pipeline_mode<synchronous>, transform_indices = @transform_4, window_bounds = array<i64: 6, 16>}, {pipeline_mode = #tpu.pipeline_mode<synchronous>, transform_indices = @transform_5, window_bounds = array<i64: 128, 16>}]} {
    %c0 = arith.constant 0 : index
    %c0_0 = arith.constant 0 : index
    %0 = vector.load %arg5[%c0, %c0_0] : memref<6x16xf32, #tpu.memory_space<vmem>>, vector<6x16xf32>
    %c0_1 = arith.constant 0 : index
    %c0_2 = arith.constant 0 : index
    %1 = vector.load %arg1[%c0_1, %c0_2] : memref<128x144xbf16, #tpu.memory_space<vmem>>, vector<128x144xbf16>
    %cst = arith.constant 0.000000e+00 : bf16
    %2 = vector.broadcast %cst : bf16 to vector<128x144xbf16>
    %3 = arith.maximumf %1, %2 : vector<128x144xbf16>
    %c0_3 = arith.constant 0 : index
    %c0_4 = arith.constant 0 : index
    %4 = vector.load %arg2[%c0_3, %c0_4] : memref<144x16xbf16, #tpu.memory_space<vmem>>, vector<144x16xbf16>
    %cst_5 = arith.constant dense<0.000000e+00> : vector<128x16xf32>
    %5 = tpu.matmul %3, %4, %cst_5 {dimension_numbers = #tpu.dot_dimension_numbers<[1], [0], [0], [1], [0, 0, 1, 1], [], []>} : vector<128x144xbf16>, vector<144x16xbf16>, vector<128x16xf32> -> vector<128x16xf32>
    %6 = vector.extract_strided_slice %0 {offsets = [0, 0], sizes = [1, 16], strides = [1, 1]} : vector<6x16xf32> to vector<1x16xf32>
    %7 = vector.broadcast %6 : vector<1x16xf32> to vector<128x16xf32>
    %8 = arith.addf %5, %7 : vector<128x16xf32>
    %9 = vector.extract_strided_slice %0 {offsets = [1, 0], sizes = [1, 16], strides = [1, 1]} : vector<6x16xf32> to vector<1x16xf32>
    %10 = vector.extract_strided_slice %0 {offsets = [2, 0], sizes = [1, 16], strides = [1, 1]} : vector<6x16xf32> to vector<1x16xf32>
    %cst_6 = arith.constant dense<0.000000e+00> : vector<16xf32>
    %11 = vector.multi_reduction <add>, %8, %cst_6 [0] : vector<128x16xf32> to vector<16xf32>
    %12 = vector.shape_cast %11 : vector<16xf32> to vector<1x16xf32>
    %cst_7 = arith.constant 1.280000e+02 : f32
    %13 = vector.broadcast %cst_7 : f32 to vector<1x16xf32>
    %14 = arith.divf %12, %13 : vector<1x16xf32>
    %15 = vector.broadcast %14 : vector<1x16xf32> to vector<128x16xf32>
    %16 = arith.subf %8, %15 : vector<128x16xf32>
    %17 = arith.mulf %16, %16 : vector<128x16xf32>
    %cst_8 = arith.constant dense<0.000000e+00> : vector<16xf32>
    %18 = vector.multi_reduction <add>, %17, %cst_8 [0] : vector<128x16xf32> to vector<16xf32>
    %19 = vector.shape_cast %18 : vector<16xf32> to vector<1x16xf32>
    %cst_9 = arith.constant 1.280000e+02 : f32
    %20 = vector.broadcast %cst_9 : f32 to vector<1x16xf32>
    %21 = arith.divf %19, %20 : vector<1x16xf32>
    %cst_10 = arith.constant 9.99999974E-6 : f32
    %22 = vector.broadcast %cst_10 : f32 to vector<1x16xf32>
    %23 = arith.addf %21, %22 : vector<1x16xf32>
    %24 = math.rsqrt %23 : vector<1x16xf32>
    %25 = arith.mulf %9, %24 : vector<1x16xf32>
    %26 = vector.broadcast %14 : vector<1x16xf32> to vector<128x16xf32>
    %27 = arith.subf %8, %26 : vector<128x16xf32>
    %28 = vector.broadcast %25 : vector<1x16xf32> to vector<128x16xf32>
    %29 = arith.mulf %27, %28 : vector<128x16xf32>
    %30 = vector.broadcast %10 : vector<1x16xf32> to vector<128x16xf32>
    %31 = arith.addf %29, %30 : vector<128x16xf32>
    %cst_11 = arith.constant 0.000000e+00 : f32
    %32 = vector.broadcast %cst_11 : f32 to vector<128x16xf32>
    %33 = arith.maximumf %31, %32 : vector<128x16xf32>
    %34 = arith.truncf %33 : vector<128x16xf32> to vector<128x16xbf16>
    %c0_12 = arith.constant 0 : index
    %c0_13 = arith.constant 0 : index
    %35 = vector.load %arg3[%c0_12, %c0_13] : memref<16x16xbf16, #tpu.memory_space<vmem>>, vector<16x16xbf16>
    %cst_14 = arith.constant dense<0.000000e+00> : vector<128x16xf32>
    %36 = tpu.matmul %34, %35, %cst_14 {dimension_numbers = #tpu.dot_dimension_numbers<[1], [0], [0], [1], [0, 0, 1, 1], [], []>} : vector<128x16xbf16>, vector<16x16xbf16>, vector<128x16xf32> -> vector<128x16xf32>
    %37 = vector.extract_strided_slice %0 {offsets = [3, 0], sizes = [1, 16], strides = [1, 1]} : vector<6x16xf32> to vector<1x16xf32>
    %38 = vector.broadcast %37 : vector<1x16xf32> to vector<128x16xf32>
    %39 = arith.addf %36, %38 : vector<128x16xf32>
    %c0_15 = arith.constant 0 : index
    %c0_16 = arith.constant 0 : index
    %40 = vector.load %arg4[%c0_15, %c0_16] : memref<128x16xf32, #tpu.memory_space<vmem>>, vector<128x16xf32>
    %41 = arith.addf %40, %39 : vector<128x16xf32>
    %42 = vector.extract_strided_slice %0 {offsets = [4, 0], sizes = [1, 16], strides = [1, 1]} : vector<6x16xf32> to vector<1x16xf32>
    %43 = vector.extract_strided_slice %0 {offsets = [5, 0], sizes = [1, 16], strides = [1, 1]} : vector<6x16xf32> to vector<1x16xf32>
    %cst_17 = arith.constant dense<0.000000e+00> : vector<16xf32>
    %44 = vector.multi_reduction <add>, %41, %cst_17 [0] : vector<128x16xf32> to vector<16xf32>
    %45 = vector.shape_cast %44 : vector<16xf32> to vector<1x16xf32>
    %cst_18 = arith.constant 1.280000e+02 : f32
    %46 = vector.broadcast %cst_18 : f32 to vector<1x16xf32>
    %47 = arith.divf %45, %46 : vector<1x16xf32>
    %48 = vector.broadcast %47 : vector<1x16xf32> to vector<128x16xf32>
    %49 = arith.subf %41, %48 : vector<128x16xf32>
    %50 = arith.mulf %49, %49 : vector<128x16xf32>
    %cst_19 = arith.constant dense<0.000000e+00> : vector<16xf32>
    %51 = vector.multi_reduction <add>, %50, %cst_19 [0] : vector<128x16xf32> to vector<16xf32>
    %52 = vector.shape_cast %51 : vector<16xf32> to vector<1x16xf32>
    %cst_20 = arith.constant 1.280000e+02 : f32
    %53 = vector.broadcast %cst_20 : f32 to vector<1x16xf32>
    %54 = arith.divf %52, %53 : vector<1x16xf32>
    %cst_21 = arith.constant 9.99999974E-6 : f32
    %55 = vector.broadcast %cst_21 : f32 to vector<1x16xf32>
    %56 = arith.addf %54, %55 : vector<1x16xf32>
    %57 = math.rsqrt %56 : vector<1x16xf32>
    %58 = arith.mulf %42, %57 : vector<1x16xf32>
    %59 = vector.broadcast %47 : vector<1x16xf32> to vector<128x16xf32>
    %60 = arith.subf %41, %59 : vector<128x16xf32>
    %61 = vector.broadcast %58 : vector<1x16xf32> to vector<128x16xf32>
    %62 = arith.mulf %60, %61 : vector<128x16xf32>
    %63 = vector.broadcast %43 : vector<1x16xf32> to vector<128x16xf32>
    %64 = arith.addf %62, %63 : vector<128x16xf32>
    %c0_22 = arith.constant 0 : index
    %c0_23 = arith.constant 0 : index
    %65 = vector.load %arg6[%c0_22, %c0_23] : memref<128x16xf32, #tpu.memory_space<vmem>>, vector<128x16xf32>
    tpu.vector_store %arg6[%c0_22, %c0_23], %64 {strides = array<i32>} : memref<128x16xf32, #tpu.memory_space<vmem>>, vector<128x16xf32>,
    return
  }
  func.func @transform_0(%arg0: i32) -> (i32, i32) {
    %c0_i32 = arith.constant 0 : i32
    %c0_i32_0 = arith.constant 0 : i32
    %c0_i32_1 = arith.constant 0 : i32
    return %c0_i32, %c0_i32_0 : i32, i32
  }
  func.func @transform_1(%arg0: i32) -> (i32, i32) {
    %c0_i32 = arith.constant 0 : i32
    %c0_i32_0 = arith.constant 0 : i32
    %c0_i32_1 = arith.constant 0 : i32
    return %c0_i32, %c0_i32_0 : i32, i32
  }
  func.func @transform_2(%arg0: i32) -> (i32, i32) {
    %c0_i32 = arith.constant 0 : i32
    %c0_i32_0 = arith.constant 0 : i32
    %c0_i32_1 = arith.constant 0 : i32
    return %c0_i32, %c0_i32_0 : i32, i32
  }
  func.func @transform_3(%arg0: i32) -> (i32, i32) {
    %c0_i32 = arith.constant 0 : i32
    %c0_i32_0 = arith.constant 0 : i32
    %c0_i32_1 = arith.constant 0 : i32
    return %c0_i32, %c0_i32_0 : i32, i32
  }
  func.func @transform_4(%arg0: i32) -> (i32, i32) {
    %c0_i32 = arith.constant 0 : i32
    %c0_i32_0 = arith.constant 0 : i32
    %c0_i32_1 = arith.constant 0 : i32
    return %c0_i32, %c0_i32_0 : i32, i32
  }
  func.func @transform_5(%arg0: i32) -> (i32, i32) {
    %c0_i32 = arith.constant 0 : i32
    %c0_i32_0 = arith.constant 0 : i32
    %c0_i32_1 = arith.constant 0 : i32
    return %c0_i32, %c0_i32_0 : i32, i32
  }
}

module attributes {stable_mosaic.version = 11 : i64} {
  func.func @_vq_kernel(%arg0: i32, %arg1: memref<128x16xf32, #tpu.memory_space<vmem>>, %arg2: memref<10x16xf32, #tpu.memory_space<vmem>>, %arg3: memref<1x10xf32, #tpu.memory_space<vmem>>, %arg4: memref<128x16xf32, #tpu.memory_space<vmem>>, %arg5: memref<128x1xi32, #tpu.memory_space<vmem>>) attributes {dimension_semantics = [#tpu.dimension_semantics<arbitrary>], iteration_bounds = array<i64: 1>, scalar_prefetch = 0 : i64, scratch_operands = 0 : i64, tpu.core_type = #tpu.core_type<tc>, window_params = [{transform_indices = @transform_0, window_bounds = array<i64: 128, 16>}, {pipeline_mode = #tpu.pipeline_mode<synchronous>, transform_indices = @transform_1, window_bounds = array<i64: 10, 16>}, {pipeline_mode = #tpu.pipeline_mode<synchronous>, transform_indices = @transform_2, window_bounds = array<i64: 1, 10>}, {transform_indices = @transform_3, window_bounds = array<i64: 128, 16>}, {transform_indices = @transform_4, window_bounds = array<i64: 128, 1>}]} {
    %c0 = arith.constant 0 : index
    %c0_0 = arith.constant 0 : index
    %0 = vector.load %arg1[%c0, %c0_0] : memref<128x16xf32, #tpu.memory_space<vmem>>, vector<128x16xf32>
    %c0_1 = arith.constant 0 : index
    %c0_2 = arith.constant 0 : index
    %1 = vector.load %arg2[%c0_1, %c0_2] : memref<10x16xf32, #tpu.memory_space<vmem>>, vector<10x16xf32>
    %cst = arith.constant dense<0.000000e+00> : vector<128x10xf32>
    %2 = tpu.matmul %0, %1, %cst {dimension_numbers = #tpu.dot_dimension_numbers<[1], [1], [0], [0], [0, 0, 1, 0], [], []>} : vector<128x16xf32>, vector<10x16xf32>, vector<128x10xf32> -> vector<128x10xf32>
    %c0_3 = arith.constant 0 : index
    %c0_4 = arith.constant 0 : index
    %3 = vector.load %arg3[%c0_3, %c0_4] : memref<1x10xf32, #tpu.memory_space<vmem>>, vector<1x10xf32>
    %cst_5 = arith.constant 2.000000e+00 : f32
    %4 = vector.broadcast %cst_5 : f32 to vector<128x10xf32>
    %5 = arith.mulf %4, %2 : vector<128x10xf32>
    %6 = vector.broadcast %3 : vector<1x10xf32> to vector<128x10xf32>
    %7 = arith.subf %6, %5 : vector<128x10xf32>
    %8 = tpu.iota {dimensions = array<i32: 1>} : vector<128x10xi32>
    %cst_6 = arith.constant dense<0x7F800000> : vector<128xf32>
    %9 = vector.multi_reduction <minimumf>, %7, %cst_6 [1] : vector<128x10xf32> to vector<128xf32>
    %10 = vector.shape_cast %9 : vector<128xf32> to vector<128x1xf32>
    %11 = vector.broadcast %10 : vector<128x1xf32> to vector<128x10xf32>
    %12 = arith.cmpf ole, %7, %11 : vector<128x10xf32>
    %c10_i32 = arith.constant 10 : i32
    %13 = vector.broadcast %c10_i32 : i32 to vector<128x10xi32>
    %14 = arith.select %12, %8, %13 : vector<128x10xi1>, vector<128x10xi32>
    %cst_7 = arith.constant dense<2147483647> : vector<128xi32>
    %15 = vector.multi_reduction <minsi>, %14, %cst_7 [1] : vector<128x10xi32> to vector<128xi32>
    %16 = vector.shape_cast %15 : vector<128xi32> to vector<128x1xi32>
    %17 = vector.broadcast %16 : vector<128x1xi32> to vector<128x10xi32>
    %18 = arith.cmpi eq, %8, %17 : vector<128x10xi32>
    %19 = arith.extui %18 : vector<128x10xi1> to vector<128x10xi32>
    %20 = arith.sitofp %19 : vector<128x10xi32> to vector<128x10xf32>
    %cst_8 = arith.constant dense<0.000000e+00> : vector<128x16xf32>
    %21 = tpu.matmul %20, %1, %cst_8 {dimension_numbers = #tpu.dot_dimension_numbers<[1], [0], [0], [1], [0, 0, 1, 1], [], []>} : vector<128x10xf32>, vector<10x16xf32>, vector<128x16xf32> -> vector<128x16xf32>
    %c0_9 = arith.constant 0 : index
    %c0_10 = arith.constant 0 : index
    %22 = vector.load %arg4[%c0_9, %c0_10] : memref<128x16xf32, #tpu.memory_space<vmem>>, vector<128x16xf32>
    tpu.vector_store %arg4[%c0_9, %c0_10], %21 {strides = array<i32>} : memref<128x16xf32, #tpu.memory_space<vmem>>, vector<128x16xf32>,
    %c0_11 = arith.constant 0 : index
    %c0_12 = arith.constant 0 : index
    %23 = vector.load %arg5[%c0_11, %c0_12] : memref<128x1xi32, #tpu.memory_space<vmem>>, vector<128x1xi32>
    tpu.vector_store %arg5[%c0_11, %c0_12], %16 {strides = array<i32>} : memref<128x1xi32, #tpu.memory_space<vmem>>, vector<128x1xi32>,
    return
  }
  func.func @transform_0(%arg0: i32) -> (i32, i32) {
    %c0_i32 = arith.constant 0 : i32
    %c0_i32_0 = arith.constant 0 : i32
    return %arg0, %c0_i32 : i32, i32
  }
  func.func @transform_1(%arg0: i32) -> (i32, i32) {
    %c0_i32 = arith.constant 0 : i32
    %c0_i32_0 = arith.constant 0 : i32
    %c0_i32_1 = arith.constant 0 : i32
    return %c0_i32, %c0_i32_0 : i32, i32
  }
  func.func @transform_2(%arg0: i32) -> (i32, i32) {
    %c0_i32 = arith.constant 0 : i32
    %c0_i32_0 = arith.constant 0 : i32
    %c0_i32_1 = arith.constant 0 : i32
    return %c0_i32, %c0_i32_0 : i32, i32
  }
  func.func @transform_3(%arg0: i32) -> (i32, i32) {
    %c0_i32 = arith.constant 0 : i32
    %c0_i32_0 = arith.constant 0 : i32
    return %arg0, %c0_i32 : i32, i32
  }
  func.func @transform_4(%arg0: i32) -> (i32, i32) {
    %c0_i32 = arith.constant 0 : i32
    %c0_i32_0 = arith.constant 0 : i32
    return %arg0, %c0_i32 : i32, i32
  }
}

module attributes {stable_mosaic.version = 11 : i64} {
  func.func @_resblock_kernel(%arg0: i32, %arg1: memref<128x144xbf16, #tpu.memory_space<vmem>>, %arg2: memref<144x16xbf16, #tpu.memory_space<vmem>>, %arg3: memref<16x16xbf16, #tpu.memory_space<vmem>>, %arg4: memref<128x16xf32, #tpu.memory_space<vmem>>, %arg5: memref<6x16xf32, #tpu.memory_space<vmem>>, %arg6: memref<128x16xf32, #tpu.memory_space<vmem>>) attributes {dimension_semantics = [#tpu.dimension_semantics<arbitrary>], iteration_bounds = array<i64: 1>, scalar_prefetch = 0 : i64, scratch_operands = 0 : i64, tpu.core_type = #tpu.core_type<tc>, window_params = [{pipeline_mode = #tpu.pipeline_mode<synchronous>, transform_indices = @transform_0, window_bounds = array<i64: 128, 144>}, {pipeline_mode = #tpu.pipeline_mode<synchronous>, transform_indices = @transform_1, window_bounds = array<i64: 144, 16>}, {pipeline_mode = #tpu.pipeline_mode<synchronous>, transform_indices = @transform_2, window_bounds = array<i64: 16, 16>}, {pipeline_mode = #tpu.pipeline_mode<synchronous>, transform_indices = @transform_3, window_bounds = array<i64: 128, 16>}, {pipeline_mode = #tpu.pipeline_mode<synchronous>, transform_indices = @transform_4, window_bounds = array<i64: 6, 16>}, {pipeline_mode = #tpu.pipeline_mode<synchronous>, transform_indices = @transform_5, window_bounds = array<i64: 128, 16>}]} {
    %c0 = arith.constant 0 : index
    %c0_0 = arith.constant 0 : index
    %0 = vector.load %arg5[%c0, %c0_0] : memref<6x16xf32, #tpu.memory_space<vmem>>, vector<6x16xf32>
    %c0_1 = arith.constant 0 : index
    %c0_2 = arith.constant 0 : index
    %1 = vector.load %arg1[%c0_1, %c0_2] : memref<128x144xbf16, #tpu.memory_space<vmem>>, vector<128x144xbf16>
    %cst = arith.constant 0.000000e+00 : bf16
    %2 = vector.broadcast %cst : bf16 to vector<128x144xbf16>
    %3 = arith.maximumf %1, %2 : vector<128x144xbf16>
    %c0_3 = arith.constant 0 : index
    %c0_4 = arith.constant 0 : index
    %4 = vector.load %arg2[%c0_3, %c0_4] : memref<144x16xbf16, #tpu.memory_space<vmem>>, vector<144x16xbf16>
    %cst_5 = arith.constant dense<0.000000e+00> : vector<128x16xf32>
    %5 = tpu.matmul %3, %4, %cst_5 {dimension_numbers = #tpu.dot_dimension_numbers<[1], [0], [0], [1], [0, 0, 1, 1], [], []>} : vector<128x144xbf16>, vector<144x16xbf16>, vector<128x16xf32> -> vector<128x16xf32>
    %6 = vector.extract_strided_slice %0 {offsets = [0, 0], sizes = [1, 16], strides = [1, 1]} : vector<6x16xf32> to vector<1x16xf32>
    %7 = vector.broadcast %6 : vector<1x16xf32> to vector<128x16xf32>
    %8 = arith.addf %5, %7 : vector<128x16xf32>
    %cst_6 = arith.constant 0.000000e+00 : f32
    %9 = vector.broadcast %cst_6 : f32 to vector<128x16xf32>
    %10 = arith.maximumf %8, %9 : vector<128x16xf32>
    %11 = arith.truncf %10 : vector<128x16xf32> to vector<128x16xbf16>
    %c0_7 = arith.constant 0 : index
    %c0_8 = arith.constant 0 : index
    %12 = vector.load %arg3[%c0_7, %c0_8] : memref<16x16xbf16, #tpu.memory_space<vmem>>, vector<16x16xbf16>
    %cst_9 = arith.constant dense<0.000000e+00> : vector<128x16xf32>
    %13 = tpu.matmul %11, %12, %cst_9 {dimension_numbers = #tpu.dot_dimension_numbers<[1], [0], [0], [1], [0, 0, 1, 1], [], []>} : vector<128x16xbf16>, vector<16x16xbf16>, vector<128x16xf32> -> vector<128x16xf32>
    %14 = vector.extract_strided_slice %0 {offsets = [3, 0], sizes = [1, 16], strides = [1, 1]} : vector<6x16xf32> to vector<1x16xf32>
    %15 = vector.broadcast %14 : vector<1x16xf32> to vector<128x16xf32>
    %16 = arith.addf %13, %15 : vector<128x16xf32>
    %c0_10 = arith.constant 0 : index
    %c0_11 = arith.constant 0 : index
    %17 = vector.load %arg4[%c0_10, %c0_11] : memref<128x16xf32, #tpu.memory_space<vmem>>, vector<128x16xf32>
    %18 = arith.addf %17, %16 : vector<128x16xf32>
    %c0_12 = arith.constant 0 : index
    %c0_13 = arith.constant 0 : index
    %19 = vector.load %arg6[%c0_12, %c0_13] : memref<128x16xf32, #tpu.memory_space<vmem>>, vector<128x16xf32>
    tpu.vector_store %arg6[%c0_12, %c0_13], %18 {strides = array<i32>} : memref<128x16xf32, #tpu.memory_space<vmem>>, vector<128x16xf32>,
    return
  }
  func.func @transform_0(%arg0: i32) -> (i32, i32) {
    %c0_i32 = arith.constant 0 : i32
    %c0_i32_0 = arith.constant 0 : i32
    %c0_i32_1 = arith.constant 0 : i32
    return %c0_i32, %c0_i32_0 : i32, i32
  }
  func.func @transform_1(%arg0: i32) -> (i32, i32) {
    %c0_i32 = arith.constant 0 : i32
    %c0_i32_0 = arith.constant 0 : i32
    %c0_i32_1 = arith.constant 0 : i32
    return %c0_i32, %c0_i32_0 : i32, i32
  }
  func.func @transform_2(%arg0: i32) -> (i32, i32) {
    %c0_i32 = arith.constant 0 : i32
    %c0_i32_0 = arith.constant 0 : i32
    %c0_i32_1 = arith.constant 0 : i32
    return %c0_i32, %c0_i32_0 : i32, i32
  }
  func.func @transform_3(%arg0: i32) -> (i32, i32) {
    %c0_i32 = arith.constant 0 : i32
    %c0_i32_0 = arith.constant 0 : i32
    %c0_i32_1 = arith.constant 0 : i32
    return %c0_i32, %c0_i32_0 : i32, i32
  }
  func.func @transform_4(%arg0: i32) -> (i32, i32) {
    %c0_i32 = arith.constant 0 : i32
    %c0_i32_0 = arith.constant 0 : i32
    %c0_i32_1 = arith.constant 0 : i32
    return %c0_i32, %c0_i32_0 : i32, i32
  }
  func.func @transform_5(%arg0: i32) -> (i32, i32) {
    %c0_i32 = arith.constant 0 : i32
    %c0_i32_0 = arith.constant 0 : i32
    %c0_i32_1 = arith.constant 0 : i32
    return %c0_i32, %c0_i32_0 : i32, i32
  }
}

module attributes {stable_mosaic.version = 11 : i64} {
  func.func @_convt_bn_relu_kernel(%arg0: i32, %arg1: memref<128x144xbf16, #tpu.memory_space<vmem>>, %arg2: memref<144x64xbf16, #tpu.memory_space<vmem>>, %arg3: memref<3x16xf32, #tpu.memory_space<vmem>>, %arg4: memref<128x64xf32, #tpu.memory_space<vmem>>) attributes {dimension_semantics = [#tpu.dimension_semantics<arbitrary>], iteration_bounds = array<i64: 1>, scalar_prefetch = 0 : i64, scratch_operands = 0 : i64, tpu.core_type = #tpu.core_type<tc>, window_params = [{pipeline_mode = #tpu.pipeline_mode<synchronous>, transform_indices = @transform_0, window_bounds = array<i64: 128, 144>}, {pipeline_mode = #tpu.pipeline_mode<synchronous>, transform_indices = @transform_1, window_bounds = array<i64: 144, 64>}, {pipeline_mode = #tpu.pipeline_mode<synchronous>, transform_indices = @transform_2, window_bounds = array<i64: 3, 16>}, {pipeline_mode = #tpu.pipeline_mode<synchronous>, transform_indices = @transform_3, window_bounds = array<i64: 128, 64>}]} {
    %c0 = arith.constant 0 : index
    %c0_0 = arith.constant 0 : index
    %0 = vector.load %arg3[%c0, %c0_0] : memref<3x16xf32, #tpu.memory_space<vmem>>, vector<3x16xf32>
    %1 = vector.extract_strided_slice %0 {offsets = [0, 0], sizes = [1, 16], strides = [1, 1]} : vector<3x16xf32> to vector<1x16xf32>
    %2 = vector.extract_strided_slice %0 {offsets = [1, 0], sizes = [1, 16], strides = [1, 1]} : vector<3x16xf32> to vector<1x16xf32>
    %3 = vector.extract_strided_slice %0 {offsets = [2, 0], sizes = [1, 16], strides = [1, 1]} : vector<3x16xf32> to vector<1x16xf32>
    %c0_1 = arith.constant 0 : index
    %c0_2 = arith.constant 0 : index
    %4 = vector.load %arg1[%c0_1, %c0_2] : memref<128x144xbf16, #tpu.memory_space<vmem>>, vector<128x144xbf16>
    %c0_3 = arith.constant 0 : index
    %c0_4 = arith.constant 0 : index
    %5 = vector.load %arg2[%c0_3, %c0_4] : memref<144x64xbf16, #tpu.memory_space<vmem>>, vector<144x64xbf16>
    %cst = arith.constant dense<0.000000e+00> : vector<128x64xf32>
    %6 = tpu.matmul %4, %5, %cst {dimension_numbers = #tpu.dot_dimension_numbers<[1], [0], [0], [1], [0, 0, 1, 1], [], []>} : vector<128x144xbf16>, vector<144x64xbf16>, vector<128x64xf32> -> vector<128x64xf32>
    %7 = tpu.concatenate %1, %1, %1, %1 in 1 : vector<1x16xf32>, vector<1x16xf32>, vector<1x16xf32>, vector<1x16xf32> -> vector<1x64xf32>
    %8 = vector.broadcast %7 : vector<1x64xf32> to vector<128x64xf32>
    %9 = arith.addf %6, %8 : vector<128x64xf32>
    %cst_5 = arith.constant dense<0.000000e+00> : vector<64xf32>
    %10 = vector.multi_reduction <add>, %9, %cst_5 [0] : vector<128x64xf32> to vector<64xf32>
    %11 = vector.shape_cast %10 : vector<64xf32> to vector<1x64xf32>
    %12 = arith.mulf %9, %9 : vector<128x64xf32>
    %cst_6 = arith.constant dense<0.000000e+00> : vector<64xf32>
    %13 = vector.multi_reduction <add>, %12, %cst_6 [0] : vector<128x64xf32> to vector<64xf32>
    %14 = vector.shape_cast %13 : vector<64xf32> to vector<1x64xf32>
    %15 = vector.extract_strided_slice %11 {offsets = [0, 0], sizes = [1, 16], strides = [1, 1]} : vector<1x64xf32> to vector<1x16xf32>
    %16 = vector.extract_strided_slice %11 {offsets = [0, 16], sizes = [1, 16], strides = [1, 1]} : vector<1x64xf32> to vector<1x16xf32>
    %17 = arith.addf %15, %16 : vector<1x16xf32>
    %18 = vector.extract_strided_slice %11 {offsets = [0, 32], sizes = [1, 16], strides = [1, 1]} : vector<1x64xf32> to vector<1x16xf32>
    %19 = arith.addf %17, %18 : vector<1x16xf32>
    %20 = vector.extract_strided_slice %11 {offsets = [0, 48], sizes = [1, 16], strides = [1, 1]} : vector<1x64xf32> to vector<1x16xf32>
    %21 = arith.addf %19, %20 : vector<1x16xf32>
    %22 = vector.extract_strided_slice %14 {offsets = [0, 0], sizes = [1, 16], strides = [1, 1]} : vector<1x64xf32> to vector<1x16xf32>
    %23 = vector.extract_strided_slice %14 {offsets = [0, 16], sizes = [1, 16], strides = [1, 1]} : vector<1x64xf32> to vector<1x16xf32>
    %24 = arith.addf %22, %23 : vector<1x16xf32>
    %25 = vector.extract_strided_slice %14 {offsets = [0, 32], sizes = [1, 16], strides = [1, 1]} : vector<1x64xf32> to vector<1x16xf32>
    %26 = arith.addf %24, %25 : vector<1x16xf32>
    %27 = vector.extract_strided_slice %14 {offsets = [0, 48], sizes = [1, 16], strides = [1, 1]} : vector<1x64xf32> to vector<1x16xf32>
    %28 = arith.addf %26, %27 : vector<1x16xf32>
    %cst_7 = arith.constant 0.001953125 : f32
    %29 = vector.broadcast %cst_7 : f32 to vector<1x16xf32>
    %30 = arith.mulf %21, %29 : vector<1x16xf32>
    %cst_8 = arith.constant 0.001953125 : f32
    %31 = vector.broadcast %cst_8 : f32 to vector<1x16xf32>
    %32 = arith.mulf %28, %31 : vector<1x16xf32>
    %33 = arith.mulf %30, %30 : vector<1x16xf32>
    %34 = arith.subf %32, %33 : vector<1x16xf32>
    %cst_9 = arith.constant 0.000000e+00 : f32
    %35 = vector.broadcast %cst_9 : f32 to vector<1x16xf32>
    %36 = arith.maximumf %34, %35 : vector<1x16xf32>
    %cst_10 = arith.constant 9.99999974E-6 : f32
    %37 = vector.broadcast %cst_10 : f32 to vector<1x16xf32>
    %38 = arith.addf %36, %37 : vector<1x16xf32>
    %39 = math.rsqrt %38 : vector<1x16xf32>
    %40 = arith.mulf %2, %39 : vector<1x16xf32>
    %41 = arith.mulf %30, %40 : vector<1x16xf32>
    %42 = arith.subf %3, %41 : vector<1x16xf32>
    %43 = tpu.concatenate %40, %40, %40, %40 in 1 : vector<1x16xf32>, vector<1x16xf32>, vector<1x16xf32>, vector<1x16xf32> -> vector<1x64xf32>
    %44 = tpu.concatenate %42, %42, %42, %42 in 1 : vector<1x16xf32>, vector<1x16xf32>, vector<1x16xf32>, vector<1x16xf32> -> vector<1x64xf32>
    %45 = vector.broadcast %43 : vector<1x64xf32> to vector<128x64xf32>
    %46 = arith.mulf %9, %45 : vector<128x64xf32>
    %47 = vector.broadcast %44 : vector<1x64xf32> to vector<128x64xf32>
    %48 = arith.addf %46, %47 : vector<128x64xf32>
    %cst_11 = arith.constant 0.000000e+00 : f32
    %49 = vector.broadcast %cst_11 : f32 to vector<128x64xf32>
    %50 = arith.maximumf %48, %49 : vector<128x64xf32>
    %c0_12 = arith.constant 0 : index
    %c0_13 = arith.constant 0 : index
    %51 = vector.load %arg4[%c0_12, %c0_13] : memref<128x64xf32, #tpu.memory_space<vmem>>, vector<128x64xf32>
    tpu.vector_store %arg4[%c0_12, %c0_13], %50 {strides = array<i32>} : memref<128x64xf32, #tpu.memory_space<vmem>>, vector<128x64xf32>,
    return
  }
  func.func @transform_0(%arg0: i32) -> (i32, i32) {
    %c0_i32 = arith.constant 0 : i32
    %c0_i32_0 = arith.constant 0 : i32
    %c0_i32_1 = arith.constant 0 : i32
    return %c0_i32, %c0_i32_0 : i32, i32
  }
  func.func @transform_1(%arg0: i32) -> (i32, i32) {
    %c0_i32 = arith.constant 0 : i32
    %c0_i32_0 = arith.constant 0 : i32
    %c0_i32_1 = arith.constant 0 : i32
    return %c0_i32, %c0_i32_0 : i32, i32
  }
  func.func @transform_2(%arg0: i32) -> (i32, i32) {
    %c0_i32 = arith.constant 0 : i32
    %c0_i32_0 = arith.constant 0 : i32
    %c0_i32_1 = arith.constant 0 : i32
    return %c0_i32, %c0_i32_0 : i32, i32
  }
  func.func @transform_3(%arg0: i32) -> (i32, i32) {
    %c0_i32 = arith.constant 0 : i32
    %c0_i32_0 = arith.constant 0 : i32
    %c0_i32_1 = arith.constant 0 : i32
    return %c0_i32, %c0_i32_0 : i32, i32
  }
}

module attributes {stable_mosaic.version = 11 : i64} {
  func.func @_resblock_kernel(%arg0: i32, %arg1: memref<128x144xbf16, #tpu.memory_space<vmem>>, %arg2: memref<144x16xbf16, #tpu.memory_space<vmem>>, %arg3: memref<16x16xbf16, #tpu.memory_space<vmem>>, %arg4: memref<128x16xf32, #tpu.memory_space<vmem>>, %arg5: memref<6x16xf32, #tpu.memory_space<vmem>>, %arg6: memref<128x16xf32, #tpu.memory_space<vmem>>) attributes {dimension_semantics = [#tpu.dimension_semantics<arbitrary>], iteration_bounds = array<i64: 1>, scalar_prefetch = 0 : i64, scratch_operands = 0 : i64, tpu.core_type = #tpu.core_type<tc>, window_params = [{pipeline_mode = #tpu.pipeline_mode<synchronous>, transform_indices = @transform_0, window_bounds = array<i64: 128, 144>}, {pipeline_mode = #tpu.pipeline_mode<synchronous>, transform_indices = @transform_1, window_bounds = array<i64: 144, 16>}, {pipeline_mode = #tpu.pipeline_mode<synchronous>, transform_indices = @transform_2, window_bounds = array<i64: 16, 16>}, {pipeline_mode = #tpu.pipeline_mode<synchronous>, transform_indices = @transform_3, window_bounds = array<i64: 128, 16>}, {pipeline_mode = #tpu.pipeline_mode<synchronous>, transform_indices = @transform_4, window_bounds = array<i64: 6, 16>}, {pipeline_mode = #tpu.pipeline_mode<synchronous>, transform_indices = @transform_5, window_bounds = array<i64: 128, 16>}]} {
    %c0 = arith.constant 0 : index
    %c0_0 = arith.constant 0 : index
    %0 = vector.load %arg5[%c0, %c0_0] : memref<6x16xf32, #tpu.memory_space<vmem>>, vector<6x16xf32>
    %c0_1 = arith.constant 0 : index
    %c0_2 = arith.constant 0 : index
    %1 = vector.load %arg1[%c0_1, %c0_2] : memref<128x144xbf16, #tpu.memory_space<vmem>>, vector<128x144xbf16>
    %cst = arith.constant 0.000000e+00 : bf16
    %2 = vector.broadcast %cst : bf16 to vector<128x144xbf16>
    %3 = arith.maximumf %1, %2 : vector<128x144xbf16>
    %c0_3 = arith.constant 0 : index
    %c0_4 = arith.constant 0 : index
    %4 = vector.load %arg2[%c0_3, %c0_4] : memref<144x16xbf16, #tpu.memory_space<vmem>>, vector<144x16xbf16>
    %cst_5 = arith.constant dense<0.000000e+00> : vector<128x16xf32>
    %5 = tpu.matmul %3, %4, %cst_5 {dimension_numbers = #tpu.dot_dimension_numbers<[1], [0], [0], [1], [0, 0, 1, 1], [], []>} : vector<128x144xbf16>, vector<144x16xbf16>, vector<128x16xf32> -> vector<128x16xf32>
    %6 = vector.extract_strided_slice %0 {offsets = [0, 0], sizes = [1, 16], strides = [1, 1]} : vector<6x16xf32> to vector<1x16xf32>
    %7 = vector.broadcast %6 : vector<1x16xf32> to vector<128x16xf32>
    %8 = arith.addf %5, %7 : vector<128x16xf32>
    %cst_6 = arith.constant 0.000000e+00 : f32
    %9 = vector.broadcast %cst_6 : f32 to vector<128x16xf32>
    %10 = arith.maximumf %8, %9 : vector<128x16xf32>
    %11 = arith.truncf %10 : vector<128x16xf32> to vector<128x16xbf16>
    %c0_7 = arith.constant 0 : index
    %c0_8 = arith.constant 0 : index
    %12 = vector.load %arg3[%c0_7, %c0_8] : memref<16x16xbf16, #tpu.memory_space<vmem>>, vector<16x16xbf16>
    %cst_9 = arith.constant dense<0.000000e+00> : vector<128x16xf32>
    %13 = tpu.matmul %11, %12, %cst_9 {dimension_numbers = #tpu.dot_dimension_numbers<[1], [0], [0], [1], [0, 0, 1, 1], [], []>} : vector<128x16xbf16>, vector<16x16xbf16>, vector<128x16xf32> -> vector<128x16xf32>
    %14 = vector.extract_strided_slice %0 {offsets = [3, 0], sizes = [1, 16], strides = [1, 1]} : vector<6x16xf32> to vector<1x16xf32>
    %15 = vector.broadcast %14 : vector<1x16xf32> to vector<128x16xf32>
    %16 = arith.addf %13, %15 : vector<128x16xf32>
    %c0_10 = arith.constant 0 : index
    %c0_11 = arith.constant 0 : index
    %17 = vector.load %arg4[%c0_10, %c0_11] : memref<128x16xf32, #tpu.memory_space<vmem>>, vector<128x16xf32>
    %18 = arith.addf %17, %16 : vector<128x16xf32>
    %19 = vector.extract_strided_slice %0 {offsets = [4, 0], sizes = [1, 16], strides = [1, 1]} : vector<6x16xf32> to vector<1x16xf32>
    %20 = vector.extract_strided_slice %0 {offsets = [5, 0], sizes = [1, 16], strides = [1, 1]} : vector<6x16xf32> to vector<1x16xf32>
    %cst_12 = arith.constant dense<0.000000e+00> : vector<16xf32>
    %21 = vector.multi_reduction <add>, %18, %cst_12 [0] : vector<128x16xf32> to vector<16xf32>
    %22 = vector.shape_cast %21 : vector<16xf32> to vector<1x16xf32>
    %cst_13 = arith.constant 1.280000e+02 : f32
    %23 = vector.broadcast %cst_13 : f32 to vector<1x16xf32>
    %24 = arith.divf %22, %23 : vector<1x16xf32>
    %25 = vector.broadcast %24 : vector<1x16xf32> to vector<128x16xf32>
    %26 = arith.subf %18, %25 : vector<128x16xf32>
    %27 = arith.mulf %26, %26 : vector<128x16xf32>
    %cst_14 = arith.constant dense<0.000000e+00> : vector<16xf32>
    %28 = vector.multi_reduction <add>, %27, %cst_14 [0] : vector<128x16xf32> to vector<16xf32>
    %29 = vector.shape_cast %28 : vector<16xf32> to vector<1x16xf32>
    %cst_15 = arith.constant 1.280000e+02 : f32
    %30 = vector.broadcast %cst_15 : f32 to vector<1x16xf32>
    %31 = arith.divf %29, %30 : vector<1x16xf32>
    %cst_16 = arith.constant 9.99999974E-6 : f32
    %32 = vector.broadcast %cst_16 : f32 to vector<1x16xf32>
    %33 = arith.addf %31, %32 : vector<1x16xf32>
    %34 = math.rsqrt %33 : vector<1x16xf32>
    %35 = arith.mulf %19, %34 : vector<1x16xf32>
    %36 = vector.broadcast %24 : vector<1x16xf32> to vector<128x16xf32>
    %37 = arith.subf %18, %36 : vector<128x16xf32>
    %38 = vector.broadcast %35 : vector<1x16xf32> to vector<128x16xf32>
    %39 = arith.mulf %37, %38 : vector<128x16xf32>
    %40 = vector.broadcast %20 : vector<1x16xf32> to vector<128x16xf32>
    %41 = arith.addf %39, %40 : vector<128x16xf32>
    %c0_17 = arith.constant 0 : index
    %c0_18 = arith.constant 0 : index
    %42 = vector.load %arg6[%c0_17, %c0_18] : memref<128x16xf32, #tpu.memory_space<vmem>>, vector<128x16xf32>
    tpu.vector_store %arg6[%c0_17, %c0_18], %41 {strides = array<i32>} : memref<128x16xf32, #tpu.memory_space<vmem>>, vector<128x16xf32>,
    return
  }
  func.func @transform_0(%arg0: i32) -> (i32, i32) {
    %c0_i32 = arith.constant 0 : i32
    %c0_i32_0 = arith.constant 0 : i32
    %c0_i32_1 = arith.constant 0 : i32
    return %c0_i32, %c0_i32_0 : i32, i32
  }
  func.func @transform_1(%arg0: i32) -> (i32, i32) {
    %c0_i32 = arith.constant 0 : i32
    %c0_i32_0 = arith.constant 0 : i32
    %c0_i32_1 = arith.constant 0 : i32
    return %c0_i32, %c0_i32_0 : i32, i32
  }
  func.func @transform_2(%arg0: i32) -> (i32, i32) {
    %c0_i32 = arith.constant 0 : i32
    %c0_i32_0 = arith.constant 0 : i32
    %c0_i32_1 = arith.constant 0 : i32
    return %c0_i32, %c0_i32_0 : i32, i32
  }
  func.func @transform_3(%arg0: i32) -> (i32, i32) {
    %c0_i32 = arith.constant 0 : i32
    %c0_i32_0 = arith.constant 0 : i32
    %c0_i32_1 = arith.constant 0 : i32
    return %c0_i32, %c0_i32_0 : i32, i32
  }
  func.func @transform_4(%arg0: i32) -> (i32, i32) {
    %c0_i32 = arith.constant 0 : i32
    %c0_i32_0 = arith.constant 0 : i32
    %c0_i32_1 = arith.constant 0 : i32
    return %c0_i32, %c0_i32_0 : i32, i32
  }
  func.func @transform_5(%arg0: i32) -> (i32, i32) {
    %c0_i32 = arith.constant 0 : i32
    %c0_i32_0 = arith.constant 0 : i32
    %c0_i32_1 = arith.constant 0 : i32
    return %c0_i32, %c0_i32_0 : i32, i32
  }
}

module attributes {stable_mosaic.version = 11 : i64} {
  func.func @_gemm_bias_act_kernel(%arg0: i32, %arg1: memref<512x144xbf16, #tpu.memory_space<vmem>>, %arg2: memref<144x12xbf16, #tpu.memory_space<vmem>>, %arg3: memref<1x12xf32, #tpu.memory_space<vmem>>, %arg4: memref<512x12xf32, #tpu.memory_space<vmem>>) attributes {dimension_semantics = [#tpu.dimension_semantics<arbitrary>], iteration_bounds = array<i64: 1>, scalar_prefetch = 0 : i64, scratch_operands = 0 : i64, tpu.core_type = #tpu.core_type<tc>, window_params = [{transform_indices = @transform_0, window_bounds = array<i64: 512, 144>}, {pipeline_mode = #tpu.pipeline_mode<synchronous>, transform_indices = @transform_1, window_bounds = array<i64: 144, 12>}, {pipeline_mode = #tpu.pipeline_mode<synchronous>, transform_indices = @transform_2, window_bounds = array<i64: 1, 12>}, {transform_indices = @transform_3, window_bounds = array<i64: 512, 12>}]} {
    %c0 = arith.constant 0 : index
    %c0_0 = arith.constant 0 : index
    %0 = vector.load %arg1[%c0, %c0_0] : memref<512x144xbf16, #tpu.memory_space<vmem>>, vector<512x144xbf16>
    %c0_1 = arith.constant 0 : index
    %c0_2 = arith.constant 0 : index
    %1 = vector.load %arg2[%c0_1, %c0_2] : memref<144x12xbf16, #tpu.memory_space<vmem>>, vector<144x12xbf16>
    %cst = arith.constant dense<0.000000e+00> : vector<512x12xf32>
    %2 = tpu.matmul %0, %1, %cst {dimension_numbers = #tpu.dot_dimension_numbers<[1], [0], [0], [1], [0, 0, 1, 1], [], []>} : vector<512x144xbf16>, vector<144x12xbf16>, vector<512x12xf32> -> vector<512x12xf32>
    %c0_3 = arith.constant 0 : index
    %c0_4 = arith.constant 0 : index
    %3 = vector.load %arg3[%c0_3, %c0_4] : memref<1x12xf32, #tpu.memory_space<vmem>>, vector<1x12xf32>
    %4 = vector.broadcast %3 : vector<1x12xf32> to vector<512x12xf32>
    %5 = arith.addf %2, %4 : vector<512x12xf32>
    %6 = math.tanh %5 : vector<512x12xf32>
    %c0_5 = arith.constant 0 : index
    %c0_6 = arith.constant 0 : index
    %7 = vector.load %arg4[%c0_5, %c0_6] : memref<512x12xf32, #tpu.memory_space<vmem>>, vector<512x12xf32>
    tpu.vector_store %arg4[%c0_5, %c0_6], %6 {strides = array<i32>} : memref<512x12xf32, #tpu.memory_space<vmem>>, vector<512x12xf32>,
    return
  }
  func.func @transform_0(%arg0: i32) -> (i32, i32) {
    %c0_i32 = arith.constant 0 : i32
    %c0_i32_0 = arith.constant 0 : i32
    return %arg0, %c0_i32 : i32, i32
  }
  func.func @transform_1(%arg0: i32) -> (i32, i32) {
    %c0_i32 = arith.constant 0 : i32
    %c0_i32_0 = arith.constant 0 : i32
    %c0_i32_1 = arith.constant 0 : i32
    return %c0_i32, %c0_i32_0 : i32, i32
  }
  func.func @transform_2(%arg0: i32) -> (i32, i32) {
    %c0_i32 = arith.constant 0 : i32
    %c0_i32_0 = arith.constant 0 : i32
    %c0_i32_1 = arith.constant 0 : i32
    return %c0_i32, %c0_i32_0 : i32, i32
  }
  func.func @transform_3(%arg0: i32) -> (i32, i32) {
    %c0_i32 = arith.constant 0 : i32
    %c0_i32_0 = arith.constant 0 : i32
    return %arg0, %c0_i32 : i32, i32
  }
}

</mosaic_0001>

<llo_original>
// kernel: tile.9
$region0: #{tile.9}
  %s0 = inlined_call_operand.vmem [shape: f32[4,3], index: 0, kind: input, shape index: {}]
  %s1 = inlined_call_operand.vmem [shape: f32[1,12], index: 1, kind: output, shape index: {}]
  $region1: #{tile.9} parent=0
    #allocation0 [shape = 'u8[4096]{0}', space=vmem, size = 0x1000, scoped, tag = 'scoped mem for output reshape']
    #allocation1 [shape = 'u8[4096]{0}', space=vmem, size = 0x1000, scoped, tag = 'scoped mem for input reshape']
    %s3 = sshllo.u32 0, 4
    %v4 = vld [vmem:[%s0] sm:%s3]
    %5 = vst [vmem:[#allocation1] sm:%s3] %v4
    %v6 = vld [vmem:[#allocation1] sm:$0x1]
    %vm7 = vcmask 23552
    %8 = vst.msk [vmem:[#allocation0] sm:$0x1] %vm7, %v6
    %s9 = scalar_lea.vmem [#allocation1], 3
    %v10 = vld [vmem:[%s9] sm:$0x1]
    %11 = vrot.lane.b32.xlu0 %v10, 9
    %v12 = vpop.permute.xlu0 %11
    %vm13 = vcmask 97352
    %14 = vst.msk [vmem:[#allocation0] sm:$0x1] %vm13, %v12
    %s15 = scalar_lea.vmem [#allocation1], 2
    %v16 = vld [vmem:[%s15] sm:$0x1]
    %17 = vrot.lane.b32.xlu0 %v16, 6
    %v18 = vpop.permute.xlu0 %17
    %vm19 = vcmask 72752
    %20 = vst.msk [vmem:[#allocation0] sm:$0x1] %vm19, %v18
    %s21 = scalar_lea.vmem [#allocation1], 1
    %v22 = vld [vmem:[%s21] sm:$0x1]
    %23 = vrot.lane.b32.xlu0 %v22, 3
    %v24 = vpop.permute.xlu0 %23
    %vm25 = vcmask 48152
    %26 = vst.msk [vmem:[#allocation0] sm:$0x1] %vm25, %v24
    %s28 = sshllo.u32 0, 1
    %v30 = vld [vmem:[#allocation0] sm:%s28]
    %s31 = sshllo.u32 0, 1
    %32 = vst [vmem:[%s1] sm:%s31] %v30

// kernel: tile.8
$region0: #{tile.8}
  #allocation2 [shape = 's32[1]{0}', space=sflag, size = 0x4, scoped, tag = 'scoped memory for tile.8']
  %s0 = inlined_call_operand.hbm [shape: f32[3], index: 0, kind: input, shape index: {}]
  %s1 = inlined_call_operand.vmem [shape: f32[4,3], index: 1, kind: output, shape index: {}]
  $region1: #{tile.8} parent=0
    #allocation0 [shape = 'u8[512]{0}', space=vmem, size = 0x400, scoped, tag = 'operand span for operand 0']
    #allocation1 [shape = 's32[1]{0}', space=sflag, size = 0x4, scoped, tag = 'scoped memory for tile.8']
    %2 = vsyncpa [#allocation1], 0
    // Predicated region
    $region2: #{tile.8} parent=1 // pred_check
      _
    $region3: #{tile.8} parent=1 // pred_check_branch
      %4 = sbr.rel (0) target = $region5
    $region4: #{tile.8} parent=1 // pred_region
      %s6 = ssub.s32 16, 16
      %7 = vsyncadd [#allocation1], %s6
      %s9 = sshll.u32 [#allocation0], 4
      %s10 = int_to_ptr.vmem [resolvable:$true] %s9
      %12 = dma.hbm_to_vmem [thread:$0]  %s0, 16, %s10, [#allocation1]
    $region5: #{tile.8} parent=1 // pred_fallthru
      _
    // Predicated region
    $region6: #{tile.8} parent=1 // pred_check
      _
    $region7: #{tile.8} parent=1 // pred_check_branch
      %14 = sbr.rel (0) target = $region9
    $region8: #{tile.8} parent=1 // pred_region
      %15 = dma.done [#allocation1], 16
    $region9: #{tile.8} parent=1 // pred_fallthru
      _
    %v16 = vld [vmem:[#allocation0] ss:$0 sm:$0xff]
    %17 = vst [vmem:[%s1] sm:$0xf] %v16
    %18 = vsyncpa [#allocation1], 1

// kernel: vq_cvae_forward.9
$region0: #{vq_cvae_forward.9}
  #allocation0 [shape = 'u32[]', space=smem, size = 0x4, offset = 0x4, fixed_abs, tag = 'smem constant byte address 0x4 - core index']
  #allocation1 [shape = 'u32[144,128]{1,0:T(1,128)}', space=vmem, size = 0x12000, scoped, tag = 'internal scratch']
  %s0 = inlined_call_operand.vmem [shape: bf16[512,48], index: 0, kind: input, shape index: {}]
  %s1 = inlined_call_operand.vmem [shape: bf16[48,16], index: 1, kind: input, shape index: {}]
  %s2 = inlined_call_operand.vmem [shape: f32[3,16], index: 2, kind: input, shape index: {}]
  %s3 = inlined_call_operand.vmem [shape: f32[512,16], index: 3, kind: output, shape index: {}]
  %s4 = sld [smem:[#allocation0]]
  $region22: #{vq_cvae_forward.9} parent=0
    _
  %s6 = ssub.s32 1, %s4
  %s7 = scalar_select 0, %s6, %s4
  // Predicated region
  $region2: #{vq_cvae_forward.9} parent=0 // pred_check
    _
  $region3: #{vq_cvae_forward.9} parent=0 // pred_check_branch
    %9 = sbr.rel (0) target = $region5
  $region4: #{vq_cvae_forward.9} parent=0 // pred_region
    _
  $region5: #{vq_cvae_forward.9} parent=0 // pred_fallthru
    _
  // Predicated region
  $region6: #{vq_cvae_forward.9} parent=0 // pred_check
    _
  $region7: #{vq_cvae_forward.9} parent=0 // pred_check_branch
    %11 = sbr.rel (0) target = $region9
  $region8: #{vq_cvae_forward.9} parent=0 // pred_region
    _
  $region9: #{vq_cvae_forward.9} parent=0 // pred_fallthru
    _
  // Predicated region
  $region10: #{vq_cvae_forward.9} parent=0 // pred_check
    _
  $region11: #{vq_cvae_forward.9} parent=0 // pred_check_branch
    %13 = sbr.rel (0) target = $region13
  $region12: #{vq_cvae_forward.9} parent=0 // pred_region
    _
  $region13: #{vq_cvae_forward.9} parent=0 // pred_fallthru
    _
  %v15 = vld [vmem:[%s2] sm:$0x7]
  %v16 = vld [vmem:[%s0] sm:$0xf]
  %v17 = vld [vmem:[%s0 + $0x4] sm:$0xf]
  %v18 = vld [vmem:[%s0 + $0x8] sm:$0xf]
  %v19 = vld [vmem:[%s0 + $0xc] sm:$0xf]
  %v20 = vld [vmem:[%s0 + $0x10] sm:$0xf]
  %v21 = vld [vmem:[%s0 + $0x14] sm:$0xf]
  %v22 = vld [vmem:[%s0 + $0x18] sm:$0xf]
  %v23 = vld [vmem:[%s0 + $0x1c] sm:$0xf]
  %v24 = vld [vmem:[%s0 + $0x20] sm:$0xf]
  %v25 = vld [vmem:[%s0 + $0x24] sm:$0xf]
  %v26 = vld [vmem:[%s0 + $0x28] sm:$0xf]
  %v27 = vld [vmem:[%s0 + $0x2c] sm:$0xf]
  %v28 = vld [vmem:[%s0 + $0x30] sm:$0xf]
  %v29 = vld [vmem:[%s0 + $0x34] sm:$0xf]
  %v30 = vld [vmem:[%s0 + $0x38] sm:$0xf]
  %v31 = vld [vmem:[%s0 + $0x3c] sm:$0xf]
  %v32 = vld [vmem:[%s0 + $0x40] sm:$0xf]
  %v33 = vld [vmem:[%s0 + $0x44] sm:$0xf]
  %v34 = vld [vmem:[%s0 + $0x48] sm:$0xf]
  %v35 = vld [vmem:[%s0 + $0x4c] sm:$0xf]
  %v36 = vld [vmem:[%s0 + $0x50] sm:$0xf]
  %v37 = vld [vmem:[%s0 + $0x54] sm:$0xf]
  %v38 = vld [vmem:[%s0 + $0x58] sm:$0xf]
  %v39 = vld [vmem:[%s0 + $0x5c] sm:$0xf]
  %v40 = vld [vmem:[%s0 + $0x60] sm:$0xf]
  %v41 = vld [vmem:[%s0 + $0x64] sm:$0xf]
  %v42 = vld [vmem:[%s0 + $0x68] sm:$0xf]
  %v43 = vld [vmem:[%s0 + $0x6c] sm:$0xf]
  %v44 = vld [vmem:[%s0 + $0x70] sm:$0xf]
  %v45 = vld [vmem:[%s0 + $0x74] sm:$0xf]
  %v46 = vld [vmem:[%s0 + $0x78] sm:$0xf]
  %v47 = vld [vmem:[%s0 + $0x7c] sm:$0xf]
  %v48 = vld [vmem:[%s0 + $0x80] sm:$0xf]
  %v49 = vld [vmem:[%s0 + $0x84] sm:$0xf]
  %v50 = vld [vmem:[%s0 + $0x88] sm:$0xf]
  %v51 = vld [vmem:[%s0 + $0x8c] sm:$0xf]
  %v52 = vld [vmem:[%s0 + $0x90] sm:$0xf]
  %v53 = vld [vmem:[%s0 + $0x94] sm:$0xf]
  %v54 = vld [vmem:[%s0 + $0x98] sm:$0xf]
  %v55 = vld [vmem:[%s0 + $0x9c] sm:$0xf]
  %v56 = vld [vmem:[%s0 + $0xa0] sm:$0xf]
  %v57 = vld [vmem:[%s0 + $0xa4] sm:$0xf]
  %v58 = vld [vmem:[%s0 + $0xa8] sm:$0xf]
  %v59 = vld [vmem:[%s0 + $0xac] sm:$0xf]
  %v60 = vld [vmem:[%s0 + $0xb0] sm:$0xf]
  %v61 = vld [vmem:[%s0 + $0xb4] sm:$0xf]
  %v62 = vld [vmem:[%s0 + $0xb8] sm:$0xf]
  %v63 = vld [vmem:[%s0 + $0xbc] sm:$0xf]
  %v64 = vld [vmem:[%s0 + $0xc0] sm:$0xf]
  %v65 = vld [vmem:[%s0 + $0xc4] sm:$0xf]
  %v66 = vld [vmem:[%s0 + $0xc8] sm:$0xf]
  %v67 = vld [vmem:[%s0 + $0xcc] sm:$0xf]
  %v68 = vld [vmem:[%s0 + $0xd0] sm:$0xf]
  %v69 = vld [vmem:[%s0 + $0xd4] sm:$0xf]
  %v70 = vld [vmem:[%s0 + $0xd8] sm:$0xf]
  %v71 = vld [vmem:[%s0 + $0xdc] sm:$0xf]
  %v72 = vld [vmem:[%s0 + $0xe0] sm:$0xf]
  %v73 = vld [vmem:[%s0 + $0xe4] sm:$0xf]
  %v74 = vld [vmem:[%s0 + $0xe8] sm:$0xf]
  %v75 = vld [vmem:[%s0 + $0xec] sm:$0xf]
  %v76 = vld [vmem:[%s0 + $0xf0] sm:$0xf]
  %v77 = vld [vmem:[%s0 + $0xf4] sm:$0xf]
  %v78 = vld [vmem:[%s0 + $0xf8] sm:$0xf]
  %v79 = vld [vmem:[%s0 + $0xfc] sm:$0xf]
  %v80 = vld [vmem:[%s1] sm:$0xf]
  %v81 = vld [vmem:[%s1 + $0x4] sm:$0xf]
  %v82 = vld [vmem:[%s1 + $0x8] sm:$0xf]
  %v83 = vld [vmem:[%s1 + $0xc] sm:$0xf]
  %v84 = vld [vmem:[%s1 + $0x10] sm:$0xf]
  %v85 = vld [vmem:[%s1 + $0x14] sm:$0xf]
  %v86 = vlaneseq
  %v87 = vshrl.u32 %v86, 7
  %v88 = vsub.s32 0, %v87
  %v89 = vrot.slane %v15, %v88
  %v154 = vunpack.c.l.b16 %v16
  %v155 = vunpack.c.l.b16 %v17
  %v156 = vunpack.c.l.b16 %v18
  %v157 = vunpack.c.l.b16 %v19
  %v158 = vunpack.c.l.b16 %v20
  %v159 = vunpack.c.l.b16 %v21
  %v160 = vunpack.c.l.b16 %v22
  %v161 = vunpack.c.l.b16 %v23
  %v162 = vunpack.c.l.b16 %v24
  %v163 = vunpack.c.l.b16 %v25
  %v164 = vunpack.c.l.b16 %v26
  %v165 = vunpack.c.l.b16 %v27
  %v166 = vunpack.c.l.b16 %v28
  %v167 = vunpack.c.l.b16 %v29
  %v168 = vunpack.c.l.b16 %v30
  %v169 = vunpack.c.l.b16 %v31
  %v170 = vunpack.c.l.b16 %v32
  %v171 = vunpack.c.l.b16 %v33
  %v172 = vunpack.c.l.b16 %v34
  %v173 = vunpack.c.l.b16 %v35
  %v174 = vunpack.c.l.b16 %v36
  %v175 = vunpack.c.l.b16 %v37
  %v176 = vunpack.c.l.b16 %v38
  %v177 = vunpack.c.l.b16 %v39
  %v178 = vunpack.c.l.b16 %v40
  %v179 = vunpack.c.l.b16 %v41
  %v180 = vunpack.c.l.b16 %v42
  %v181 = vunpack.c.l.b16 %v43
  %v182 = vunpack.c.l.b16 %v44
  %v183 = vunpack.c.l.b16 %v45
  %v184 = vunpack.c.l.b16 %v46
  %v185 = vunpack.c.l.b16 %v47
  %v186 = vunpack.c.l.b16 %v48
  %v187 = vunpack.c.l.b16 %v49
  %v188 = vunpack.c.l.b16 %v50
  %v189 = vunpack.c.l.b16 %v51
  %v190 = vunpack.c.l.b16 %v52
  %v191 = vunpack.c.l.b16 %v53
  %v192 = vunpack.c.l.b16 %v54
  %v193 = vunpack.c.l.b16 %v55
  %v194 = vunpack.c.l.b16 %v56
  %v195 = vunpack.c.l.b16 %v57
  %v196 = vunpack.c.l.b16 %v58
  %v197 = vunpack.c.l.b16 %v59
  %v198 = vunpack.c.l.b16 %v60
  %v199 = vunpack.c.l.b16 %v61
  %v200 = vunpack.c.l.b16 %v62
  %v201 = vunpack.c.l.b16 %v63
  %v202 = vunpack.c.l.b16 %v64
  %v203 = vunpack.c.l.b16 %v65
  %v204 = vunpack.c.l.b16 %v66
  %v205 = vunpack.c.l.b16 %v67
  %v206 = vunpack.c.l.b16 %v68
  %v207 = vunpack.c.l.b16 %v69
  %v208 = vunpack.c.l.b16 %v70
  %v209 = vunpack.c.l.b16 %v71
  %v210 = vunpack.c.l.b16 %v72
  %v211 = vunpack.c.l.b16 %v73
  %v212 = vunpack.c.l.b16 %v74
  %v213 = vunpack.c.l.b16 %v75
  %v214 = vunpack.c.l.b16 %v76
  %v215 = vunpack.c.l.b16 %v77
  %v216 = vunpack.c.l.b16 %v78
  %v217 = vunpack.c.l.b16 %v79
  %v218 = vpack.c.b16 %v155, %v154
  %v219 = vpack.c.b16 %v157, %v156
  %v220 = vpack.c.b16 %v159, %v158
  %v221 = vpack.c.b16 %v161, %v160
  %v222 = vpack.c.b16 %v163, %v162
  %v223 = vpack.c.b16 %v165, %v164
  %v224 = vpack.c.b16 %v167, %v166
  %v225 = vpack.c.b16 %v169, %v168
  %v226 = vpack.c.b16 %v171, %v170
  %v227 = vpack.c.b16 %v173, %v172
  %v228 = vpack.c.b16 %v175, %v174
  %v229 = vpack.c.b16 %v177, %v176
  %v230 = vpack.c.b16 %v179, %v178
  %v231 = vpack.c.b16 %v181, %v180
  %v232 = vpack.c.b16 %v183, %v182
  %v233 = vpack.c.b16 %v185, %v184
  %v234 = vpack.c.b16 %v187, %v186
  %v235 = vpack.c.b16 %v189, %v188
  %v236 = vpack.c.b16 %v191, %v190
  %v237 = vpack.c.b16 %v193, %v192
  %v238 = vpack.c.b16 %v195, %v194
  %v239 = vpack.c.b16 %v197, %v196
  %v240 = vpack.c.b16 %v199, %v198
  %v241 = vpack.c.b16 %v201, %v200
  %v242 = vpack.c.b16 %v203, %v202
  %v243 = vpack.c.b16 %v205, %v204
  %v244 = vpack.c.b16 %v207, %v206
  %v245 = vpack.c.b16 %v209, %v208
  %v246 = vpack.c.b16 %v211, %v210
  %v247 = vpack.c.b16 %v213, %v212
  %v248 = vpack.c.b16 %v215, %v214
  %v249 = vpack.c.b16 %v217, %v216
  %v256 = vunpack.c.l.b16 %v80
  %v257 = vunpack.c.l.b16 %v81
  %v258 = vunpack.c.l.b16 %v82
  %v259 = vunpack.c.l.b16 %v83
  %v260 = vunpack.c.l.b16 %v84
  %v261 = vunpack.c.l.b16 %v85
  %v262 = vpack.c.b16 %v257, %v256
  %v263 = vpack.c.b16 %v259, %v258
  %v264 = vpack.c.b16 %v261, %v260
  %vm268 = vcmask 392192
  %v270 = vsel %vm268, %v218, 0
  %v273 = vsel %vm268, %v219, 0
  %v276 = vsel %vm268, %v220, 0
  %v279 = vsel %vm268, %v221, 0
  %v282 = vsel %vm268, %v222, 0
  %v285 = vsel %vm268, %v223, 0
  %v288 = vsel %vm268, %v224, 0
  %v291 = vsel %vm268, %v225, 0
  %v294 = vsel %vm268, %v226, 0
  %v297 = vsel %vm268, %v227, 0
  %v300 = vsel %vm268, %v228, 0
  %v303 = vsel %vm268, %v229, 0
  %v306 = vsel %vm268, %v230, 0
  %v309 = vsel %vm268, %v231, 0
  %v312 = vsel %vm268, %v232, 0
  %v315 = vsel %vm268, %v233, 0
  %v318 = vsel %vm268, %v234, 0
  %v321 = vsel %vm268, %v235, 0
  %v324 = vsel %vm268, %v236, 0
  %v327 = vsel %vm268, %v237, 0
  %v330 = vsel %vm268, %v238, 0
  %v333 = vsel %vm268, %v239, 0
  %v336 = vsel %vm268, %v240, 0
  %v339 = vsel %vm268, %v241, 0
  %v342 = vsel %vm268, %v242, 0
  %v345 = vsel %vm268, %v243, 0
  %v348 = vsel %vm268, %v244, 0
  %v351 = vsel %vm268, %v245, 0
  %v354 = vsel %vm268, %v246, 0
  %v357 = vsel %vm268, %v247, 0
  %v360 = vsel %vm268, %v248, 0
  %v363 = vsel %vm268, %v249, 0
  %365 = vmatprep.subr.bf16.mxu0 0
  %366 = vmatpush1.bf16.msra.mxu0 %v262
  %367 = vmatprep.subr.bf16.mxu0 0
  %368 = vmatpush1.bf16.msra.mxu0 %v263
  %369 = vmatprep.subr.bf16.mxu0 0
  %370 = vmatpush1.bf16.msra.mxu0 %v264
  %371 = vmatprep.subr.bf16.mxu0 0
  %372 = vmatpush1.bf16.msra.mxu0 0
  %373 = vmatprep.subr.bf16.mxu0 0
  %374 = vmatpush1.bf16.msra.mxu0 0
  %375 = vmatprep.subr.bf16.mxu0 0
  %376 = vmatpush1.bf16.msra.mxu0 0
  %377 = vmatprep.subr.bf16.mxu0 0
  %378 = vmatpush1.bf16.msra.mxu0 0
  %379 = vmatprep.subr.bf16.mxu0 0
  %380 = vmatpush1.bf16.msra.mxu0 0
  %381 = vmatprep.subr.bf16.mxu0 0
  %382 = vmatpush1.bf16.msra.mxu0 0
  %383 = vmatprep.subr.bf16.mxu0 0
  %384 = vmatpush1.bf16.msra.mxu0 0
  %385 = vmatprep.subr.bf16.mxu0 0
  %386 = vmatpush1.bf16.msra.mxu0 0
  %387 = vmatprep.subr.bf16.mxu0 0
  %388 = vmatpush1.bf16.msra.mxu0 0
  %389 = vmatprep.subr.bf16.mxu0 0
  %390 = vmatpush1.bf16.msra.mxu0 0
  %391 = vmatprep.subr.bf16.mxu0 0
  %392 = vmatpush1.bf16.msra.mxu0 0
  %393 = vmatprep.subr.bf16.mxu0 0
  %394 = vmatpush1.bf16.msra.mxu0 0
  %395 = vmatprep.subr.bf16.mxu0 0
  %396 = vmatpush1.bf16.msra.mxu0 0
  %397 = vmatprep.mubr.bf16.mxu0 0
  %398 = vmatmul.mubr.bf16.gmra.mrb[0].mxu0 %v270
  %v399 = vpop.f32.mrb[0].mxu0
  %v400 = vadd.f32 %v89, %v399
  %v401 = vpop.f32.mrb[0].mxu0
  %v402 = vpop.f32.mrb[0].mxu0
  %v403 = vadd.f32 %v89, %v402
  %v404 = vpop.f32.mrb[0].mxu0
  %405 = vmatprep.mubr.bf16.mxu0 0
  %406 = vmatmul.mubr.bf16.gmra.mrb[0].mxu0 %v273
  %v407 = vpop.f32.mrb[0].mxu0
  %v408 = vadd.f32 %v89, %v407
  %v409 = vpop.f32.mrb[0].mxu0
  %v410 = vpop.f32.mrb[0].mxu0
  %v411 = vadd.f32 %v89, %v410
  %v412 = vpop.f32.mrb[0].mxu0
  %413 = vmatprep.mubr.bf16.mxu0 0
  %414 = vmatmul.mubr.bf16.gmra.mrb[0].mxu0 %v276
  %v415 = vpop.f32.mrb[0].mxu0
  %v416 = vadd.f32 %v89, %v415
  %v417 = vpop.f32.mrb[0].mxu0
  %v418 = vpop.f32.mrb[0].mxu0
  %v419 = vadd.f32 %v89, %v418
  %v420 = vpop.f32.mrb[0].mxu0
  %421 = vmatprep.mubr.bf16.mxu0 0
  %422 = vmatmul.mubr.bf16.gmra.mrb[0].mxu0 %v279
  %v423 = vpop.f32.mrb[0].mxu0
  %v424 = vadd.f32 %v89, %v423
  %v425 = vpop.f32.mrb[0].mxu0
  %v426 = vpop.f32.mrb[0].mxu0
  %v427 = vadd.f32 %v89, %v426
  %v428 = vpop.f32.mrb[0].mxu0
  %429 = vmatprep.mubr.bf16.mxu0 0
  %430 = vmatmul.mubr.bf16.gmra.mrb[0].mxu0 %v282
  %v431 = vpop.f32.mrb[0].mxu0
  %v432 = vadd.f32 %v89, %v431
  %v433 = vpop.f32.mrb[0].mxu0
  %v434 = vpop.f32.mrb[0].mxu0
  %v435 = vadd.f32 %v89, %v434
  %v436 = vpop.f32.mrb[0].mxu0
  %437 = vmatprep.mubr.bf16.mxu0 0
  %438 = vmatmul.mubr.bf16.gmra.mrb[0].mxu0 %v285
  %v439 = vpop.f32.mrb[0].mxu0
  %v440 = vadd.f32 %v89, %v439
  %v441 = vpop.f32.mrb[0].mxu0
  %v442 = vpop.f32.mrb[0].mxu0
  %v443 = vadd.f32 %v89, %v442
  %v444 = vpop.f32.mrb[0].mxu0
  %445 = vmatprep.mubr.bf16.mxu0 0
  %446 = vmatmul.mubr.bf16.gmra.mrb[0].mxu0 %v288
  %v447 = vpop.f32.mrb[0].mxu0
  %v448 = vadd.f32 %v89, %v447
  %v449 = vpop.f32.mrb[0].mxu0
  %v450 = vpop.f32.mrb[0].mxu0
  %v451 = vadd.f32 %v89, %v450
  %v452 = vpop.f32.mrb[0].mxu0
  %453 = vmatprep.mubr.bf16.mxu0 0
  %454 = vmatmul.mubr.bf16.gmra.mrb[0].mxu0 %v291
  %v455 = vpop.f32.mrb[0].mxu0
  %v456 = vadd.f32 %v89, %v455
  %v457 = vpop.f32.mrb[0].mxu0
  %v458 = vpop.f32.mrb[0].mxu0
  %v459 = vadd.f32 %v89, %v458
  %v460 = vpop.f32.mrb[0].mxu0
  %461 = vmatprep.mubr.bf16.mxu0 0
  %462 = vmatmul.mubr.bf16.gmra.mrb[0].mxu0 %v294
  %v463 = vpop.f32.mrb[0].mxu0
  %v464 = vadd.f32 %v89, %v463
  %v465 = vpop.f32.mrb[0].mxu0
  %v466 = vpop.f32.mrb[0].mxu0
  %v467 = vadd.f32 %v89, %v466
  %v468 = vpop.f32.mrb[0].mxu0
  %469 = vmatprep.mubr.bf16.mxu0 0
  %470 = vmatmul.mubr.bf16.gmra.mrb[0].mxu0 %v297
  %v471 = vpop.f32.mrb[0].mxu0
  %v472 = vadd.f32 %v89, %v471
  %v473 = vpop.f32.mrb[0].mxu0
  %v474 = vpop.f32.mrb[0].mxu0
  %v475 = vadd.f32 %v89, %v474
  %v476 = vpop.f32.mrb[0].mxu0
  %477 = vmatprep.mubr.bf16.mxu0 0
  %478 = vmatmul.mubr.bf16.gmra.mrb[0].mxu0 %v300
  %v479 = vpop.f32.mrb[0].mxu0
  %v480 = vadd.f32 %v89, %v479
  %v481 = vpop.f32.mrb[0].mxu0
  %v482 = vpop.f32.mrb[0].mxu0
  %v483 = vadd.f32 %v89, %v482
  %v484 = vpop.f32.mrb[0].mxu0
  %485 = vmatprep.mubr.bf16.mxu0 0
  %486 = vmatmul.mubr.bf16.gmra.mrb[0].mxu0 %v303
  %v487 = vpop.f32.mrb[0].mxu0
  %v488 = vadd.f32 %v89, %v487
  %v489 = vpop.f32.mrb[0].mxu0
  %v490 = vpop.f32.mrb[0].mxu0
  %v491 = vadd.f32 %v89, %v490
  %v492 = vpop.f32.mrb[0].mxu0
  %493 = vmatprep.mubr.bf16.mxu0 0
  %494 = vmatmul.mubr.bf16.gmra.mrb[0].mxu0 %v306
  %v495 = vpop.f32.mrb[0].mxu0
  %v496 = vadd.f32 %v89, %v495
  %v497 = vpop.f32.mrb[0].mxu0
  %v498 = vpop.f32.mrb[0].mxu0
  %v499 = vadd.f32 %v89, %v498
  %v500 = vpop.f32.mrb[0].mxu0
  %501 = vmatprep.mubr.bf16.mxu0 0
  %502 = vmatmul.mubr.bf16.gmra.mrb[0].mxu0 %v309
  %v503 = vpop.f32.mrb[0].mxu0
  %v504 = vadd.f32 %v89, %v503
  %v505 = vpop.f32.mrb[0].mxu0
  %v506 = vpop.f32.mrb[0].mxu0
  %v507 = vadd.f32 %v89, %v506
  %v508 = vpop.f32.mrb[0].mxu0
  %509 = vmatprep.mubr.bf16.mxu0 0
  %510 = vmatmul.mubr.bf16.gmra.mrb[0].mxu0 %v312
  %v511 = vpop.f32.mrb[0].mxu0
  %v512 = vadd.f32 %v89, %v511
  %v513 = vpop.f32.mrb[0].mxu0
  %v514 = vpop.f32.mrb[0].mxu0
  %v515 = vadd.f32 %v89, %v514
  %v516 = vpop.f32.mrb[0].mxu0
  %517 = vmatprep.mubr.bf16.mxu0 0
  %518 = vmatmul.mubr.bf16.gmra.mrb[0].mxu0 %v315
  %v519 = vpop.f32.mrb[0].mxu0
  %v520 = vadd.f32 %v89, %v519
  %v521 = vpop.f32.mrb[0].mxu0
  %v522 = vpop.f32.mrb[0].mxu0
  %v523 = vadd.f32 %v89, %v522
  %v524 = vpop.f32.mrb[0].mxu0
  %525 = vmatprep.mubr.bf16.mxu0 0
  %526 = vmatmul.mubr.bf16.gmra.mrb[0].mxu0 %v318
  %v527 = vpop.f32.mrb[0].mxu0
  %v528 = vadd.f32 %v89, %v527
  %v529 = vpop.f32.mrb[0].mxu0
  %v530 = vpop.f32.mrb[0].mxu0
  %v531 = vadd.f32 %v89, %v530
  %v532 = vpop.f32.mrb[0].mxu0
  %533 = vmatprep.mubr.bf16.mxu0 0
  %534 = vmatmul.mubr.bf16.gmra.mrb[0].mxu0 %v321
  %v535 = vpop.f32.mrb[0].mxu0
  %v536 = vadd.f32 %v89, %v535
  %v537 = vpop.f32.mrb[0].mxu0
  %v538 = vpop.f32.mrb[0].mxu0
  %v539 = vadd.f32 %v89, %v538
  %v540 = vpop.f32.mrb[0].mxu0
  %541 = vmatprep.mubr.bf16.mxu0 0
  %542 = vmatmul.mubr.bf16.gmra.mrb[0].mxu0 %v324
  %v543 = vpop.f32.mrb[0].mxu0
  %v544 = vadd.f32 %v89, %v543
  %v545 = vpop.f32.mrb[0].mxu0
  %v546 = vpop.f32.mrb[0].mxu0
  %v547 = vadd.f32 %v89, %v546
  %v548 = vpop.f32.mrb[0].mxu0
  %549 = vmatprep.mubr.bf16.mxu0 0
  %550 = vmatmul.mubr.bf16.gmra.mrb[0].mxu0 %v327
  %v551 = vpop.f32.mrb[0].mxu0
  %v552 = vadd.f32 %v89, %v551
  %v553 = vpop.f32.mrb[0].mxu0
  %v554 = vpop.f32.mrb[0].mxu0
  %v555 = vadd.f32 %v89, %v554
  %v556 = vpop.f32.mrb[0].mxu0
  %557 = vmatprep.mubr.bf16.mxu0 0
  %558 = vmatmul.mubr.bf16.gmra.mrb[0].mxu0 %v330
  %v559 = vpop.f32.mrb[0].mxu0
  %v560 = vadd.f32 %v89, %v559
  %v561 = vpop.f32.mrb[0].mxu0
  %v562 = vpop.f32.mrb[0].mxu0
  %v563 = vadd.f32 %v89, %v562
  %v564 = vpop.f32.mrb[0].mxu0
  %565 = vmatprep.mubr.bf16.mxu0 0
  %566 = vmatmul.mubr.bf16.gmra.mrb[0].mxu0 %v333
  %v567 = vpop.f32.mrb[0].mxu0
  %v568 = vadd.f32 %v89, %v567
  %v569 = vpop.f32.mrb[0].mxu0
  %v570 = vpop.f32.mrb[0].mxu0
  %v571 = vadd.f32 %v89, %v570
  %v572 = vpop.f32.mrb[0].mxu0
  %573 = vmatprep.mubr.bf16.mxu0 0
  %574 = vmatmul.mubr.bf16.gmra.mrb[0].mxu0 %v336
  %v575 = vpop.f32.mrb[0].mxu0
  %v576 = vadd.f32 %v89, %v575
  %v577 = vpop.f32.mrb[0].mxu0
  %v578 = vpop.f32.mrb[0].mxu0
  %v579 = vadd.f32 %v89, %v578
  %v580 = vpop.f32.mrb[0].mxu0
  %581 = vmatprep.mubr.bf16.mxu0 0
  %582 = vmatmul.mubr.bf16.gmra.mrb[0].mxu0 %v339
  %v583 = vpop.f32.mrb[0].mxu0
  %v584 = vadd.f32 %v89, %v583
  %v585 = vpop.f32.mrb[0].mxu0
  %v586 = vpop.f32.mrb[0].mxu0
  %v587 = vadd.f32 %v89, %v586
  %v588 = vpop.f32.mrb[0].mxu0
  %589 = vmatprep.mubr.bf16.mxu0 0
  %590 = vmatmul.mubr.bf16.gmra.mrb[0].mxu0 %v342
  %v591 = vpop.f32.mrb[0].mxu0
  %v592 = vadd.f32 %v89, %v591
  %v593 = vpop.f32.mrb[0].mxu0
  %v594 = vpop.f32.mrb[0].mxu0
  %v595 = vadd.f32 %v89, %v594
  %v596 = vpop.f32.mrb[0].mxu0
  %597 = vmatprep.mubr.bf16.mxu0 0
  %598 = vmatmul.mubr.bf16.gmra.mrb[0].mxu0 %v345
  %v599 = vpop.f32.mrb[0].mxu0
  %v600 = vadd.f32 %v89, %v599
  %v601 = vpop.f32.mrb[0].mxu0
  %v602 = vpop.f32.mrb[0].mxu0
  %v603 = vadd.f32 %v89, %v602
  %v604 = vpop.f32.mrb[0].mxu0
  %605 = vmatprep.mubr.bf16.mxu0 0
  %606 = vmatmul.mubr.bf16.gmra.mrb[0].mxu0 %v348
  %v607 = vpop.f32.mrb[0].mxu0
  %v608 = vadd.f32 %v89, %v607
  %v609 = vpop.f32.mrb[0].mxu0
  %v610 = vpop.f32.mrb[0].mxu0
  %v611 = vadd.f32 %v89, %v610
  %v612 = vpop.f32.mrb[0].mxu0
  %613 = vmatprep.mubr.bf16.mxu0 0
  %614 = vmatmul.mubr.bf16.gmra.mrb[0].mxu0 %v351
  %v615 = vpop.f32.mrb[0].mxu0
  %v616 = vadd.f32 %v89, %v615
  %v617 = vpop.f32.mrb[0].mxu0
  %v618 = vpop.f32.mrb[0].mxu0
  %v619 = vadd.f32 %v89, %v618
  %v620 = vpop.f32.mrb[0].mxu0
  %621 = vmatprep.mubr.bf16.mxu0 0
  %622 = vmatmul.mubr.bf16.gmra.mrb[0].mxu0 %v354
  %v623 = vpop.f32.mrb[0].mxu0
  %v624 = vadd.f32 %v89, %v623
  %v625 = vpop.f32.mrb[0].mxu0
  %v626 = vpop.f32.mrb[0].mxu0
  %v627 = vadd.f32 %v89, %v626
  %v628 = vpop.f32.mrb[0].mxu0
  %629 = vmatprep.mubr.bf16.mxu0 0
  %630 = vmatmul.mubr.bf16.gmra.mrb[0].mxu0 %v357
  %v631 = vpop.f32.mrb[0].mxu0
  %v632 = vadd.f32 %v89, %v631
  %v633 = vpop.f32.mrb[0].mxu0
  %v634 = vpop.f32.mrb[0].mxu0
  %v635 = vadd.f32 %v89, %v634
  %v636 = vpop.f32.mrb[0].mxu0
  %637 = vmatprep.mubr.bf16.mxu0 0
  %638 = vmatmul.mubr.bf16.gmra.mrb[0].mxu0 %v360
  %v639 = vpop.f32.mrb[0].mxu0
  %v640 = vadd.f32 %v89, %v639
  %v641 = vpop.f32.mrb[0].mxu0
  %v642 = vpop.f32.mrb[0].mxu0
  %v643 = vadd.f32 %v89, %v642
  %v644 = vpop.f32.mrb[0].mxu0
  %645 = vmatprep.mubr.bf16.mxu0 0
  %646 = vmatmul.mubr.bf16.gmra.mrb[0].mxu0 %v363
  %v647 = vpop.f32.mrb[0].mxu0
  %v648 = vadd.f32 %v89, %v647
  %v649 = vpop.f32.mrb[0].mxu0
  %v650 = vpop.f32.mrb[0].mxu0
  %v651 = vadd.f32 %v89, %v650
  %v652 = vpop.f32.mrb[0].mxu0
  %653 = vdwg.mxu0
  %vm654 = vcmask 130048
  %v655 = vsel %vm654, %v400, 0.0
  %v656 = vsel %vm654, %v403, 0.0
  %v657 = vadd.f32 %v655, %v656
  %v658 = vsel %vm654, %v408, 0.0
  %v659 = vadd.f32 %v657, %v658
  %v660 = vsel %vm654, %v411, 0.0
  %v661 = vadd.f32 %v659, %v660
  %v662 = vsel %vm654, %v416, 0.0
  %v663 = vadd.f32 %v661, %v662
  %v664 = vsel %vm654, %v419, 0.0
  %v665 = vadd.f32 %v663, %v664
  %v666 = vsel %vm654, %v424, 0.0
  %v667 = vadd.f32 %v665, %v666
  %v668 = vsel %vm654, %v427, 0.0
  %v669 = vadd.f32 %v667, %v668
  %v670 = vsel %vm654, %v432, 0.0
  %v671 = vadd.f32 %v669, %v670
  %v672 = vsel %vm654, %v435, 0.0
  %v673 = vadd.f32 %v671, %v672
  %v674 = vsel %vm654, %v440, 0.0
  %v675 = vadd.f32 %v673, %v674
  %v676 = vsel %vm654, %v443, 0.0
  %v677 = vadd.f32 %v675, %v676
  %v678 = vsel %vm654, %v448, 0.0
  %v679 = vadd.f32 %v677, %v678
  %v680 = vsel %vm654, %v451, 0.0
  %v681 = vadd.f32 %v679, %v680
  %v682 = vsel %vm654, %v456, 0.0
  %v683 = vadd.f32 %v681, %v682
  %v684 = vsel %vm654, %v459, 0.0
  %v685 = vadd.f32 %v683, %v684
  %v686 = vsel %vm654, %v464, 0.0
  %v687 = vadd.f32 %v685, %v686
  %v688 = vsel %vm654, %v467, 0.0
  %v689 = vadd.f32 %v687, %v688
  %v690 = vsel %vm654, %v472, 0.0
  %v691 = vadd.f32 %v689, %v690
  %v692 = vsel %vm654, %v475, 0.0
  %v693 = vadd.f32 %v691, %v692
  %v694 = vsel %vm654, %v480, 0.0
  %v695 = vadd.f32 %v693, %v694
  %v696 = vsel %vm654, %v483, 0.0
  %v697 = vadd.f32 %v695, %v696
  %v698 = vsel %vm654, %v488, 0.0
  %v699 = vadd.f32 %v697, %v698
  %v700 = vsel %vm654, %v491, 0.0
  %v701 = vadd.f32 %v699, %v700
  %v702 = vsel %vm654, %v496, 0.0
  %v703 = vadd.f32 %v701, %v702
  %v704 = vsel %vm654, %v499, 0.0
  %v705 = vadd.f32 %v703, %v704
  %v706 = vsel %vm654, %v504, 0.0
  %v707 = vadd.f32 %v705, %v706
  %v708 = vsel %vm654, %v507, 0.0
  %v709 = vadd.f32 %v707, %v708
  %v710 = vsel %vm654, %v512, 0.0
  %v711 = vadd.f32 %v709, %v710
  %v712 = vsel %vm654, %v515, 0.0
  %v713 = vadd.f32 %v711, %v712
  %v714 = vsel %vm654, %v520, 0.0
  %v715 = vadd.f32 %v713, %v714
  %v716 = vsel %vm654, %v523, 0.0
  %v717 = vadd.f32 %v715, %v716
  %v718 = vsel %vm654, %v528, 0.0
  %v719 = vadd.f32 %v717, %v718
  %v720 = vsel %vm654, %v531, 0.0
  %v721 = vadd.f32 %v719, %v720
  %v722 = vsel %vm654, %v536, 0.0
  %v723 = vadd.f32 %v721, %v722
  %v724 = vsel %vm654, %v539, 0.0
  %v725 = vadd.f32 %v723, %v724
  %v726 = vsel %vm654, %v544, 0.0
  %v727 = vadd.f32 %v725, %v726
  %v728 = vsel %vm654, %v547, 0.0
  %v729 = vadd.f32 %v727, %v728
  %v730 = vsel %vm654, %v552, 0.0
  %v731 = vadd.f32 %v729, %v730
  %v732 = vsel %vm654, %v555, 0.0
  %v733 = vadd.f32 %v731, %v732
  %v734 = vsel %vm654, %v560, 0.0
  %v735 = vadd.f32 %v733, %v734
  %v736 = vsel %vm654, %v563, 0.0
  %v737 = vadd.f32 %v735, %v736
  %v738 = vsel %vm654, %v568, 0.0
  %v739 = vadd.f32 %v737, %v738
  %v740 = vsel %vm654, %v571, 0.0
  %v741 = vadd.f32 %v739, %v740
  %v742 = vsel %vm654, %v576, 0.0
  %v743 = vadd.f32 %v741, %v742
  %v744 = vsel %vm654, %v579, 0.0
  %v745 = vadd.f32 %v743, %v744
  %v746 = vsel %vm654, %v584, 0.0
  %v747 = vadd.f32 %v745, %v746
  %v748 = vsel %vm654, %v587, 0.0
  %v749 = vadd.f32 %v747, %v748
  %v750 = vsel %vm654, %v592, 0.0
  %v751 = vadd.f32 %v749, %v750
  %v752 = vsel %vm654, %v595, 0.0
  %v753 = vadd.f32 %v751, %v752
  %v754 = vsel %vm654, %v600, 0.0
  %v755 = vadd.f32 %v753, %v754
  %v756 = vsel %vm654, %v603, 0.0
  %v757 = vadd.f32 %v755, %v756
  %v758 = vsel %vm654, %v608, 0.0
  %v759 = vadd.f32 %v757, %v758
  %v760 = vsel %vm654, %v611, 0.0
  %v761 = vadd.f32 %v759, %v760
  %v762 = vsel %vm654, %v616, 0.0
  %v763 = vadd.f32 %v761, %v762
  %v764 = vsel %vm654, %v619, 0.0
  %v765 = vadd.f32 %v763, %v764
  %v766 = vsel %vm654, %v624, 0.0
  %v767 = vadd.f32 %v765, %v766
  %v768 = vsel %vm654, %v627, 0.0
  %v769 = vadd.f32 %v767, %v768
  %v770 = vsel %vm654, %v632, 0.0
  %v771 = vadd.f32 %v769, %v770
  %v772 = vsel %vm654, %v635, 0.0
  %v773 = vadd.f32 %v771, %v772
  %v774 = vsel %vm654, %v640, 0.0
  %v775 = vadd.f32 %v773, %v774
  %v776 = vsel %vm654, %v643, 0.0
  %v777 = vadd.f32 %v775, %v776
  %v778 = vsel %vm654, %v648, 0.0
  %v779 = vadd.f32 %v777, %v778
  %v780 = vsel %vm654, %v651, 0.0
  %v781 = vadd.f32 %v779, %v780
  %v782 = vrot.slane %v781, 4
  %v783 = vadd.f32 %v781, %v782
  %v784 = vrot.slane %v783, 2
  %v785 = vadd.f32 %v783, %v784
  %v786 = vrot.slane %v785, 1
  %v787 = vadd.f32 %v785, %v786
  %v788 = vrcp.pop 512.0
  %v789 = vmul.f32 %v787, %v788
  %v790 = vsub.f32 %v400, %v789
  %v791 = vsub.f32 %v403, %v789
  %v792 = vsub.f32 %v408, %v789
  %v793 = vsub.f32 %v411, %v789
  %v794 = vsub.f32 %v416, %v789
  %v795 = vsub.f32 %v419, %v789
  %v796 = vsub.f32 %v424, %v789
  %v797 = vsub.f32 %v427, %v789
  %v798 = vsub.f32 %v432, %v789
  %v799 = vsub.f32 %v435, %v789
  %v800 = vsub.f32 %v440, %v789
  %v801 = vsub.f32 %v443, %v789
  %v802 = vsub.f32 %v448, %v789
  %v803 = vsub.f32 %v451, %v789
  %v804 = vsub.f32 %v456, %v789
  %v805 = vsub.f32 %v459, %v789
  %v806 = vsub.f32 %v464, %v789
  %v807 = vsub.f32 %v467, %v789
  %v808 = vsub.f32 %v472, %v789
  %v809 = vsub.f32 %v475, %v789
  %v810 = vsub.f32 %v480, %v789
  %v811 = vsub.f32 %v483, %v789
  %v812 = vsub.f32 %v488, %v789
  %v813 = vsub.f32 %v491, %v789
  %v814 = vsub.f32 %v496, %v789
  %v815 = vsub.f32 %v499, %v789
  %v816 = vsub.f32 %v504, %v789
  %v817 = vsub.f32 %v507, %v789
  %v818 = vsub.f32 %v512, %v789
  %v819 = vsub.f32 %v515, %v789
  %v820 = vsub.f32 %v520, %v789
  %v821 = vsub.f32 %v523, %v789
  %v822 = vsub.f32 %v528, %v789
  %v823 = vsub.f32 %v531, %v789
  %v824 = vsub.f32 %v536, %v789
  %v825 = vsub.f32 %v539, %v789
  %v826 = vsub.f32 %v544, %v789
  %v827 = vsub.f32 %v547, %v789
  %v828 = vsub.f32 %v552, %v789
  %v829 = vsub.f32 %v555, %v789
  %v830 = vsub.f32 %v560, %v789
  %v831 = vsub.f32 %v563, %v789
  %v832 = vsub.f32 %v568, %v789
  %v833 = vsub.f32 %v571, %v789
  %v834 = vsub.f32 %v576, %v789
  %v835 = vsub.f32 %v579, %v789
  %v836 = vsub.f32 %v584, %v789
  %v837 = vsub.f32 %v587, %v789
  %v838 = vsub.f32 %v592, %v789
  %v839 = vsub.f32 %v595, %v789
  %v840 = vsub.f32 %v600, %v789
  %v841 = vsub.f32 %v603, %v789
  %v842 = vsub.f32 %v608, %v789
  %v843 = vsub.f32 %v611, %v789
  %v844 = vsub.f32 %v616, %v789
  %v845 = vsub.f32 %v619, %v789
  %v846 = vsub.f32 %v624, %v789
  %v847 = vsub.f32 %v627, %v789
  %v848 = vsub.f32 %v632, %v789
  %v849 = vsub.f32 %v635, %v789
  %v850 = vsub.f32 %v640, %v789
  %v851 = vsub.f32 %v643, %v789
  %v852 = vsub.f32 %v648, %v789
  %v853 = vsub.f32 %v651, %v789
  %v854 = vmul.f32 %v790, %v790
  %v855 = vmul.f32 %v791, %v791
  %v856 = vmul.f32 %v792, %v792
  %v857 = vmul.f32 %v793, %v793
  %v858 = vmul.f32 %v794, %v794
  %v859 = vmul.f32 %v795, %v795
  %v860 = vmul.f32 %v796, %v796
  %v861 = vmul.f32 %v797, %v797
  %v862 = vmul.f32 %v798, %v798
  %v863 = vmul.f32 %v799, %v799
  %v864 = vmul.f32 %v800, %v800
  %v865 = vmul.f32 %v801, %v801
  %v866 = vmul.f32 %v802, %v802
  %v867 = vmul.f32 %v803, %v803
  %v868 = vmul.f32 %v804, %v804
  %v869 = vmul.f32 %v805, %v805
  %v870 = vmul.f32 %v806, %v806
  %v871 = vmul.f32 %v807, %v807
  %v872 = vmul.f32 %v808, %v808
  %v873 = vmul.f32 %v809, %v809
  %v874 = vmul.f32 %v810, %v810
  %v875 = vmul.f32 %v811, %v811
  %v876 = vmul.f32 %v812, %v812
  %v877 = vmul.f32 %v813, %v813
  %v878 = vmul.f32 %v814, %v814
  %v879 = vmul.f32 %v815, %v815
  %v880 = vmul.f32 %v816, %v816
  %v881 = vmul.f32 %v817, %v817
  %v882 = vmul.f32 %v818, %v818
  %v883 = vmul.f32 %v819, %v819
  %v884 = vmul.f32 %v820, %v820
  %v885 = vmul.f32 %v821, %v821
  %v886 = vmul.f32 %v822, %v822
  %v887 = vmul.f32 %v823, %v823
  %v888 = vmul.f32 %v824, %v824
  %v889 = vmul.f32 %v825, %v825
  %v890 = vmul.f32 %v826, %v826
  %v891 = vmul.f32 %v827, %v827
  %v892 = vmul.f32 %v828, %v828
  %v893 = vmul.f32 %v829, %v829
  %v894 = vmul.f32 %v830, %v830
  %v895 = vmul.f32 %v831, %v831
  %v896 = vmul.f32 %v832, %v832
  %v897 = vmul.f32 %v833, %v833
  %v898 = vmul.f32 %v834, %v834
  %v899 = vmul.f32 %v835, %v835
  %v900 = vmul.f32 %v836, %v836
  %v901 = vmul.f32 %v837, %v837
  %v902 = vmul.f32 %v838, %v838
  %v903 = vmul.f32 %v839, %v839
  %v904 = vmul.f32 %v840, %v840
  %v905 = vmul.f32 %v841, %v841
  %v906 = vmul.f32 %v842, %v842
  %v907 = vmul.f32 %v843, %v843
  %v908 = vmul.f32 %v844, %v844
  %v909 = vmul.f32 %v845, %v845
  %v910 = vmul.f32 %v846, %v846
  %v911 = vmul.f32 %v847, %v847
  %v912 = vmul.f32 %v848, %v848
  %v913 = vmul.f32 %v849, %v849
  %v914 = vmul.f32 %v850, %v850
  %v915 = vmul.f32 %v851, %v851
  %v916 = vmul.f32 %v852, %v852
  %v917 = vmul.f32 %v853, %v853
  %v918 = vsel %vm654, %v854, 0.0
  %v919 = vsel %vm654, %v855, 0.0
  %v920 = vadd.f32 %v918, %v919
  %v921 = vsel %vm654, %v856, 0.0
  %v922 = vadd.f32 %v920, %v921
  %v923 = vsel %vm654, %v857, 0.0
  %v924 = vadd.f32 %v922, %v923
  %v925 = vsel %vm654, %v858, 0.0
  %v926 = vadd.f32 %v924, %v925
  %v927 = vsel %vm654, %v859, 0.0
  %v928 = vadd.f32 %v926, %v927
  %v929 = vsel %vm654, %v860, 0.0
  %v930 = vadd.f32 %v928, %v929
  %v931 = vsel %vm654, %v861, 0.0
  %v932 = vadd.f32 %v930, %v931
  %v933 = vsel %vm654, %v862, 0.0
  %v934 = vadd.f32 %v932, %v933
  %v935 = vsel %vm654, %v863, 0.0
  %v936 = vadd.f32 %v934, %v935
  %v937 = vsel %vm654, %v864, 0.0
  %v938 = vadd.f32 %v936, %v937
  %v939 = vsel %vm654, %v865, 0.0
  %v940 = vadd.f32 %v938, %v939
  %v941 = vsel %vm654, %v866, 0.0
  %v942 = vadd.f32 %v940, %v941
  %v943 = vsel %vm654, %v867, 0.0
  %v944 = vadd.f32 %v942, %v943
  %v945 = vsel %vm654, %v868, 0.0
  %v946 = vadd.f32 %v944, %v945
  %v947 = vsel %vm654, %v869, 0.0
  %v948 = vadd.f32 %v946, %v947
  %v949 = vsel %vm654, %v870, 0.0
  %v950 = vadd.f32 %v948, %v949
  %v951 = vsel %vm654, %v871, 0.0
  %v952 = vadd.f32 %v950, %v951
  %v953 = vsel %vm654, %v872, 0.0
  %v954 = vadd.f32 %v952, %v953
  %v955 = vsel %vm654, %v873, 0.0
  %v956 = vadd.f32 %v954, %v955
  %v957 = vsel %vm654, %v874, 0.0
  %v958 = vadd.f32 %v956, %v957
  %v959 = vsel %vm654, %v875, 0.0
  %v960 = vadd.f32 %v958, %v959
  %v961 = vsel %vm654, %v876, 0.0
  %v962 = vadd.f32 %v960, %v961
  %v963 = vsel %vm654, %v877, 0.0
  %v964 = vadd.f32 %v962, %v963
  %v965 = vsel %vm654, %v878, 0.0
  %v966 = vadd.f32 %v964, %v965
  %v967 = vsel %vm654, %v879, 0.0
  %v968 = vadd.f32 %v966, %v967
  %v969 = vsel %vm654, %v880, 0.0
  %v970 = vadd.f32 %v968, %v969
  %v971 = vsel %vm654, %v881, 0.0
  %v972 = vadd.f32 %v970, %v971
  %v973 = vsel %vm654, %v882, 0.0
  %v974 = vadd.f32 %v972, %v973
  %v975 = vsel %vm654, %v883, 0.0
  %v976 = vadd.f32 %v974, %v975
  %v977 = vsel %vm654, %v884, 0.0
  %v978 = vadd.f32 %v976, %v977
  %v979 = vsel %vm654, %v885, 0.0
  %v980 = vadd.f32 %v978, %v979
  %v981 = vsel %vm654, %v886, 0.0
  %v982 = vadd.f32 %v980, %v981
  %v983 = vsel %vm654, %v887, 0.0
  %v984 = vadd.f32 %v982, %v983
  %v985 = vsel %vm654, %v888, 0.0
  %v986 = vadd.f32 %v984, %v985
  %v987 = vsel %vm654, %v889, 0.0
  %v988 = vadd.f32 %v986, %v987
  %v989 = vsel %vm654, %v890, 0.0
  %v990 = vadd.f32 %v988, %v989
  %v991 = vsel %vm654, %v891, 0.0
  %v992 = vadd.f32 %v990, %v991
  %v993 = vsel %vm654, %v892, 0.0
  %v994 = vadd.f32 %v992, %v993
  %v995 = vsel %vm654, %v893, 0.0
  %v996 = vadd.f32 %v994, %v995
  %v997 = vsel %vm654, %v894, 0.0
  %v998 = vadd.f32 %v996, %v997
  %v999 = vsel %vm654, %v895, 0.0
  %v1000 = vadd.f32 %v998, %v999
  %v1001 = vsel %vm654, %v896, 0.0
  %v1002 = vadd.f32 %v1000, %v1001
  %v1003 = vsel %vm654, %v897, 0.0
  %v1004 = vadd.f32 %v1002, %v1003
  %v1005 = vsel %vm654, %v898, 0.0
  %v1006 = vadd.f32 %v1004, %v1005
  %v1007 = vsel %vm654, %v899, 0.0
  %v1008 = vadd.f32 %v1006, %v1007
  %v1009 = vsel %vm654, %v900, 0.0
  %v1010 = vadd.f32 %v1008, %v1009
  %v1011 = vsel %vm654, %v901, 0.0
  %v1012 = vadd.f32 %v1010, %v1011
  %v1013 = vsel %vm654, %v902, 0.0
  %v1014 = vadd.f32 %v1012, %v1013
  %v1015 = vsel %vm654, %v903, 0.0
  %v1016 = vadd.f32 %v1014, %v1015
  %v1017 = vsel %vm654, %v904, 0.0
  %v1018 = vadd.f32 %v1016, %v1017
  %v1019 = vsel %vm654, %v905, 0.0
  %v1020 = vadd.f32 %v1018, %v1019
  %v1021 = vsel %vm654, %v906, 0.0
  %v1022 = vadd.f32 %v1020, %v1021
  %v1023 = vsel %vm654, %v907, 0.0
  %v1024 = vadd.f32 %v1022, %v1023
  %v1025 = vsel %vm654, %v908, 0.0
  %v1026 = vadd.f32 %v1024, %v1025
  %v1027 = vsel %vm654, %v909, 0.0
  %v1028 = vadd.f32 %v1026, %v1027
  %v1029 = vsel %vm654, %v910, 0.0
  %v1030 = vadd.f32 %v1028, %v1029
  %v1031 = vsel %vm654, %v911, 0.0
  %v1032 = vadd.f32 %v1030, %v1031
  %v1033 = vsel %vm654, %v912, 0.0
  %v1034 = vadd.f32 %v1032, %v1033
  %v1035 = vsel %vm654, %v913, 0.0
  %v1036 = vadd.f32 %v1034, %v1035
  %v1037 = vsel %vm654, %v914, 0.0
  %v1038 = vadd.f32 %v1036, %v1037
  %v1039 = vsel %vm654, %v915, 0.0
  %v1040 = vadd.f32 %v1038, %v1039
  %v1041 = vsel %vm654, %v916, 0.0
  %v1042 = vadd.f32 %v1040, %v1041
  %v1043 = vsel %vm654, %v917, 0.0
  %v1044 = vadd.f32 %v1042, %v1043
  %v1045 = vrot.slane %v1044, 4
  %v1046 = vadd.f32 %v1044, %v1045
  %v1047 = vrot.slane %v1046, 2
  %v1048 = vadd.f32 %v1046, %v1047
  %v1049 = vrot.slane %v1048, 1
  %v1050 = vadd.f32 %v1048, %v1049
  %v1051 = vmul.f32 %v1050, %v788
  %v1052 = vadd.f32 %v1051, 1e-05
  %v1053 = vrsqrt.pop %v1052
  %v1054 = vmul.f32 %v15, %v1053
  %v1055 = vlaneseq
  %v1056 = vshrl.u32 %v1055, 7
  %v1057 = vsub.s32 1, %v1056
  %v1058 = vrot.slane %v1054, %v1057
  %v1059 = vmul.f32 %v790, %v1058
  %v1060 = vmul.f32 %v791, %v1058
  %v1061 = vmul.f32 %v792, %v1058
  %v1062 = vmul.f32 %v793, %v1058
  %v1063 = vmul.f32 %v794, %v1058
  %v1064 = vmul.f32 %v795, %v1058
  %v1065 = vmul.f32 %v796, %v1058
  %v1066 = vmul.f32 %v797, %v1058
  %v1067 = vmul.f32 %v798, %v1058
  %v1068 = vmul.f32 %v799, %v1058
  %v1069 = vmul.f32 %v800, %v1058
  %v1070 = vmul.f32 %v801, %v1058
  %v1071 = vmul.f32 %v802, %v1058
  %v1072 = vmul.f32 %v803, %v1058
  %v1073 = vmul.f32 %v804, %v1058
  %v1074 = vmul.f32 %v805, %v1058
  %v1075 = vmul.f32 %v806, %v1058
  %v1076 = vmul.f32 %v807, %v1058
  %v1077 = vmul.f32 %v808, %v1058
  %v1078 = vmul.f32 %v809, %v1058
  %v1079 = vmul.f32 %v810, %v1058
  %v1080 = vmul.f32 %v811, %v1058
  %v1081 = vmul.f32 %v812, %v1058
  %v1082 = vmul.f32 %v813, %v1058
  %v1083 = vmul.f32 %v814, %v1058
  %v1084 = vmul.f32 %v815, %v1058
  %v1085 = vmul.f32 %v816, %v1058
  %v1086 = vmul.f32 %v817, %v1058
  %v1087 = vmul.f32 %v818, %v1058
  %v1088 = vmul.f32 %v819, %v1058
  %v1089 = vmul.f32 %v820, %v1058
  %v1090 = vmul.f32 %v821, %v1058
  %v1091 = vmul.f32 %v822, %v1058
  %v1092 = vmul.f32 %v823, %v1058
  %v1093 = vmul.f32 %v824, %v1058
  %v1094 = vmul.f32 %v825, %v1058
  %v1095 = vmul.f32 %v826, %v1058
  %v1096 = vmul.f32 %v827, %v1058
  %v1097 = vmul.f32 %v828, %v1058
  %v1098 = vmul.f32 %v829, %v1058
  %v1099 = vmul.f32 %v830, %v1058
  %v1100 = vmul.f32 %v831, %v1058
  %v1101 = vmul.f32 %v832, %v1058
  %v1102 = vmul.f32 %v833, %v1058
  %v1103 = vmul.f32 %v834, %v1058
  %v1104 = vmul.f32 %v835, %v1058
  %v1105 = vmul.f32 %v836, %v1058
  %v1106 = vmul.f32 %v837, %v1058
  %v1107 = vmul.f32 %v838, %v1058
  %v1108 = vmul.f32 %v839, %v1058
  %v1109 = vmul.f32 %v840, %v1058
  %v1110 = vmul.f32 %v841, %v1058
  %v1111 = vmul.f32 %v842, %v1058
  %v1112 = vmul.f32 %v843, %v1058
  %v1113 = vmul.f32 %v844, %v1058
  %v1114 = vmul.f32 %v845, %v1058
  %v1115 = vmul.f32 %v846, %v1058
  %v1116 = vmul.f32 %v847, %v1058
  %v1117 = vmul.f32 %v848, %v1058
  %v1118 = vmul.f32 %v849, %v1058
  %v1119 = vmul.f32 %v850, %v1058
  %v1120 = vmul.f32 %v851, %v1058
  %v1121 = vmul.f32 %v852, %v1058
  %v1122 = vmul.f32 %v853, %v1058
  %v1123 = vlaneseq
  %v1124 = vshrl.u32 %v1123, 7
  %v1125 = vsub.s32 2, %v1124
  %v1126 = vrot.slane %v15, %v1125
  %v1127 = vadd.f32 %v1059, %v1126
  %v1128 = vadd.f32 %v1060, %v1126
  %v1129 = vadd.f32 %v1061, %v1126
  %v1130 = vadd.f32 %v1062, %v1126
  %v1131 = vadd.f32 %v1063, %v1126
  %v1132 = vadd.f32 %v1064, %v1126
  %v1133 = vadd.f32 %v1065, %v1126
  %v1134 = vadd.f32 %v1066, %v1126
  %v1135 = vadd.f32 %v1067, %v1126
  %v1136 = vadd.f32 %v1068, %v1126
  %v1137 = vadd.f32 %v1069, %v1126
  %v1138 = vadd.f32 %v1070, %v1126
  %v1139 = vadd.f32 %v1071, %v1126
  %v1140 = vadd.f32 %v1072, %v1126
  %v1141 = vadd.f32 %v1073, %v1126
  %v1142 = vadd.f32 %v1074, %v1126
  %v1143 = vadd.f32 %v1075, %v1126
  %v1144 = vadd.f32 %v1076, %v1126
  %v1145 = vadd.f32 %v1077, %v1126
  %v1146 = vadd.f32 %v1078, %v1126
  %v1147 = vadd.f32 %v1079, %v1126
  %v1148 = vadd.f32 %v1080, %v1126
  %v1149 = vadd.f32 %v1081, %v1126
  %v1150 = vadd.f32 %v1082, %v1126
  %v1151 = vadd.f32 %v1083, %v1126
  %v1152 = vadd.f32 %v1084, %v1126
  %v1153 = vadd.f32 %v1085, %v1126
  %v1154 = vadd.f32 %v1086, %v1126
  %v1155 = vadd.f32 %v1087, %v1126
  %v1156 = vadd.f32 %v1088, %v1126
  %v1157 = vadd.f32 %v1089, %v1126
  %v1158 = vadd.f32 %v1090, %v1126
  %v1159 = vadd.f32 %v1091, %v1126
  %v1160 = vadd.f32 %v1092, %v1126
  %v1161 = vadd.f32 %v1093, %v1126
  %v1162 = vadd.f32 %v1094, %v1126
  %v1163 = vadd.f32 %v1095, %v1126
  %v1164 = vadd.f32 %v1096, %v1126
  %v1165 = vadd.f32 %v1097, %v1126
  %v1166 = vadd.f32 %v1098, %v1126
  %v1167 = vadd.f32 %v1099, %v1126
  %v1168 = vadd.f32 %v1100, %v1126
  %v1169 = vadd.f32 %v1101, %v1126
  %v1170 = vadd.f32 %v1102, %v1126
  %v1171 = vadd.f32 %v1103, %v1126
  %v1172 = vadd.f32 %v1104, %v1126
  %v1173 = vadd.f32 %v1105, %v1126
  %v1174 = vadd.f32 %v1106, %v1126
  %v1175 = vadd.f32 %v1107, %v1126
  %v1176 = vadd.f32 %v1108, %v1126
  %v1177 = vadd.f32 %v1109, %v1126
  %v1178 = vadd.f32 %v1110, %v1126
  %v1179 = vadd.f32 %v1111, %v1126
  %v1180 = vadd.f32 %v1112, %v1126
  %v1181 = vadd.f32 %v1113, %v1126
  %v1182 = vadd.f32 %v1114, %v1126
  %v1183 = vadd.f32 %v1115, %v1126
  %v1184 = vadd.f32 %v1116, %v1126
  %v1185 = vadd.f32 %v1117, %v1126
  %v1186 = vadd.f32 %v1118, %v1126
  %v1187 = vadd.f32 %v1119, %v1126
  %v1188 = vadd.f32 %v1120, %v1126
  %v1189 = vadd.f32 %v1121, %v1126
  %v1190 = vadd.f32 %v1122, %v1126
  %v1191 = vmax.f32 %v1127, 0.0
  %v1192 = vmax.f32 %v1128, 0.0
  %v1193 = vmax.f32 %v1129, 0.0
  %v1194 = vmax.f32 %v1130, 0.0
  %v1195 = vmax.f32 %v1131, 0.0
  %v1196 = vmax.f32 %v1132, 0.0
  %v1197 = vmax.f32 %v1133, 0.0
  %v1198 = vmax.f32 %v1134, 0.0
  %v1199 = vmax.f32 %v1135, 0.0
  %v1200 = vmax.f32 %v1136, 0.0
  %v1201 = vmax.f32 %v1137, 0.0
  %v1202 = vmax.f32 %v1138, 0.0
  %v1203 = vmax.f32 %v1139, 0.0
  %v1204 = vmax.f32 %v1140, 0.0
  %v1205 = vmax.f32 %v1141, 0.0
  %v1206 = vmax.f32 %v1142, 0.0
  %v1207 = vmax.f32 %v1143, 0.0
  %v1208 = vmax.f32 %v1144, 0.0
  %v1209 = vmax.f32 %v1145, 0.0
  %v1210 = vmax.f32 %v1146, 0.0
  %v1211 = vmax.f32 %v1147, 0.0
  %v1212 = vmax.f32 %v1148, 0.0
  %v1213 = vmax.f32 %v1149, 0.0
  %v1214 = vmax.f32 %v1150, 0.0
  %v1215 = vmax.f32 %v1151, 0.0
  %v1216 = vmax.f32 %v1152, 0.0
  %v1217 = vmax.f32 %v1153, 0.0
  %v1218 = vmax.f32 %v1154, 0.0
  %v1219 = vmax.f32 %v1155, 0.0
  %v1220 = vmax.f32 %v1156, 0.0
  %v1221 = vmax.f32 %v1157, 0.0
  %v1222 = vmax.f32 %v1158, 0.0
  %v1223 = vmax.f32 %v1159, 0.0
  %v1224 = vmax.f32 %v1160, 0.0
  %v1225 = vmax.f32 %v1161, 0.0
  %v1226 = vmax.f32 %v1162, 0.0
  %v1227 = vmax.f32 %v1163, 0.0
  %v1228 = vmax.f32 %v1164, 0.0
  %v1229 = vmax.f32 %v1165, 0.0
  %v1230 = vmax.f32 %v1166, 0.0
  %v1231 = vmax.f32 %v1167, 0.0
  %v1232 = vmax.f32 %v1168, 0.0
  %v1233 = vmax.f32 %v1169, 0.0
  %v1234 = vmax.f32 %v1170, 0.0
  %v1235 = vmax.f32 %v1171, 0.0
  %v1236 = vmax.f32 %v1172, 0.0
  %v1237 = vmax.f32 %v1173, 0.0
  %v1238 = vmax.f32 %v1174, 0.0
  %v1239 = vmax.f32 %v1175, 0.0
  %v1240 = vmax.f32 %v1176, 0.0
  %v1241 = vmax.f32 %v1177, 0.0
  %v1242 = vmax.f32 %v1178, 0.0
  %v1243 = vmax.f32 %v1179, 0.0
  %v1244 = vmax.f32 %v1180, 0.0
  %v1245 = vmax.f32 %v1181, 0.0
  %v1246 = vmax.f32 %v1182, 0.0
  %v1247 = vmax.f32 %v1183, 0.0
  %v1248 = vmax.f32 %v1184, 0.0
  %v1249 = vmax.f32 %v1185, 0.0
  %v1250 = vmax.f32 %v1186, 0.0
  %v1251 = vmax.f32 %v1187, 0.0
  %v1252 = vmax.f32 %v1188, 0.0
  %v1253 = vmax.f32 %v1189, 0.0
  %v1254 = vmax.f32 %v1190, 0.0
  %1255 = vst.msk [vmem:[%s3] sm:$0xff] %vm654, %v1191
  %1256 = vst.msk [vmem:[%s3 + $0x8] sm:$0xff] %vm654, %v1192
  %1257 = vst.msk [vmem:[%s3 + $0x10] sm:$0xff] %vm654, %v1193
  %1258 = vst.msk [vmem:[%s3 + $0x18] sm:$0xff] %vm654, %v1194
  %1259 = vst.msk [vmem:[%s3 + $0x20] sm:$0xff] %vm654, %v1195
  %1260 = vst.msk [vmem:[%s3 + $0x28] sm:$0xff] %vm654, %v1196
  %1261 = vst.msk [vmem:[%s3 + $0x30] sm:$0xff] %vm654, %v1197
  %1262 = vst.msk [vmem:[%s3 + $0x38] sm:$0xff] %vm654, %v1198
  %1263 = vst.msk [vmem:[%s3 + $0x40] sm:$0xff] %vm654, %v1199
  %1264 = vst.msk [vmem:[%s3 + $0x48] sm:$0xff] %vm654, %v1200
  %1265 = vst.msk [vmem:[%s3 + $0x50] sm:$0xff] %vm654, %v1201
  %1266 = vst.msk [vmem:[%s3 + $0x58] sm:$0xff] %vm654, %v1202
  %1267 = vst.msk [vmem:[%s3 + $0x60] sm:$0xff] %vm654, %v1203
  %1268 = vst.msk [vmem:[%s3 + $0x68] sm:$0xff] %vm654, %v1204
  %1269 = vst.msk [vmem:[%s3 + $0x70] sm:$0xff] %vm654, %v1205
  %1270 = vst.msk [vmem:[%s3 + $0x78] sm:$0xff] %vm654, %v1206
  %1271 = vst.msk [vmem:[%s3 + $0x80] sm:$0xff] %vm654, %v1207
  %1272 = vst.msk [vmem:[%s3 + $0x88] sm:$0xff] %vm654, %v1208
  %1273 = vst.msk [vmem:[%s3 + $0x90] sm:$0xff] %vm654, %v1209
  %1274 = vst.msk [vmem:[%s3 + $0x98] sm:$0xff] %vm654, %v1210
  %1275 = vst.msk [vmem:[%s3 + $0xa0] sm:$0xff] %vm654, %v1211
  %1276 = vst.msk [vmem:[%s3 + $0xa8] sm:$0xff] %vm654, %v1212
  %1277 = vst.msk [vmem:[%s3 + $0xb0] sm:$0xff] %vm654, %v1213
  %1278 = vst.msk [vmem:[%s3 + $0xb8] sm:$0xff] %vm654, %v1214
  %1279 = vst.msk [vmem:[%s3 + $0xc0] sm:$0xff] %vm654, %v1215
  %1280 = vst.msk [vmem:[%s3 + $0xc8] sm:$0xff] %vm654, %v1216
  %1281 = vst.msk [vmem:[%s3 + $0xd0] sm:$0xff] %vm654, %v1217
  %1282 = vst.msk [vmem:[%s3 + $0xd8] sm:$0xff] %vm654, %v1218
  %1283 = vst.msk [vmem:[%s3 + $0xe0] sm:$0xff] %vm654, %v1219
  %1284 = vst.msk [vmem:[%s3 + $0xe8] sm:$0xff] %vm654, %v1220
  %1285 = vst.msk [vmem:[%s3 + $0xf0] sm:$0xff] %vm654, %v1221
  %1286 = vst.msk [vmem:[%s3 + $0xf8] sm:$0xff] %vm654, %v1222
  %1287 = vst.msk [vmem:[%s3 + $0x100] sm:$0xff] %vm654, %v1223
  %1288 = vst.msk [vmem:[%s3 + $0x108] sm:$0xff] %vm654, %v1224
  %1289 = vst.msk [vmem:[%s3 + $0x110] sm:$0xff] %vm654, %v1225
  %1290 = vst.msk [vmem:[%s3 + $0x118] sm:$0xff] %vm654, %v1226
  %1291 = vst.msk [vmem:[%s3 + $0x120] sm:$0xff] %vm654, %v1227
  %1292 = vst.msk [vmem:[%s3 + $0x128] sm:$0xff] %vm654, %v1228
  %1293 = vst.msk [vmem:[%s3 + $0x130] sm:$0xff] %vm654, %v1229
  %1294 = vst.msk [vmem:[%s3 + $0x138] sm:$0xff] %vm654, %v1230
  %1295 = vst.msk [vmem:[%s3 + $0x140] sm:$0xff] %vm654, %v1231
  %1296 = vst.msk [vmem:[%s3 + $0x148] sm:$0xff] %vm654, %v1232
  %1297 = vst.msk [vmem:[%s3 + $0x150] sm:$0xff] %vm654, %v1233
  %1298 = vst.msk [vmem:[%s3 + $0x158] sm:$0xff] %vm654, %v1234
  %1299 = vst.msk [vmem:[%s3 + $0x160] sm:$0xff] %vm654, %v1235
  %1300 = vst.msk [vmem:[%s3 + $0x168] sm:$0xff] %vm654, %v1236
  %1301 = vst.msk [vmem:[%s3 + $0x170] sm:$0xff] %vm654, %v1237
  %1302 = vst.msk [vmem:[%s3 + $0x178] sm:$0xff] %vm654, %v1238
  %1303 = vst.msk [vmem:[%s3 + $0x180] sm:$0xff] %vm654, %v1239
  %1304 = vst.msk [vmem:[%s3 + $0x188] sm:$0xff] %vm654, %v1240
  %1305 = vst.msk [vmem:[%s3 + $0x190] sm:$0xff] %vm654, %v1241
  %1306 = vst.msk [vmem:[%s3 + $0x198] sm:$0xff] %vm654, %v1242
  %1307 = vst.msk [vmem:[%s3 + $0x1a0] sm:$0xff] %vm654, %v1243
  %1308 = vst.msk [vmem:[%s3 + $0x1a8] sm:$0xff] %vm654, %v1244
  %1309 = vst.msk [vmem:[%s3 + $0x1b0] sm:$0xff] %vm654, %v1245
  %1310 = vst.msk [vmem:[%s3 + $0x1b8] sm:$0xff] %vm654, %v1246
  %1311 = vst.msk [vmem:[%s3 + $0x1c0] sm:$0xff] %vm654, %v1247
  %1312 = vst.msk [vmem:[%s3 + $0x1c8] sm:$0xff] %vm654, %v1248
  %1313 = vst.msk [vmem:[%s3 + $0x1d0] sm:$0xff] %vm654, %v1249
  %1314 = vst.msk [vmem:[%s3 + $0x1d8] sm:$0xff] %vm654, %v1250
  %1315 = vst.msk [vmem:[%s3 + $0x1e0] sm:$0xff] %vm654, %v1251
  %1316 = vst.msk [vmem:[%s3 + $0x1e8] sm:$0xff] %vm654, %v1252
  %1317 = vst.msk [vmem:[%s3 + $0x1f0] sm:$0xff] %vm654, %v1253
  %1318 = vst.msk [vmem:[%s3 + $0x1f8] sm:$0xff] %vm654, %v1254
  // Predicated region
  $region14: #{vq_cvae_forward.9} parent=0 // pred_check
    _
  $region15: #{vq_cvae_forward.9} parent=0 // pred_check_branch
    %1320 = sbr.rel (0) target = $region17
  $region16: #{vq_cvae_forward.9} parent=0 // pred_region
    _
  $region17: #{vq_cvae_forward.9} parent=0 // pred_fallthru
    _
  // Predicated region
  $region18: #{vq_cvae_forward.9} parent=0 // pred_check
    _
  $region19: #{vq_cvae_forward.9} parent=0 // pred_check_branch
    %1322 = sbr.rel (0) target = $region21
  $region20: #{vq_cvae_forward.9} parent=0 // pred_region
    _
  $region21: #{vq_cvae_forward.9} parent=0 // pred_fallthru
    _

// kernel: vq_cvae_forward.10
$region0: #{vq_cvae_forward.10}
  #allocation0 [shape = 'u32[]', space=smem, size = 0x4, offset = 0x4, fixed_abs, tag = 'smem constant byte address 0x4 - core index']
  #allocation1 [shape = 'u32[144,128]{1,0:T(1,128)}', space=vmem, size = 0x12000, scoped, tag = 'internal scratch']
  %s0 = inlined_call_operand.vmem [shape: bf16[128,256], index: 0, kind: input, shape index: {}]
  %s1 = inlined_call_operand.vmem [shape: bf16[256,16], index: 1, kind: input, shape index: {}]
  %s2 = inlined_call_operand.vmem [shape: f32[3,16], index: 2, kind: input, shape index: {}]
  %s3 = inlined_call_operand.vmem [shape: f32[128,16], index: 3, kind: output, shape index: {}]
  %s4 = sld [smem:[#allocation0]]
  $region22: #{vq_cvae_forward.10} parent=0
    _
  %s6 = ssub.s32 1, %s4
  %s7 = scalar_select 0, %s6, %s4
  // Predicated region
  $region2: #{vq_cvae_forward.10} parent=0 // pred_check
    _
  $region3: #{vq_cvae_forward.10} parent=0 // pred_check_branch
    %9 = sbr.rel (0) target = $region5
  $region4: #{vq_cvae_forward.10} parent=0 // pred_region
    _
  $region5: #{vq_cvae_forward.10} parent=0 // pred_fallthru
    _
  // Predicated region
  $region6: #{vq_cvae_forward.10} parent=0 // pred_check
    _
  $region7: #{vq_cvae_forward.10} parent=0 // pred_check_branch
    %11 = sbr.rel (0) target = $region9
  $region8: #{vq_cvae_forward.10} parent=0 // pred_region
    _
  $region9: #{vq_cvae_forward.10} parent=0 // pred_fallthru
    _
  // Predicated region
  $region10: #{vq_cvae_forward.10} parent=0 // pred_check
    _
  $region11: #{vq_cvae_forward.10} parent=0 // pred_check_branch
    %13 = sbr.rel (0) target = $region13
  $region12: #{vq_cvae_forward.10} parent=0 // pred_region
    _
  $region13: #{vq_cvae_forward.10} parent=0 // pred_fallthru
    _
  %v15 = vld [vmem:[%s2] sm:$0x7]
  %v16 = vld [vmem:[%s0] sm:$0xff]
  %v17 = vld [vmem:[%s0 + $0x8] sm:$0xff]
  %v18 = vld [vmem:[%s0 + $0x10] sm:$0xff]
  %v19 = vld [vmem:[%s0 + $0x18] sm:$0xff]
  %v20 = vld [vmem:[%s0 + $0x20] sm:$0xff]
  %v21 = vld [vmem:[%s0 + $0x28] sm:$0xff]
  %v22 = vld [vmem:[%s0 + $0x30] sm:$0xff]
  %v23 = vld [vmem:[%s0 + $0x38] sm:$0xff]
  %v24 = vld [vmem:[%s0 + $0x40] sm:$0xff]
  %v25 = vld [vmem:[%s0 + $0x48] sm:$0xff]
  %v26 = vld [vmem:[%s0 + $0x50] sm:$0xff]
  %v27 = vld [vmem:[%s0 + $0x58] sm:$0xff]
  %v28 = vld [vmem:[%s0 + $0x60] sm:$0xff]
  %v29 = vld [vmem:[%s0 + $0x68] sm:$0xff]
  %v30 = vld [vmem:[%s0 + $0x70] sm:$0xff]
  %v31 = vld [vmem:[%s0 + $0x78] sm:$0xff]
  %v32 = vld [vmem:[%s1] sm:$0xf]
  %v33 = vld [vmem:[%s1 + $0x4] sm:$0xf]
  %v34 = vld [vmem:[%s1 + $0x8] sm:$0xf]
  %v35 = vld [vmem:[%s1 + $0xc] sm:$0xf]
  %v36 = vld [vmem:[%s1 + $0x10] sm:$0xf]
  %v37 = vld [vmem:[%s1 + $0x14] sm:$0xf]
  %v38 = vld [vmem:[%s1 + $0x18] sm:$0xf]
  %v39 = vld [vmem:[%s1 + $0x1c] sm:$0xf]
  %v40 = vld [vmem:[%s1 + $0x20] sm:$0xf]
  %v41 = vld [vmem:[%s1 + $0x24] sm:$0xf]
  %v42 = vld [vmem:[%s1 + $0x28] sm:$0xf]
  %v43 = vld [vmem:[%s1 + $0x2c] sm:$0xf]
  %v44 = vld [vmem:[%s1 + $0x30] sm:$0xf]
  %v45 = vld [vmem:[%s1 + $0x34] sm:$0xf]
  %v46 = vld [vmem:[%s1 + $0x38] sm:$0xf]
  %v47 = vld [vmem:[%s1 + $0x3c] sm:$0xf]
  %v48 = vld [vmem:[%s1 + $0x40] sm:$0xf]
  %v49 = vld [vmem:[%s1 + $0x44] sm:$0xf]
  %v50 = vld [vmem:[%s1 + $0x48] sm:$0xf]
  %v51 = vld [vmem:[%s1 + $0x4c] sm:$0xf]
  %v52 = vld [vmem:[%s1 + $0x50] sm:$0xf]
  %v53 = vld [vmem:[%s1 + $0x54] sm:$0xf]
  %v54 = vld [vmem:[%s1 + $0x58] sm:$0xf]
  %v55 = vld [vmem:[%s1 + $0x5c] sm:$0xf]
  %v56 = vld [vmem:[%s1 + $0x60] sm:$0xf]
  %v57 = vld [vmem:[%s1 + $0x64] sm:$0xf]
  %v58 = vld [vmem:[%s1 + $0x68] sm:$0xf]
  %v59 = vld [vmem:[%s1 + $0x6c] sm:$0xf]
  %v60 = vld [vmem:[%s1 + $0x70] sm:$0xf]
  %v61 = vld [vmem:[%s1 + $0x74] sm:$0xf]
  %v62 = vld [vmem:[%s1 + $0x78] sm:$0xf]
  %v63 = vld [vmem:[%s1 + $0x7c] sm:$0xf]
  %v64 = vlaneseq
  %v65 = vshrl.u32 %v64, 7
  %v66 = vsub.s32 0, %v65
  %v67 = vrot.slane %v15, %v66
  %v84 = vunpack.c.l.b16 %v16
  %v85 = vunpack.c.h.b16 %v16
  %v86 = vunpack.c.l.b16 %v17
  %v87 = vunpack.c.h.b16 %v17
  %v88 = vunpack.c.l.b16 %v18
  %v89 = vunpack.c.h.b16 %v18
  %v90 = vunpack.c.l.b16 %v19
  %v91 = vunpack.c.h.b16 %v19
  %v92 = vunpack.c.l.b16 %v20
  %v93 = vunpack.c.h.b16 %v20
  %v94 = vunpack.c.l.b16 %v21
  %v95 = vunpack.c.h.b16 %v21
  %v96 = vunpack.c.l.b16 %v22
  %v97 = vunpack.c.h.b16 %v22
  %v98 = vunpack.c.l.b16 %v23
  %v99 = vunpack.c.h.b16 %v23
  %v100 = vunpack.c.l.b16 %v24
  %v101 = vunpack.c.h.b16 %v24
  %v102 = vunpack.c.l.b16 %v25
  %v103 = vunpack.c.h.b16 %v25
  %v104 = vunpack.c.l.b16 %v26
  %v105 = vunpack.c.h.b16 %v26
  %v106 = vunpack.c.l.b16 %v27
  %v107 = vunpack.c.h.b16 %v27
  %v108 = vunpack.c.l.b16 %v28
  %v109 = vunpack.c.h.b16 %v28
  %v110 = vunpack.c.l.b16 %v29
  %v111 = vunpack.c.h.b16 %v29
  %v112 = vunpack.c.l.b16 %v30
  %v113 = vunpack.c.h.b16 %v30
  %v114 = vunpack.c.l.b16 %v31
  %v115 = vunpack.c.h.b16 %v31
  %v116 = vpack.c.b16 %v86, %v84
  %v117 = vpack.c.b16 %v87, %v85
  %v118 = vpack.c.b16 %v90, %v88
  %v119 = vpack.c.b16 %v91, %v89
  %v120 = vpack.c.b16 %v94, %v92
  %v121 = vpack.c.b16 %v95, %v93
  %v122 = vpack.c.b16 %v98, %v96
  %v123 = vpack.c.b16 %v99, %v97
  %v124 = vpack.c.b16 %v102, %v100
  %v125 = vpack.c.b16 %v103, %v101
  %v126 = vpack.c.b16 %v106, %v104
  %v127 = vpack.c.b16 %v107, %v105
  %v128 = vpack.c.b16 %v110, %v108
  %v129 = vpack.c.b16 %v111, %v109
  %v130 = vpack.c.b16 %v114, %v112
  %v131 = vpack.c.b16 %v115, %v113
  %v180 = vunpack.c.l.b16 %v32
  %v181 = vunpack.c.l.b16 %v33
  %v182 = vunpack.c.l.b16 %v34
  %v183 = vunpack.c.l.b16 %v35
  %v184 = vunpack.c.l.b16 %v36
  %v185 = vunpack.c.l.b16 %v37
  %v186 = vunpack.c.l.b16 %v38
  %v187 = vunpack.c.l.b16 %v39
  %v188 = vunpack.c.l.b16 %v40
  %v189 = vunpack.c.l.b16 %v41
  %v190 = vunpack.c.l.b16 %v42
  %v191 = vunpack.c.l.b16 %v43
  %v192 = vunpack.c.l.b16 %v44
  %v193 = vunpack.c.l.b16 %v45
  %v194 = vunpack.c.l.b16 %v46
  %v195 = vunpack.c.l.b16 %v47
  %v196 = vunpack.c.l.b16 %v48
  %v197 = vunpack.c.l.b16 %v49
  %v198 = vunpack.c.l.b16 %v50
  %v199 = vunpack.c.l.b16 %v51
  %v200 = vunpack.c.l.b16 %v52
  %v201 = vunpack.c.l.b16 %v53
  %v202 = vunpack.c.l.b16 %v54
  %v203 = vunpack.c.l.b16 %v55
  %v204 = vunpack.c.l.b16 %v56
  %v205 = vunpack.c.l.b16 %v57
  %v206 = vunpack.c.l.b16 %v58
  %v207 = vunpack.c.l.b16 %v59
  %v208 = vunpack.c.l.b16 %v60
  %v209 = vunpack.c.l.b16 %v61
  %v210 = vunpack.c.l.b16 %v62
  %v211 = vunpack.c.l.b16 %v63
  %v212 = vpack.c.b16 %v181, %v180
  %v213 = vpack.c.b16 %v183, %v182
  %v214 = vpack.c.b16 %v185, %v184
  %v215 = vpack.c.b16 %v187, %v186
  %v216 = vpack.c.b16 %v189, %v188
  %v217 = vpack.c.b16 %v191, %v190
  %v218 = vpack.c.b16 %v193, %v192
  %v219 = vpack.c.b16 %v195, %v194
  %v220 = vpack.c.b16 %v197, %v196
  %v221 = vpack.c.b16 %v199, %v198
  %v222 = vpack.c.b16 %v201, %v200
  %v223 = vpack.c.b16 %v203, %v202
  %v224 = vpack.c.b16 %v205, %v204
  %v225 = vpack.c.b16 %v207, %v206
  %v226 = vpack.c.b16 %v209, %v208
  %v227 = vpack.c.b16 %v211, %v210
  %244 = vmatprep.subr.bf16.mxu0 0
  %245 = vmatpush1.bf16.msra.mxu0 %v212
  %246 = vmatprep.subr.bf16.mxu0 0
  %247 = vmatpush1.bf16.msra.mxu0 %v213
  %248 = vmatprep.subr.bf16.mxu0 0
  %249 = vmatpush1.bf16.msra.mxu0 %v214
  %250 = vmatprep.subr.bf16.mxu0 0
  %251 = vmatpush1.bf16.msra.mxu0 %v215
  %252 = vmatprep.subr.bf16.mxu0 0
  %253 = vmatpush1.bf16.msra.mxu0 %v216
  %254 = vmatprep.subr.bf16.mxu0 0
  %255 = vmatpush1.bf16.msra.mxu0 %v217
  %256 = vmatprep.subr.bf16.mxu0 0
  %257 = vmatpush1.bf16.msra.mxu0 %v218
  %258 = vmatprep.subr.bf16.mxu0 0
  %259 = vmatpush1.bf16.msra.mxu0 %v219
  %260 = vmatprep.subr.bf16.mxu0 0
  %261 = vmatpush1.bf16.msra.mxu0 %v220
  %262 = vmatprep.subr.bf16.mxu0 0
  %263 = vmatpush1.bf16.msra.mxu0 %v221
  %264 = vmatprep.subr.bf16.mxu0 0
  %265 = vmatpush1.bf16.msra.mxu0 %v222
  %266 = vmatprep.subr.bf16.mxu0 0
  %267 = vmatpush1.bf16.msra.mxu0 %v223
  %268 = vmatprep.subr.bf16.mxu0 0
  %269 = vmatpush1.bf16.msra.mxu0 %v224
  %270 = vmatprep.subr.bf16.mxu0 0
  %271 = vmatpush1.bf16.msra.mxu0 %v225
  %272 = vmatprep.subr.bf16.mxu0 0
  %273 = vmatpush1.bf16.msra.mxu0 %v226
  %274 = vmatprep.subr.bf16.mxu0 0
  %275 = vmatpush1.bf16.msra.mxu0 %v227
  %276 = vmatprep.mubr.bf16.mxu0 %v117
  %277 = vmatmul.mubr.bf16.gmra.mrb[0].mxu0 %v116
  %v278 = vpop.f32.mrb[0].mxu0
  %v279 = vadd.f32 %v67, %v278
  %v280 = vpop.f32.mrb[0].mxu0
  %v281 = vpop.f32.mrb[0].mxu0
  %v282 = vadd.f32 %v67, %v281
  %v283 = vpop.f32.mrb[0].mxu0
  %284 = vmatprep.mubr.bf16.mxu0 %v119
  %285 = vmatmul.mubr.bf16.gmra.mrb[0].mxu0 %v118
  %v286 = vpop.f32.mrb[0].mxu0
  %v287 = vadd.f32 %v67, %v286
  %v288 = vpop.f32.mrb[0].mxu0
  %v289 = vpop.f32.mrb[0].mxu0
  %v290 = vadd.f32 %v67, %v289
  %v291 = vpop.f32.mrb[0].mxu0
  %292 = vmatprep.mubr.bf16.mxu0 %v121
  %293 = vmatmul.mubr.bf16.gmra.mrb[0].mxu0 %v120
  %v294 = vpop.f32.mrb[0].mxu0
  %v295 = vadd.f32 %v67, %v294
  %v296 = vpop.f32.mrb[0].mxu0
  %v297 = vpop.f32.mrb[0].mxu0
  %v298 = vadd.f32 %v67, %v297
  %v299 = vpop.f32.mrb[0].mxu0
  %300 = vmatprep.mubr.bf16.mxu0 %v123
  %301 = vmatmul.mubr.bf16.gmra.mrb[0].mxu0 %v122
  %v302 = vpop.f32.mrb[0].mxu0
  %v303 = vadd.f32 %v67, %v302
  %v304 = vpop.f32.mrb[0].mxu0
  %v305 = vpop.f32.mrb[0].mxu0
  %v306 = vadd.f32 %v67, %v305
  %v307 = vpop.f32.mrb[0].mxu0
  %308 = vmatprep.mubr.bf16.mxu0 %v125
  %309 = vmatmul.mubr.bf16.gmra.mrb[0].mxu0 %v124
  %v310 = vpop.f32.mrb[0].mxu0
  %v311 = vadd.f32 %v67, %v310
  %v312 = vpop.f32.mrb[0].mxu0
  %v313 = vpop.f32.mrb[0].mxu0
  %v314 = vadd.f32 %v67, %v313
  %v315 = vpop.f32.mrb[0].mxu0
  %316 = vmatprep.mubr.bf16.mxu0 %v127
  %317 = vmatmul.mubr.bf16.gmra.mrb[0].mxu0 %v126
  %v318 = vpop.f32.mrb[0].mxu0
  %v319 = vadd.f32 %v67, %v318
  %v320 = vpop.f32.mrb[0].mxu0
  %v321 = vpop.f32.mrb[0].mxu0
  %v322 = vadd.f32 %v67, %v321
  %v323 = vpop.f32.mrb[0].mxu0
  %324 = vmatprep.mubr.bf16.mxu0 %v129
  %325 = vmatmul.mubr.bf16.gmra.mrb[0].mxu0 %v128
  %v326 = vpop.f32.mrb[0].mxu0
  %v327 = vadd.f32 %v67, %v326
  %v328 = vpop.f32.mrb[0].mxu0
  %v329 = vpop.f32.mrb[0].mxu0
  %v330 = vadd.f32 %v67, %v329
  %v331 = vpop.f32.mrb[0].mxu0
  %332 = vmatprep.mubr.bf16.mxu0 %v131
  %333 = vmatmul.mubr.bf16.gmra.mrb[0].mxu0 %v130
  %v334 = vpop.f32.mrb[0].mxu0
  %v335 = vadd.f32 %v67, %v334
  %v336 = vpop.f32.mrb[0].mxu0
  %v337 = vpop.f32.mrb[0].mxu0
  %v338 = vadd.f32 %v67, %v337
  %v339 = vpop.f32.mrb[0].mxu0
  %340 = vdwg.mxu0
  %vm341 = vcmask 130048
  %v342 = vsel %vm341, %v279, 0.0
  %v343 = vsel %vm341, %v282, 0.0
  %v344 = vadd.f32 %v342, %v343
  %v345 = vsel %vm341, %v287, 0.0
  %v346 = vadd.f32 %v344, %v345
  %v347 = vsel %vm341, %v290, 0.0
  %v348 = vadd.f32 %v346, %v347
  %v349 = vsel %vm341, %v295, 0.0
  %v350 = vadd.f32 %v348, %v349
  %v351 = vsel %vm341, %v298, 0.0
  %v352 = vadd.f32 %v350, %v351
  %v353 = vsel %vm341, %v303, 0.0
  %v354 = vadd.f32 %v352, %v353
  %v355 = vsel %vm341, %v306, 0.0
  %v356 = vadd.f32 %v354, %v355
  %v357 = vsel %vm341, %v311, 0.0
  %v358 = vadd.f32 %v356, %v357
  %v359 = vsel %vm341, %v314, 0.0
  %v360 = vadd.f32 %v358, %v359
  %v361 = vsel %vm341, %v319, 0.0
  %v362 = vadd.f32 %v360, %v361
  %v363 = vsel %vm341, %v322, 0.0
  %v364 = vadd.f32 %v362, %v363
  %v365 = vsel %vm341, %v327, 0.0
  %v366 = vadd.f32 %v364, %v365
  %v367 = vsel %vm341, %v330, 0.0
  %v368 = vadd.f32 %v366, %v367
  %v369 = vsel %vm341, %v335, 0.0
  %v370 = vadd.f32 %v368, %v369
  %v371 = vsel %vm341, %v338, 0.0
  %v372 = vadd.f32 %v370, %v371
  %v373 = vrot.slane %v372, 4
  %v374 = vadd.f32 %v372, %v373
  %v375 = vrot.slane %v374, 2
  %v376 = vadd.f32 %v374, %v375
  %v377 = vrot.slane %v376, 1
  %v378 = vadd.f32 %v376, %v377
  %v379 = vrcp.pop 128.0
  %v380 = vmul.f32 %v378, %v379
  %v381 = vsub.f32 %v279, %v380
  %v382 = vsub.f32 %v282, %v380
  %v383 = vsub.f32 %v287, %v380
  %v384 = vsub.f32 %v290, %v380
  %v385 = vsub.f32 %v295, %v380
  %v386 = vsub.f32 %v298, %v380
  %v387 = vsub.f32 %v303, %v380
  %v388 = vsub.f32 %v306, %v380
  %v389 = vsub.f32 %v311, %v380
  %v390 = vsub.f32 %v314, %v380
  %v391 = vsub.f32 %v319, %v380
  %v392 = vsub.f32 %v322, %v380
  %v393 = vsub.f32 %v327, %v380
  %v394 = vsub.f32 %v330, %v380
  %v395 = vsub.f32 %v335, %v380
  %v396 = vsub.f32 %v338, %v380
  %v397 = vmul.f32 %v381, %v381
  %v398 = vmul.f32 %v382, %v382
  %v399 = vmul.f32 %v383, %v383
  %v400 = vmul.f32 %v384, %v384
  %v401 = vmul.f32 %v385, %v385
  %v402 = vmul.f32 %v386, %v386
  %v403 = vmul.f32 %v387, %v387
  %v404 = vmul.f32 %v388, %v388
  %v405 = vmul.f32 %v389, %v389
  %v406 = vmul.f32 %v390, %v390
  %v407 = vmul.f32 %v391, %v391
  %v408 = vmul.f32 %v392, %v392
  %v409 = vmul.f32 %v393, %v393
  %v410 = vmul.f32 %v394, %v394
  %v411 = vmul.f32 %v395, %v395
  %v412 = vmul.f32 %v396, %v396
  %v413 = vsel %vm341, %v397, 0.0
  %v414 = vsel %vm341, %v398, 0.0
  %v415 = vadd.f32 %v413, %v414
  %v416 = vsel %vm341, %v399, 0.0
  %v417 = vadd.f32 %v415, %v416
  %v418 = vsel %vm341, %v400, 0.0
  %v419 = vadd.f32 %v417, %v418
  %v420 = vsel %vm341, %v401, 0.0
  %v421 = vadd.f32 %v419, %v420
  %v422 = vsel %vm341, %v402, 0.0
  %v423 = vadd.f32 %v421, %v422
  %v424 = vsel %vm341, %v403, 0.0
  %v425 = vadd.f32 %v423, %v424
  %v426 = vsel %vm341, %v404, 0.0
  %v427 = vadd.f32 %v425, %v426
  %v428 = vsel %vm341, %v405, 0.0
  %v429 = vadd.f32 %v427, %v428
  %v430 = vsel %vm341, %v406, 0.0
  %v431 = vadd.f32 %v429, %v430
  %v432 = vsel %vm341, %v407, 0.0
  %v433 = vadd.f32 %v431, %v432
  %v434 = vsel %vm341, %v408, 0.0
  %v435 = vadd.f32 %v433, %v434
  %v436 = vsel %vm341, %v409, 0.0
  %v437 = vadd.f32 %v435, %v436
  %v438 = vsel %vm341, %v410, 0.0
  %v439 = vadd.f32 %v437, %v438
  %v440 = vsel %vm341, %v411, 0.0
  %v441 = vadd.f32 %v439, %v440
  %v442 = vsel %vm341, %v412, 0.0
  %v443 = vadd.f32 %v441, %v442
  %v444 = vrot.slane %v443, 4
  %v445 = vadd.f32 %v443, %v444
  %v446 = vrot.slane %v445, 2
  %v447 = vadd.f32 %v445, %v446
  %v448 = vrot.slane %v447, 1
  %v449 = vadd.f32 %v447, %v448
  %v450 = vmul.f32 %v449, %v379
  %v451 = vadd.f32 %v450, 1e-05
  %v452 = vrsqrt.pop %v451
  %v453 = vmul.f32 %v15, %v452
  %v454 = vlaneseq
  %v455 = vshrl.u32 %v454, 7
  %v456 = vsub.s32 1, %v455
  %v457 = vrot.slane %v453, %v456
  %v458 = vmul.f32 %v381, %v457
  %v459 = vmul.f32 %v382, %v457
  %v460 = vmul.f32 %v383, %v457
  %v461 = vmul.f32 %v384, %v457
  %v462 = vmul.f32 %v385, %v457
  %v463 = vmul.f32 %v386, %v457
  %v464 = vmul.f32 %v387, %v457
  %v465 = vmul.f32 %v388, %v457
  %v466 = vmul.f32 %v389, %v457
  %v467 = vmul.f32 %v390, %v457
  %v468 = vmul.f32 %v391, %v457
  %v469 = vmul.f32 %v392, %v457
  %v470 = vmul.f32 %v393, %v457
  %v471 = vmul.f32 %v394, %v457
  %v472 = vmul.f32 %v395, %v457
  %v473 = vmul.f32 %v396, %v457
  %v474 = vlaneseq
  %v475 = vshrl.u32 %v474, 7
  %v476 = vsub.s32 2, %v475
  %v477 = vrot.slane %v15, %v476
  %v478 = vadd.f32 %v458, %v477
  %v479 = vadd.f32 %v459, %v477
  %v480 = vadd.f32 %v460, %v477
  %v481 = vadd.f32 %v461, %v477
  %v482 = vadd.f32 %v462, %v477
  %v483 = vadd.f32 %v463, %v477
  %v484 = vadd.f32 %v464, %v477
  %v485 = vadd.f32 %v465, %v477
  %v486 = vadd.f32 %v466, %v477
  %v487 = vadd.f32 %v467, %v477
  %v488 = vadd.f32 %v468, %v477
  %v489 = vadd.f32 %v469, %v477
  %v490 = vadd.f32 %v470, %v477
  %v491 = vadd.f32 %v471, %v477
  %v492 = vadd.f32 %v472, %v477
  %v493 = vadd.f32 %v473, %v477
  %v494 = vmax.f32 %v478, 0.0
  %v495 = vmax.f32 %v479, 0.0
  %v496 = vmax.f32 %v480, 0.0
  %v497 = vmax.f32 %v481, 0.0
  %v498 = vmax.f32 %v482, 0.0
  %v499 = vmax.f32 %v483, 0.0
  %v500 = vmax.f32 %v484, 0.0
  %v501 = vmax.f32 %v485, 0.0
  %v502 = vmax.f32 %v486, 0.0
  %v503 = vmax.f32 %v487, 0.0
  %v504 = vmax.f32 %v488, 0.0
  %v505 = vmax.f32 %v489, 0.0
  %v506 = vmax.f32 %v490, 0.0
  %v507 = vmax.f32 %v491, 0.0
  %v508 = vmax.f32 %v492, 0.0
  %v509 = vmax.f32 %v493, 0.0
  %510 = vst.msk [vmem:[%s3] sm:$0xff] %vm341, %v494
  %511 = vst.msk [vmem:[%s3 + $0x8] sm:$0xff] %vm341, %v495
  %512 = vst.msk [vmem:[%s3 + $0x10] sm:$0xff] %vm341, %v496
  %513 = vst.msk [vmem:[%s3 + $0x18] sm:$0xff] %vm341, %v497
  %514 = vst.msk [vmem:[%s3 + $0x20] sm:$0xff] %vm341, %v498
  %515 = vst.msk [vmem:[%s3 + $0x28] sm:$0xff] %vm341, %v499
  %516 = vst.msk [vmem:[%s3 + $0x30] sm:$0xff] %vm341, %v500
  %517 = vst.msk [vmem:[%s3 + $0x38] sm:$0xff] %vm341, %v501
  %518 = vst.msk [vmem:[%s3 + $0x40] sm:$0xff] %vm341, %v502
  %519 = vst.msk [vmem:[%s3 + $0x48] sm:$0xff] %vm341, %v503
  %520 = vst.msk [vmem:[%s3 + $0x50] sm:$0xff] %vm341, %v504
  %521 = vst.msk [vmem:[%s3 + $0x58] sm:$0xff] %vm341, %v505
  %522 = vst.msk [vmem:[%s3 + $0x60] sm:$0xff] %vm341, %v506
  %523 = vst.msk [vmem:[%s3 + $0x68] sm:$0xff] %vm341, %v507
  %524 = vst.msk [vmem:[%s3 + $0x70] sm:$0xff] %vm341, %v508
  %525 = vst.msk [vmem:[%s3 + $0x78] sm:$0xff] %vm341, %v509
  // Predicated region
  $region14: #{vq_cvae_forward.10} parent=0 // pred_check
    _
  $region15: #{vq_cvae_forward.10} parent=0 // pred_check_branch
    %527 = sbr.rel (0) target = $region17
  $region16: #{vq_cvae_forward.10} parent=0 // pred_region
    _
  $region17: #{vq_cvae_forward.10} parent=0 // pred_fallthru
    _
  // Predicated region
  $region18: #{vq_cvae_forward.10} parent=0 // pred_check
    _
  $region19: #{vq_cvae_forward.10} parent=0 // pred_check_branch
    %529 = sbr.rel (0) target = $region21
  $region20: #{vq_cvae_forward.10} parent=0 // pred_region
    _
  $region21: #{vq_cvae_forward.10} parent=0 // pred_fallthru
    _

// kernel: vq_cvae_forward.11
$region0: #{vq_cvae_forward.11}
  #allocation0 [shape = 'u32[]', space=smem, size = 0x4, offset = 0x4, fixed_abs, tag = 'smem constant byte address 0x4 - core index']
  #allocation1 [shape = 'u32[144,128]{1,0:T(1,128)}', space=vmem, size = 0x12000, scoped, tag = 'internal scratch']
  %s0 = inlined_call_operand.vmem [shape: bf16[128,144], index: 0, kind: input, shape index: {}]
  %s1 = inlined_call_operand.vmem [shape: bf16[144,16], index: 1, kind: input, shape index: {}]
  %s2 = inlined_call_operand.vmem [shape: bf16[16,16], index: 2, kind: input, shape index: {}]
  %s3 = inlined_call_operand.vmem [shape: f32[128,16], index: 3, kind: input, shape index: {}]
  %s4 = inlined_call_operand.vmem [shape: f32[6,16], index: 4, kind: input, shape index: {}]
  %s5 = inlined_call_operand.vmem [shape: f32[128,16], index: 5, kind: output, shape index: {}]
  %s6 = sld [smem:[#allocation0]]
  $region30: #{vq_cvae_forward.11} parent=0
    _
  %s8 = ssub.s32 1, %s6
  %s9 = scalar_select 0, %s8, %s6
  // Predicated region
  $region2: #{vq_cvae_forward.11} parent=0 // pred_check
    _
  $region3: #{vq_cvae_forward.11} parent=0 // pred_check_branch
    %11 = sbr.rel (0) target = $region5
  $region4: #{vq_cvae_forward.11} parent=0 // pred_region
    _
  $region5: #{vq_cvae_forward.11} parent=0 // pred_fallthru
    _
  // Predicated region
  $region6: #{vq_cvae_forward.11} parent=0 // pred_check
    _
  $region7: #{vq_cvae_forward.11} parent=0 // pred_check_branch
    %13 = sbr.rel (0) target = $region9
  $region8: #{vq_cvae_forward.11} parent=0 // pred_region
    _
  $region9: #{vq_cvae_forward.11} parent=0 // pred_fallthru
    _
  // Predicated region
  $region10: #{vq_cvae_forward.11} parent=0 // pred_check
    _
  $region11: #{vq_cvae_forward.11} parent=0 // pred_check_branch
    %15 = sbr.rel (0) target = $region13
  $region12: #{vq_cvae_forward.11} parent=0 // pred_region
    _
  $region13: #{vq_cvae_forward.11} parent=0 // pred_fallthru
    _
  // Predicated region
  $region14: #{vq_cvae_forward.11} parent=0 // pred_check
    _
  $region15: #{vq_cvae_forward.11} parent=0 // pred_check_branch
    %17 = sbr.rel (0) target = $region17
  $region16: #{vq_cvae_forward.11} parent=0 // pred_region
    _
  $region17: #{vq_cvae_forward.11} parent=0 // pred_fallthru
    _
  // Predicated region
  $region18: #{vq_cvae_forward.11} parent=0 // pred_check
    _
  $region19: #{vq_cvae_forward.11} parent=0 // pred_check_branch
    %19 = sbr.rel (0) target = $region21
  $region20: #{vq_cvae_forward.11} parent=0 // pred_region
    _
  $region21: #{vq_cvae_forward.11} parent=0 // pred_fallthru
    _
  %v21 = vld [vmem:[%s4] sm:$0x3f]
  %v22 = vld [vmem:[%s0] sm:$0xff]
  %v23 = vld [vmem:[%s0 + $0x8] sm:$0xff]
  %v24 = vld [vmem:[%s0 + $0x10] sm:$0xff]
  %v25 = vld [vmem:[%s0 + $0x18] sm:$0xff]
  %v26 = vld [vmem:[%s0 + $0x20] sm:$0xff]
  %v27 = vld [vmem:[%s0 + $0x28] sm:$0xff]
  %v28 = vld [vmem:[%s0 + $0x30] sm:$0xff]
  %v29 = vld [vmem:[%s0 + $0x38] sm:$0xff]
  %v30 = vld [vmem:[%s0 + $0x40] sm:$0xff]
  %v31 = vld [vmem:[%s0 + $0x48] sm:$0xff]
  %v32 = vld [vmem:[%s0 + $0x50] sm:$0xff]
  %v33 = vld [vmem:[%s0 + $0x58] sm:$0xff]
  %v34 = vld [vmem:[%s0 + $0x60] sm:$0xff]
  %v35 = vld [vmem:[%s0 + $0x68] sm:$0xff]
  %v36 = vld [vmem:[%s0 + $0x70] sm:$0xff]
  %v37 = vld [vmem:[%s0 + $0x78] sm:$0xff]
  %v38 = vmax.bf16 %v22, 0
  %v39 = vmax.bf16 %v23, 0
  %v40 = vmax.bf16 %v24, 0
  %v41 = vmax.bf16 %v25, 0
  %v42 = vmax.bf16 %v26, 0
  %v43 = vmax.bf16 %v27, 0
  %v44 = vmax.bf16 %v28, 0
  %v45 = vmax.bf16 %v29, 0
  %v46 = vmax.bf16 %v30, 0
  %v47 = vmax.bf16 %v31, 0
  %v48 = vmax.bf16 %v32, 0
  %v49 = vmax.bf16 %v33, 0
  %v50 = vmax.bf16 %v34, 0
  %v51 = vmax.bf16 %v35, 0
  %v52 = vmax.bf16 %v36, 0
  %v53 = vmax.bf16 %v37, 0
  %v54 = vld [vmem:[%s1] sm:$0xf]
  %v55 = vld [vmem:[%s1 + $0x4] sm:$0xf]
  %v56 = vld [vmem:[%s1 + $0x8] sm:$0xf]
  %v57 = vld [vmem:[%s1 + $0xc] sm:$0xf]
  %v58 = vld [vmem:[%s1 + $0x10] sm:$0xf]
  %v59 = vld [vmem:[%s1 + $0x14] sm:$0xf]
  %v60 = vld [vmem:[%s1 + $0x18] sm:$0xf]
  %v61 = vld [vmem:[%s1 + $0x1c] sm:$0xf]
  %v62 = vld [vmem:[%s1 + $0x20] sm:$0xf]
  %v63 = vld [vmem:[%s1 + $0x24] sm:$0xf]
  %v64 = vld [vmem:[%s1 + $0x28] sm:$0xf]
  %v65 = vld [vmem:[%s1 + $0x2c] sm:$0xf]
  %v66 = vld [vmem:[%s1 + $0x30] sm:$0xf]
  %v67 = vld [vmem:[%s1 + $0x34] sm:$0xf]
  %v68 = vld [vmem:[%s1 + $0x38] sm:$0xf]
  %v69 = vld [vmem:[%s1 + $0x3c] sm:$0xf]
  %v70 = vld [vmem:[%s1 + $0x40] sm:$0xf]
  %v71 = vld [vmem:[%s1 + $0x44] sm:$0xf]
  %v72 = vlaneseq
  %v73 = vshrl.u32 %v72, 7
  %v74 = vsub.s32 0, %v73
  %v75 = vrot.slane %v21, %v74
  %v92 = vunpack.c.l.b16 %v38
  %v93 = vunpack.c.h.b16 %v38
  %v94 = vunpack.c.l.b16 %v39
  %v95 = vunpack.c.h.b16 %v39
  %v96 = vunpack.c.l.b16 %v40
  %v97 = vunpack.c.h.b16 %v40
  %v98 = vunpack.c.l.b16 %v41
  %v99 = vunpack.c.h.b16 %v41
  %v100 = vunpack.c.l.b16 %v42
  %v101 = vunpack.c.h.b16 %v42
  %v102 = vunpack.c.l.b16 %v43
  %v103 = vunpack.c.h.b16 %v43
  %v104 = vunpack.c.l.b16 %v44
  %v105 = vunpack.c.h.b16 %v44
  %v106 = vunpack.c.l.b16 %v45
  %v107 = vunpack.c.h.b16 %v45
  %v108 = vunpack.c.l.b16 %v46
  %v109 = vunpack.c.h.b16 %v46
  %v110 = vunpack.c.l.b16 %v47
  %v111 = vunpack.c.h.b16 %v47
  %v112 = vunpack.c.l.b16 %v48
  %v113 = vunpack.c.h.b16 %v48
  %v114 = vunpack.c.l.b16 %v49
  %v115 = vunpack.c.h.b16 %v49
  %v116 = vunpack.c.l.b16 %v50
  %v117 = vunpack.c.h.b16 %v50
  %v118 = vunpack.c.l.b16 %v51
  %v119 = vunpack.c.h.b16 %v51
  %v120 = vunpack.c.l.b16 %v52
  %v121 = vunpack.c.h.b16 %v52
  %v122 = vunpack.c.l.b16 %v53
  %v123 = vunpack.c.h.b16 %v53
  %v124 = vpack.c.b16 %v94, %v92
  %v125 = vpack.c.b16 %v95, %v93
  %v126 = vpack.c.b16 %v98, %v96
  %v127 = vpack.c.b16 %v99, %v97
  %v128 = vpack.c.b16 %v102, %v100
  %v129 = vpack.c.b16 %v103, %v101
  %v130 = vpack.c.b16 %v106, %v104
  %v131 = vpack.c.b16 %v107, %v105
  %v132 = vpack.c.b16 %v110, %v108
  %v133 = vpack.c.b16 %v111, %v109
  %v134 = vpack.c.b16 %v114, %v112
  %v135 = vpack.c.b16 %v115, %v113
  %v136 = vpack.c.b16 %v118, %v116
  %v137 = vpack.c.b16 %v119, %v117
  %v138 = vpack.c.b16 %v122, %v120
  %v139 = vpack.c.b16 %v123, %v121
  %v166 = vunpack.c.l.b16 %v54
  %v167 = vunpack.c.l.b16 %v55
  %v168 = vunpack.c.l.b16 %v56
  %v169 = vunpack.c.l.b16 %v57
  %v170 = vunpack.c.l.b16 %v58
  %v171 = vunpack.c.l.b16 %v59
  %v172 = vunpack.c.l.b16 %v60
  %v173 = vunpack.c.l.b16 %v61
  %v174 = vunpack.c.l.b16 %v62
  %v175 = vunpack.c.l.b16 %v63
  %v176 = vunpack.c.l.b16 %v64
  %v177 = vunpack.c.l.b16 %v65
  %v178 = vunpack.c.l.b16 %v66
  %v179 = vunpack.c.l.b16 %v67
  %v180 = vunpack.c.l.b16 %v68
  %v181 = vunpack.c.l.b16 %v69
  %v182 = vunpack.c.l.b16 %v70
  %v183 = vunpack.c.l.b16 %v71
  %v184 = vpack.c.b16 %v167, %v166
  %v185 = vpack.c.b16 %v169, %v168
  %v186 = vpack.c.b16 %v171, %v170
  %v187 = vpack.c.b16 %v173, %v172
  %v188 = vpack.c.b16 %v175, %v174
  %v189 = vpack.c.b16 %v177, %v176
  %v190 = vpack.c.b16 %v179, %v178
  %v191 = vpack.c.b16 %v181, %v180
  %v192 = vpack.c.b16 %v183, %v182
  %vm202 = vcmask 130048
  %v204 = vsel %vm202, %v125, 0
  %v207 = vsel %vm202, %v127, 0
  %v210 = vsel %vm202, %v129, 0
  %v213 = vsel %vm202, %v131, 0
  %v216 = vsel %vm202, %v133, 0
  %v219 = vsel %vm202, %v135, 0
  %v222 = vsel %vm202, %v137, 0
  %v225 = vsel %vm202, %v139, 0
  %227 = vmatprep.subr.bf16.mxu0 0
  %228 = vmatpush1.bf16.msra.mxu0 %v184
  %229 = vmatprep.subr.bf16.mxu0 0
  %230 = vmatpush1.bf16.msra.mxu0 %v185
  %231 = vmatprep.subr.bf16.mxu0 0
  %232 = vmatpush1.bf16.msra.mxu0 %v186
  %233 = vmatprep.subr.bf16.mxu0 0
  %234 = vmatpush1.bf16.msra.mxu0 %v187
  %235 = vmatprep.subr.bf16.mxu0 0
  %236 = vmatpush1.bf16.msra.mxu0 %v188
  %237 = vmatprep.subr.bf16.mxu0 0
  %238 = vmatpush1.bf16.msra.mxu0 %v189
  %239 = vmatprep.subr.bf16.mxu0 0
  %240 = vmatpush1.bf16.msra.mxu0 %v190
  %241 = vmatprep.subr.bf16.mxu0 0
  %242 = vmatpush1.bf16.msra.mxu0 %v191
  %243 = vmatprep.subr.bf16.mxu0 0
  %244 = vmatpush1.bf16.msra.mxu0 %v192
  %245 = vmatprep.subr.bf16.mxu0 0
  %246 = vmatpush1.bf16.msra.mxu0 0
  %247 = vmatprep.subr.bf16.mxu0 0
  %248 = vmatpush1.bf16.msra.mxu0 0
  %249 = vmatprep.subr.bf16.mxu0 0
  %250 = vmatpush1.bf16.msra.mxu0 0
  %251 = vmatprep.subr.bf16.mxu0 0
  %252 = vmatpush1.bf16.msra.mxu0 0
  %253 = vmatprep.subr.bf16.mxu0 0
  %254 = vmatpush1.bf16.msra.mxu0 0
  %255 = vmatprep.subr.bf16.mxu0 0
  %256 = vmatpush1.bf16.msra.mxu0 0
  %257 = vmatprep.subr.bf16.mxu0 0
  %258 = vmatpush1.bf16.msra.mxu0 0
  %259 = vmatprep.mubr.bf16.mxu0 %v204
  %260 = vmatmul.mubr.bf16.gmra.mrb[0].mxu0 %v124
  %v261 = vpop.f32.mrb[0].mxu0
  %v262 = vadd.f32 %v75, %v261
  %v263 = vpop.f32.mrb[0].mxu0
  %v264 = vpop.f32.mrb[0].mxu0
  %v265 = vadd.f32 %v75, %v264
  %v266 = vpop.f32.mrb[0].mxu0
  %267 = vmatprep.mubr.bf16.mxu0 %v207
  %268 = vmatmul.mubr.bf16.gmra.mrb[0].mxu0 %v126
  %v269 = vpop.f32.mrb[0].mxu0
  %v270 = vadd.f32 %v75, %v269
  %v271 = vpop.f32.mrb[0].mxu0
  %v272 = vpop.f32.mrb[0].mxu0
  %v273 = vadd.f32 %v75, %v272
  %v274 = vpop.f32.mrb[0].mxu0
  %275 = vmatprep.mubr.bf16.mxu0 %v210
  %276 = vmatmul.mubr.bf16.gmra.mrb[0].mxu0 %v128
  %v277 = vpop.f32.mrb[0].mxu0
  %v278 = vadd.f32 %v75, %v277
  %v279 = vpop.f32.mrb[0].mxu0
  %v280 = vpop.f32.mrb[0].mxu0
  %v281 = vadd.f32 %v75, %v280
  %v282 = vpop.f32.mrb[0].mxu0
  %283 = vmatprep.mubr.bf16.mxu0 %v213
  %284 = vmatmul.mubr.bf16.gmra.mrb[0].mxu0 %v130
  %v285 = vpop.f32.mrb[0].mxu0
  %v286 = vadd.f32 %v75, %v285
  %v287 = vpop.f32.mrb[0].mxu0
  %v288 = vpop.f32.mrb[0].mxu0
  %v289 = vadd.f32 %v75, %v288
  %v290 = vpop.f32.mrb[0].mxu0
  %291 = vmatprep.mubr.bf16.mxu0 %v216
  %292 = vmatmul.mubr.bf16.gmra.mrb[0].mxu0 %v132
  %v293 = vpop.f32.mrb[0].mxu0
  %v294 = vadd.f32 %v75, %v293
  %v295 = vpop.f32.mrb[0].mxu0
  %v296 = vpop.f32.mrb[0].mxu0
  %v297 = vadd.f32 %v75, %v296
  %v298 = vpop.f32.mrb[0].mxu0
  %299 = vmatprep.mubr.bf16.mxu0 %v219
  %300 = vmatmul.mubr.bf16.gmra.mrb[0].mxu0 %v134
  %v301 = vpop.f32.mrb[0].mxu0
  %v302 = vadd.f32 %v75, %v301
  %v303 = vpop.f32.mrb[0].mxu0
  %v304 = vpop.f32.mrb[0].mxu0
  %v305 = vadd.f32 %v75, %v304
  %v306 = vpop.f32.mrb[0].mxu0
  %307 = vmatprep.mubr.bf16.mxu0 %v222
  %308 = vmatmul.mubr.bf16.gmra.mrb[0].mxu0 %v136
  %v309 = vpop.f32.mrb[0].mxu0
  %v310 = vadd.f32 %v75, %v309
  %v311 = vpop.f32.mrb[0].mxu0
  %v312 = vpop.f32.mrb[0].mxu0
  %v313 = vadd.f32 %v75, %v312
  %v314 = vpop.f32.mrb[0].mxu0
  %315 = vmatprep.mubr.bf16.mxu0 %v225
  %316 = vmatmul.mubr.bf16.gmra.mrb[0].mxu0 %v138
  %v317 = vpop.f32.mrb[0].mxu0
  %v318 = vadd.f32 %v75, %v317
  %v319 = vpop.f32.mrb[0].mxu0
  %v320 = vpop.f32.mrb[0].mxu0
  %v321 = vadd.f32 %v75, %v320
  %v322 = vpop.f32.mrb[0].mxu0
  %323 = vdwg.mxu0
  %v324 = vsel %vm202, %v262, 0.0
  %v325 = vsel %vm202, %v265, 0.0
  %v326 = vadd.f32 %v324, %v325
  %v327 = vsel %vm202, %v270, 0.0
  %v328 = vadd.f32 %v326, %v327
  %v329 = vsel %vm202, %v273, 0.0
  %v330 = vadd.f32 %v328, %v329
  %v331 = vsel %vm202, %v278, 0.0
  %v332 = vadd.f32 %v330, %v331
  %v333 = vsel %vm202, %v281, 0.0
  %v334 = vadd.f32 %v332, %v333
  %v335 = vsel %vm202, %v286, 0.0
  %v336 = vadd.f32 %v334, %v335
  %v337 = vsel %vm202, %v289, 0.0
  %v338 = vadd.f32 %v336, %v337
  %v339 = vsel %vm202, %v294, 0.0
  %v340 = vadd.f32 %v338, %v339
  %v341 = vsel %vm202, %v297, 0.0
  %v342 = vadd.f32 %v340, %v341
  %v343 = vsel %vm202, %v302, 0.0
  %v344 = vadd.f32 %v342, %v343
  %v345 = vsel %vm202, %v305, 0.0
  %v346 = vadd.f32 %v344, %v345
  %v347 = vsel %vm202, %v310, 0.0
  %v348 = vadd.f32 %v346, %v347
  %v349 = vsel %vm202, %v313, 0.0
  %v350 = vadd.f32 %v348, %v349
  %v351 = vsel %vm202, %v318, 0.0
  %v352 = vadd.f32 %v350, %v351
  %v353 = vsel %vm202, %v321, 0.0
  %v354 = vadd.f32 %v352, %v353
  %v355 = vrot.slane %v354, 4
  %v356 = vadd.f32 %v354, %v355
  %v357 = vrot.slane %v356, 2
  %v358 = vadd.f32 %v356, %v357
  %v359 = vrot.slane %v358, 1
  %v360 = vadd.f32 %v358, %v359
  %v361 = vrcp.pop 128.0
  %v362 = vmul.f32 %v360, %v361
  %v363 = vsub.f32 %v262, %v362
  %v364 = vsub.f32 %v265, %v362
  %v365 = vsub.f32 %v270, %v362
  %v366 = vsub.f32 %v273, %v362
  %v367 = vsub.f32 %v278, %v362
  %v368 = vsub.f32 %v281, %v362
  %v369 = vsub.f32 %v286, %v362
  %v370 = vsub.f32 %v289, %v362
  %v371 = vsub.f32 %v294, %v362
  %v372 = vsub.f32 %v297, %v362
  %v373 = vsub.f32 %v302, %v362
  %v374 = vsub.f32 %v305, %v362
  %v375 = vsub.f32 %v310, %v362
  %v376 = vsub.f32 %v313, %v362
  %v377 = vsub.f32 %v318, %v362
  %v378 = vsub.f32 %v321, %v362
  %v379 = vmul.f32 %v363, %v363
  %v380 = vmul.f32 %v364, %v364
  %v381 = vmul.f32 %v365, %v365
  %v382 = vmul.f32 %v366, %v366
  %v383 = vmul.f32 %v367, %v367
  %v384 = vmul.f32 %v368, %v368
  %v385 = vmul.f32 %v369, %v369
  %v386 = vmul.f32 %v370, %v370
  %v387 = vmul.f32 %v371, %v371
  %v388 = vmul.f32 %v372, %v372
  %v389 = vmul.f32 %v373, %v373
  %v390 = vmul.f32 %v374, %v374
  %v391 = vmul.f32 %v375, %v375
  %v392 = vmul.f32 %v376, %v376
  %v393 = vmul.f32 %v377, %v377
  %v394 = vmul.f32 %v378, %v378
  %v395 = vsel %vm202, %v379, 0.0
  %v396 = vsel %vm202, %v380, 0.0
  %v397 = vadd.f32 %v395, %v396
  %v398 = vsel %vm202, %v381, 0.0
  %v399 = vadd.f32 %v397, %v398
  %v400 = vsel %vm202, %v382, 0.0
  %v401 = vadd.f32 %v399, %v400
  %v402 = vsel %vm202, %v383, 0.0
  %v403 = vadd.f32 %v401, %v402
  %v404 = vsel %vm202, %v384, 0.0
  %v405 = vadd.f32 %v403, %v404
  %v406 = vsel %vm202, %v385, 0.0
  %v407 = vadd.f32 %v405, %v406
  %v408 = vsel %vm202, %v386, 0.0
  %v409 = vadd.f32 %v407, %v408
  %v410 = vsel %vm202, %v387, 0.0
  %v411 = vadd.f32 %v409, %v410
  %v412 = vsel %vm202, %v388, 0.0
  %v413 = vadd.f32 %v411, %v412
  %v414 = vsel %vm202, %v389, 0.0
  %v415 = vadd.f32 %v413, %v414
  %v416 = vsel %vm202, %v390, 0.0
  %v417 = vadd.f32 %v415, %v416
  %v418 = vsel %vm202, %v391, 0.0
  %v419 = vadd.f32 %v417, %v418
  %v420 = vsel %vm202, %v392, 0.0
  %v421 = vadd.f32 %v419, %v420
  %v422 = vsel %vm202, %v393, 0.0
  %v423 = vadd.f32 %v421, %v422
  %v424 = vsel %vm202, %v394, 0.0
  %v425 = vadd.f32 %v423, %v424
  %v426 = vrot.slane %v425, 4
  %v427 = vadd.f32 %v425, %v426
  %v428 = vrot.slane %v427, 2
  %v429 = vadd.f32 %v427, %v428
  %v430 = vrot.slane %v429, 1
  %v431 = vadd.f32 %v429, %v430
  %v432 = vmul.f32 %v431, %v361
  %v433 = vadd.f32 %v432, 1e-05
  %v434 = vrsqrt.pop %v433
  %v435 = vmul.f32 %v21, %v434
  %v436 = vlaneseq
  %v437 = vshrl.u32 %v436, 7
  %v438 = vsub.s32 1, %v437
  %v439 = vrot.slane %v435, %v438
  %v440 = vmul.f32 %v363, %v439
  %v441 = vmul.f32 %v364, %v439
  %v442 = vmul.f32 %v365, %v439
  %v443 = vmul.f32 %v366, %v439
  %v444 = vmul.f32 %v367, %v439
  %v445 = vmul.f32 %v368, %v439
  %v446 = vmul.f32 %v369, %v439
  %v447 = vmul.f32 %v370, %v439
  %v448 = vmul.f32 %v371, %v439
  %v449 = vmul.f32 %v372, %v439
  %v450 = vmul.f32 %v373, %v439
  %v451 = vmul.f32 %v374, %v439
  %v452 = vmul.f32 %v375, %v439
  %v453 = vmul.f32 %v376, %v439
  %v454 = vmul.f32 %v377, %v439
  %v455 = vmul.f32 %v378, %v439
  %v456 = vlaneseq
  %v457 = vshrl.u32 %v456, 7
  %v458 = vsub.s32 2, %v457
  %v459 = vrot.slane %v21, %v458
  %v460 = vadd.f32 %v440, %v459
  %v461 = vadd.f32 %v441, %v459
  %v462 = vadd.f32 %v442, %v459
  %v463 = vadd.f32 %v443, %v459
  %v464 = vadd.f32 %v444, %v459
  %v465 = vadd.f32 %v445, %v459
  %v466 = vadd.f32 %v446, %v459
  %v467 = vadd.f32 %v447, %v459
  %v468 = vadd.f32 %v448, %v459
  %v469 = vadd.f32 %v449, %v459
  %v470 = vadd.f32 %v450, %v459
  %v471 = vadd.f32 %v451, %v459
  %v472 = vadd.f32 %v452, %v459
  %v473 = vadd.f32 %v453, %v459
  %v474 = vadd.f32 %v454, %v459
  %v475 = vadd.f32 %v455, %v459
  %v476 = vmax.f32 %v460, 0.0
  %v477 = vmax.f32 %v461, 0.0
  %v478 = vmax.f32 %v462, 0.0
  %v479 = vmax.f32 %v463, 0.0
  %v480 = vmax.f32 %v464, 0.0
  %v481 = vmax.f32 %v465, 0.0
  %v482 = vmax.f32 %v466, 0.0
  %v483 = vmax.f32 %v467, 0.0
  %v484 = vmax.f32 %v468, 0.0
  %v485 = vmax.f32 %v469, 0.0
  %v486 = vmax.f32 %v470, 0.0
  %v487 = vmax.f32 %v471, 0.0
  %v488 = vmax.f32 %v472, 0.0
  %v489 = vmax.f32 %v473, 0.0
  %v490 = vmax.f32 %v474, 0.0
  %v491 = vmax.f32 %v475, 0.0
  %v492 = vpack.c.bf16 %v477, %v476
  %v493 = vpack.c.bf16 %v479, %v478
  %v494 = vpack.c.bf16 %v481, %v480
  %v495 = vpack.c.bf16 %v483, %v482
  %v496 = vpack.c.bf16 %v485, %v484
  %v497 = vpack.c.bf16 %v487, %v486
  %v498 = vpack.c.bf16 %v489, %v488
  %v499 = vpack.c.bf16 %v491, %v490
  %v500 = vld [vmem:[%s2] sm:$0xf]
  %v501 = vld [vmem:[%s2 + $0x4] sm:$0xf]
  %v502 = vlaneseq
  %v503 = vshrl.u32 %v502, 7
  %v504 = vsub.s32 3, %v503
  %v505 = vrot.slane %v21, %v504
  %v508 = vunpack.c.l.b16 %v500
  %v509 = vunpack.c.l.b16 %v501
  %v510 = vpack.c.b16 %v509, %v508
  %v513 = vsel %vm202, %v492, 0
  %v516 = vsel %vm202, %v493, 0
  %v519 = vsel %vm202, %v494, 0
  %v522 = vsel %vm202, %v495, 0
  %v525 = vsel %vm202, %v496, 0
  %v528 = vsel %vm202, %v497, 0
  %v531 = vsel %vm202, %v498, 0
  %v534 = vsel %vm202, %v499, 0
  %536 = vmatprep.subr.bf16.mxu0 0
  %537 = vmatpush1.bf16.msra.mxu0 %v510
  %538 = vmatprep.subr.bf16.mxu0 0
  %539 = vmatpush1.bf16.msra.mxu0 0
  %540 = vmatprep.subr.bf16.mxu0 0
  %541 = vmatpush1.bf16.msra.mxu0 0
  %542 = vmatprep.subr.bf16.mxu0 0
  %543 = vmatpush1.bf16.msra.mxu0 0
  %544 = vmatprep.subr.bf16.mxu0 0
  %545 = vmatpush1.bf16.msra.mxu0 0
  %546 = vmatprep.subr.bf16.mxu0 0
  %547 = vmatpush1.bf16.msra.mxu0 0
  %548 = vmatprep.subr.bf16.mxu0 0
  %549 = vmatpush1.bf16.msra.mxu0 0
  %550 = vmatprep.subr.bf16.mxu0 0
  %551 = vmatpush1.bf16.msra.mxu0 0
  %552 = vmatprep.subr.bf16.mxu0 0
  %553 = vmatpush1.bf16.msra.mxu0 0
  %554 = vmatprep.subr.bf16.mxu0 0
  %555 = vmatpush1.bf16.msra.mxu0 0
  %556 = vmatprep.subr.bf16.mxu0 0
  %557 = vmatpush1.bf16.msra.mxu0 0
  %558 = vmatprep.subr.bf16.mxu0 0
  %559 = vmatpush1.bf16.msra.mxu0 0
  %560 = vmatprep.subr.bf16.mxu0 0
  %561 = vmatpush1.bf16.msra.mxu0 0
  %562 = vmatprep.subr.bf16.mxu0 0
  %563 = vmatpush1.bf16.msra.mxu0 0
  %564 = vmatprep.subr.bf16.mxu0 0
  %565 = vmatpush1.bf16.msra.mxu0 0
  %566 = vmatprep.subr.bf16.mxu0 0
  %567 = vmatpush1.bf16.msra.mxu0 0
  %568 = vmatprep.mubr.bf16.mxu0 0
  %569 = vmatmul.mubr.bf16.gmra.mrb[0].mxu0 %v513
  %v570 = vpop.f32.mrb[0].mxu0
  %v571 = vadd.f32 %v505, %v570
  %v572 = vpop.f32.mrb[0].mxu0
  %v573 = vpop.f32.mrb[0].mxu0
  %v574 = vadd.f32 %v505, %v573
  %v575 = vpop.f32.mrb[0].mxu0
  %576 = vmatprep.mubr.bf16.mxu0 0
  %577 = vmatmul.mubr.bf16.gmra.mrb[0].mxu0 %v516
  %v578 = vpop.f32.mrb[0].mxu0
  %v579 = vadd.f32 %v505, %v578
  %v580 = vpop.f32.mrb[0].mxu0
  %v581 = vpop.f32.mrb[0].mxu0
  %v582 = vadd.f32 %v505, %v581
  %v583 = vpop.f32.mrb[0].mxu0
  %584 = vmatprep.mubr.bf16.mxu0 0
  %585 = vmatmul.mubr.bf16.gmra.mrb[0].mxu0 %v519
  %v586 = vpop.f32.mrb[0].mxu0
  %v587 = vadd.f32 %v505, %v586
  %v588 = vpop.f32.mrb[0].mxu0
  %v589 = vpop.f32.mrb[0].mxu0
  %v590 = vadd.f32 %v505, %v589
  %v591 = vpop.f32.mrb[0].mxu0
  %592 = vmatprep.mubr.bf16.mxu0 0
  %593 = vmatmul.mubr.bf16.gmra.mrb[0].mxu0 %v522
  %v594 = vpop.f32.mrb[0].mxu0
  %v595 = vadd.f32 %v505, %v594
  %v596 = vpop.f32.mrb[0].mxu0
  %v597 = vpop.f32.mrb[0].mxu0
  %v598 = vadd.f32 %v505, %v597
  %v599 = vpop.f32.mrb[0].mxu0
  %600 = vmatprep.mubr.bf16.mxu0 0
  %601 = vmatmul.mubr.bf16.gmra.mrb[0].mxu0 %v525
  %v602 = vpop.f32.mrb[0].mxu0
  %v603 = vadd.f32 %v505, %v602
  %v604 = vpop.f32.mrb[0].mxu0
  %v605 = vpop.f32.mrb[0].mxu0
  %v606 = vadd.f32 %v505, %v605
  %v607 = vpop.f32.mrb[0].mxu0
  %608 = vmatprep.mubr.bf16.mxu0 0
  %609 = vmatmul.mubr.bf16.gmra.mrb[0].mxu0 %v528
  %v610 = vpop.f32.mrb[0].mxu0
  %v611 = vadd.f32 %v505, %v610
  %v612 = vpop.f32.mrb[0].mxu0
  %v613 = vpop.f32.mrb[0].mxu0
  %v614 = vadd.f32 %v505, %v613
  %v615 = vpop.f32.mrb[0].mxu0
  %616 = vmatprep.mubr.bf16.mxu0 0
  %617 = vmatmul.mubr.bf16.gmra.mrb[0].mxu0 %v531
  %v618 = vpop.f32.mrb[0].mxu0
  %v619 = vadd.f32 %v505, %v618
  %v620 = vpop.f32.mrb[0].mxu0
  %v621 = vpop.f32.mrb[0].mxu0
  %v622 = vadd.f32 %v505, %v621
  %v623 = vpop.f32.mrb[0].mxu0
  %624 = vmatprep.mubr.bf16.mxu0 0
  %625 = vmatmul.mubr.bf16.gmra.mrb[0].mxu0 %v534
  %v626 = vpop.f32.mrb[0].mxu0
  %v627 = vadd.f32 %v505, %v626
  %v628 = vpop.f32.mrb[0].mxu0
  %v629 = vpop.f32.mrb[0].mxu0
  %v630 = vadd.f32 %v505, %v629
  %v631 = vpop.f32.mrb[0].mxu0
  %632 = vdwg.mxu0
  %v633 = vld [vmem:[%s3] sm:$0xff]
  %v634 = vld [vmem:[%s3 + $0x8] sm:$0xff]
  %v635 = vld [vmem:[%s3 + $0x10] sm:$0xff]
  %v636 = vld [vmem:[%s3 + $0x18] sm:$0xff]
  %v637 = vld [vmem:[%s3 + $0x20] sm:$0xff]
  %v638 = vld [vmem:[%s3 + $0x28] sm:$0xff]
  %v639 = vld [vmem:[%s3 + $0x30] sm:$0xff]
  %v640 = vld [vmem:[%s3 + $0x38] sm:$0xff]
  %v641 = vld [vmem:[%s3 + $0x40] sm:$0xff]
  %v642 = vld [vmem:[%s3 + $0x48] sm:$0xff]
  %v643 = vld [vmem:[%s3 + $0x50] sm:$0xff]
  %v644 = vld [vmem:[%s3 + $0x58] sm:$0xff]
  %v645 = vld [vmem:[%s3 + $0x60] sm:$0xff]
  %v646 = vld [vmem:[%s3 + $0x68] sm:$0xff]
  %v647 = vld [vmem:[%s3 + $0x70] sm:$0xff]
  %v648 = vld [vmem:[%s3 + $0x78] sm:$0xff]
  %v649 = vadd.f32 %v633, %v571
  %v650 = vadd.f32 %v634, %v574
  %v651 = vadd.f32 %v635, %v579
  %v652 = vadd.f32 %v636, %v582
  %v653 = vadd.f32 %v637, %v587
  %v654 = vadd.f32 %v638, %v590
  %v655 = vadd.f32 %v639, %v595
  %v656 = vadd.f32 %v640, %v598
  %v657 = vadd.f32 %v641, %v603
  %v658 = vadd.f32 %v642, %v606
  %v659 = vadd.f32 %v643, %v611
  %v660 = vadd.f32 %v644, %v614
  %v661 = vadd.f32 %v645, %v619
  %v662 = vadd.f32 %v646, %v622
  %v663 = vadd.f32 %v647, %v627
  %v664 = vadd.f32 %v648, %v630
  %v665 = vsel %vm202, %v649, 0.0
  %v666 = vsel %vm202, %v650, 0.0
  %v667 = vadd.f32 %v665, %v666
  %v668 = vsel %vm202, %v651, 0.0
  %v669 = vadd.f32 %v667, %v668
  %v670 = vsel %vm202, %v652, 0.0
  %v671 = vadd.f32 %v669, %v670
  %v672 = vsel %vm202, %v653, 0.0
  %v673 = vadd.f32 %v671, %v672
  %v674 = vsel %vm202, %v654, 0.0
  %v675 = vadd.f32 %v673, %v674
  %v676 = vsel %vm202, %v655, 0.0
  %v677 = vadd.f32 %v675, %v676
  %v678 = vsel %vm202, %v656, 0.0
  %v679 = vadd.f32 %v677, %v678
  %v680 = vsel %vm202, %v657, 0.0
  %v681 = vadd.f32 %v679, %v680
  %v682 = vsel %vm202, %v658, 0.0
  %v683 = vadd.f32 %v681, %v682
  %v684 = vsel %vm202, %v659, 0.0
  %v685 = vadd.f32 %v683, %v684
  %v686 = vsel %vm202, %v660, 0.0
  %v687 = vadd.f32 %v685, %v686
  %v688 = vsel %vm202, %v661, 0.0
  %v689 = vadd.f32 %v687, %v688
  %v690 = vsel %vm202, %v662, 0.0
  %v691 = vadd.f32 %v689, %v690
  %v692 = vsel %vm202, %v663, 0.0
  %v693 = vadd.f32 %v691, %v692
  %v694 = vsel %vm202, %v664, 0.0
  %v695 = vadd.f32 %v693, %v694
  %v696 = vrot.slane %v695, 4
  %v697 = vadd.f32 %v695, %v696
  %v698 = vrot.slane %v697, 2
  %v699 = vadd.f32 %v697, %v698
  %v700 = vrot.slane %v699, 1
  %v701 = vadd.f32 %v699, %v700
  %v702 = vmul.f32 %v701, %v361
  %v703 = vsub.f32 %v649, %v702
  %v704 = vsub.f32 %v650, %v702
  %v705 = vsub.f32 %v651, %v702
  %v706 = vsub.f32 %v652, %v702
  %v707 = vsub.f32 %v653, %v702
  %v708 = vsub.f32 %v654, %v702
  %v709 = vsub.f32 %v655, %v702
  %v710 = vsub.f32 %v656, %v702
  %v711 = vsub.f32 %v657, %v702
  %v712 = vsub.f32 %v658, %v702
  %v713 = vsub.f32 %v659, %v702
  %v714 = vsub.f32 %v660, %v702
  %v715 = vsub.f32 %v661, %v702
  %v716 = vsub.f32 %v662, %v702
  %v717 = vsub.f32 %v663, %v702
  %v718 = vsub.f32 %v664, %v702
  %v719 = vmul.f32 %v703, %v703
  %v720 = vmul.f32 %v704, %v704
  %v721 = vmul.f32 %v705, %v705
  %v722 = vmul.f32 %v706, %v706
  %v723 = vmul.f32 %v707, %v707
  %v724 = vmul.f32 %v708, %v708
  %v725 = vmul.f32 %v709, %v709
  %v726 = vmul.f32 %v710, %v710
  %v727 = vmul.f32 %v711, %v711
  %v728 = vmul.f32 %v712, %v712
  %v729 = vmul.f32 %v713, %v713
  %v730 = vmul.f32 %v714, %v714
  %v731 = vmul.f32 %v715, %v715
  %v732 = vmul.f32 %v716, %v716
  %v733 = vmul.f32 %v717, %v717
  %v734 = vmul.f32 %v718, %v718
  %v735 = vsel %vm202, %v719, 0.0
  %v736 = vsel %vm202, %v720, 0.0
  %v737 = vadd.f32 %v735, %v736
  %v738 = vsel %vm202, %v721, 0.0
  %v739 = vadd.f32 %v737, %v738
  %v740 = vsel %vm202, %v722, 0.0
  %v741 = vadd.f32 %v739, %v740
  %v742 = vsel %vm202, %v723, 0.0
  %v743 = vadd.f32 %v741, %v742
  %v744 = vsel %vm202, %v724, 0.0
  %v745 = vadd.f32 %v743, %v744
  %v746 = vsel %vm202, %v725, 0.0
  %v747 = vadd.f32 %v745, %v746
  %v748 = vsel %vm202, %v726, 0.0
  %v749 = vadd.f32 %v747, %v748
  %v750 = vsel %vm202, %v727, 0.0
  %v751 = vadd.f32 %v749, %v750
  %v752 = vsel %vm202, %v728, 0.0
  %v753 = vadd.f32 %v751, %v752
  %v754 = vsel %vm202, %v729, 0.0
  %v755 = vadd.f32 %v753, %v754
  %v756 = vsel %vm202, %v730, 0.0
  %v757 = vadd.f32 %v755, %v756
  %v758 = vsel %vm202, %v731, 0.0
  %v759 = vadd.f32 %v757, %v758
  %v760 = vsel %vm202, %v732, 0.0
  %v761 = vadd.f32 %v759, %v760
  %v762 = vsel %vm202, %v733, 0.0
  %v763 = vadd.f32 %v761, %v762
  %v764 = vsel %vm202, %v734, 0.0
  %v765 = vadd.f32 %v763, %v764
  %v766 = vrot.slane %v765, 4
  %v767 = vadd.f32 %v765, %v766
  %v768 = vrot.slane %v767, 2
  %v769 = vadd.f32 %v767, %v768
  %v770 = vrot.slane %v769, 1
  %v771 = vadd.f32 %v769, %v770
  %v772 = vmul.f32 %v771, %v361
  %v773 = vadd.f32 %v772, 1e-05
  %v774 = vrsqrt.pop %v773
  %v775 = vmul.f32 %v21, %v774
  %v776 = vlaneseq
  %v777 = vshrl.u32 %v776, 7
  %v778 = vsub.s32 4, %v777
  %v779 = vrot.slane %v775, %v778
  %v780 = vmul.f32 %v703, %v779
  %v781 = vmul.f32 %v704, %v779
  %v782 = vmul.f32 %v705, %v779
  %v783 = vmul.f32 %v706, %v779
  %v784 = vmul.f32 %v707, %v779
  %v785 = vmul.f32 %v708, %v779
  %v786 = vmul.f32 %v709, %v779
  %v787 = vmul.f32 %v710, %v779
  %v788 = vmul.f32 %v711, %v779
  %v789 = vmul.f32 %v712, %v779
  %v790 = vmul.f32 %v713, %v779
  %v791 = vmul.f32 %v714, %v779
  %v792 = vmul.f32 %v715, %v779
  %v793 = vmul.f32 %v716, %v779
  %v794 = vmul.f32 %v717, %v779
  %v795 = vmul.f32 %v718, %v779
  %v796 = vlaneseq
  %v797 = vshrl.u32 %v796, 7
  %v798 = vsub.s32 5, %v797
  %v799 = vrot.slane %v21, %v798
  %v800 = vadd.f32 %v780, %v799
  %v801 = vadd.f32 %v781, %v799
  %v802 = vadd.f32 %v782, %v799
  %v803 = vadd.f32 %v783, %v799
  %v804 = vadd.f32 %v784, %v799
  %v805 = vadd.f32 %v785, %v799
  %v806 = vadd.f32 %v786, %v799
  %v807 = vadd.f32 %v787, %v799
  %v808 = vadd.f32 %v788, %v799
  %v809 = vadd.f32 %v789, %v799
  %v810 = vadd.f32 %v790, %v799
  %v811 = vadd.f32 %v791, %v799
  %v812 = vadd.f32 %v792, %v799
  %v813 = vadd.f32 %v793, %v799
  %v814 = vadd.f32 %v794, %v799
  %v815 = vadd.f32 %v795, %v799
  %816 = vst.msk [vmem:[%s5] sm:$0xff] %vm202, %v800
  %817 = vst.msk [vmem:[%s5 + $0x8] sm:$0xff] %vm202, %v801
  %818 = vst.msk [vmem:[%s5 + $0x10] sm:$0xff] %vm202, %v802
  %819 = vst.msk [vmem:[%s5 + $0x18] sm:$0xff] %vm202, %v803
  %820 = vst.msk [vmem:[%s5 + $0x20] sm:$0xff] %vm202, %v804
  %821 = vst.msk [vmem:[%s5 + $0x28] sm:$0xff] %vm202, %v805
  %822 = vst.msk [vmem:[%s5 + $0x30] sm:$0xff] %vm202, %v806
  %823 = vst.msk [vmem:[%s5 + $0x38] sm:$0xff] %vm202, %v807
  %824 = vst.msk [vmem:[%s5 + $0x40] sm:$0xff] %vm202, %v808
  %825 = vst.msk [vmem:[%s5 + $0x48] sm:$0xff] %vm202, %v809
  %826 = vst.msk [vmem:[%s5 + $0x50] sm:$0xff] %vm202, %v810
  %827 = vst.msk [vmem:[%s5 + $0x58] sm:$0xff] %vm202, %v811
  %828 = vst.msk [vmem:[%s5 + $0x60] sm:$0xff] %vm202, %v812
  %829 = vst.msk [vmem:[%s5 + $0x68] sm:$0xff] %vm202, %v813
  %830 = vst.msk [vmem:[%s5 + $0x70] sm:$0xff] %vm202, %v814
  %831 = vst.msk [vmem:[%s5 + $0x78] sm:$0xff] %vm202, %v815
  // Predicated region
  $region22: #{vq_cvae_forward.11} parent=0 // pred_check
    _
  $region23: #{vq_cvae_forward.11} parent=0 // pred_check_branch
    %833 = sbr.rel (0) target = $region25
  $region24: #{vq_cvae_forward.11} parent=0 // pred_region
    _
  $region25: #{vq_cvae_forward.11} parent=0 // pred_fallthru
    _
  // Predicated region
  $region26: #{vq_cvae_forward.11} parent=0 // pred_check
    _
  $region27: #{vq_cvae_forward.11} parent=0 // pred_check_branch
    %835 = sbr.rel (0) target = $region29
  $region28: #{vq_cvae_forward.11} parent=0 // pred_region
    _
  $region29: #{vq_cvae_forward.11} parent=0 // pred_fallthru
    _

// kernel: vq_cvae_forward.13
$region0: #{vq_cvae_forward.13}
  #allocation0 [shape = 'u32[]', space=smem, size = 0x4, offset = 0x4, fixed_abs, tag = 'smem constant byte address 0x4 - core index']
  #allocation1 [shape = 'u32[144,128]{1,0:T(1,128)}', space=vmem, size = 0x12000, scoped, tag = 'internal scratch']
  %s0 = inlined_call_operand.vmem [shape: f32[128,16], index: 0, kind: input, shape index: {}]
  %s1 = inlined_call_operand.vmem [shape: f32[10,16], index: 1, kind: input, shape index: {}]
  %s2 = inlined_call_operand.vmem [shape: f32[1,10], index: 2, kind: input, shape index: {}]
  %s3 = inlined_call_operand.vmem [shape: f32[128,16], index: 3, kind: output, shape index: {0}]
  %s4 = inlined_call_operand.vmem [shape: s32[128,1], index: 4, kind: output, shape index: {1}]
  %5 = xla_tuple %s3, %s4
  %s6 = sld [smem:[#allocation0]]
  $region30: #{vq_cvae_forward.13} parent=0
    _
  %s8 = ssub.s32 1, %s6
  %s9 = scalar_select 0, %s8, %s6
  // Predicated region
  $region2: #{vq_cvae_forward.13} parent=0 // pred_check
    _
  $region3: #{vq_cvae_forward.13} parent=0 // pred_check_branch
    %11 = sbr.rel (0) target = $region5
  $region4: #{vq_cvae_forward.13} parent=0 // pred_region
    _
  $region5: #{vq_cvae_forward.13} parent=0 // pred_fallthru
    _
  // Predicated region
  $region6: #{vq_cvae_forward.13} parent=0 // pred_check
    _
  $region7: #{vq_cvae_forward.13} parent=0 // pred_check_branch
    %13 = sbr.rel (0) target = $region9
  $region8: #{vq_cvae_forward.13} parent=0 // pred_region
    _
  $region9: #{vq_cvae_forward.13} parent=0 // pred_fallthru
    _
  // Predicated region
  $region10: #{vq_cvae_forward.13} parent=0 // pred_check
    _
  $region11: #{vq_cvae_forward.13} parent=0 // pred_check_branch
    %15 = sbr.rel (0) target = $region13
  $region12: #{vq_cvae_forward.13} parent=0 // pred_region
    _
  $region13: #{vq_cvae_forward.13} parent=0 // pred_fallthru
    _
  %v16 = vld [vmem:[%s0] sm:$0xff]
  %v17 = vld [vmem:[%s0 + $0x8] sm:$0xff]
  %v18 = vld [vmem:[%s0 + $0x10] sm:$0xff]
  %v19 = vld [vmem:[%s0 + $0x18] sm:$0xff]
  %v20 = vld [vmem:[%s0 + $0x20] sm:$0xff]
  %v21 = vld [vmem:[%s0 + $0x28] sm:$0xff]
  %v22 = vld [vmem:[%s0 + $0x30] sm:$0xff]
  %v23 = vld [vmem:[%s0 + $0x38] sm:$0xff]
  %v24 = vld [vmem:[%s0 + $0x40] sm:$0xff]
  %v25 = vld [vmem:[%s0 + $0x48] sm:$0xff]
  %v26 = vld [vmem:[%s0 + $0x50] sm:$0xff]
  %v27 = vld [vmem:[%s0 + $0x58] sm:$0xff]
  %v28 = vld [vmem:[%s0 + $0x60] sm:$0xff]
  %v29 = vld [vmem:[%s0 + $0x68] sm:$0xff]
  %v30 = vld [vmem:[%s0 + $0x70] sm:$0xff]
  %v31 = vld [vmem:[%s0 + $0x78] sm:$0xff]
  %v32 = vld [vmem:[%s1] sm:$0xff]
  %v33 = vld [vmem:[%s1 + $0x8] sm:$0x3]
  %vm34 = vcmask 130048
  %v36 = vsel %vm34, %v16, 0
  %v39 = vsel %vm34, %v17, 0
  %v42 = vsel %vm34, %v18, 0
  %v45 = vsel %vm34, %v19, 0
  %v48 = vsel %vm34, %v20, 0
  %v51 = vsel %vm34, %v21, 0
  %v54 = vsel %vm34, %v22, 0
  %v57 = vsel %vm34, %v23, 0
  %v60 = vsel %vm34, %v24, 0
  %v63 = vsel %vm34, %v25, 0
  %v66 = vsel %vm34, %v26, 0
  %v69 = vsel %vm34, %v27, 0
  %v72 = vsel %vm34, %v28, 0
  %v75 = vsel %vm34, %v29, 0
  %v78 = vsel %vm34, %v30, 0
  %v81 = vsel %vm34, %v31, 0
  %v84 = vsel %vm34, %v32, 0
  %v87 = vsel %vm34, %v33, 0
  %89 = vmatprep.subr.mxu0 0.0
  %90 = vmatpush1.xpose.msra.mxu0 %v84
  %91 = vmatprep.subr.mxu0 0.0
  %92 = vmatpush1.xpose.msra.mxu0 %v87
  %93 = vmatprep.subr.mxu0 0.0
  %94 = vmatpush1.xpose.msra.mxu0 0.0
  %95 = vmatprep.subr.mxu0 0.0
  %96 = vmatpush1.xpose.msra.mxu0 0.0
  %97 = vmatprep.subr.mxu0 0.0
  %98 = vmatpush1.xpose.msra.mxu0 0.0
  %99 = vmatprep.subr.mxu0 0.0
  %100 = vmatpush1.xpose.msra.mxu0 0.0
  %101 = vmatprep.subr.mxu0 0.0
  %102 = vmatpush1.xpose.msra.mxu0 0.0
  %103 = vmatprep.subr.mxu0 0.0
  %104 = vmatpush1.xpose.msra.mxu0 0.0
  %105 = vmatprep.subr.mxu0 0.0
  %106 = vmatpush1.xpose.msra.mxu0 0.0
  %107 = vmatprep.subr.mxu0 0.0
  %108 = vmatpush1.xpose.msra.mxu0 0.0
  %109 = vmatprep.subr.mxu0 0.0
  %110 = vmatpush1.xpose.msra.mxu0 0.0
  %111 = vmatprep.subr.mxu0 0.0
  %112 = vmatpush1.xpose.msra.mxu0 0.0
  %113 = vmatprep.subr.mxu0 0.0
  %114 = vmatpush1.xpose.msra.mxu0 0.0
  %115 = vmatprep.subr.mxu0 0.0
  %116 = vmatpush1.xpose.msra.mxu0 0.0
  %117 = vmatprep.subr.mxu0 0.0
  %118 = vmatpush1.xpose.msra.mxu0 0.0
  %119 = vmatprep.subr.mxu0 0.0
  %120 = vmatpush1.xpose.msra.mxu0 0.0
  %121 = vmatprep.subr.mxu0 0.0
  %122 = vmatpush1.xpose.msra.mxu0 0.0
  %123 = vmatprep.subr.mxu0 0.0
  %124 = vmatpush1.xpose.msra.mxu0 0.0
  %125 = vmatprep.subr.mxu0 0.0
  %126 = vmatpush1.xpose.msra.mxu0 0.0
  %127 = vmatprep.subr.mxu0 0.0
  %128 = vmatpush1.xpose.msra.mxu0 0.0
  %129 = vmatprep.subr.mxu0 0.0
  %130 = vmatpush1.xpose.msra.mxu0 0.0
  %131 = vmatprep.subr.mxu0 0.0
  %132 = vmatpush1.xpose.msra.mxu0 0.0
  %133 = vmatprep.subr.mxu0 0.0
  %134 = vmatpush1.xpose.msra.mxu0 0.0
  %135 = vmatprep.subr.mxu0 0.0
  %136 = vmatpush1.xpose.msra.mxu0 0.0
  %137 = vmatprep.subr.mxu0 0.0
  %138 = vmatpush1.xpose.msra.mxu0 0.0
  %139 = vmatprep.subr.mxu0 0.0
  %140 = vmatpush1.xpose.msra.mxu0 0.0
  %141 = vmatprep.subr.mxu0 0.0
  %142 = vmatpush1.xpose.msra.mxu0 0.0
  %143 = vmatprep.subr.mxu0 0.0
  %144 = vmatpush1.xpose.msra.mxu0 0.0
  %145 = vmatprep.subr.mxu0 0.0
  %146 = vmatpush1.xpose.msra.mxu0 0.0
  %147 = vmatprep.subr.mxu0 0.0
  %148 = vmatpush1.xpose.msra.mxu0 0.0
  %149 = vmatprep.subr.mxu0 0.0
  %150 = vmatpush1.xpose.msra.mxu0 0.0
  %151 = vmatprep.subr.mxu0 0.0
  %152 = vmatpush1.xpose.msra.mxu0 0.0
  %153 = vmatprep.mubr.f32.mxu0 0.0
  %154 = vmatmul.mubr.f32.gmra.mrb[0].mxu0 %v36
  %v155 = vpop.f32.mrb[0].mxu0
  %v156 = vadd.f32 0.0, %v155
  %v157 = vpop.f32.mrb[0].mxu0
  %158 = vmatprep.mubr.f32.mxu0 0.0
  %159 = vmatmul.mubr.f32.gmra.mrb[0].mxu0 %v39
  %v160 = vpop.f32.mrb[0].mxu0
  %v161 = vadd.f32 0.0, %v160
  %v162 = vpop.f32.mrb[0].mxu0
  %163 = vmatprep.mubr.f32.mxu0 0.0
  %164 = vmatmul.mubr.f32.gmra.mrb[0].mxu0 %v42
  %v165 = vpop.f32.mrb[0].mxu0
  %v166 = vadd.f32 0.0, %v165
  %v167 = vpop.f32.mrb[0].mxu0
  %168 = vmatprep.mubr.f32.mxu0 0.0
  %169 = vmatmul.mubr.f32.gmra.mrb[0].mxu0 %v45
  %v170 = vpop.f32.mrb[0].mxu0
  %v171 = vadd.f32 0.0, %v170
  %v172 = vpop.f32.mrb[0].mxu0
  %173 = vmatprep.mubr.f32.mxu0 0.0
  %174 = vmatmul.mubr.f32.gmra.mrb[0].mxu0 %v48
  %v175 = vpop.f32.mrb[0].mxu0
  %v176 = vadd.f32 0.0, %v175
  %v177 = vpop.f32.mrb[0].mxu0
  %178 = vmatprep.mubr.f32.mxu0 0.0
  %179 = vmatmul.mubr.f32.gmra.mrb[0].mxu0 %v51
  %v180 = vpop.f32.mrb[0].mxu0
  %v181 = vadd.f32 0.0, %v180
  %v182 = vpop.f32.mrb[0].mxu0
  %183 = vmatprep.mubr.f32.mxu0 0.0
  %184 = vmatmul.mubr.f32.gmra.mrb[0].mxu0 %v54
  %v185 = vpop.f32.mrb[0].mxu0
  %v186 = vadd.f32 0.0, %v185
  %v187 = vpop.f32.mrb[0].mxu0
  %188 = vmatprep.mubr.f32.mxu0 0.0
  %189 = vmatmul.mubr.f32.gmra.mrb[0].mxu0 %v57
  %v190 = vpop.f32.mrb[0].mxu0
  %v191 = vadd.f32 0.0, %v190
  %v192 = vpop.f32.mrb[0].mxu0
  %193 = vmatprep.mubr.f32.mxu0 0.0
  %194 = vmatmul.mubr.f32.gmra.mrb[0].mxu0 %v60
  %v195 = vpop.f32.mrb[0].mxu0
  %v196 = vadd.f32 0.0, %v195
  %v197 = vpop.f32.mrb[0].mxu0
  %198 = vmatprep.mubr.f32.mxu0 0.0
  %199 = vmatmul.mubr.f32.gmra.mrb[0].mxu0 %v63
  %v200 = vpop.f32.mrb[0].mxu0
  %v201 = vadd.f32 0.0, %v200
  %v202 = vpop.f32.mrb[0].mxu0
  %203 = vmatprep.mubr.f32.mxu0 0.0
  %204 = vmatmul.mubr.f32.gmra.mrb[0].mxu0 %v66
  %v205 = vpop.f32.mrb[0].mxu0
  %v206 = vadd.f32 0.0, %v205
  %v207 = vpop.f32.mrb[0].mxu0
  %208 = vmatprep.mubr.f32.mxu0 0.0
  %209 = vmatmul.mubr.f32.gmra.mrb[0].mxu0 %v69
  %v210 = vpop.f32.mrb[0].mxu0
  %v211 = vadd.f32 0.0, %v210
  %v212 = vpop.f32.mrb[0].mxu0
  %213 = vmatprep.mubr.f32.mxu0 0.0
  %214 = vmatmul.mubr.f32.gmra.mrb[0].mxu0 %v72
  %v215 = vpop.f32.mrb[0].mxu0
  %v216 = vadd.f32 0.0, %v215
  %v217 = vpop.f32.mrb[0].mxu0
  %218 = vmatprep.mubr.f32.mxu0 0.0
  %219 = vmatmul.mubr.f32.gmra.mrb[0].mxu0 %v75
  %v220 = vpop.f32.mrb[0].mxu0
  %v221 = vadd.f32 0.0, %v220
  %v222 = vpop.f32.mrb[0].mxu0
  %223 = vmatprep.mubr.f32.mxu0 0.0
  %224 = vmatmul.mubr.f32.gmra.mrb[0].mxu0 %v78
  %v225 = vpop.f32.mrb[0].mxu0
  %v226 = vadd.f32 0.0, %v225
  %v227 = vpop.f32.mrb[0].mxu0
  %228 = vmatprep.mubr.f32.mxu0 0.0
  %229 = vmatmul.mubr.f32.gmra.mrb[0].mxu0 %v81
  %v230 = vpop.f32.mrb[0].mxu0
  %v231 = vadd.f32 0.0, %v230
  %v232 = vpop.f32.mrb[0].mxu0
  %233 = vdwg.mxu0
  %v234 = vld [vmem:[%s2] sm:$0x1]
  %v235 = vmul.f32 %v156, 2.0
  %v236 = vmul.f32 %v161, 2.0
  %v237 = vmul.f32 %v166, 2.0
  %v238 = vmul.f32 %v171, 2.0
  %v239 = vmul.f32 %v176, 2.0
  %v240 = vmul.f32 %v181, 2.0
  %v241 = vmul.f32 %v186, 2.0
  %v242 = vmul.f32 %v191, 2.0
  %v243 = vmul.f32 %v196, 2.0
  %v244 = vmul.f32 %v201, 2.0
  %v245 = vmul.f32 %v206, 2.0
  %v246 = vmul.f32 %v211, 2.0
  %v247 = vmul.f32 %v216, 2.0
  %v248 = vmul.f32 %v221, 2.0
  %v249 = vmul.f32 %v226, 2.0
  %v250 = vmul.f32 %v231, 2.0
  %v252 = vlaneseq
  %v253 = vshrl.u32 %v252, 7
  %v254 = vsub.s32 0, %v253
  %v255 = vrot.slane %v234, %v254
  %v257 = vsub.f32 %v255, %v235
  %v258 = vsub.f32 %v255, %v236
  %v259 = vsub.f32 %v255, %v237
  %v260 = vsub.f32 %v255, %v238
  %v261 = vsub.f32 %v255, %v239
  %v262 = vsub.f32 %v255, %v240
  %v263 = vsub.f32 %v255, %v241
  %v264 = vsub.f32 %v255, %v242
  %v265 = vsub.f32 %v255, %v243
  %v266 = vsub.f32 %v255, %v244
  %v267 = vsub.f32 %v255, %v245
  %v268 = vsub.f32 %v255, %v246
  %v269 = vsub.f32 %v255, %v247
  %v270 = vsub.f32 %v255, %v248
  %v271 = vsub.f32 %v255, %v249
  %v272 = vsub.f32 %v255, %v250
  %v273 = vlaneseq
  %v274 = vand.u32 %v273, 127
  %vm275 = vcmask 80896
  %v276 = vsel %vm275, %v257, inf
  %277 = vmin.xlane.f32.xlu0 %v276
  %v278 = vpop.xlane.xlu0 %277
  %v279 = vsel %vm275, %v258, inf
  %280 = vmin.xlane.f32.xlu0 %v279
  %v281 = vpop.xlane.xlu0 %280
  %v282 = vsel %vm275, %v259, inf
  %283 = vmin.xlane.f32.xlu0 %v282
  %v284 = vpop.xlane.xlu0 %283
  %v285 = vsel %vm275, %v260, inf
  %286 = vmin.xlane.f32.xlu0 %v285
  %v287 = vpop.xlane.xlu0 %286
  %v288 = vsel %vm275, %v261, inf
  %289 = vmin.xlane.f32.xlu0 %v288
  %v290 = vpop.xlane.xlu0 %289
  %v291 = vsel %vm275, %v262, inf
  %292 = vmin.xlane.f32.xlu0 %v291
  %v293 = vpop.xlane.xlu0 %292
  %v294 = vsel %vm275, %v263, inf
  %295 = vmin.xlane.f32.xlu0 %v294
  %v296 = vpop.xlane.xlu0 %295
  %v297 = vsel %vm275, %v264, inf
  %298 = vmin.xlane.f32.xlu0 %v297
  %v299 = vpop.xlane.xlu0 %298
  %v300 = vsel %vm275, %v265, inf
  %301 = vmin.xlane.f32.xlu0 %v300
  %v302 = vpop.xlane.xlu0 %301
  %v303 = vsel %vm275, %v266, inf
  %304 = vmin.xlane.f32.xlu0 %v303
  %v305 = vpop.xlane.xlu0 %304
  %v306 = vsel %vm275, %v267, inf
  %307 = vmin.xlane.f32.xlu0 %v306
  %v308 = vpop.xlane.xlu0 %307
  %v309 = vsel %vm275, %v268, inf
  %310 = vmin.xlane.f32.xlu0 %v309
  %v311 = vpop.xlane.xlu0 %310
  %v312 = vsel %vm275, %v269, inf
  %313 = vmin.xlane.f32.xlu0 %v312
  %v314 = vpop.xlane.xlu0 %313
  %v315 = vsel %vm275, %v270, inf
  %316 = vmin.xlane.f32.xlu0 %v315
  %v317 = vpop.xlane.xlu0 %316
  %v318 = vsel %vm275, %v271, inf
  %319 = vmin.xlane.f32.xlu0 %v318
  %v320 = vpop.xlane.xlu0 %319
  %v321 = vsel %vm275, %v272, inf
  %322 = vmin.xlane.f32.xlu0 %v321
  %v323 = vpop.xlane.xlu0 %322
  %vm324 = vcmp.le.f32.partialorder %v257, %v278
  %vm325 = vcmp.le.f32.partialorder %v258, %v281
  %vm326 = vcmp.le.f32.partialorder %v259, %v284
  %vm327 = vcmp.le.f32.partialorder %v260, %v287
  %vm328 = vcmp.le.f32.partialorder %v261, %v290
  %vm329 = vcmp.le.f32.partialorder %v262, %v293
  %vm330 = vcmp.le.f32.partialorder %v263, %v296
  %vm331 = vcmp.le.f32.partialorder %v264, %v299
  %vm332 = vcmp.le.f32.partialorder %v265, %v302
  %vm333 = vcmp.le.f32.partialorder %v266, %v305
  %vm334 = vcmp.le.f32.partialorder %v267, %v308
  %vm335 = vcmp.le.f32.partialorder %v268, %v311
  %vm336 = vcmp.le.f32.partialorder %v269, %v314
  %vm337 = vcmp.le.f32.partialorder %v270, %v317
  %vm338 = vcmp.le.f32.partialorder %v271, %v320
  %vm339 = vcmp.le.f32.partialorder %v272, %v323
  %v340 = vsel %vm324, %v274, 10
  %v341 = vsel %vm325, %v274, 10
  %v342 = vsel %vm326, %v274, 10
  %v343 = vsel %vm327, %v274, 10
  %v344 = vsel %vm328, %v274, 10
  %v345 = vsel %vm329, %v274, 10
  %v346 = vsel %vm330, %v274, 10
  %v347 = vsel %vm331, %v274, 10
  %v348 = vsel %vm332, %v274, 10
  %v349 = vsel %vm333, %v274, 10
  %v350 = vsel %vm334, %v274, 10
  %v351 = vsel %vm335, %v274, 10
  %v352 = vsel %vm336, %v274, 10
  %v353 = vsel %vm337, %v274, 10
  %v354 = vsel %vm338, %v274, 10
  %v355 = vsel %vm339, %v274, 10
  %v356 = vsel %vm275, %v340, 2147483647
  %v357 = vand.u32 %v356, 65535
  %v358 = vshra.s32 %v356, 16
  %v359 = vcvt.s32.f32 %v357
  %v360 = vcvt.s32.f32 %v358
  %361 = vmin.xlane.f32.xlu0 %v360
  %v362 = vpop.xlane.xlu0 %361
  %vm363 = vcmp.eq.f32.partialorder %v360, %v362
  %v364 = vsel %vm363, %v359, inf
  %365 = vmin.xlane.f32.xlu0 %v364
  %v366 = vpop.xlane.xlu0 %365
  %v367 = vcvt.f32.s32 %v366
  %v368 = vcvt.f32.s32 %v362
  %v369 = vshll.u32 %v368, 16
  %v370 = vadd.s32 %v369, %v367
  %v371 = vsel %vm275, %v341, 2147483647
  %v372 = vand.u32 %v371, 65535
  %v373 = vshra.s32 %v371, 16
  %v374 = vcvt.s32.f32 %v372
  %v375 = vcvt.s32.f32 %v373
  %376 = vmin.xlane.f32.xlu0 %v375
  %v377 = vpop.xlane.xlu0 %376
  %vm378 = vcmp.eq.f32.partialorder %v375, %v377
  %v379 = vsel %vm378, %v374, inf
  %380 = vmin.xlane.f32.xlu0 %v379
  %v381 = vpop.xlane.xlu0 %380
  %v382 = vcvt.f32.s32 %v381
  %v383 = vcvt.f32.s32 %v377
  %v384 = vshll.u32 %v383, 16
  %v385 = vadd.s32 %v384, %v382
  %v386 = vsel %vm275, %v342, 2147483647
  %v387 = vand.u32 %v386, 65535
  %v388 = vshra.s32 %v386, 16
  %v389 = vcvt.s32.f32 %v387
  %v390 = vcvt.s32.f32 %v388
  %391 = vmin.xlane.f32.xlu0 %v390
  %v392 = vpop.xlane.xlu0 %391
  %vm393 = vcmp.eq.f32.partialorder %v390, %v392
  %v394 = vsel %vm393, %v389, inf
  %395 = vmin.xlane.f32.xlu0 %v394
  %v396 = vpop.xlane.xlu0 %395
  %v397 = vcvt.f32.s32 %v396
  %v398 = vcvt.f32.s32 %v392
  %v399 = vshll.u32 %v398, 16
  %v400 = vadd.s32 %v399, %v397
  %v401 = vsel %vm275, %v343, 2147483647
  %v402 = vand.u32 %v401, 65535
  %v403 = vshra.s32 %v401, 16
  %v404 = vcvt.s32.f32 %v402
  %v405 = vcvt.s32.f32 %v403
  %406 = vmin.xlane.f32.xlu0 %v405
  %v407 = vpop.xlane.xlu0 %406
  %vm408 = vcmp.eq.f32.partialorder %v405, %v407
  %v409 = vsel %vm408, %v404, inf
  %410 = vmin.xlane.f32.xlu0 %v409
  %v411 = vpop.xlane.xlu0 %410
  %v412 = vcvt.f32.s32 %v411
  %v413 = vcvt.f32.s32 %v407
  %v414 = vshll.u32 %v413, 16
  %v415 = vadd.s32 %v414, %v412
  %v416 = vsel %vm275, %v344, 2147483647
  %v417 = vand.u32 %v416, 65535
  %v418 = vshra.s32 %v416, 16
  %v419 = vcvt.s32.f32 %v417
  %v420 = vcvt.s32.f32 %v418
  %421 = vmin.xlane.f32.xlu0 %v420
  %v422 = vpop.xlane.xlu0 %421
  %vm423 = vcmp.eq.f32.partialorder %v420, %v422
  %v424 = vsel %vm423, %v419, inf
  %425 = vmin.xlane.f32.xlu0 %v424
  %v426 = vpop.xlane.xlu0 %425
  %v427 = vcvt.f32.s32 %v426
  %v428 = vcvt.f32.s32 %v422
  %v429 = vshll.u32 %v428, 16
  %v430 = vadd.s32 %v429, %v427
  %v431 = vsel %vm275, %v345, 2147483647
  %v432 = vand.u32 %v431, 65535
  %v433 = vshra.s32 %v431, 16
  %v434 = vcvt.s32.f32 %v432
  %v435 = vcvt.s32.f32 %v433
  %436 = vmin.xlane.f32.xlu0 %v435
  %v437 = vpop.xlane.xlu0 %436
  %vm438 = vcmp.eq.f32.partialorder %v435, %v437
  %v439 = vsel %vm438, %v434, inf
  %440 = vmin.xlane.f32.xlu0 %v439
  %v441 = vpop.xlane.xlu0 %440
  %v442 = vcvt.f32.s32 %v441
  %v443 = vcvt.f32.s32 %v437
  %v444 = vshll.u32 %v443, 16
  %v445 = vadd.s32 %v444, %v442
  %v446 = vsel %vm275, %v346, 2147483647
  %v447 = vand.u32 %v446, 65535
  %v448 = vshra.s32 %v446, 16
  %v449 = vcvt.s32.f32 %v447
  %v450 = vcvt.s32.f32 %v448
  %451 = vmin.xlane.f32.xlu0 %v450
  %v452 = vpop.xlane.xlu0 %451
  %vm453 = vcmp.eq.f32.partialorder %v450, %v452
  %v454 = vsel %vm453, %v449, inf
  %455 = vmin.xlane.f32.xlu0 %v454
  %v456 = vpop.xlane.xlu0 %455
  %v457 = vcvt.f32.s32 %v456
  %v458 = vcvt.f32.s32 %v452
  %v459 = vshll.u32 %v458, 16
  %v460 = vadd.s32 %v459, %v457
  %v461 = vsel %vm275, %v347, 2147483647
  %v462 = vand.u32 %v461, 65535
  %v463 = vshra.s32 %v461, 16
  %v464 = vcvt.s32.f32 %v462
  %v465 = vcvt.s32.f32 %v463
  %466 = vmin.xlane.f32.xlu0 %v465
  %v467 = vpop.xlane.xlu0 %466
  %vm468 = vcmp.eq.f32.partialorder %v465, %v467
  %v469 = vsel %vm468, %v464, inf
  %470 = vmin.xlane.f32.xlu0 %v469
  %v471 = vpop.xlane.xlu0 %470
  %v472 = vcvt.f32.s32 %v471
  %v473 = vcvt.f32.s32 %v467
  %v474 = vshll.u32 %v473, 16
  %v475 = vadd.s32 %v474, %v472
  %v476 = vsel %vm275, %v348, 2147483647
  %v477 = vand.u32 %v476, 65535
  %v478 = vshra.s32 %v476, 16
  %v479 = vcvt.s32.f32 %v477
  %v480 = vcvt.s32.f32 %v478
  %481 = vmin.xlane.f32.xlu0 %v480
  %v482 = vpop.xlane.xlu0 %481
  %vm483 = vcmp.eq.f32.partialorder %v480, %v482
  %v484 = vsel %vm483, %v479, inf
  %485 = vmin.xlane.f32.xlu0 %v484
  %v486 = vpop.xlane.xlu0 %485
  %v487 = vcvt.f32.s32 %v486
  %v488 = vcvt.f32.s32 %v482
  %v489 = vshll.u32 %v488, 16
  %v490 = vadd.s32 %v489, %v487
  %v491 = vsel %vm275, %v349, 2147483647
  %v492 = vand.u32 %v491, 65535
  %v493 = vshra.s32 %v491, 16
  %v494 = vcvt.s32.f32 %v492
  %v495 = vcvt.s32.f32 %v493
  %496 = vmin.xlane.f32.xlu0 %v495
  %v497 = vpop.xlane.xlu0 %496
  %vm498 = vcmp.eq.f32.partialorder %v495, %v497
  %v499 = vsel %vm498, %v494, inf
  %500 = vmin.xlane.f32.xlu0 %v499
  %v501 = vpop.xlane.xlu0 %500
  %v502 = vcvt.f32.s32 %v501
  %v503 = vcvt.f32.s32 %v497
  %v504 = vshll.u32 %v503, 16
  %v505 = vadd.s32 %v504, %v502
  %v506 = vsel %vm275, %v350, 2147483647
  %v507 = vand.u32 %v506, 65535
  %v508 = vshra.s32 %v506, 16
  %v509 = vcvt.s32.f32 %v507
  %v510 = vcvt.s32.f32 %v508
  %511 = vmin.xlane.f32.xlu0 %v510
  %v512 = vpop.xlane.xlu0 %511
  %vm513 = vcmp.eq.f32.partialorder %v510, %v512
  %v514 = vsel %vm513, %v509, inf
  %515 = vmin.xlane.f32.xlu0 %v514
  %v516 = vpop.xlane.xlu0 %515
  %v517 = vcvt.f32.s32 %v516
  %v518 = vcvt.f32.s32 %v512
  %v519 = vshll.u32 %v518, 16
  %v520 = vadd.s32 %v519, %v517
  %v521 = vsel %vm275, %v351, 2147483647
  %v522 = vand.u32 %v521, 65535
  %v523 = vshra.s32 %v521, 16
  %v524 = vcvt.s32.f32 %v522
  %v525 = vcvt.s32.f32 %v523
  %526 = vmin.xlane.f32.xlu0 %v525
  %v527 = vpop.xlane.xlu0 %526
  %vm528 = vcmp.eq.f32.partialorder %v525, %v527
  %v529 = vsel %vm528, %v524, inf
  %530 = vmin.xlane.f32.xlu0 %v529
  %v531 = vpop.xlane.xlu0 %530
  %v532 = vcvt.f32.s32 %v531
  %v533 = vcvt.f32.s32 %v527
  %v534 = vshll.u32 %v533, 16
  %v535 = vadd.s32 %v534, %v532
  %v536 = vsel %vm275, %v352, 2147483647
  %v537 = vand.u32 %v536, 65535
  %v538 = vshra.s32 %v536, 16
  %v539 = vcvt.s32.f32 %v537
  %v540 = vcvt.s32.f32 %v538
  %541 = vmin.xlane.f32.xlu0 %v540
  %v542 = vpop.xlane.xlu0 %541
  %vm543 = vcmp.eq.f32.partialorder %v540, %v542
  %v544 = vsel %vm543, %v539, inf
  %545 = vmin.xlane.f32.xlu0 %v544
  %v546 = vpop.xlane.xlu0 %545
  %v547 = vcvt.f32.s32 %v546
  %v548 = vcvt.f32.s32 %v542
  %v549 = vshll.u32 %v548, 16
  %v550 = vadd.s32 %v549, %v547
  %v551 = vsel %vm275, %v353, 2147483647
  %v552 = vand.u32 %v551, 65535
  %v553 = vshra.s32 %v551, 16
  %v554 = vcvt.s32.f32 %v552
  %v555 = vcvt.s32.f32 %v553
  %556 = vmin.xlane.f32.xlu0 %v555
  %v557 = vpop.xlane.xlu0 %556
  %vm558 = vcmp.eq.f32.partialorder %v555, %v557
  %v559 = vsel %vm558, %v554, inf
  %560 = vmin.xlane.f32.xlu0 %v559
  %v561 = vpop.xlane.xlu0 %560
  %v562 = vcvt.f32.s32 %v561
  %v563 = vcvt.f32.s32 %v557
  %v564 = vshll.u32 %v563, 16
  %v565 = vadd.s32 %v564, %v562
  %v566 = vsel %vm275, %v354, 2147483647
  %v567 = vand.u32 %v566, 65535
  %v568 = vshra.s32 %v566, 16
  %v569 = vcvt.s32.f32 %v567
  %v570 = vcvt.s32.f32 %v568
  %571 = vmin.xlane.f32.xlu0 %v570
  %v572 = vpop.xlane.xlu0 %571
  %vm573 = vcmp.eq.f32.partialorder %v570, %v572
  %v574 = vsel %vm573, %v569, inf
  %575 = vmin.xlane.f32.xlu0 %v574
  %v576 = vpop.xlane.xlu0 %575
  %v577 = vcvt.f32.s32 %v576
  %v578 = vcvt.f32.s32 %v572
  %v579 = vshll.u32 %v578, 16
  %v580 = vadd.s32 %v579, %v577
  %v581 = vsel %vm275, %v355, 2147483647
  %v582 = vand.u32 %v581, 65535
  %v583 = vshra.s32 %v581, 16
  %v584 = vcvt.s32.f32 %v582
  %v585 = vcvt.s32.f32 %v583
  %586 = vmin.xlane.f32.xlu0 %v585
  %v587 = vpop.xlane.xlu0 %586
  %vm588 = vcmp.eq.f32.partialorder %v585, %v587
  %v589 = vsel %vm588, %v584, inf
  %590 = vmin.xlane.f32.xlu0 %v589
  %v591 = vpop.xlane.xlu0 %590
  %v592 = vcvt.f32.s32 %v591
  %v593 = vcvt.f32.s32 %v587
  %v594 = vshll.u32 %v593, 16
  %v595 = vadd.s32 %v594, %v592
  %vm596 = vcmp.eq.s32.totalorder %v274, %v370
  %vm597 = vcmp.eq.s32.totalorder %v274, %v385
  %vm598 = vcmp.eq.s32.totalorder %v274, %v400
  %vm599 = vcmp.eq.s32.totalorder %v274, %v415
  %vm600 = vcmp.eq.s32.totalorder %v274, %v430
  %vm601 = vcmp.eq.s32.totalorder %v274, %v445
  %vm602 = vcmp.eq.s32.totalorder %v274, %v460
  %vm603 = vcmp.eq.s32.totalorder %v274, %v475
  %vm604 = vcmp.eq.s32.totalorder %v274, %v490
  %vm605 = vcmp.eq.s32.totalorder %v274, %v505
  %vm606 = vcmp.eq.s32.totalorder %v274, %v520
  %vm607 = vcmp.eq.s32.totalorder %v274, %v535
  %vm608 = vcmp.eq.s32.totalorder %v274, %v550
  %vm609 = vcmp.eq.s32.totalorder %v274, %v565
  %vm610 = vcmp.eq.s32.totalorder %v274, %v580
  %vm611 = vcmp.eq.s32.totalorder %v274, %v595
  %v612 = vsel %vm596, 1, 0
  %v613 = vsel %vm597, 1, 0
  %v614 = vsel %vm598, 1, 0
  %v615 = vsel %vm599, 1, 0
  %v616 = vsel %vm600, 1, 0
  %v617 = vsel %vm601, 1, 0
  %v618 = vsel %vm602, 1, 0
  %v619 = vsel %vm603, 1, 0
  %v620 = vsel %vm604, 1, 0
  %v621 = vsel %vm605, 1, 0
  %v622 = vsel %vm606, 1, 0
  %v623 = vsel %vm607, 1, 0
  %v624 = vsel %vm608, 1, 0
  %v625 = vsel %vm609, 1, 0
  %v626 = vsel %vm610, 1, 0
  %v627 = vsel %vm611, 1, 0
  %v628 = vcvt.s32.f32 %v612
  %v629 = vcvt.s32.f32 %v613
  %v630 = vcvt.s32.f32 %v614
  %v631 = vcvt.s32.f32 %v615
  %v632 = vcvt.s32.f32 %v616
  %v633 = vcvt.s32.f32 %v617
  %v634 = vcvt.s32.f32 %v618
  %v635 = vcvt.s32.f32 %v619
  %v636 = vcvt.s32.f32 %v620
  %v637 = vcvt.s32.f32 %v621
  %v638 = vcvt.s32.f32 %v622
  %v639 = vcvt.s32.f32 %v623
  %v640 = vcvt.s32.f32 %v624
  %v641 = vcvt.s32.f32 %v625
  %v642 = vcvt.s32.f32 %v626
  %v643 = vcvt.s32.f32 %v627
  %v645 = vsel %vm275, %v628, 0
  %v648 = vsel %vm275, %v629, 0
  %v651 = vsel %vm275, %v630, 0
  %v654 = vsel %vm275, %v631, 0
  %v657 = vsel %vm275, %v632, 0
  %v660 = vsel %vm275, %v633, 0
  %v663 = vsel %vm275, %v634, 0
  %v666 = vsel %vm275, %v635, 0
  %v669 = vsel %vm275, %v636, 0
  %v672 = vsel %vm275, %v637, 0
  %v675 = vsel %vm275, %v638, 0
  %v678 = vsel %vm275, %v639, 0
  %v681 = vsel %vm275, %v640, 0
  %v684 = vsel %vm275, %v641, 0
  %v687 = vsel %vm275, %v642, 0
  %v690 = vsel %vm275, %v643, 0
  %vm692 = vcmask 1041408
  %v693 = vsel %vm692, %v33, 0
  %695 = vmatprep.subr.mxu0 0.0
  %696 = vmatpush1.msra.mxu0 %v32
  %697 = vmatprep.subr.mxu0 0.0
  %698 = vmatpush1.msra.mxu0 %v693
  %699 = vmatprep.subr.mxu0 0.0
  %700 = vmatpush1.msra.mxu0 0.0
  %701 = vmatprep.subr.mxu0 0.0
  %702 = vmatpush1.msra.mxu0 0.0
  %703 = vmatprep.subr.mxu0 0.0
  %704 = vmatpush1.msra.mxu0 0.0
  %705 = vmatprep.subr.mxu0 0.0
  %706 = vmatpush1.msra.mxu0 0.0
  %707 = vmatprep.subr.mxu0 0.0
  %708 = vmatpush1.msra.mxu0 0.0
  %709 = vmatprep.subr.mxu0 0.0
  %710 = vmatpush1.msra.mxu0 0.0
  %711 = vmatprep.subr.mxu0 0.0
  %712 = vmatpush1.msra.mxu0 0.0
  %713 = vmatprep.subr.mxu0 0.0
  %714 = vmatpush1.msra.mxu0 0.0
  %715 = vmatprep.subr.mxu0 0.0
  %716 = vmatpush1.msra.mxu0 0.0
  %717 = vmatprep.subr.mxu0 0.0
  %718 = vmatpush1.msra.mxu0 0.0
  %719 = vmatprep.subr.mxu0 0.0
  %720 = vmatpush1.msra.mxu0 0.0
  %721 = vmatprep.subr.mxu0 0.0
  %722 = vmatpush1.msra.mxu0 0.0
  %723 = vmatprep.subr.mxu0 0.0
  %724 = vmatpush1.msra.mxu0 0.0
  %725 = vmatprep.subr.mxu0 0.0
  %726 = vmatpush1.msra.mxu0 0.0
  %727 = vmatprep.subr.mxu0 0.0
  %728 = vmatpush1.msra.mxu0 0.0
  %729 = vmatprep.subr.mxu0 0.0
  %730 = vmatpush1.msra.mxu0 0.0
  %731 = vmatprep.subr.mxu0 0.0
  %732 = vmatpush1.msra.mxu0 0.0
  %733 = vmatprep.subr.mxu0 0.0
  %734 = vmatpush1.msra.mxu0 0.0
  %735 = vmatprep.subr.mxu0 0.0
  %736 = vmatpush1.msra.mxu0 0.0
  %737 = vmatprep.subr.mxu0 0.0
  %738 = vmatpush1.msra.mxu0 0.0
  %739 = vmatprep.subr.mxu0 0.0
  %740 = vmatpush1.msra.mxu0 0.0
  %741 = vmatprep.subr.mxu0 0.0
  %742 = vmatpush1.msra.mxu0 0.0
  %743 = vmatprep.subr.mxu0 0.0
  %744 = vmatpush1.msra.mxu0 0.0
  %745 = vmatprep.subr.mxu0 0.0
  %746 = vmatpush1.msra.mxu0 0.0
  %747 = vmatprep.subr.mxu0 0.0
  %748 = vmatpush1.msra.mxu0 0.0
  %749 = vmatprep.subr.mxu0 0.0
  %750 = vmatpush1.msra.mxu0 0.0
  %751 = vmatprep.subr.mxu0 0.0
  %752 = vmatpush1.msra.mxu0 0.0
  %753 = vmatprep.subr.mxu0 0.0
  %754 = vmatpush1.msra.mxu0 0.0
  %755 = vmatprep.subr.mxu0 0.0
  %756 = vmatpush1.msra.mxu0 0.0
  %757 = vmatprep.subr.mxu0 0.0
  %758 = vmatpush1.msra.mxu0 0.0
  %759 = vmatprep.mubr.f32.mxu0 0.0
  %760 = vmatmul.mubr.f32.gmra.mrb[0].mxu0 %v645
  %v761 = vpop.f32.mrb[0].mxu0
  %v762 = vadd.f32 0.0, %v761
  %v763 = vpop.f32.mrb[0].mxu0
  %764 = vmatprep.mubr.f32.mxu0 0.0
  %765 = vmatmul.mubr.f32.gmra.mrb[0].mxu0 %v648
  %v766 = vpop.f32.mrb[0].mxu0
  %v767 = vadd.f32 0.0, %v766
  %v768 = vpop.f32.mrb[0].mxu0
  %769 = vmatprep.mubr.f32.mxu0 0.0
  %770 = vmatmul.mubr.f32.gmra.mrb[0].mxu0 %v651
  %v771 = vpop.f32.mrb[0].mxu0
  %v772 = vadd.f32 0.0, %v771
  %v773 = vpop.f32.mrb[0].mxu0
  %774 = vmatprep.mubr.f32.mxu0 0.0
  %775 = vmatmul.mubr.f32.gmra.mrb[0].mxu0 %v654
  %v776 = vpop.f32.mrb[0].mxu0
  %v777 = vadd.f32 0.0, %v776
  %v778 = vpop.f32.mrb[0].mxu0
  %779 = vmatprep.mubr.f32.mxu0 0.0
  %780 = vmatmul.mubr.f32.gmra.mrb[0].mxu0 %v657
  %v781 = vpop.f32.mrb[0].mxu0
  %v782 = vadd.f32 0.0, %v781
  %v783 = vpop.f32.mrb[0].mxu0
  %784 = vmatprep.mubr.f32.mxu0 0.0
  %785 = vmatmul.mubr.f32.gmra.mrb[0].mxu0 %v660
  %v786 = vpop.f32.mrb[0].mxu0
  %v787 = vadd.f32 0.0, %v786
  %v788 = vpop.f32.mrb[0].mxu0
  %789 = vmatprep.mubr.f32.mxu0 0.0
  %790 = vmatmul.mubr.f32.gmra.mrb[0].mxu0 %v663
  %v791 = vpop.f32.mrb[0].mxu0
  %v792 = vadd.f32 0.0, %v791
  %v793 = vpop.f32.mrb[0].mxu0
  %794 = vmatprep.mubr.f32.mxu0 0.0
  %795 = vmatmul.mubr.f32.gmra.mrb[0].mxu0 %v666
  %v796 = vpop.f32.mrb[0].mxu0
  %v797 = vadd.f32 0.0, %v796
  %v798 = vpop.f32.mrb[0].mxu0
  %799 = vmatprep.mubr.f32.mxu0 0.0
  %800 = vmatmul.mubr.f32.gmra.mrb[0].mxu0 %v669
  %v801 = vpop.f32.mrb[0].mxu0
  %v802 = vadd.f32 0.0, %v801
  %v803 = vpop.f32.mrb[0].mxu0
  %804 = vmatprep.mubr.f32.mxu0 0.0
  %805 = vmatmul.mubr.f32.gmra.mrb[0].mxu0 %v672
  %v806 = vpop.f32.mrb[0].mxu0
  %v807 = vadd.f32 0.0, %v806
  %v808 = vpop.f32.mrb[0].mxu0
  %809 = vmatprep.mubr.f32.mxu0 0.0
  %810 = vmatmul.mubr.f32.gmra.mrb[0].mxu0 %v675
  %v811 = vpop.f32.mrb[0].mxu0
  %v812 = vadd.f32 0.0, %v811
  %v813 = vpop.f32.mrb[0].mxu0
  %814 = vmatprep.mubr.f32.mxu0 0.0
  %815 = vmatmul.mubr.f32.gmra.mrb[0].mxu0 %v678
  %v816 = vpop.f32.mrb[0].mxu0
  %v817 = vadd.f32 0.0, %v816
  %v818 = vpop.f32.mrb[0].mxu0
  %819 = vmatprep.mubr.f32.mxu0 0.0
  %820 = vmatmul.mubr.f32.gmra.mrb[0].mxu0 %v681
  %v821 = vpop.f32.mrb[0].mxu0
  %v822 = vadd.f32 0.0, %v821
  %v823 = vpop.f32.mrb[0].mxu0
  %824 = vmatprep.mubr.f32.mxu0 0.0
  %825 = vmatmul.mubr.f32.gmra.mrb[0].mxu0 %v684
  %v826 = vpop.f32.mrb[0].mxu0
  %v827 = vadd.f32 0.0, %v826
  %v828 = vpop.f32.mrb[0].mxu0
  %829 = vmatprep.mubr.f32.mxu0 0.0
  %830 = vmatmul.mubr.f32.gmra.mrb[0].mxu0 %v687
  %v831 = vpop.f32.mrb[0].mxu0
  %v832 = vadd.f32 0.0, %v831
  %v833 = vpop.f32.mrb[0].mxu0
  %834 = vmatprep.mubr.f32.mxu0 0.0
  %835 = vmatmul.mubr.f32.gmra.mrb[0].mxu0 %v690
  %v836 = vpop.f32.mrb[0].mxu0
  %v837 = vadd.f32 0.0, %v836
  %v838 = vpop.f32.mrb[0].mxu0
  %839 = vdwg.mxu0
  %840 = vst.msk [vmem:[%s3] sm:$0xff] %vm34, %v762
  %841 = vst.msk [vmem:[%s3 + $0x8] sm:$0xff] %vm34, %v767
  %842 = vst.msk [vmem:[%s3 + $0x10] sm:$0xff] %vm34, %v772
  %843 = vst.msk [vmem:[%s3 + $0x18] sm:$0xff] %vm34, %v777
  %844 = vst.msk [vmem:[%s3 + $0x20] sm:$0xff] %vm34, %v782
  %845 = vst.msk [vmem:[%s3 + $0x28] sm:$0xff] %vm34, %v787
  %846 = vst.msk [vmem:[%s3 + $0x30] sm:$0xff] %vm34, %v792
  %847 = vst.msk [vmem:[%s3 + $0x38] sm:$0xff] %vm34, %v797
  %848 = vst.msk [vmem:[%s3 + $0x40] sm:$0xff] %vm34, %v802
  %849 = vst.msk [vmem:[%s3 + $0x48] sm:$0xff] %vm34, %v807
  %850 = vst.msk [vmem:[%s3 + $0x50] sm:$0xff] %vm34, %v812
  %851 = vst.msk [vmem:[%s3 + $0x58] sm:$0xff] %vm34, %v817
  %852 = vst.msk [vmem:[%s3 + $0x60] sm:$0xff] %vm34, %v822
  %853 = vst.msk [vmem:[%s3 + $0x68] sm:$0xff] %vm34, %v827
  %854 = vst.msk [vmem:[%s3 + $0x70] sm:$0xff] %vm34, %v832
  %855 = vst.msk [vmem:[%s3 + $0x78] sm:$0xff] %vm34, %v837
  %vm856 = vcmask 7168
  %857 = vst.msk [vmem:[%s4] sm:$0xff] %vm856, %v370
  %858 = vst.msk [vmem:[%s4 + $0x8] sm:$0xff] %vm856, %v385
  %859 = vst.msk [vmem:[%s4 + $0x10] sm:$0xff] %vm856, %v400
  %860 = vst.msk [vmem:[%s4 + $0x18] sm:$0xff] %vm856, %v415
  %861 = vst.msk [vmem:[%s4 + $0x20] sm:$0xff] %vm856, %v430
  %862 = vst.msk [vmem:[%s4 + $0x28] sm:$0xff] %vm856, %v445
  %863 = vst.msk [vmem:[%s4 + $0x30] sm:$0xff] %vm856, %v460
  %864 = vst.msk [vmem:[%s4 + $0x38] sm:$0xff] %vm856, %v475
  %865 = vst.msk [vmem:[%s4 + $0x40] sm:$0xff] %vm856, %v490
  %866 = vst.msk [vmem:[%s4 + $0x48] sm:$0xff] %vm856, %v505
  %867 = vst.msk [vmem:[%s4 + $0x50] sm:$0xff] %vm856, %v520
  %868 = vst.msk [vmem:[%s4 + $0x58] sm:$0xff] %vm856, %v535
  %869 = vst.msk [vmem:[%s4 + $0x60] sm:$0xff] %vm856, %v550
  %870 = vst.msk [vmem:[%s4 + $0x68] sm:$0xff] %vm856, %v565
  %871 = vst.msk [vmem:[%s4 + $0x70] sm:$0xff] %vm856, %v580
  %872 = vst.msk [vmem:[%s4 + $0x78] sm:$0xff] %vm856, %v595
  // Predicated region
  $region14: #{vq_cvae_forward.13} parent=0 // pred_check
    _
  $region15: #{vq_cvae_forward.13} parent=0 // pred_check_branch
    %874 = sbr.rel (0) target = $region17
  $region16: #{vq_cvae_forward.13} parent=0 // pred_region
    _
  $region17: #{vq_cvae_forward.13} parent=0 // pred_fallthru
    _
  // Predicated region
  $region18: #{vq_cvae_forward.13} parent=0 // pred_check
    _
  $region19: #{vq_cvae_forward.13} parent=0 // pred_check_branch
    %876 = sbr.rel (0) target = $region21
  $region20: #{vq_cvae_forward.13} parent=0 // pred_region
    _
  $region21: #{vq_cvae_forward.13} parent=0 // pred_fallthru
    _
  // Predicated region
  $region22: #{vq_cvae_forward.13} parent=0 // pred_check
    _
  $region23: #{vq_cvae_forward.13} parent=0 // pred_check_branch
    %878 = sbr.rel (0) target = $region25
  $region24: #{vq_cvae_forward.13} parent=0 // pred_region
    _
  $region25: #{vq_cvae_forward.13} parent=0 // pred_fallthru
    _
  // Predicated region
  $region26: #{vq_cvae_forward.13} parent=0 // pred_check
    _
  $region27: #{vq_cvae_forward.13} parent=0 // pred_check_branch
    %880 = sbr.rel (0) target = $region29
  $region28: #{vq_cvae_forward.13} parent=0 // pred_region
    _
  $region29: #{vq_cvae_forward.13} parent=0 // pred_fallthru
    _

// kernel: squeeze.33
$region0: #{squeeze.33}
  %s0 = inlined_call_operand.vmem [shape: s32[128], index: 0, kind: input, shape index: {}]
  %s1 = inlined_call_operand.hbm [shape: s32[2,8,8], index: 1, kind: output, shape index: {}]
  $region1: #{squeeze.33} parent=0
    #allocation0 [shape = 'u8[8192]{0}', space=vmem, size = 0x2000, scoped, tag = 'operand span for operand 1']
    #allocation1 [shape = 's32[1]{0}', space=sflag, size = 0x4, scoped, tag = 'scoped memory for squeeze.33']
    #allocation2 [shape = 'u8[4096]{0}', space=vmem, size = 0x1000, scoped, tag = 'scoped mem for input reshape']
    %2 = vsyncpa [#allocation1], 0
    %s4 = sshllo.u32 0, 1
    %v5 = vld [vmem:[%s0] sm:%s4]
    %6 = vst [vmem:[#allocation2] sm:%s4] %v5
    %v7 = vld [vmem:[#allocation2] sm:$0x1]
    %vm8 = vcmask 64512
    %9 = vst.msk [vmem:[#allocation0] sm:$0x1] %vm8, %v7
    %v10 = vld [vmem:[#allocation2] sm:$0x1]
    %11 = vrot.lane.b32.xlu0 %v10, 120
    %v12 = vpop.permute.xlu0 %11
    %vm13 = vcmask 64512
    %s14 = scalar_lea.vmem [#allocation0], 1
    %15 = vst.msk [vmem:[%s14] sm:$0x1] %vm13, %v12
    %v16 = vld [vmem:[#allocation2] sm:$0x1]
    %17 = vrot.lane.b32.xlu0 %v16, 112
    %v18 = vpop.permute.xlu0 %17
    %vm19 = vcmask 64512
    %s20 = scalar_lea.vmem [#allocation0], 2
    %21 = vst.msk [vmem:[%s20] sm:$0x1] %vm19, %v18
    %v22 = vld [vmem:[#allocation2] sm:$0x1]
    %23 = vrot.lane.b32.xlu0 %v22, 104
    %v24 = vpop.permute.xlu0 %23
    %vm25 = vcmask 64512
    %s26 = scalar_lea.vmem [#allocation0], 3
    %27 = vst.msk [vmem:[%s26] sm:$0x1] %vm25, %v24
    %v28 = vld [vmem:[#allocation2] sm:$0x1]
    %29 = vrot.lane.b32.xlu0 %v28, 96
    %v30 = vpop.permute.xlu0 %29
    %vm31 = vcmask 64512
    %s32 = scalar_lea.vmem [#allocation0], 4
    %33 = vst.msk [vmem:[%s32] sm:$0x1] %vm31, %v30
    %v34 = vld [vmem:[#allocation2] sm:$0x1]
    %35 = vrot.lane.b32.xlu0 %v34, 88
    %v36 = vpop.permute.xlu0 %35
    %vm37 = vcmask 64512
    %s38 = scalar_lea.vmem [#allocation0], 5
    %39 = vst.msk [vmem:[%s38] sm:$0x1] %vm37, %v36
    %v40 = vld [vmem:[#allocation2] sm:$0x1]
    %41 = vrot.lane.b32.xlu0 %v40, 80
    %v42 = vpop.permute.xlu0 %41
    %vm43 = vcmask 64512
    %s44 = scalar_lea.vmem [#allocation0], 6
    %45 = vst.msk [vmem:[%s44] sm:$0x1] %vm43, %v42
    %v46 = vld [vmem:[#allocation2] sm:$0x1]
    %47 = vrot.lane.b32.xlu0 %v46, 72
    %v48 = vpop.permute.xlu0 %47
    %vm49 = vcmask 64512
    %s50 = scalar_lea.vmem [#allocation0], 7
    %51 = vst.msk [vmem:[%s50] sm:$0x1] %vm49, %v48
    %v52 = vld [vmem:[#allocation2] sm:$0x1]
    %53 = vrot.lane.b32.xlu0 %v52, 64
    %v54 = vpop.permute.xlu0 %53
    %vm55 = vcmask 64512
    %s56 = scalar_lea.vmem [#allocation0], 8
    %57 = vst.msk [vmem:[%s56] sm:$0x1] %vm55, %v54
    %v58 = vld [vmem:[#allocation2] sm:$0x1]
    %59 = vrot.lane.b32.xlu0 %v58, 56
    %v60 = vpop.permute.xlu0 %59
    %vm61 = vcmask 64512
    %s62 = scalar_lea.vmem [#allocation0], 9
    %63 = vst.msk [vmem:[%s62] sm:$0x1] %vm61, %v60
    %v64 = vld [vmem:[#allocation2] sm:$0x1]
    %65 = vrot.lane.b32.xlu0 %v64, 48
    %v66 = vpop.permute.xlu0 %65
    %vm67 = vcmask 64512
    %s68 = scalar_lea.vmem [#allocation0], 10
    %69 = vst.msk [vmem:[%s68] sm:$0x1] %vm67, %v66
    %v70 = vld [vmem:[#allocation2] sm:$0x1]
    %71 = vrot.lane.b32.xlu0 %v70, 40
    %v72 = vpop.permute.xlu0 %71
    %vm73 = vcmask 64512
    %s74 = scalar_lea.vmem [#allocation0], 11
    %75 = vst.msk [vmem:[%s74] sm:$0x1] %vm73, %v72
    %v76 = vld [vmem:[#allocation2] sm:$0x1]
    %77 = vrot.lane.b32.xlu0 %v76, 32
    %v78 = vpop.permute.xlu0 %77
    %vm79 = vcmask 64512
    %s80 = scalar_lea.vmem [#allocation0], 12
    %81 = vst.msk [vmem:[%s80] sm:$0x1] %vm79, %v78
    %v82 = vld [vmem:[#allocation2] sm:$0x1]
    %83 = vrot.lane.b32.xlu0 %v82, 24
    %v84 = vpop.permute.xlu0 %83
    %vm85 = vcmask 64512
    %s86 = scalar_lea.vmem [#allocation0], 13
    %87 = vst.msk [vmem:[%s86] sm:$0x1] %vm85, %v84
    %v88 = vld [vmem:[#allocation2] sm:$0x1]
    %89 = vrot.lane.b32.xlu0 %v88, 16
    %v90 = vpop.permute.xlu0 %89
    %vm91 = vcmask 64512
    %s92 = scalar_lea.vmem [#allocation0], 14
    %93 = vst.msk [vmem:[%s92] sm:$0x1] %vm91, %v90
    %v94 = vld [vmem:[#allocation2] sm:$0x1]
    %95 = vrot.lane.b32.xlu0 %v94, 8
    %v96 = vpop.permute.xlu0 %95
    %vm97 = vcmask 64512
    %s98 = scalar_lea.vmem [#allocation0], 15
    %99 = vst.msk [vmem:[%s98] sm:$0x1] %vm97, %v96
    %s101 = ssub.s32 256, 256
    %102 = vsyncadd [#allocation1], %s101
    %s104 = sshll.u32 [#allocation0], 4
    %s105 = int_to_ptr.vmem [resolvable:$true] %s104
    %107 = dma.vmem_to_hbm [thread:$0]  %s105, 256, %s1, [#allocation1]
    %108 = dma.done [#allocation1], 256
    %109 = vsyncpa [#allocation1], 1

// kernel: vq_cvae_forward.15
$region0: #{vq_cvae_forward.15}
  #allocation0 [shape = 'u32[]', space=smem, size = 0x4, offset = 0x4, fixed_abs, tag = 'smem constant byte address 0x4 - core index']
  #allocation1 [shape = 'u32[144,128]{1,0:T(1,128)}', space=vmem, size = 0x12000, scoped, tag = 'internal scratch']
  %s0 = inlined_call_operand.vmem [shape: bf16[128,144], index: 0, kind: input, shape index: {}]
  %s1 = inlined_call_operand.vmem [shape: bf16[144,16], index: 1, kind: input, shape index: {}]
  %s2 = inlined_call_operand.vmem [shape: bf16[16,16], index: 2, kind: input, shape index: {}]
  %s3 = inlined_call_operand.vmem [shape: f32[128,16], index: 3, kind: input, shape index: {}]
  %s4 = inlined_call_operand.vmem [shape: f32[6,16], index: 4, kind: input, shape index: {}]
  %s5 = inlined_call_operand.vmem [shape: f32[128,16], index: 5, kind: output, shape index: {}]
  %s6 = sld [smem:[#allocation0]]
  $region30: #{vq_cvae_forward.15} parent=0
    _
  %s8 = ssub.s32 1, %s6
  %s9 = scalar_select 0, %s8, %s6
  // Predicated region
  $region2: #{vq_cvae_forward.15} parent=0 // pred_check
    _
  $region3: #{vq_cvae_forward.15} parent=0 // pred_check_branch
    %11 = sbr.rel (0) target = $region5
  $region4: #{vq_cvae_forward.15} parent=0 // pred_region
    _
  $region5: #{vq_cvae_forward.15} parent=0 // pred_fallthru
    _
  // Predicated region
  $region6: #{vq_cvae_forward.15} parent=0 // pred_check
    _
  $region7: #{vq_cvae_forward.15} parent=0 // pred_check_branch
    %13 = sbr.rel (0) target = $region9
  $region8: #{vq_cvae_forward.15} parent=0 // pred_region
    _
  $region9: #{vq_cvae_forward.15} parent=0 // pred_fallthru
    _
  // Predicated region
  $region10: #{vq_cvae_forward.15} parent=0 // pred_check
    _
  $region11: #{vq_cvae_forward.15} parent=0 // pred_check_branch
    %15 = sbr.rel (0) target = $region13
  $region12: #{vq_cvae_forward.15} parent=0 // pred_region
    _
  $region13: #{vq_cvae_forward.15} parent=0 // pred_fallthru
    _
  // Predicated region
  $region14: #{vq_cvae_forward.15} parent=0 // pred_check
    _
  $region15: #{vq_cvae_forward.15} parent=0 // pred_check_branch
    %17 = sbr.rel (0) target = $region17
  $region16: #{vq_cvae_forward.15} parent=0 // pred_region
    _
  $region17: #{vq_cvae_forward.15} parent=0 // pred_fallthru
    _
  // Predicated region
  $region18: #{vq_cvae_forward.15} parent=0 // pred_check
    _
  $region19: #{vq_cvae_forward.15} parent=0 // pred_check_branch
    %19 = sbr.rel (0) target = $region21
  $region20: #{vq_cvae_forward.15} parent=0 // pred_region
    _
  $region21: #{vq_cvae_forward.15} parent=0 // pred_fallthru
    _
  %v21 = vld [vmem:[%s4] sm:$0x3f]
  %v22 = vld [vmem:[%s0] sm:$0xff]
  %v23 = vld [vmem:[%s0 + $0x8] sm:$0xff]
  %v24 = vld [vmem:[%s0 + $0x10] sm:$0xff]
  %v25 = vld [vmem:[%s0 + $0x18] sm:$0xff]
  %v26 = vld [vmem:[%s0 + $0x20] sm:$0xff]
  %v27 = vld [vmem:[%s0 + $0x28] sm:$0xff]
  %v28 = vld [vmem:[%s0 + $0x30] sm:$0xff]
  %v29 = vld [vmem:[%s0 + $0x38] sm:$0xff]
  %v30 = vld [vmem:[%s0 + $0x40] sm:$0xff]
  %v31 = vld [vmem:[%s0 + $0x48] sm:$0xff]
  %v32 = vld [vmem:[%s0 + $0x50] sm:$0xff]
  %v33 = vld [vmem:[%s0 + $0x58] sm:$0xff]
  %v34 = vld [vmem:[%s0 + $0x60] sm:$0xff]
  %v35 = vld [vmem:[%s0 + $0x68] sm:$0xff]
  %v36 = vld [vmem:[%s0 + $0x70] sm:$0xff]
  %v37 = vld [vmem:[%s0 + $0x78] sm:$0xff]
  %v38 = vmax.bf16 %v22, 0
  %v39 = vmax.bf16 %v23, 0
  %v40 = vmax.bf16 %v24, 0
  %v41 = vmax.bf16 %v25, 0
  %v42 = vmax.bf16 %v26, 0
  %v43 = vmax.bf16 %v27, 0
  %v44 = vmax.bf16 %v28, 0
  %v45 = vmax.bf16 %v29, 0
  %v46 = vmax.bf16 %v30, 0
  %v47 = vmax.bf16 %v31, 0
  %v48 = vmax.bf16 %v32, 0
  %v49 = vmax.bf16 %v33, 0
  %v50 = vmax.bf16 %v34, 0
  %v51 = vmax.bf16 %v35, 0
  %v52 = vmax.bf16 %v36, 0
  %v53 = vmax.bf16 %v37, 0
  %v54 = vld [vmem:[%s1] sm:$0xf]
  %v55 = vld [vmem:[%s1 + $0x4] sm:$0xf]
  %v56 = vld [vmem:[%s1 + $0x8] sm:$0xf]
  %v57 = vld [vmem:[%s1 + $0xc] sm:$0xf]
  %v58 = vld [vmem:[%s1 + $0x10] sm:$0xf]
  %v59 = vld [vmem:[%s1 + $0x14] sm:$0xf]
  %v60 = vld [vmem:[%s1 + $0x18] sm:$0xf]
  %v61 = vld [vmem:[%s1 + $0x1c] sm:$0xf]
  %v62 = vld [vmem:[%s1 + $0x20] sm:$0xf]
  %v63 = vld [vmem:[%s1 + $0x24] sm:$0xf]
  %v64 = vld [vmem:[%s1 + $0x28] sm:$0xf]
  %v65 = vld [vmem:[%s1 + $0x2c] sm:$0xf]
  %v66 = vld [vmem:[%s1 + $0x30] sm:$0xf]
  %v67 = vld [vmem:[%s1 + $0x34] sm:$0xf]
  %v68 = vld [vmem:[%s1 + $0x38] sm:$0xf]
  %v69 = vld [vmem:[%s1 + $0x3c] sm:$0xf]
  %v70 = vld [vmem:[%s1 + $0x40] sm:$0xf]
  %v71 = vld [vmem:[%s1 + $0x44] sm:$0xf]
  %v72 = vlaneseq
  %v73 = vshrl.u32 %v72, 7
  %v74 = vsub.s32 0, %v73
  %v75 = vrot.slane %v21, %v74
  %v92 = vunpack.c.l.b16 %v38
  %v93 = vunpack.c.h.b16 %v38
  %v94 = vunpack.c.l.b16 %v39
  %v95 = vunpack.c.h.b16 %v39
  %v96 = vunpack.c.l.b16 %v40
  %v97 = vunpack.c.h.b16 %v40
  %v98 = vunpack.c.l.b16 %v41
  %v99 = vunpack.c.h.b16 %v41
  %v100 = vunpack.c.l.b16 %v42
  %v101 = vunpack.c.h.b16 %v42
  %v102 = vunpack.c.l.b16 %v43
  %v103 = vunpack.c.h.b16 %v43
  %v104 = vunpack.c.l.b16 %v44
  %v105 = vunpack.c.h.b16 %v44
  %v106 = vunpack.c.l.b16 %v45
  %v107 = vunpack.c.h.b16 %v45
  %v108 = vunpack.c.l.b16 %v46
  %v109 = vunpack.c.h.b16 %v46
  %v110 = vunpack.c.l.b16 %v47
  %v111 = vunpack.c.h.b16 %v47
  %v112 = vunpack.c.l.b16 %v48
  %v113 = vunpack.c.h.b16 %v48
  %v114 = vunpack.c.l.b16 %v49
  %v115 = vunpack.c.h.b16 %v49
  %v116 = vunpack.c.l.b16 %v50
  %v117 = vunpack.c.h.b16 %v50
  %v118 = vunpack.c.l.b16 %v51
  %v119 = vunpack.c.h.b16 %v51
  %v120 = vunpack.c.l.b16 %v52
  %v121 = vunpack.c.h.b16 %v52
  %v122 = vunpack.c.l.b16 %v53
  %v123 = vunpack.c.h.b16 %v53
  %v124 = vpack.c.b16 %v94, %v92
  %v125 = vpack.c.b16 %v95, %v93
  %v126 = vpack.c.b16 %v98, %v96
  %v127 = vpack.c.b16 %v99, %v97
  %v128 = vpack.c.b16 %v102, %v100
  %v129 = vpack.c.b16 %v103, %v101
  %v130 = vpack.c.b16 %v106, %v104
  %v131 = vpack.c.b16 %v107, %v105
  %v132 = vpack.c.b16 %v110, %v108
  %v133 = vpack.c.b16 %v111, %v109
  %v134 = vpack.c.b16 %v114, %v112
  %v135 = vpack.c.b16 %v115, %v113
  %v136 = vpack.c.b16 %v118, %v116
  %v137 = vpack.c.b16 %v119, %v117
  %v138 = vpack.c.b16 %v122, %v120
  %v139 = vpack.c.b16 %v123, %v121
  %v166 = vunpack.c.l.b16 %v54
  %v167 = vunpack.c.l.b16 %v55
  %v168 = vunpack.c.l.b16 %v56
  %v169 = vunpack.c.l.b16 %v57
  %v170 = vunpack.c.l.b16 %v58
  %v171 = vunpack.c.l.b16 %v59
  %v172 = vunpack.c.l.b16 %v60
  %v173 = vunpack.c.l.b16 %v61
  %v174 = vunpack.c.l.b16 %v62
  %v175 = vunpack.c.l.b16 %v63
  %v176 = vunpack.c.l.b16 %v64
  %v177 = vunpack.c.l.b16 %v65
  %v178 = vunpack.c.l.b16 %v66
  %v179 = vunpack.c.l.b16 %v67
  %v180 = vunpack.c.l.b16 %v68
  %v181 = vunpack.c.l.b16 %v69
  %v182 = vunpack.c.l.b16 %v70
  %v183 = vunpack.c.l.b16 %v71
  %v184 = vpack.c.b16 %v167, %v166
  %v185 = vpack.c.b16 %v169, %v168
  %v186 = vpack.c.b16 %v171, %v170
  %v187 = vpack.c.b16 %v173, %v172
  %v188 = vpack.c.b16 %v175, %v174
  %v189 = vpack.c.b16 %v177, %v176
  %v190 = vpack.c.b16 %v179, %v178
  %v191 = vpack.c.b16 %v181, %v180
  %v192 = vpack.c.b16 %v183, %v182
  %vm202 = vcmask 130048
  %v204 = vsel %vm202, %v125, 0
  %v207 = vsel %vm202, %v127, 0
  %v210 = vsel %vm202, %v129, 0
  %v213 = vsel %vm202, %v131, 0
  %v216 = vsel %vm202, %v133, 0
  %v219 = vsel %vm202, %v135, 0
  %v222 = vsel %vm202, %v137, 0
  %v225 = vsel %vm202, %v139, 0
  %227 = vmatprep.subr.bf16.mxu0 0
  %228 = vmatpush1.bf16.msra.mxu0 %v184
  %229 = vmatprep.subr.bf16.mxu0 0
  %230 = vmatpush1.bf16.msra.mxu0 %v185
  %231 = vmatprep.subr.bf16.mxu0 0
  %232 = vmatpush1.bf16.msra.mxu0 %v186
  %233 = vmatprep.subr.bf16.mxu0 0
  %234 = vmatpush1.bf16.msra.mxu0 %v187
  %235 = vmatprep.subr.bf16.mxu0 0
  %236 = vmatpush1.bf16.msra.mxu0 %v188
  %237 = vmatprep.subr.bf16.mxu0 0
  %238 = vmatpush1.bf16.msra.mxu0 %v189
  %239 = vmatprep.subr.bf16.mxu0 0
  %240 = vmatpush1.bf16.msra.mxu0 %v190
  %241 = vmatprep.subr.bf16.mxu0 0
  %242 = vmatpush1.bf16.msra.mxu0 %v191
  %243 = vmatprep.subr.bf16.mxu0 0
  %244 = vmatpush1.bf16.msra.mxu0 %v192
  %245 = vmatprep.subr.bf16.mxu0 0
  %246 = vmatpush1.bf16.msra.mxu0 0
  %247 = vmatprep.subr.bf16.mxu0 0
  %248 = vmatpush1.bf16.msra.mxu0 0
  %249 = vmatprep.subr.bf16.mxu0 0
  %250 = vmatpush1.bf16.msra.mxu0 0
  %251 = vmatprep.subr.bf16.mxu0 0
  %252 = vmatpush1.bf16.msra.mxu0 0
  %253 = vmatprep.subr.bf16.mxu0 0
  %254 = vmatpush1.bf16.msra.mxu0 0
  %255 = vmatprep.subr.bf16.mxu0 0
  %256 = vmatpush1.bf16.msra.mxu0 0
  %257 = vmatprep.subr.bf16.mxu0 0
  %258 = vmatpush1.bf16.msra.mxu0 0
  %259 = vmatprep.mubr.bf16.mxu0 %v204
  %260 = vmatmul.mubr.bf16.gmra.mrb[0].mxu0 %v124
  %v261 = vpop.f32.mrb[0].mxu0
  %v262 = vadd.f32 %v75, %v261
  %v263 = vpop.f32.mrb[0].mxu0
  %v264 = vpop.f32.mrb[0].mxu0
  %v265 = vadd.f32 %v75, %v264
  %v266 = vpop.f32.mrb[0].mxu0
  %267 = vmatprep.mubr.bf16.mxu0 %v207
  %268 = vmatmul.mubr.bf16.gmra.mrb[0].mxu0 %v126
  %v269 = vpop.f32.mrb[0].mxu0
  %v270 = vadd.f32 %v75, %v269
  %v271 = vpop.f32.mrb[0].mxu0
  %v272 = vpop.f32.mrb[0].mxu0
  %v273 = vadd.f32 %v75, %v272
  %v274 = vpop.f32.mrb[0].mxu0
  %275 = vmatprep.mubr.bf16.mxu0 %v210
  %276 = vmatmul.mubr.bf16.gmra.mrb[0].mxu0 %v128
  %v277 = vpop.f32.mrb[0].mxu0
  %v278 = vadd.f32 %v75, %v277
  %v279 = vpop.f32.mrb[0].mxu0
  %v280 = vpop.f32.mrb[0].mxu0
  %v281 = vadd.f32 %v75, %v280
  %v282 = vpop.f32.mrb[0].mxu0
  %283 = vmatprep.mubr.bf16.mxu0 %v213
  %284 = vmatmul.mubr.bf16.gmra.mrb[0].mxu0 %v130
  %v285 = vpop.f32.mrb[0].mxu0
  %v286 = vadd.f32 %v75, %v285
  %v287 = vpop.f32.mrb[0].mxu0
  %v288 = vpop.f32.mrb[0].mxu0
  %v289 = vadd.f32 %v75, %v288
  %v290 = vpop.f32.mrb[0].mxu0
  %291 = vmatprep.mubr.bf16.mxu0 %v216
  %292 = vmatmul.mubr.bf16.gmra.mrb[0].mxu0 %v132
  %v293 = vpop.f32.mrb[0].mxu0
  %v294 = vadd.f32 %v75, %v293
  %v295 = vpop.f32.mrb[0].mxu0
  %v296 = vpop.f32.mrb[0].mxu0
  %v297 = vadd.f32 %v75, %v296
  %v298 = vpop.f32.mrb[0].mxu0
  %299 = vmatprep.mubr.bf16.mxu0 %v219
  %300 = vmatmul.mubr.bf16.gmra.mrb[0].mxu0 %v134
  %v301 = vpop.f32.mrb[0].mxu0
  %v302 = vadd.f32 %v75, %v301
  %v303 = vpop.f32.mrb[0].mxu0
  %v304 = vpop.f32.mrb[0].mxu0
  %v305 = vadd.f32 %v75, %v304
  %v306 = vpop.f32.mrb[0].mxu0
  %307 = vmatprep.mubr.bf16.mxu0 %v222
  %308 = vmatmul.mubr.bf16.gmra.mrb[0].mxu0 %v136
  %v309 = vpop.f32.mrb[0].mxu0
  %v310 = vadd.f32 %v75, %v309
  %v311 = vpop.f32.mrb[0].mxu0
  %v312 = vpop.f32.mrb[0].mxu0
  %v313 = vadd.f32 %v75, %v312
  %v314 = vpop.f32.mrb[0].mxu0
  %315 = vmatprep.mubr.bf16.mxu0 %v225
  %316 = vmatmul.mubr.bf16.gmra.mrb[0].mxu0 %v138
  %v317 = vpop.f32.mrb[0].mxu0
  %v318 = vadd.f32 %v75, %v317
  %v319 = vpop.f32.mrb[0].mxu0
  %v320 = vpop.f32.mrb[0].mxu0
  %v321 = vadd.f32 %v75, %v320
  %v322 = vpop.f32.mrb[0].mxu0
  %323 = vdwg.mxu0
  %v324 = vmax.f32 %v262, 0.0
  %v325 = vmax.f32 %v265, 0.0
  %v326 = vmax.f32 %v270, 0.0
  %v327 = vmax.f32 %v273, 0.0
  %v328 = vmax.f32 %v278, 0.0
  %v329 = vmax.f32 %v281, 0.0
  %v330 = vmax.f32 %v286, 0.0
  %v331 = vmax.f32 %v289, 0.0
  %v332 = vmax.f32 %v294, 0.0
  %v333 = vmax.f32 %v297, 0.0
  %v334 = vmax.f32 %v302, 0.0
  %v335 = vmax.f32 %v305, 0.0
  %v336 = vmax.f32 %v310, 0.0
  %v337 = vmax.f32 %v313, 0.0
  %v338 = vmax.f32 %v318, 0.0
  %v339 = vmax.f32 %v321, 0.0
  %v340 = vpack.c.bf16 %v325, %v324
  %v341 = vpack.c.bf16 %v327, %v326
  %v342 = vpack.c.bf16 %v329, %v328
  %v343 = vpack.c.bf16 %v331, %v330
  %v344 = vpack.c.bf16 %v333, %v332
  %v345 = vpack.c.bf16 %v335, %v334
  %v346 = vpack.c.bf16 %v337, %v336
  %v347 = vpack.c.bf16 %v339, %v338
  %v348 = vld [vmem:[%s2] sm:$0xf]
  %v349 = vld [vmem:[%s2 + $0x4] sm:$0xf]
  %v350 = vlaneseq
  %v351 = vshrl.u32 %v350, 7
  %v352 = vsub.s32 3, %v351
  %v353 = vrot.slane %v21, %v352
  %v356 = vunpack.c.l.b16 %v348
  %v357 = vunpack.c.l.b16 %v349
  %v358 = vpack.c.b16 %v357, %v356
  %v361 = vsel %vm202, %v340, 0
  %v364 = vsel %vm202, %v341, 0
  %v367 = vsel %vm202, %v342, 0
  %v370 = vsel %vm202, %v343, 0
  %v373 = vsel %vm202, %v344, 0
  %v376 = vsel %vm202, %v345, 0
  %v379 = vsel %vm202, %v346, 0
  %v382 = vsel %vm202, %v347, 0
  %384 = vmatprep.subr.bf16.mxu0 0
  %385 = vmatpush1.bf16.msra.mxu0 %v358
  %386 = vmatprep.subr.bf16.mxu0 0
  %387 = vmatpush1.bf16.msra.mxu0 0
  %388 = vmatprep.subr.bf16.mxu0 0
  %389 = vmatpush1.bf16.msra.mxu0 0
  %390 = vmatprep.subr.bf16.mxu0 0
  %391 = vmatpush1.bf16.msra.mxu0 0
  %392 = vmatprep.subr.bf16.mxu0 0
  %393 = vmatpush1.bf16.msra.mxu0 0
  %394 = vmatprep.subr.bf16.mxu0 0
  %395 = vmatpush1.bf16.msra.mxu0 0
  %396 = vmatprep.subr.bf16.mxu0 0
  %397 = vmatpush1.bf16.msra.mxu0 0
  %398 = vmatprep.subr.bf16.mxu0 0
  %399 = vmatpush1.bf16.msra.mxu0 0
  %400 = vmatprep.subr.bf16.mxu0 0
  %401 = vmatpush1.bf16.msra.mxu0 0
  %402 = vmatprep.subr.bf16.mxu0 0
  %403 = vmatpush1.bf16.msra.mxu0 0
  %404 = vmatprep.subr.bf16.mxu0 0
  %405 = vmatpush1.bf16.msra.mxu0 0
  %406 = vmatprep.subr.bf16.mxu0 0
  %407 = vmatpush1.bf16.msra.mxu0 0
  %408 = vmatprep.subr.bf16.mxu0 0
  %409 = vmatpush1.bf16.msra.mxu0 0
  %410 = vmatprep.subr.bf16.mxu0 0
  %411 = vmatpush1.bf16.msra.mxu0 0
  %412 = vmatprep.subr.bf16.mxu0 0
  %413 = vmatpush1.bf16.msra.mxu0 0
  %414 = vmatprep.subr.bf16.mxu0 0
  %415 = vmatpush1.bf16.msra.mxu0 0
  %416 = vmatprep.mubr.bf16.mxu0 0
  %417 = vmatmul.mubr.bf16.gmra.mrb[0].mxu0 %v361
  %v418 = vpop.f32.mrb[0].mxu0
  %v419 = vadd.f32 %v353, %v418
  %v420 = vpop.f32.mrb[0].mxu0
  %v421 = vpop.f32.mrb[0].mxu0
  %v422 = vadd.f32 %v353, %v421
  %v423 = vpop.f32.mrb[0].mxu0
  %424 = vmatprep.mubr.bf16.mxu0 0
  %425 = vmatmul.mubr.bf16.gmra.mrb[0].mxu0 %v364
  %v426 = vpop.f32.mrb[0].mxu0
  %v427 = vadd.f32 %v353, %v426
  %v428 = vpop.f32.mrb[0].mxu0
  %v429 = vpop.f32.mrb[0].mxu0
  %v430 = vadd.f32 %v353, %v429
  %v431 = vpop.f32.mrb[0].mxu0
  %432 = vmatprep.mubr.bf16.mxu0 0
  %433 = vmatmul.mubr.bf16.gmra.mrb[0].mxu0 %v367
  %v434 = vpop.f32.mrb[0].mxu0
  %v435 = vadd.f32 %v353, %v434
  %v436 = vpop.f32.mrb[0].mxu0
  %v437 = vpop.f32.mrb[0].mxu0
  %v438 = vadd.f32 %v353, %v437
  %v439 = vpop.f32.mrb[0].mxu0
  %440 = vmatprep.mubr.bf16.mxu0 0
  %441 = vmatmul.mubr.bf16.gmra.mrb[0].mxu0 %v370
  %v442 = vpop.f32.mrb[0].mxu0
  %v443 = vadd.f32 %v353, %v442
  %v444 = vpop.f32.mrb[0].mxu0
  %v445 = vpop.f32.mrb[0].mxu0
  %v446 = vadd.f32 %v353, %v445
  %v447 = vpop.f32.mrb[0].mxu0
  %448 = vmatprep.mubr.bf16.mxu0 0
  %449 = vmatmul.mubr.bf16.gmra.mrb[0].mxu0 %v373
  %v450 = vpop.f32.mrb[0].mxu0
  %v451 = vadd.f32 %v353, %v450
  %v452 = vpop.f32.mrb[0].mxu0
  %v453 = vpop.f32.mrb[0].mxu0
  %v454 = vadd.f32 %v353, %v453
  %v455 = vpop.f32.mrb[0].mxu0
  %456 = vmatprep.mubr.bf16.mxu0 0
  %457 = vmatmul.mubr.bf16.gmra.mrb[0].mxu0 %v376
  %v458 = vpop.f32.mrb[0].mxu0
  %v459 = vadd.f32 %v353, %v458
  %v460 = vpop.f32.mrb[0].mxu0
  %v461 = vpop.f32.mrb[0].mxu0
  %v462 = vadd.f32 %v353, %v461
  %v463 = vpop.f32.mrb[0].mxu0
  %464 = vmatprep.mubr.bf16.mxu0 0
  %465 = vmatmul.mubr.bf16.gmra.mrb[0].mxu0 %v379
  %v466 = vpop.f32.mrb[0].mxu0
  %v467 = vadd.f32 %v353, %v466
  %v468 = vpop.f32.mrb[0].mxu0
  %v469 = vpop.f32.mrb[0].mxu0
  %v470 = vadd.f32 %v353, %v469
  %v471 = vpop.f32.mrb[0].mxu0
  %472 = vmatprep.mubr.bf16.mxu0 0
  %473 = vmatmul.mubr.bf16.gmra.mrb[0].mxu0 %v382
  %v474 = vpop.f32.mrb[0].mxu0
  %v475 = vadd.f32 %v353, %v474
  %v476 = vpop.f32.mrb[0].mxu0
  %v477 = vpop.f32.mrb[0].mxu0
  %v478 = vadd.f32 %v353, %v477
  %v479 = vpop.f32.mrb[0].mxu0
  %480 = vdwg.mxu0
  %v481 = vld [vmem:[%s3] sm:$0xff]
  %v482 = vld [vmem:[%s3 + $0x8] sm:$0xff]
  %v483 = vld [vmem:[%s3 + $0x10] sm:$0xff]
  %v484 = vld [vmem:[%s3 + $0x18] sm:$0xff]
  %v485 = vld [vmem:[%s3 + $0x20] sm:$0xff]
  %v486 = vld [vmem:[%s3 + $0x28] sm:$0xff]
  %v487 = vld [vmem:[%s3 + $0x30] sm:$0xff]
  %v488 = vld [vmem:[%s3 + $0x38] sm:$0xff]
  %v489 = vld [vmem:[%s3 + $0x40] sm:$0xff]
  %v490 = vld [vmem:[%s3 + $0x48] sm:$0xff]
  %v491 = vld [vmem:[%s3 + $0x50] sm:$0xff]
  %v492 = vld [vmem:[%s3 + $0x58] sm:$0xff]
  %v493 = vld [vmem:[%s3 + $0x60] sm:$0xff]
  %v494 = vld [vmem:[%s3 + $0x68] sm:$0xff]
  %v495 = vld [vmem:[%s3 + $0x70] sm:$0xff]
  %v496 = vld [vmem:[%s3 + $0x78] sm:$0xff]
  %v497 = vadd.f32 %v481, %v419
  %v498 = vadd.f32 %v482, %v422
  %v499 = vadd.f32 %v483, %v427
  %v500 = vadd.f32 %v484, %v430
  %v501 = vadd.f32 %v485, %v435
  %v502 = vadd.f32 %v486, %v438
  %v503 = vadd.f32 %v487, %v443
  %v504 = vadd.f32 %v488, %v446
  %v505 = vadd.f32 %v489, %v451
  %v506 = vadd.f32 %v490, %v454
  %v507 = vadd.f32 %v491, %v459
  %v508 = vadd.f32 %v492, %v462
  %v509 = vadd.f32 %v493, %v467
  %v510 = vadd.f32 %v494, %v470
  %v511 = vadd.f32 %v495, %v475
  %v512 = vadd.f32 %v496, %v478
  %513 = vst.msk [vmem:[%s5] sm:$0xff] %vm202, %v497
  %514 = vst.msk [vmem:[%s5 + $0x8] sm:$0xff] %vm202, %v498
  %515 = vst.msk [vmem:[%s5 + $0x10] sm:$0xff] %vm202, %v499
  %516 = vst.msk [vmem:[%s5 + $0x18] sm:$0xff] %vm202, %v500
  %517 = vst.msk [vmem:[%s5 + $0x20] sm:$0xff] %vm202, %v501
  %518 = vst.msk [vmem:[%s5 + $0x28] sm:$0xff] %vm202, %v502
  %519 = vst.msk [vmem:[%s5 + $0x30] sm:$0xff] %vm202, %v503
  %520 = vst.msk [vmem:[%s5 + $0x38] sm:$0xff] %vm202, %v504
  %521 = vst.msk [vmem:[%s5 + $0x40] sm:$0xff] %vm202, %v505
  %522 = vst.msk [vmem:[%s5 + $0x48] sm:$0xff] %vm202, %v506
  %523 = vst.msk [vmem:[%s5 + $0x50] sm:$0xff] %vm202, %v507
  %524 = vst.msk [vmem:[%s5 + $0x58] sm:$0xff] %vm202, %v508
  %525 = vst.msk [vmem:[%s5 + $0x60] sm:$0xff] %vm202, %v509
  %526 = vst.msk [vmem:[%s5 + $0x68] sm:$0xff] %vm202, %v510
  %527 = vst.msk [vmem:[%s5 + $0x70] sm:$0xff] %vm202, %v511
  %528 = vst.msk [vmem:[%s5 + $0x78] sm:$0xff] %vm202, %v512
  // Predicated region
  $region22: #{vq_cvae_forward.15} parent=0 // pred_check
    _
  $region23: #{vq_cvae_forward.15} parent=0 // pred_check_branch
    %530 = sbr.rel (0) target = $region25
  $region24: #{vq_cvae_forward.15} parent=0 // pred_region
    _
  $region25: #{vq_cvae_forward.15} parent=0 // pred_fallthru
    _
  // Predicated region
  $region26: #{vq_cvae_forward.15} parent=0 // pred_check
    _
  $region27: #{vq_cvae_forward.15} parent=0 // pred_check_branch
    %532 = sbr.rel (0) target = $region29
  $region28: #{vq_cvae_forward.15} parent=0 // pred_region
    _
  $region29: #{vq_cvae_forward.15} parent=0 // pred_fallthru
    _

// kernel: vq_cvae_forward.16
$region0: #{vq_cvae_forward.16}
  #allocation0 [shape = 'u32[]', space=smem, size = 0x4, offset = 0x4, fixed_abs, tag = 'smem constant byte address 0x4 - core index']
  #allocation1 [shape = 'u32[144,128]{1,0:T(1,128)}', space=vmem, size = 0x12000, scoped, tag = 'internal scratch']
  %s0 = inlined_call_operand.vmem [shape: bf16[128,144], index: 0, kind: input, shape index: {}]
  %s1 = inlined_call_operand.vmem [shape: bf16[144,64], index: 1, kind: input, shape index: {}]
  %s2 = inlined_call_operand.vmem [shape: f32[3,16], index: 2, kind: input, shape index: {}]
  %s3 = inlined_call_operand.vmem [shape: f32[128,64], index: 3, kind: output, shape index: {}]
  %s4 = sld [smem:[#allocation0]]
  $region22: #{vq_cvae_forward.16} parent=0
    _
  %s6 = ssub.s32 1, %s4
  %s7 = scalar_select 0, %s6, %s4
  // Predicated region
  $region2: #{vq_cvae_forward.16} parent=0 // pred_check
    _
  $region3: #{vq_cvae_forward.16} parent=0 // pred_check_branch
    %9 = sbr.rel (0) target = $region5
  $region4: #{vq_cvae_forward.16} parent=0 // pred_region
    _
  $region5: #{vq_cvae_forward.16} parent=0 // pred_fallthru
    _
  // Predicated region
  $region6: #{vq_cvae_forward.16} parent=0 // pred_check
    _
  $region7: #{vq_cvae_forward.16} parent=0 // pred_check_branch
    %11 = sbr.rel (0) target = $region9
  $region8: #{vq_cvae_forward.16} parent=0 // pred_region
    _
  $region9: #{vq_cvae_forward.16} parent=0 // pred_fallthru
    _
  // Predicated region
  $region10: #{vq_cvae_forward.16} parent=0 // pred_check
    _
  $region11: #{vq_cvae_forward.16} parent=0 // pred_check_branch
    %13 = sbr.rel (0) target = $region13
  $region12: #{vq_cvae_forward.16} parent=0 // pred_region
    _
  $region13: #{vq_cvae_forward.16} parent=0 // pred_fallthru
    _
  %v15 = vld [vmem:[%s2] sm:$0x7]
  %v16 = vld [vmem:[%s0] sm:$0xff]
  %v17 = vld [vmem:[%s0 + $0x8] sm:$0xff]
  %v18 = vld [vmem:[%s0 + $0x10] sm:$0xff]
  %v19 = vld [vmem:[%s0 + $0x18] sm:$0xff]
  %v20 = vld [vmem:[%s0 + $0x20] sm:$0xff]
  %v21 = vld [vmem:[%s0 + $0x28] sm:$0xff]
  %v22 = vld [vmem:[%s0 + $0x30] sm:$0xff]
  %v23 = vld [vmem:[%s0 + $0x38] sm:$0xff]
  %v24 = vld [vmem:[%s0 + $0x40] sm:$0xff]
  %v25 = vld [vmem:[%s0 + $0x48] sm:$0xff]
  %v26 = vld [vmem:[%s0 + $0x50] sm:$0xff]
  %v27 = vld [vmem:[%s0 + $0x58] sm:$0xff]
  %v28 = vld [vmem:[%s0 + $0x60] sm:$0xff]
  %v29 = vld [vmem:[%s0 + $0x68] sm:$0xff]
  %v30 = vld [vmem:[%s0 + $0x70] sm:$0xff]
  %v31 = vld [vmem:[%s0 + $0x78] sm:$0xff]
  %v32 = vld [vmem:[%s1] sm:$0xf]
  %v33 = vld [vmem:[%s1 + $0x4] sm:$0xf]
  %v34 = vld [vmem:[%s1 + $0x8] sm:$0xf]
  %v35 = vld [vmem:[%s1 + $0xc] sm:$0xf]
  %v36 = vld [vmem:[%s1 + $0x10] sm:$0xf]
  %v37 = vld [vmem:[%s1 + $0x14] sm:$0xf]
  %v38 = vld [vmem:[%s1 + $0x18] sm:$0xf]
  %v39 = vld [vmem:[%s1 + $0x1c] sm:$0xf]
  %v40 = vld [vmem:[%s1 + $0x20] sm:$0xf]
  %v41 = vld [vmem:[%s1 + $0x24] sm:$0xf]
  %v42 = vld [vmem:[%s1 + $0x28] sm:$0xf]
  %v43 = vld [vmem:[%s1 + $0x2c] sm:$0xf]
  %v44 = vld [vmem:[%s1 + $0x30] sm:$0xf]
  %v45 = vld [vmem:[%s1 + $0x34] sm:$0xf]
  %v46 = vld [vmem:[%s1 + $0x38] sm:$0xf]
  %v47 = vld [vmem:[%s1 + $0x3c] sm:$0xf]
  %v48 = vld [vmem:[%s1 + $0x40] sm:$0xf]
  %v49 = vld [vmem:[%s1 + $0x44] sm:$0xf]
  %51 = vrot.lane.b32.xlu0 %v15, 16
  %v52 = vpop.permute.xlu0 %51
  %54 = vrot.lane.b32.xlu0 %v15, 32
  %v55 = vpop.permute.xlu0 %54
  %57 = vrot.lane.b32.xlu0 %v15, 48
  %v58 = vpop.permute.xlu0 %57
  %vm60 = vcmask 130048
  %v61 = vsel %vm60, %v15, %v52
  %vm62 = vcmask 261120
  %v63 = vsel %vm62, %v61, %v55
  %vm64 = vcmask 392192
  %v65 = vsel %vm64, %v63, %v58
  %v66 = vlaneseq
  %v67 = vshrl.u32 %v66, 7
  %v68 = vsub.s32 0, %v67
  %v69 = vrot.slane %v65, %v68
  %v86 = vunpack.c.l.b16 %v16
  %v87 = vunpack.c.h.b16 %v16
  %v88 = vunpack.c.l.b16 %v17
  %v89 = vunpack.c.h.b16 %v17
  %v90 = vunpack.c.l.b16 %v18
  %v91 = vunpack.c.h.b16 %v18
  %v92 = vunpack.c.l.b16 %v19
  %v93 = vunpack.c.h.b16 %v19
  %v94 = vunpack.c.l.b16 %v20
  %v95 = vunpack.c.h.b16 %v20
  %v96 = vunpack.c.l.b16 %v21
  %v97 = vunpack.c.h.b16 %v21
  %v98 = vunpack.c.l.b16 %v22
  %v99 = vunpack.c.h.b16 %v22
  %v100 = vunpack.c.l.b16 %v23
  %v101 = vunpack.c.h.b16 %v23
  %v102 = vunpack.c.l.b16 %v24
  %v103 = vunpack.c.h.b16 %v24
  %v104 = vunpack.c.l.b16 %v25
  %v105 = vunpack.c.h.b16 %v25
  %v106 = vunpack.c.l.b16 %v26
  %v107 = vunpack.c.h.b16 %v26
  %v108 = vunpack.c.l.b16 %v27
  %v109 = vunpack.c.h.b16 %v27
  %v110 = vunpack.c.l.b16 %v28
  %v111 = vunpack.c.h.b16 %v28
  %v112 = vunpack.c.l.b16 %v29
  %v113 = vunpack.c.h.b16 %v29
  %v114 = vunpack.c.l.b16 %v30
  %v115 = vunpack.c.h.b16 %v30
  %v116 = vunpack.c.l.b16 %v31
  %v117 = vunpack.c.h.b16 %v31
  %v118 = vpack.c.b16 %v88, %v86
  %v119 = vpack.c.b16 %v89, %v87
  %v120 = vpack.c.b16 %v92, %v90
  %v121 = vpack.c.b16 %v93, %v91
  %v122 = vpack.c.b16 %v96, %v94
  %v123 = vpack.c.b16 %v97, %v95
  %v124 = vpack.c.b16 %v100, %v98
  %v125 = vpack.c.b16 %v101, %v99
  %v126 = vpack.c.b16 %v104, %v102
  %v127 = vpack.c.b16 %v105, %v103
  %v128 = vpack.c.b16 %v108, %v106
  %v129 = vpack.c.b16 %v109, %v107
  %v130 = vpack.c.b16 %v112, %v110
  %v131 = vpack.c.b16 %v113, %v111
  %v132 = vpack.c.b16 %v116, %v114
  %v133 = vpack.c.b16 %v117, %v115
  %v160 = vunpack.c.l.b16 %v32
  %v161 = vunpack.c.l.b16 %v33
  %v162 = vunpack.c.l.b16 %v34
  %v163 = vunpack.c.l.b16 %v35
  %v164 = vunpack.c.l.b16 %v36
  %v165 = vunpack.c.l.b16 %v37
  %v166 = vunpack.c.l.b16 %v38
  %v167 = vunpack.c.l.b16 %v39
  %v168 = vunpack.c.l.b16 %v40
  %v169 = vunpack.c.l.b16 %v41
  %v170 = vunpack.c.l.b16 %v42
  %v171 = vunpack.c.l.b16 %v43
  %v172 = vunpack.c.l.b16 %v44
  %v173 = vunpack.c.l.b16 %v45
  %v174 = vunpack.c.l.b16 %v46
  %v175 = vunpack.c.l.b16 %v47
  %v176 = vunpack.c.l.b16 %v48
  %v177 = vunpack.c.l.b16 %v49
  %v178 = vpack.c.b16 %v161, %v160
  %v179 = vpack.c.b16 %v163, %v162
  %v180 = vpack.c.b16 %v165, %v164
  %v181 = vpack.c.b16 %v167, %v166
  %v182 = vpack.c.b16 %v169, %v168
  %v183 = vpack.c.b16 %v171, %v170
  %v184 = vpack.c.b16 %v173, %v172
  %v185 = vpack.c.b16 %v175, %v174
  %v186 = vpack.c.b16 %v177, %v176
  %v197 = vsel %vm60, %v119, 0
  %v200 = vsel %vm60, %v121, 0
  %v203 = vsel %vm60, %v123, 0
  %v206 = vsel %vm60, %v125, 0
  %v209 = vsel %vm60, %v127, 0
  %v212 = vsel %vm60, %v129, 0
  %v215 = vsel %vm60, %v131, 0
  %v218 = vsel %vm60, %v133, 0
  %220 = vmatprep.subr.bf16.mxu0 0
  %221 = vmatpush1.bf16.msra.mxu0 %v178
  %222 = vmatprep.subr.bf16.mxu0 0
  %223 = vmatpush1.bf16.msra.mxu0 %v179
  %224 = vmatprep.subr.bf16.mxu0 0
  %225 = vmatpush1.bf16.msra.mxu0 %v180
  %226 = vmatprep.subr.bf16.mxu0 0
  %227 = vmatpush1.bf16.msra.mxu0 %v181
  %228 = vmatprep.subr.bf16.mxu0 0
  %229 = vmatpush1.bf16.msra.mxu0 %v182
  %230 = vmatprep.subr.bf16.mxu0 0
  %231 = vmatpush1.bf16.msra.mxu0 %v183
  %232 = vmatprep.subr.bf16.mxu0 0
  %233 = vmatpush1.bf16.msra.mxu0 %v184
  %234 = vmatprep.subr.bf16.mxu0 0
  %235 = vmatpush1.bf16.msra.mxu0 %v185
  %236 = vmatprep.subr.bf16.mxu0 0
  %237 = vmatpush1.bf16.msra.mxu0 %v186
  %238 = vmatprep.subr.bf16.mxu0 0
  %239 = vmatpush1.bf16.msra.mxu0 0
  %240 = vmatprep.subr.bf16.mxu0 0
  %241 = vmatpush1.bf16.msra.mxu0 0
  %242 = vmatprep.subr.bf16.mxu0 0
  %243 = vmatpush1.bf16.msra.mxu0 0
  %244 = vmatprep.subr.bf16.mxu0 0
  %245 = vmatpush1.bf16.msra.mxu0 0
  %246 = vmatprep.subr.bf16.mxu0 0
  %247 = vmatpush1.bf16.msra.mxu0 0
  %248 = vmatprep.subr.bf16.mxu0 0
  %249 = vmatpush1.bf16.msra.mxu0 0
  %250 = vmatprep.subr.bf16.mxu0 0
  %251 = vmatpush1.bf16.msra.mxu0 0
  %252 = vmatprep.mubr.bf16.mxu0 %v197
  %253 = vmatmul.mubr.bf16.gmra.mrb[0].mxu0 %v118
  %v254 = vpop.f32.mrb[0].mxu0
  %v255 = vadd.f32 %v69, %v254
  %v256 = vpop.f32.mrb[0].mxu0
  %v257 = vpop.f32.mrb[0].mxu0
  %v258 = vadd.f32 %v69, %v257
  %v259 = vpop.f32.mrb[0].mxu0
  %260 = vmatprep.mubr.bf16.mxu0 %v200
  %261 = vmatmul.mubr.bf16.gmra.mrb[0].mxu0 %v120
  %v262 = vpop.f32.mrb[0].mxu0
  %v263 = vadd.f32 %v69, %v262
  %v264 = vpop.f32.mrb[0].mxu0
  %v265 = vpop.f32.mrb[0].mxu0
  %v266 = vadd.f32 %v69, %v265
  %v267 = vpop.f32.mrb[0].mxu0
  %268 = vmatprep.mubr.bf16.mxu0 %v203
  %269 = vmatmul.mubr.bf16.gmra.mrb[0].mxu0 %v122
  %v270 = vpop.f32.mrb[0].mxu0
  %v271 = vadd.f32 %v69, %v270
  %v272 = vpop.f32.mrb[0].mxu0
  %v273 = vpop.f32.mrb[0].mxu0
  %v274 = vadd.f32 %v69, %v273
  %v275 = vpop.f32.mrb[0].mxu0
  %276 = vmatprep.mubr.bf16.mxu0 %v206
  %277 = vmatmul.mubr.bf16.gmra.mrb[0].mxu0 %v124
  %v278 = vpop.f32.mrb[0].mxu0
  %v279 = vadd.f32 %v69, %v278
  %v280 = vpop.f32.mrb[0].mxu0
  %v281 = vpop.f32.mrb[0].mxu0
  %v282 = vadd.f32 %v69, %v281
  %v283 = vpop.f32.mrb[0].mxu0
  %284 = vmatprep.mubr.bf16.mxu0 %v209
  %285 = vmatmul.mubr.bf16.gmra.mrb[0].mxu0 %v126
  %v286 = vpop.f32.mrb[0].mxu0
  %v287 = vadd.f32 %v69, %v286
  %v288 = vpop.f32.mrb[0].mxu0
  %v289 = vpop.f32.mrb[0].mxu0
  %v290 = vadd.f32 %v69, %v289
  %v291 = vpop.f32.mrb[0].mxu0
  %292 = vmatprep.mubr.bf16.mxu0 %v212
  %293 = vmatmul.mubr.bf16.gmra.mrb[0].mxu0 %v128
  %v294 = vpop.f32.mrb[0].mxu0
  %v295 = vadd.f32 %v69, %v294
  %v296 = vpop.f32.mrb[0].mxu0
  %v297 = vpop.f32.mrb[0].mxu0
  %v298 = vadd.f32 %v69, %v297
  %v299 = vpop.f32.mrb[0].mxu0
  %300 = vmatprep.mubr.bf16.mxu0 %v215
  %301 = vmatmul.mubr.bf16.gmra.mrb[0].mxu0 %v130
  %v302 = vpop.f32.mrb[0].mxu0
  %v303 = vadd.f32 %v69, %v302
  %v304 = vpop.f32.mrb[0].mxu0
  %v305 = vpop.f32.mrb[0].mxu0
  %v306 = vadd.f32 %v69, %v305
  %v307 = vpop.f32.mrb[0].mxu0
  %308 = vmatprep.mubr.bf16.mxu0 %v218
  %309 = vmatmul.mubr.bf16.gmra.mrb[0].mxu0 %v132
  %v310 = vpop.f32.mrb[0].mxu0
  %v311 = vadd.f32 %v69, %v310
  %v312 = vpop.f32.mrb[0].mxu0
  %v313 = vpop.f32.mrb[0].mxu0
  %v314 = vadd.f32 %v69, %v313
  %v315 = vpop.f32.mrb[0].mxu0
  %316 = vdwg.mxu0
  %vm317 = vcmask 523264
  %v318 = vsel %vm317, %v255, 0.0
  %v319 = vsel %vm317, %v258, 0.0
  %v320 = vadd.f32 %v318, %v319
  %v321 = vsel %vm317, %v263, 0.0
  %v322 = vadd.f32 %v320, %v321
  %v323 = vsel %vm317, %v266, 0.0
  %v324 = vadd.f32 %v322, %v323
  %v325 = vsel %vm317, %v271, 0.0
  %v326 = vadd.f32 %v324, %v325
  %v327 = vsel %vm317, %v274, 0.0
  %v328 = vadd.f32 %v326, %v327
  %v329 = vsel %vm317, %v279, 0.0
  %v330 = vadd.f32 %v328, %v329
  %v331 = vsel %vm317, %v282, 0.0
  %v332 = vadd.f32 %v330, %v331
  %v333 = vsel %vm317, %v287, 0.0
  %v334 = vadd.f32 %v332, %v333
  %v335 = vsel %vm317, %v290, 0.0
  %v336 = vadd.f32 %v334, %v335
  %v337 = vsel %vm317, %v295, 0.0
  %v338 = vadd.f32 %v336, %v337
  %v339 = vsel %vm317, %v298, 0.0
  %v340 = vadd.f32 %v338, %v339
  %v341 = vsel %vm317, %v303, 0.0
  %v342 = vadd.f32 %v340, %v341
  %v343 = vsel %vm317, %v306, 0.0
  %v344 = vadd.f32 %v342, %v343
  %v345 = vsel %vm317, %v311, 0.0
  %v346 = vadd.f32 %v344, %v345
  %v347 = vsel %vm317, %v314, 0.0
  %v348 = vadd.f32 %v346, %v347
  %v349 = vrot.slane %v348, 4
  %v350 = vadd.f32 %v348, %v349
  %v351 = vrot.slane %v350, 2
  %v352 = vadd.f32 %v350, %v351
  %v353 = vrot.slane %v352, 1
  %v354 = vadd.f32 %v352, %v353
  %v355 = vmul.f32 %v255, %v255
  %v356 = vmul.f32 %v258, %v258
  %v357 = vmul.f32 %v263, %v263
  %v358 = vmul.f32 %v266, %v266
  %v359 = vmul.f32 %v271, %v271
  %v360 = vmul.f32 %v274, %v274
  %v361 = vmul.f32 %v279, %v279
  %v362 = vmul.f32 %v282, %v282
  %v363 = vmul.f32 %v287, %v287
  %v364 = vmul.f32 %v290, %v290
  %v365 = vmul.f32 %v295, %v295
  %v366 = vmul.f32 %v298, %v298
  %v367 = vmul.f32 %v303, %v303
  %v368 = vmul.f32 %v306, %v306
  %v369 = vmul.f32 %v311, %v311
  %v370 = vmul.f32 %v314, %v314
  %v371 = vsel %vm317, %v355, 0.0
  %v372 = vsel %vm317, %v356, 0.0
  %v373 = vadd.f32 %v371, %v372
  %v374 = vsel %vm317, %v357, 0.0
  %v375 = vadd.f32 %v373, %v374
  %v376 = vsel %vm317, %v358, 0.0
  %v377 = vadd.f32 %v375, %v376
  %v378 = vsel %vm317, %v359, 0.0
  %v379 = vadd.f32 %v377, %v378
  %v380 = vsel %vm317, %v360, 0.0
  %v381 = vadd.f32 %v379, %v380
  %v382 = vsel %vm317, %v361, 0.0
  %v383 = vadd.f32 %v381, %v382
  %v384 = vsel %vm317, %v362, 0.0
  %v385 = vadd.f32 %v383, %v384
  %v386 = vsel %vm317, %v363, 0.0
  %v387 = vadd.f32 %v385, %v386
  %v388 = vsel %vm317, %v364, 0.0
  %v389 = vadd.f32 %v387, %v388
  %v390 = vsel %vm317, %v365, 0.0
  %v391 = vadd.f32 %v389, %v390
  %v392 = vsel %vm317, %v366, 0.0
  %v393 = vadd.f32 %v391, %v392
  %v394 = vsel %vm317, %v367, 0.0
  %v395 = vadd.f32 %v393, %v394
  %v396 = vsel %vm317, %v368, 0.0
  %v397 = vadd.f32 %v395, %v396
  %v398 = vsel %vm317, %v369, 0.0
  %v399 = vadd.f32 %v397, %v398
  %v400 = vsel %vm317, %v370, 0.0
  %v401 = vadd.f32 %v399, %v400
  %v402 = vrot.slane %v401, 4
  %v403 = vadd.f32 %v401, %v402
  %v404 = vrot.slane %v403, 2
  %v405 = vadd.f32 %v403, %v404
  %v406 = vrot.slane %v405, 1
  %v407 = vadd.f32 %v405, %v406
  %409 = vrot.lane.b32.xlu0 %v354, 112
  %v410 = vpop.permute.xlu0 %409
  %v412 = vadd.f32 %v354, %v410
  %413 = vrot.lane.b32.xlu0 %v354, 96
  %v414 = vpop.permute.xlu0 %413
  %v416 = vadd.f32 %v412, %v414
  %417 = vrot.lane.b32.xlu0 %v354, 80
  %v418 = vpop.permute.xlu0 %417
  %v420 = vadd.f32 %v416, %v418
  %422 = vrot.lane.b32.xlu0 %v407, 112
  %v423 = vpop.permute.xlu0 %422
  %v425 = vadd.f32 %v407, %v423
  %426 = vrot.lane.b32.xlu0 %v407, 96
  %v427 = vpop.permute.xlu0 %426
  %v429 = vadd.f32 %v425, %v427
  %430 = vrot.lane.b32.xlu0 %v407, 80
  %v431 = vpop.permute.xlu0 %430
  %v433 = vadd.f32 %v429, %v431
  %v434 = vmul.f32 %v420, 0.001953125
  %v435 = vmul.f32 %v433, 0.001953125
  %v436 = vmul.f32 %v434, %v434
  %v437 = vsub.f32 %v435, %v436
  %v438 = vmax.f32 %v437, 0.0
  %v439 = vadd.f32 %v438, 1e-05
  %v440 = vrsqrt.pop %v439
  %v442 = vrot.slane %v440, 7
  %v444 = vmul.f32 %v15, %v442
  %v446 = vrot.slane %v444, 1
  %v448 = vmul.f32 %v434, %v446
  %v450 = vrot.slane %v448, 6
  %v452 = vsub.f32 %v15, %v450
  %453 = vrot.lane.b32.xlu0 %v444, 16
  %v454 = vpop.permute.xlu0 %453
  %456 = vrot.lane.b32.xlu0 %v444, 32
  %v457 = vpop.permute.xlu0 %456
  %459 = vrot.lane.b32.xlu0 %v444, 48
  %v460 = vpop.permute.xlu0 %459
  %v462 = vsel %vm60, %v444, %v454
  %v463 = vsel %vm62, %v462, %v457
  %v464 = vsel %vm64, %v463, %v460
  %466 = vrot.lane.b32.xlu0 %v452, 16
  %v467 = vpop.permute.xlu0 %466
  %469 = vrot.lane.b32.xlu0 %v452, 32
  %v470 = vpop.permute.xlu0 %469
  %472 = vrot.lane.b32.xlu0 %v452, 48
  %v473 = vpop.permute.xlu0 %472
  %v475 = vsel %vm60, %v452, %v467
  %v476 = vsel %vm62, %v475, %v470
  %v477 = vsel %vm64, %v476, %v473
  %v478 = vlaneseq
  %v479 = vshrl.u32 %v478, 7
  %v480 = vsub.s32 1, %v479
  %v481 = vrot.slane %v464, %v480
  %v482 = vmul.f32 %v255, %v481
  %v483 = vmul.f32 %v258, %v481
  %v484 = vmul.f32 %v263, %v481
  %v485 = vmul.f32 %v266, %v481
  %v486 = vmul.f32 %v271, %v481
  %v487 = vmul.f32 %v274, %v481
  %v488 = vmul.f32 %v279, %v481
  %v489 = vmul.f32 %v282, %v481
  %v490 = vmul.f32 %v287, %v481
  %v491 = vmul.f32 %v290, %v481
  %v492 = vmul.f32 %v295, %v481
  %v493 = vmul.f32 %v298, %v481
  %v494 = vmul.f32 %v303, %v481
  %v495 = vmul.f32 %v306, %v481
  %v496 = vmul.f32 %v311, %v481
  %v497 = vmul.f32 %v314, %v481
  %v498 = vlaneseq
  %v499 = vshrl.u32 %v498, 7
  %v500 = vsub.s32 2, %v499
  %v501 = vrot.slane %v477, %v500
  %v502 = vadd.f32 %v482, %v501
  %v503 = vadd.f32 %v483, %v501
  %v504 = vadd.f32 %v484, %v501
  %v505 = vadd.f32 %v485, %v501
  %v506 = vadd.f32 %v486, %v501
  %v507 = vadd.f32 %v487, %v501
  %v508 = vadd.f32 %v488, %v501
  %v509 = vadd.f32 %v489, %v501
  %v510 = vadd.f32 %v490, %v501
  %v511 = vadd.f32 %v491, %v501
  %v512 = vadd.f32 %v492, %v501
  %v513 = vadd.f32 %v493, %v501
  %v514 = vadd.f32 %v494, %v501
  %v515 = vadd.f32 %v495, %v501
  %v516 = vadd.f32 %v496, %v501
  %v517 = vadd.f32 %v497, %v501
  %v518 = vmax.f32 %v502, 0.0
  %v519 = vmax.f32 %v503, 0.0
  %v520 = vmax.f32 %v504, 0.0
  %v521 = vmax.f32 %v505, 0.0
  %v522 = vmax.f32 %v506, 0.0
  %v523 = vmax.f32 %v507, 0.0
  %v524 = vmax.f32 %v508, 0.0
  %v525 = vmax.f32 %v509, 0.0
  %v526 = vmax.f32 %v510, 0.0
  %v527 = vmax.f32 %v511, 0.0
  %v528 = vmax.f32 %v512, 0.0
  %v529 = vmax.f32 %v513, 0.0
  %v530 = vmax.f32 %v514, 0.0
  %v531 = vmax.f32 %v515, 0.0
  %v532 = vmax.f32 %v516, 0.0
  %v533 = vmax.f32 %v517, 0.0
  %534 = vst.msk [vmem:[%s3] sm:$0xff] %vm317, %v518
  %535 = vst.msk [vmem:[%s3 + $0x8] sm:$0xff] %vm317, %v519
  %536 = vst.msk [vmem:[%s3 + $0x10] sm:$0xff] %vm317, %v520
  %537 = vst.msk [vmem:[%s3 + $0x18] sm:$0xff] %vm317, %v521
  %538 = vst.msk [vmem:[%s3 + $0x20] sm:$0xff] %vm317, %v522
  %539 = vst.msk [vmem:[%s3 + $0x28] sm:$0xff] %vm317, %v523
  %540 = vst.msk [vmem:[%s3 + $0x30] sm:$0xff] %vm317, %v524
  %541 = vst.msk [vmem:[%s3 + $0x38] sm:$0xff] %vm317, %v525
  %542 = vst.msk [vmem:[%s3 + $0x40] sm:$0xff] %vm317, %v526
  %543 = vst.msk [vmem:[%s3 + $0x48] sm:$0xff] %vm317, %v527
  %544 = vst.msk [vmem:[%s3 + $0x50] sm:$0xff] %vm317, %v528
  %545 = vst.msk [vmem:[%s3 + $0x58] sm:$0xff] %vm317, %v529
  %546 = vst.msk [vmem:[%s3 + $0x60] sm:$0xff] %vm317, %v530
  %547 = vst.msk [vmem:[%s3 + $0x68] sm:$0xff] %vm317, %v531
  %548 = vst.msk [vmem:[%s3 + $0x70] sm:$0xff] %vm317, %v532
  %549 = vst.msk [vmem:[%s3 + $0x78] sm:$0xff] %vm317, %v533
  // Predicated region
  $region14: #{vq_cvae_forward.16} parent=0 // pred_check
    _
  $region15: #{vq_cvae_forward.16} parent=0 // pred_check_branch
    %551 = sbr.rel (0) target = $region17
  $region16: #{vq_cvae_forward.16} parent=0 // pred_region
    _
  $region17: #{vq_cvae_forward.16} parent=0 // pred_fallthru
    _
  // Predicated region
  $region18: #{vq_cvae_forward.16} parent=0 // pred_check
    _
  $region19: #{vq_cvae_forward.16} parent=0 // pred_check_branch
    %553 = sbr.rel (0) target = $region21
  $region20: #{vq_cvae_forward.16} parent=0 // pred_region
    _
  $region21: #{vq_cvae_forward.16} parent=0 // pred_fallthru
    _

// kernel: vq_cvae_forward.14
$region0: #{vq_cvae_forward.14}
  #allocation0 [shape = 'u32[]', space=smem, size = 0x4, offset = 0x4, fixed_abs, tag = 'smem constant byte address 0x4 - core index']
  #allocation1 [shape = 'u32[144,128]{1,0:T(1,128)}', space=vmem, size = 0x12000, scoped, tag = 'internal scratch']
  %s0 = inlined_call_operand.vmem [shape: bf16[128,144], index: 0, kind: input, shape index: {}]
  %s1 = inlined_call_operand.vmem [shape: bf16[144,16], index: 1, kind: input, shape index: {}]
  %s2 = inlined_call_operand.vmem [shape: bf16[16,16], index: 2, kind: input, shape index: {}]
  %s3 = inlined_call_operand.vmem [shape: f32[128,16], index: 3, kind: input, shape index: {}]
  %s4 = inlined_call_operand.vmem [shape: f32[6,16], index: 4, kind: input, shape index: {}]
  %s5 = inlined_call_operand.vmem [shape: f32[128,16], index: 5, kind: output, shape index: {}]
  %s6 = sld [smem:[#allocation0]]
  $region30: #{vq_cvae_forward.14} parent=0
    _
  %s8 = ssub.s32 1, %s6
  %s9 = scalar_select 0, %s8, %s6
  // Predicated region
  $region2: #{vq_cvae_forward.14} parent=0 // pred_check
    _
  $region3: #{vq_cvae_forward.14} parent=0 // pred_check_branch
    %11 = sbr.rel (0) target = $region5
  $region4: #{vq_cvae_forward.14} parent=0 // pred_region
    _
  $region5: #{vq_cvae_forward.14} parent=0 // pred_fallthru
    _
  // Predicated region
  $region6: #{vq_cvae_forward.14} parent=0 // pred_check
    _
  $region7: #{vq_cvae_forward.14} parent=0 // pred_check_branch
    %13 = sbr.rel (0) target = $region9
  $region8: #{vq_cvae_forward.14} parent=0 // pred_region
    _
  $region9: #{vq_cvae_forward.14} parent=0 // pred_fallthru
    _
  // Predicated region
  $region10: #{vq_cvae_forward.14} parent=0 // pred_check
    _
  $region11: #{vq_cvae_forward.14} parent=0 // pred_check_branch
    %15 = sbr.rel (0) target = $region13
  $region12: #{vq_cvae_forward.14} parent=0 // pred_region
    _
  $region13: #{vq_cvae_forward.14} parent=0 // pred_fallthru
    _
  // Predicated region
  $region14: #{vq_cvae_forward.14} parent=0 // pred_check
    _
  $region15: #{vq_cvae_forward.14} parent=0 // pred_check_branch
    %17 = sbr.rel (0) target = $region17
  $region16: #{vq_cvae_forward.14} parent=0 // pred_region
    _
  $region17: #{vq_cvae_forward.14} parent=0 // pred_fallthru
    _
  // Predicated region
  $region18: #{vq_cvae_forward.14} parent=0 // pred_check
    _
  $region19: #{vq_cvae_forward.14} parent=0 // pred_check_branch
    %19 = sbr.rel (0) target = $region21
  $region20: #{vq_cvae_forward.14} parent=0 // pred_region
    _
  $region21: #{vq_cvae_forward.14} parent=0 // pred_fallthru
    _
  %v21 = vld [vmem:[%s4] sm:$0x3f]
  %v22 = vld [vmem:[%s0] sm:$0xff]
  %v23 = vld [vmem:[%s0 + $0x8] sm:$0xff]
  %v24 = vld [vmem:[%s0 + $0x10] sm:$0xff]
  %v25 = vld [vmem:[%s0 + $0x18] sm:$0xff]
  %v26 = vld [vmem:[%s0 + $0x20] sm:$0xff]
  %v27 = vld [vmem:[%s0 + $0x28] sm:$0xff]
  %v28 = vld [vmem:[%s0 + $0x30] sm:$0xff]
  %v29 = vld [vmem:[%s0 + $0x38] sm:$0xff]
  %v30 = vld [vmem:[%s0 + $0x40] sm:$0xff]
  %v31 = vld [vmem:[%s0 + $0x48] sm:$0xff]
  %v32 = vld [vmem:[%s0 + $0x50] sm:$0xff]
  %v33 = vld [vmem:[%s0 + $0x58] sm:$0xff]
  %v34 = vld [vmem:[%s0 + $0x60] sm:$0xff]
  %v35 = vld [vmem:[%s0 + $0x68] sm:$0xff]
  %v36 = vld [vmem:[%s0 + $0x70] sm:$0xff]
  %v37 = vld [vmem:[%s0 + $0x78] sm:$0xff]
  %v38 = vmax.bf16 %v22, 0
  %v39 = vmax.bf16 %v23, 0
  %v40 = vmax.bf16 %v24, 0
  %v41 = vmax.bf16 %v25, 0
  %v42 = vmax.bf16 %v26, 0
  %v43 = vmax.bf16 %v27, 0
  %v44 = vmax.bf16 %v28, 0
  %v45 = vmax.bf16 %v29, 0
  %v46 = vmax.bf16 %v30, 0
  %v47 = vmax.bf16 %v31, 0
  %v48 = vmax.bf16 %v32, 0
  %v49 = vmax.bf16 %v33, 0
  %v50 = vmax.bf16 %v34, 0
  %v51 = vmax.bf16 %v35, 0
  %v52 = vmax.bf16 %v36, 0
  %v53 = vmax.bf16 %v37, 0
  %v54 = vld [vmem:[%s1] sm:$0xf]
  %v55 = vld [vmem:[%s1 + $0x4] sm:$0xf]
  %v56 = vld [vmem:[%s1 + $0x8] sm:$0xf]
  %v57 = vld [vmem:[%s1 + $0xc] sm:$0xf]
  %v58 = vld [vmem:[%s1 + $0x10] sm:$0xf]
  %v59 = vld [vmem:[%s1 + $0x14] sm:$0xf]
  %v60 = vld [vmem:[%s1 + $0x18] sm:$0xf]
  %v61 = vld [vmem:[%s1 + $0x1c] sm:$0xf]
  %v62 = vld [vmem:[%s1 + $0x20] sm:$0xf]
  %v63 = vld [vmem:[%s1 + $0x24] sm:$0xf]
  %v64 = vld [vmem:[%s1 + $0x28] sm:$0xf]
  %v65 = vld [vmem:[%s1 + $0x2c] sm:$0xf]
  %v66 = vld [vmem:[%s1 + $0x30] sm:$0xf]
  %v67 = vld [vmem:[%s1 + $0x34] sm:$0xf]
  %v68 = vld [vmem:[%s1 + $0x38] sm:$0xf]
  %v69 = vld [vmem:[%s1 + $0x3c] sm:$0xf]
  %v70 = vld [vmem:[%s1 + $0x40] sm:$0xf]
  %v71 = vld [vmem:[%s1 + $0x44] sm:$0xf]
  %v72 = vlaneseq
  %v73 = vshrl.u32 %v72, 7
  %v74 = vsub.s32 0, %v73
  %v75 = vrot.slane %v21, %v74
  %v92 = vunpack.c.l.b16 %v38
  %v93 = vunpack.c.h.b16 %v38
  %v94 = vunpack.c.l.b16 %v39
  %v95 = vunpack.c.h.b16 %v39
  %v96 = vunpack.c.l.b16 %v40
  %v97 = vunpack.c.h.b16 %v40
  %v98 = vunpack.c.l.b16 %v41
  %v99 = vunpack.c.h.b16 %v41
  %v100 = vunpack.c.l.b16 %v42
  %v101 = vunpack.c.h.b16 %v42
  %v102 = vunpack.c.l.b16 %v43
  %v103 = vunpack.c.h.b16 %v43
  %v104 = vunpack.c.l.b16 %v44
  %v105 = vunpack.c.h.b16 %v44
  %v106 = vunpack.c.l.b16 %v45
  %v107 = vunpack.c.h.b16 %v45
  %v108 = vunpack.c.l.b16 %v46
  %v109 = vunpack.c.h.b16 %v46
  %v110 = vunpack.c.l.b16 %v47
  %v111 = vunpack.c.h.b16 %v47
  %v112 = vunpack.c.l.b16 %v48
  %v113 = vunpack.c.h.b16 %v48
  %v114 = vunpack.c.l.b16 %v49
  %v115 = vunpack.c.h.b16 %v49
  %v116 = vunpack.c.l.b16 %v50
  %v117 = vunpack.c.h.b16 %v50
  %v118 = vunpack.c.l.b16 %v51
  %v119 = vunpack.c.h.b16 %v51
  %v120 = vunpack.c.l.b16 %v52
  %v121 = vunpack.c.h.b16 %v52
  %v122 = vunpack.c.l.b16 %v53
  %v123 = vunpack.c.h.b16 %v53
  %v124 = vpack.c.b16 %v94, %v92
  %v125 = vpack.c.b16 %v95, %v93
  %v126 = vpack.c.b16 %v98, %v96
  %v127 = vpack.c.b16 %v99, %v97
  %v128 = vpack.c.b16 %v102, %v100
  %v129 = vpack.c.b16 %v103, %v101
  %v130 = vpack.c.b16 %v106, %v104
  %v131 = vpack.c.b16 %v107, %v105
  %v132 = vpack.c.b16 %v110, %v108
  %v133 = vpack.c.b16 %v111, %v109
  %v134 = vpack.c.b16 %v114, %v112
  %v135 = vpack.c.b16 %v115, %v113
  %v136 = vpack.c.b16 %v118, %v116
  %v137 = vpack.c.b16 %v119, %v117
  %v138 = vpack.c.b16 %v122, %v120
  %v139 = vpack.c.b16 %v123, %v121
  %v166 = vunpack.c.l.b16 %v54
  %v167 = vunpack.c.l.b16 %v55
  %v168 = vunpack.c.l.b16 %v56
  %v169 = vunpack.c.l.b16 %v57
  %v170 = vunpack.c.l.b16 %v58
  %v171 = vunpack.c.l.b16 %v59
  %v172 = vunpack.c.l.b16 %v60
  %v173 = vunpack.c.l.b16 %v61
  %v174 = vunpack.c.l.b16 %v62
  %v175 = vunpack.c.l.b16 %v63
  %v176 = vunpack.c.l.b16 %v64
  %v177 = vunpack.c.l.b16 %v65
  %v178 = vunpack.c.l.b16 %v66
  %v179 = vunpack.c.l.b16 %v67
  %v180 = vunpack.c.l.b16 %v68
  %v181 = vunpack.c.l.b16 %v69
  %v182 = vunpack.c.l.b16 %v70
  %v183 = vunpack.c.l.b16 %v71
  %v184 = vpack.c.b16 %v167, %v166
  %v185 = vpack.c.b16 %v169, %v168
  %v186 = vpack.c.b16 %v171, %v170
  %v187 = vpack.c.b16 %v173, %v172
  %v188 = vpack.c.b16 %v175, %v174
  %v189 = vpack.c.b16 %v177, %v176
  %v190 = vpack.c.b16 %v179, %v178
  %v191 = vpack.c.b16 %v181, %v180
  %v192 = vpack.c.b16 %v183, %v182
  %vm202 = vcmask 130048
  %v204 = vsel %vm202, %v125, 0
  %v207 = vsel %vm202, %v127, 0
  %v210 = vsel %vm202, %v129, 0
  %v213 = vsel %vm202, %v131, 0
  %v216 = vsel %vm202, %v133, 0
  %v219 = vsel %vm202, %v135, 0
  %v222 = vsel %vm202, %v137, 0
  %v225 = vsel %vm202, %v139, 0
  %227 = vmatprep.subr.bf16.mxu0 0
  %228 = vmatpush1.bf16.msra.mxu0 %v184
  %229 = vmatprep.subr.bf16.mxu0 0
  %230 = vmatpush1.bf16.msra.mxu0 %v185
  %231 = vmatprep.subr.bf16.mxu0 0
  %232 = vmatpush1.bf16.msra.mxu0 %v186
  %233 = vmatprep.subr.bf16.mxu0 0
  %234 = vmatpush1.bf16.msra.mxu0 %v187
  %235 = vmatprep.subr.bf16.mxu0 0
  %236 = vmatpush1.bf16.msra.mxu0 %v188
  %237 = vmatprep.subr.bf16.mxu0 0
  %238 = vmatpush1.bf16.msra.mxu0 %v189
  %239 = vmatprep.subr.bf16.mxu0 0
  %240 = vmatpush1.bf16.msra.mxu0 %v190
  %241 = vmatprep.subr.bf16.mxu0 0
  %242 = vmatpush1.bf16.msra.mxu0 %v191
  %243 = vmatprep.subr.bf16.mxu0 0
  %244 = vmatpush1.bf16.msra.mxu0 %v192
  %245 = vmatprep.subr.bf16.mxu0 0
  %246 = vmatpush1.bf16.msra.mxu0 0
  %247 = vmatprep.subr.bf16.mxu0 0
  %248 = vmatpush1.bf16.msra.mxu0 0
  %249 = vmatprep.subr.bf16.mxu0 0
  %250 = vmatpush1.bf16.msra.mxu0 0
  %251 = vmatprep.subr.bf16.mxu0 0
  %252 = vmatpush1.bf16.msra.mxu0 0
  %253 = vmatprep.subr.bf16.mxu0 0
  %254 = vmatpush1.bf16.msra.mxu0 0
  %255 = vmatprep.subr.bf16.mxu0 0
  %256 = vmatpush1.bf16.msra.mxu0 0
  %257 = vmatprep.subr.bf16.mxu0 0
  %258 = vmatpush1.bf16.msra.mxu0 0
  %259 = vmatprep.mubr.bf16.mxu0 %v204
  %260 = vmatmul.mubr.bf16.gmra.mrb[0].mxu0 %v124
  %v261 = vpop.f32.mrb[0].mxu0
  %v262 = vadd.f32 %v75, %v261
  %v263 = vpop.f32.mrb[0].mxu0
  %v264 = vpop.f32.mrb[0].mxu0
  %v265 = vadd.f32 %v75, %v264
  %v266 = vpop.f32.mrb[0].mxu0
  %267 = vmatprep.mubr.bf16.mxu0 %v207
  %268 = vmatmul.mubr.bf16.gmra.mrb[0].mxu0 %v126
  %v269 = vpop.f32.mrb[0].mxu0
  %v270 = vadd.f32 %v75, %v269
  %v271 = vpop.f32.mrb[0].mxu0
  %v272 = vpop.f32.mrb[0].mxu0
  %v273 = vadd.f32 %v75, %v272
  %v274 = vpop.f32.mrb[0].mxu0
  %275 = vmatprep.mubr.bf16.mxu0 %v210
  %276 = vmatmul.mubr.bf16.gmra.mrb[0].mxu0 %v128
  %v277 = vpop.f32.mrb[0].mxu0
  %v278 = vadd.f32 %v75, %v277
  %v279 = vpop.f32.mrb[0].mxu0
  %v280 = vpop.f32.mrb[0].mxu0
  %v281 = vadd.f32 %v75, %v280
  %v282 = vpop.f32.mrb[0].mxu0
  %283 = vmatprep.mubr.bf16.mxu0 %v213
  %284 = vmatmul.mubr.bf16.gmra.mrb[0].mxu0 %v130
  %v285 = vpop.f32.mrb[0].mxu0
  %v286 = vadd.f32 %v75, %v285
  %v287 = vpop.f32.mrb[0].mxu0
  %v288 = vpop.f32.mrb[0].mxu0
  %v289 = vadd.f32 %v75, %v288
  %v290 = vpop.f32.mrb[0].mxu0
  %291 = vmatprep.mubr.bf16.mxu0 %v216
  %292 = vmatmul.mubr.bf16.gmra.mrb[0].mxu0 %v132
  %v293 = vpop.f32.mrb[0].mxu0
  %v294 = vadd.f32 %v75, %v293
  %v295 = vpop.f32.mrb[0].mxu0
  %v296 = vpop.f32.mrb[0].mxu0
  %v297 = vadd.f32 %v75, %v296
  %v298 = vpop.f32.mrb[0].mxu0
  %299 = vmatprep.mubr.bf16.mxu0 %v219
  %300 = vmatmul.mubr.bf16.gmra.mrb[0].mxu0 %v134
  %v301 = vpop.f32.mrb[0].mxu0
  %v302 = vadd.f32 %v75, %v301
  %v303 = vpop.f32.mrb[0].mxu0
  %v304 = vpop.f32.mrb[0].mxu0
  %v305 = vadd.f32 %v75, %v304
  %v306 = vpop.f32.mrb[0].mxu0
  %307 = vmatprep.mubr.bf16.mxu0 %v222
  %308 = vmatmul.mubr.bf16.gmra.mrb[0].mxu0 %v136
  %v309 = vpop.f32.mrb[0].mxu0
  %v310 = vadd.f32 %v75, %v309
  %v311 = vpop.f32.mrb[0].mxu0
  %v312 = vpop.f32.mrb[0].mxu0
  %v313 = vadd.f32 %v75, %v312
  %v314 = vpop.f32.mrb[0].mxu0
  %315 = vmatprep.mubr.bf16.mxu0 %v225
  %316 = vmatmul.mubr.bf16.gmra.mrb[0].mxu0 %v138
  %v317 = vpop.f32.mrb[0].mxu0
  %v318 = vadd.f32 %v75, %v317
  %v319 = vpop.f32.mrb[0].mxu0
  %v320 = vpop.f32.mrb[0].mxu0
  %v321 = vadd.f32 %v75, %v320
  %v322 = vpop.f32.mrb[0].mxu0
  %323 = vdwg.mxu0
  %v324 = vmax.f32 %v262, 0.0
  %v325 = vmax.f32 %v265, 0.0
  %v326 = vmax.f32 %v270, 0.0
  %v327 = vmax.f32 %v273, 0.0
  %v328 = vmax.f32 %v278, 0.0
  %v329 = vmax.f32 %v281, 0.0
  %v330 = vmax.f32 %v286, 0.0
  %v331 = vmax.f32 %v289, 0.0
  %v332 = vmax.f32 %v294, 0.0
  %v333 = vmax.f32 %v297, 0.0
  %v334 = vmax.f32 %v302, 0.0
  %v335 = vmax.f32 %v305, 0.0
  %v336 = vmax.f32 %v310, 0.0
  %v337 = vmax.f32 %v313, 0.0
  %v338 = vmax.f32 %v318, 0.0
  %v339 = vmax.f32 %v321, 0.0
  %v340 = vpack.c.bf16 %v325, %v324
  %v341 = vpack.c.bf16 %v327, %v326
  %v342 = vpack.c.bf16 %v329, %v328
  %v343 = vpack.c.bf16 %v331, %v330
  %v344 = vpack.c.bf16 %v333, %v332
  %v345 = vpack.c.bf16 %v335, %v334
  %v346 = vpack.c.bf16 %v337, %v336
  %v347 = vpack.c.bf16 %v339, %v338
  %v348 = vld [vmem:[%s2] sm:$0xf]
  %v349 = vld [vmem:[%s2 + $0x4] sm:$0xf]
  %v350 = vlaneseq
  %v351 = vshrl.u32 %v350, 7
  %v352 = vsub.s32 3, %v351
  %v353 = vrot.slane %v21, %v352
  %v356 = vunpack.c.l.b16 %v348
  %v357 = vunpack.c.l.b16 %v349
  %v358 = vpack.c.b16 %v357, %v356
  %v361 = vsel %vm202, %v340, 0
  %v364 = vsel %vm202, %v341, 0
  %v367 = vsel %vm202, %v342, 0
  %v370 = vsel %vm202, %v343, 0
  %v373 = vsel %vm202, %v344, 0
  %v376 = vsel %vm202, %v345, 0
  %v379 = vsel %vm202, %v346, 0
  %v382 = vsel %vm202, %v347, 0
  %384 = vmatprep.subr.bf16.mxu0 0
  %385 = vmatpush1.bf16.msra.mxu0 %v358
  %386 = vmatprep.subr.bf16.mxu0 0
  %387 = vmatpush1.bf16.msra.mxu0 0
  %388 = vmatprep.subr.bf16.mxu0 0
  %389 = vmatpush1.bf16.msra.mxu0 0
  %390 = vmatprep.subr.bf16.mxu0 0
  %391 = vmatpush1.bf16.msra.mxu0 0
  %392 = vmatprep.subr.bf16.mxu0 0
  %393 = vmatpush1.bf16.msra.mxu0 0
  %394 = vmatprep.subr.bf16.mxu0 0
  %395 = vmatpush1.bf16.msra.mxu0 0
  %396 = vmatprep.subr.bf16.mxu0 0
  %397 = vmatpush1.bf16.msra.mxu0 0
  %398 = vmatprep.subr.bf16.mxu0 0
  %399 = vmatpush1.bf16.msra.mxu0 0
  %400 = vmatprep.subr.bf16.mxu0 0
  %401 = vmatpush1.bf16.msra.mxu0 0
  %402 = vmatprep.subr.bf16.mxu0 0
  %403 = vmatpush1.bf16.msra.mxu0 0
  %404 = vmatprep.subr.bf16.mxu0 0
  %405 = vmatpush1.bf16.msra.mxu0 0
  %406 = vmatprep.subr.bf16.mxu0 0
  %407 = vmatpush1.bf16.msra.mxu0 0
  %408 = vmatprep.subr.bf16.mxu0 0
  %409 = vmatpush1.bf16.msra.mxu0 0
  %410 = vmatprep.subr.bf16.mxu0 0
  %411 = vmatpush1.bf16.msra.mxu0 0
  %412 = vmatprep.subr.bf16.mxu0 0
  %413 = vmatpush1.bf16.msra.mxu0 0
  %414 = vmatprep.subr.bf16.mxu0 0
  %415 = vmatpush1.bf16.msra.mxu0 0
  %416 = vmatprep.mubr.bf16.mxu0 0
  %417 = vmatmul.mubr.bf16.gmra.mrb[0].mxu0 %v361
  %v418 = vpop.f32.mrb[0].mxu0
  %v419 = vadd.f32 %v353, %v418
  %v420 = vpop.f32.mrb[0].mxu0
  %v421 = vpop.f32.mrb[0].mxu0
  %v422 = vadd.f32 %v353, %v421
  %v423 = vpop.f32.mrb[0].mxu0
  %424 = vmatprep.mubr.bf16.mxu0 0
  %425 = vmatmul.mubr.bf16.gmra.mrb[0].mxu0 %v364
  %v426 = vpop.f32.mrb[0].mxu0
  %v427 = vadd.f32 %v353, %v426
  %v428 = vpop.f32.mrb[0].mxu0
  %v429 = vpop.f32.mrb[0].mxu0
  %v430 = vadd.f32 %v353, %v429
  %v431 = vpop.f32.mrb[0].mxu0
  %432 = vmatprep.mubr.bf16.mxu0 0
  %433 = vmatmul.mubr.bf16.gmra.mrb[0].mxu0 %v367
  %v434 = vpop.f32.mrb[0].mxu0
  %v435 = vadd.f32 %v353, %v434
  %v436 = vpop.f32.mrb[0].mxu0
  %v437 = vpop.f32.mrb[0].mxu0
  %v438 = vadd.f32 %v353, %v437
  %v439 = vpop.f32.mrb[0].mxu0
  %440 = vmatprep.mubr.bf16.mxu0 0
  %441 = vmatmul.mubr.bf16.gmra.mrb[0].mxu0 %v370
  %v442 = vpop.f32.mrb[0].mxu0
  %v443 = vadd.f32 %v353, %v442
  %v444 = vpop.f32.mrb[0].mxu0
  %v445 = vpop.f32.mrb[0].mxu0
  %v446 = vadd.f32 %v353, %v445
  %v447 = vpop.f32.mrb[0].mxu0
  %448 = vmatprep.mubr.bf16.mxu0 0
  %449 = vmatmul.mubr.bf16.gmra.mrb[0].mxu0 %v373
  %v450 = vpop.f32.mrb[0].mxu0
  %v451 = vadd.f32 %v353, %v450
  %v452 = vpop.f32.mrb[0].mxu0
  %v453 = vpop.f32.mrb[0].mxu0
  %v454 = vadd.f32 %v353, %v453
  %v455 = vpop.f32.mrb[0].mxu0
  %456 = vmatprep.mubr.bf16.mxu0 0
  %457 = vmatmul.mubr.bf16.gmra.mrb[0].mxu0 %v376
  %v458 = vpop.f32.mrb[0].mxu0
  %v459 = vadd.f32 %v353, %v458
  %v460 = vpop.f32.mrb[0].mxu0
  %v461 = vpop.f32.mrb[0].mxu0
  %v462 = vadd.f32 %v353, %v461
  %v463 = vpop.f32.mrb[0].mxu0
  %464 = vmatprep.mubr.bf16.mxu0 0
  %465 = vmatmul.mubr.bf16.gmra.mrb[0].mxu0 %v379
  %v466 = vpop.f32.mrb[0].mxu0
  %v467 = vadd.f32 %v353, %v466
  %v468 = vpop.f32.mrb[0].mxu0
  %v469 = vpop.f32.mrb[0].mxu0
  %v470 = vadd.f32 %v353, %v469
  %v471 = vpop.f32.mrb[0].mxu0
  %472 = vmatprep.mubr.bf16.mxu0 0
  %473 = vmatmul.mubr.bf16.gmra.mrb[0].mxu0 %v382
  %v474 = vpop.f32.mrb[0].mxu0
  %v475 = vadd.f32 %v353, %v474
  %v476 = vpop.f32.mrb[0].mxu0
  %v477 = vpop.f32.mrb[0].mxu0
  %v478 = vadd.f32 %v353, %v477
  %v479 = vpop.f32.mrb[0].mxu0
  %480 = vdwg.mxu0
  %v481 = vld [vmem:[%s3] sm:$0xff]
  %v482 = vld [vmem:[%s3 + $0x8] sm:$0xff]
  %v483 = vld [vmem:[%s3 + $0x10] sm:$0xff]
  %v484 = vld [vmem:[%s3 + $0x18] sm:$0xff]
  %v485 = vld [vmem:[%s3 + $0x20] sm:$0xff]
  %v486 = vld [vmem:[%s3 + $0x28] sm:$0xff]
  %v487 = vld [vmem:[%s3 + $0x30] sm:$0xff]
  %v488 = vld [vmem:[%s3 + $0x38] sm:$0xff]
  %v489 = vld [vmem:[%s3 + $0x40] sm:$0xff]
  %v490 = vld [vmem:[%s3 + $0x48] sm:$0xff]
  %v491 = vld [vmem:[%s3 + $0x50] sm:$0xff]
  %v492 = vld [vmem:[%s3 + $0x58] sm:$0xff]
  %v493 = vld [vmem:[%s3 + $0x60] sm:$0xff]
  %v494 = vld [vmem:[%s3 + $0x68] sm:$0xff]
  %v495 = vld [vmem:[%s3 + $0x70] sm:$0xff]
  %v496 = vld [vmem:[%s3 + $0x78] sm:$0xff]
  %v497 = vadd.f32 %v481, %v419
  %v498 = vadd.f32 %v482, %v422
  %v499 = vadd.f32 %v483, %v427
  %v500 = vadd.f32 %v484, %v430
  %v501 = vadd.f32 %v485, %v435
  %v502 = vadd.f32 %v486, %v438
  %v503 = vadd.f32 %v487, %v443
  %v504 = vadd.f32 %v488, %v446
  %v505 = vadd.f32 %v489, %v451
  %v506 = vadd.f32 %v490, %v454
  %v507 = vadd.f32 %v491, %v459
  %v508 = vadd.f32 %v492, %v462
  %v509 = vadd.f32 %v493, %v467
  %v510 = vadd.f32 %v494, %v470
  %v511 = vadd.f32 %v495, %v475
  %v512 = vadd.f32 %v496, %v478
  %v513 = vsel %vm202, %v497, 0.0
  %v514 = vsel %vm202, %v498, 0.0
  %v515 = vadd.f32 %v513, %v514
  %v516 = vsel %vm202, %v499, 0.0
  %v517 = vadd.f32 %v515, %v516
  %v518 = vsel %vm202, %v500, 0.0
  %v519 = vadd.f32 %v517, %v518
  %v520 = vsel %vm202, %v501, 0.0
  %v521 = vadd.f32 %v519, %v520
  %v522 = vsel %vm202, %v502, 0.0
  %v523 = vadd.f32 %v521, %v522
  %v524 = vsel %vm202, %v503, 0.0
  %v525 = vadd.f32 %v523, %v524
  %v526 = vsel %vm202, %v504, 0.0
  %v527 = vadd.f32 %v525, %v526
  %v528 = vsel %vm202, %v505, 0.0
  %v529 = vadd.f32 %v527, %v528
  %v530 = vsel %vm202, %v506, 0.0
  %v531 = vadd.f32 %v529, %v530
  %v532 = vsel %vm202, %v507, 0.0
  %v533 = vadd.f32 %v531, %v532
  %v534 = vsel %vm202, %v508, 0.0
  %v535 = vadd.f32 %v533, %v534
  %v536 = vsel %vm202, %v509, 0.0
  %v537 = vadd.f32 %v535, %v536
  %v538 = vsel %vm202, %v510, 0.0
  %v539 = vadd.f32 %v537, %v538
  %v540 = vsel %vm202, %v511, 0.0
  %v541 = vadd.f32 %v539, %v540
  %v542 = vsel %vm202, %v512, 0.0
  %v543 = vadd.f32 %v541, %v542
  %v544 = vrot.slane %v543, 4
  %v545 = vadd.f32 %v543, %v544
  %v546 = vrot.slane %v545, 2
  %v547 = vadd.f32 %v545, %v546
  %v548 = vrot.slane %v547, 1
  %v549 = vadd.f32 %v547, %v548
  %v550 = vrcp.pop 128.0
  %v551 = vmul.f32 %v549, %v550
  %v552 = vsub.f32 %v497, %v551
  %v553 = vsub.f32 %v498, %v551
  %v554 = vsub.f32 %v499, %v551
  %v555 = vsub.f32 %v500, %v551
  %v556 = vsub.f32 %v501, %v551
  %v557 = vsub.f32 %v502, %v551
  %v558 = vsub.f32 %v503, %v551
  %v559 = vsub.f32 %v504, %v551
  %v560 = vsub.f32 %v505, %v551
  %v561 = vsub.f32 %v506, %v551
  %v562 = vsub.f32 %v507, %v551
  %v563 = vsub.f32 %v508, %v551
  %v564 = vsub.f32 %v509, %v551
  %v565 = vsub.f32 %v510, %v551
  %v566 = vsub.f32 %v511, %v551
  %v567 = vsub.f32 %v512, %v551
  %v568 = vmul.f32 %v552, %v552
  %v569 = vmul.f32 %v553, %v553
  %v570 = vmul.f32 %v554, %v554
  %v571 = vmul.f32 %v555, %v555
  %v572 = vmul.f32 %v556, %v556
  %v573 = vmul.f32 %v557, %v557
  %v574 = vmul.f32 %v558, %v558
  %v575 = vmul.f32 %v559, %v559
  %v576 = vmul.f32 %v560, %v560
  %v577 = vmul.f32 %v561, %v561
  %v578 = vmul.f32 %v562, %v562
  %v579 = vmul.f32 %v563, %v563
  %v580 = vmul.f32 %v564, %v564
  %v581 = vmul.f32 %v565, %v565
  %v582 = vmul.f32 %v566, %v566
  %v583 = vmul.f32 %v567, %v567
  %v584 = vsel %vm202, %v568, 0.0
  %v585 = vsel %vm202, %v569, 0.0
  %v586 = vadd.f32 %v584, %v585
  %v587 = vsel %vm202, %v570, 0.0
  %v588 = vadd.f32 %v586, %v587
  %v589 = vsel %vm202, %v571, 0.0
  %v590 = vadd.f32 %v588, %v589
  %v591 = vsel %vm202, %v572, 0.0
  %v592 = vadd.f32 %v590, %v591
  %v593 = vsel %vm202, %v573, 0.0
  %v594 = vadd.f32 %v592, %v593
  %v595 = vsel %vm202, %v574, 0.0
  %v596 = vadd.f32 %v594, %v595
  %v597 = vsel %vm202, %v575, 0.0
  %v598 = vadd.f32 %v596, %v597
  %v599 = vsel %vm202, %v576, 0.0
  %v600 = vadd.f32 %v598, %v599
  %v601 = vsel %vm202, %v577, 0.0
  %v602 = vadd.f32 %v600, %v601
  %v603 = vsel %vm202, %v578, 0.0
  %v604 = vadd.f32 %v602, %v603
  %v605 = vsel %vm202, %v579, 0.0
  %v606 = vadd.f32 %v604, %v605
  %v607 = vsel %vm202, %v580, 0.0
  %v608 = vadd.f32 %v606, %v607
  %v609 = vsel %vm202, %v581, 0.0
  %v610 = vadd.f32 %v608, %v609
  %v611 = vsel %vm202, %v582, 0.0
  %v612 = vadd.f32 %v610, %v611
  %v613 = vsel %vm202, %v583, 0.0
  %v614 = vadd.f32 %v612, %v613
  %v615 = vrot.slane %v614, 4
  %v616 = vadd.f32 %v614, %v615
  %v617 = vrot.slane %v616, 2
  %v618 = vadd.f32 %v616, %v617
  %v619 = vrot.slane %v618, 1
  %v620 = vadd.f32 %v618, %v619
  %v621 = vmul.f32 %v620, %v550
  %v622 = vadd.f32 %v621, 1e-05
  %v623 = vrsqrt.pop %v622
  %v624 = vmul.f32 %v21, %v623
  %v625 = vlaneseq
  %v626 = vshrl.u32 %v625, 7
  %v627 = vsub.s32 4, %v626
  %v628 = vrot.slane %v624, %v627
  %v629 = vmul.f32 %v552, %v628
  %v630 = vmul.f32 %v553, %v628
  %v631 = vmul.f32 %v554, %v628
  %v632 = vmul.f32 %v555, %v628
  %v633 = vmul.f32 %v556, %v628
  %v634 = vmul.f32 %v557, %v628
  %v635 = vmul.f32 %v558, %v628
  %v636 = vmul.f32 %v559, %v628
  %v637 = vmul.f32 %v560, %v628
  %v638 = vmul.f32 %v561, %v628
  %v639 = vmul.f32 %v562, %v628
  %v640 = vmul.f32 %v563, %v628
  %v641 = vmul.f32 %v564, %v628
  %v642 = vmul.f32 %v565, %v628
  %v643 = vmul.f32 %v566, %v628
  %v644 = vmul.f32 %v567, %v628
  %v645 = vlaneseq
  %v646 = vshrl.u32 %v645, 7
  %v647 = vsub.s32 5, %v646
  %v648 = vrot.slane %v21, %v647
  %v649 = vadd.f32 %v629, %v648
  %v650 = vadd.f32 %v630, %v648
  %v651 = vadd.f32 %v631, %v648
  %v652 = vadd.f32 %v632, %v648
  %v653 = vadd.f32 %v633, %v648
  %v654 = vadd.f32 %v634, %v648
  %v655 = vadd.f32 %v635, %v648
  %v656 = vadd.f32 %v636, %v648
  %v657 = vadd.f32 %v637, %v648
  %v658 = vadd.f32 %v638, %v648
  %v659 = vadd.f32 %v639, %v648
  %v660 = vadd.f32 %v640, %v648
  %v661 = vadd.f32 %v641, %v648
  %v662 = vadd.f32 %v642, %v648
  %v663 = vadd.f32 %v643, %v648
  %v664 = vadd.f32 %v644, %v648
  %665 = vst.msk [vmem:[%s5] sm:$0xff] %vm202, %v649
  %666 = vst.msk [vmem:[%s5 + $0x8] sm:$0xff] %vm202, %v650
  %667 = vst.msk [vmem:[%s5 + $0x10] sm:$0xff] %vm202, %v651
  %668 = vst.msk [vmem:[%s5 + $0x18] sm:$0xff] %vm202, %v652
  %669 = vst.msk [vmem:[%s5 + $0x20] sm:$0xff] %vm202, %v653
  %670 = vst.msk [vmem:[%s5 + $0x28] sm:$0xff] %vm202, %v654
  %671 = vst.msk [vmem:[%s5 + $0x30] sm:$0xff] %vm202, %v655
  %672 = vst.msk [vmem:[%s5 + $0x38] sm:$0xff] %vm202, %v656
  %673 = vst.msk [vmem:[%s5 + $0x40] sm:$0xff] %vm202, %v657
  %674 = vst.msk [vmem:[%s5 + $0x48] sm:$0xff] %vm202, %v658
  %675 = vst.msk [vmem:[%s5 + $0x50] sm:$0xff] %vm202, %v659
  %676 = vst.msk [vmem:[%s5 + $0x58] sm:$0xff] %vm202, %v660
  %677 = vst.msk [vmem:[%s5 + $0x60] sm:$0xff] %vm202, %v661
  %678 = vst.msk [vmem:[%s5 + $0x68] sm:$0xff] %vm202, %v662
  %679 = vst.msk [vmem:[%s5 + $0x70] sm:$0xff] %vm202, %v663
  %680 = vst.msk [vmem:[%s5 + $0x78] sm:$0xff] %vm202, %v664
  // Predicated region
  $region22: #{vq_cvae_forward.14} parent=0 // pred_check
    _
  $region23: #{vq_cvae_forward.14} parent=0 // pred_check_branch
    %682 = sbr.rel (0) target = $region25
  $region24: #{vq_cvae_forward.14} parent=0 // pred_region
    _
  $region25: #{vq_cvae_forward.14} parent=0 // pred_fallthru
    _
  // Predicated region
  $region26: #{vq_cvae_forward.14} parent=0 // pred_check
    _
  $region27: #{vq_cvae_forward.14} parent=0 // pred_check_branch
    %684 = sbr.rel (0) target = $region29
  $region28: #{vq_cvae_forward.14} parent=0 // pred_region
    _
  $region29: #{vq_cvae_forward.14} parent=0 // pred_fallthru
    _

// kernel: vq_cvae_forward.17
$region0: #{vq_cvae_forward.17}
  #allocation0 [shape = 'u32[]', space=smem, size = 0x4, offset = 0x4, fixed_abs, tag = 'smem constant byte address 0x4 - core index']
  #allocation1 [shape = 'u32[144,128]{1,0:T(1,128)}', space=vmem, size = 0x12000, scoped, tag = 'internal scratch']
  %s0 = inlined_call_operand.vmem [shape: bf16[512,144], index: 0, kind: input, shape index: {}]
  %s1 = inlined_call_operand.vmem [shape: bf16[144,12], index: 1, kind: input, shape index: {}]
  %s2 = inlined_call_operand.vmem [shape: f32[1,12], index: 2, kind: input, shape index: {}]
  %s3 = inlined_call_operand.vmem [shape: f32[512,12], index: 3, kind: output, shape index: {}]
  %s4 = sld [smem:[#allocation0]]
  $region22: #{vq_cvae_forward.17} parent=0
    _
  %s6 = ssub.s32 1, %s4
  %s7 = scalar_select 0, %s6, %s4
  // Predicated region
  $region2: #{vq_cvae_forward.17} parent=0 // pred_check
    _
  $region3: #{vq_cvae_forward.17} parent=0 // pred_check_branch
    %9 = sbr.rel (0) target = $region5
  $region4: #{vq_cvae_forward.17} parent=0 // pred_region
    _
  $region5: #{vq_cvae_forward.17} parent=0 // pred_fallthru
    _
  // Predicated region
  $region6: #{vq_cvae_forward.17} parent=0 // pred_check
    _
  $region7: #{vq_cvae_forward.17} parent=0 // pred_check_branch
    %11 = sbr.rel (0) target = $region9
  $region8: #{vq_cvae_forward.17} parent=0 // pred_region
    _
  $region9: #{vq_cvae_forward.17} parent=0 // pred_fallthru
    _
  // Predicated region
  $region10: #{vq_cvae_forward.17} parent=0 // pred_check
    _
  $region11: #{vq_cvae_forward.17} parent=0 // pred_check_branch
    %13 = sbr.rel (0) target = $region13
  $region12: #{vq_cvae_forward.17} parent=0 // pred_region
    _
  $region13: #{vq_cvae_forward.17} parent=0 // pred_fallthru
    _
  %v15 = vld [vmem:[%s0] sm:$0xff]
  %v16 = vld [vmem:[%s0 + $0x8] sm:$0xff]
  %v17 = vld [vmem:[%s0 + $0x10] sm:$0xff]
  %v18 = vld [vmem:[%s0 + $0x18] sm:$0xff]
  %v19 = vld [vmem:[%s0 + $0x20] sm:$0xff]
  %v20 = vld [vmem:[%s0 + $0x28] sm:$0xff]
  %v21 = vld [vmem:[%s0 + $0x30] sm:$0xff]
  %v22 = vld [vmem:[%s0 + $0x38] sm:$0xff]
  %v23 = vld [vmem:[%s0 + $0x40] sm:$0xff]
  %v24 = vld [vmem:[%s0 + $0x48] sm:$0xff]
  %v25 = vld [vmem:[%s0 + $0x50] sm:$0xff]
  %v26 = vld [vmem:[%s0 + $0x58] sm:$0xff]
  %v27 = vld [vmem:[%s0 + $0x60] sm:$0xff]
  %v28 = vld [vmem:[%s0 + $0x68] sm:$0xff]
  %v29 = vld [vmem:[%s0 + $0x70] sm:$0xff]
  %v30 = vld [vmem:[%s0 + $0x78] sm:$0xff]
  %v31 = vld [vmem:[%s0 + $0x80] sm:$0xff]
  %v32 = vld [vmem:[%s0 + $0x88] sm:$0xff]
  %v33 = vld [vmem:[%s0 + $0x90] sm:$0xff]
  %v34 = vld [vmem:[%s0 + $0x98] sm:$0xff]
  %v35 = vld [vmem:[%s0 + $0xa0] sm:$0xff]
  %v36 = vld [vmem:[%s0 + $0xa8] sm:$0xff]
  %v37 = vld [vmem:[%s0 + $0xb0] sm:$0xff]
  %v38 = vld [vmem:[%s0 + $0xb8] sm:$0xff]
  %v39 = vld [vmem:[%s0 + $0xc0] sm:$0xff]
  %v40 = vld [vmem:[%s0 + $0xc8] sm:$0xff]
  %v41 = vld [vmem:[%s0 + $0xd0] sm:$0xff]
  %v42 = vld [vmem:[%s0 + $0xd8] sm:$0xff]
  %v43 = vld [vmem:[%s0 + $0xe0] sm:$0xff]
  %v44 = vld [vmem:[%s0 + $0xe8] sm:$0xff]
  %v45 = vld [vmem:[%s0 + $0xf0] sm:$0xff]
  %v46 = vld [vmem:[%s0 + $0xf8] sm:$0xff]
  %v47 = vld [vmem:[%s0 + $0x100] sm:$0xff]
  %v48 = vld [vmem:[%s0 + $0x108] sm:$0xff]
  %v49 = vld [vmem:[%s0 + $0x110] sm:$0xff]
  %v50 = vld [vmem:[%s0 + $0x118] sm:$0xff]
  %v51 = vld [vmem:[%s0 + $0x120] sm:$0xff]
  %v52 = vld [vmem:[%s0 + $0x128] sm:$0xff]
  %v53 = vld [vmem:[%s0 + $0x130] sm:$0xff]
  %v54 = vld [vmem:[%s0 + $0x138] sm:$0xff]
  %v55 = vld [vmem:[%s0 + $0x140] sm:$0xff]
  %v56 = vld [vmem:[%s0 + $0x148] sm:$0xff]
  %v57 = vld [vmem:[%s0 + $0x150] sm:$0xff]
  %v58 = vld [vmem:[%s0 + $0x158] sm:$0xff]
  %v59 = vld [vmem:[%s0 + $0x160] sm:$0xff]
  %v60 = vld [vmem:[%s0 + $0x168] sm:$0xff]
  %v61 = vld [vmem:[%s0 + $0x170] sm:$0xff]
  %v62 = vld [vmem:[%s0 + $0x178] sm:$0xff]
  %v63 = vld [vmem:[%s0 + $0x180] sm:$0xff]
  %v64 = vld [vmem:[%s0 + $0x188] sm:$0xff]
  %v65 = vld [vmem:[%s0 + $0x190] sm:$0xff]
  %v66 = vld [vmem:[%s0 + $0x198] sm:$0xff]
  %v67 = vld [vmem:[%s0 + $0x1a0] sm:$0xff]
  %v68 = vld [vmem:[%s0 + $0x1a8] sm:$0xff]
  %v69 = vld [vmem:[%s0 + $0x1b0] sm:$0xff]
  %v70 = vld [vmem:[%s0 + $0x1b8] sm:$0xff]
  %v71 = vld [vmem:[%s0 + $0x1c0] sm:$0xff]
  %v72 = vld [vmem:[%s0 + $0x1c8] sm:$0xff]
  %v73 = vld [vmem:[%s0 + $0x1d0] sm:$0xff]
  %v74 = vld [vmem:[%s0 + $0x1d8] sm:$0xff]
  %v75 = vld [vmem:[%s0 + $0x1e0] sm:$0xff]
  %v76 = vld [vmem:[%s0 + $0x1e8] sm:$0xff]
  %v77 = vld [vmem:[%s0 + $0x1f0] sm:$0xff]
  %v78 = vld [vmem:[%s0 + $0x1f8] sm:$0xff]
  %v79 = vld [vmem:[%s1] sm:$0xf]
  %v80 = vld [vmem:[%s1 + $0x4] sm:$0xf]
  %v81 = vld [vmem:[%s1 + $0x8] sm:$0xf]
  %v82 = vld [vmem:[%s1 + $0xc] sm:$0xf]
  %v83 = vld [vmem:[%s1 + $0x10] sm:$0xf]
  %v84 = vld [vmem:[%s1 + $0x14] sm:$0xf]
  %v85 = vld [vmem:[%s1 + $0x18] sm:$0xf]
  %v86 = vld [vmem:[%s1 + $0x1c] sm:$0xf]
  %v87 = vld [vmem:[%s1 + $0x20] sm:$0xf]
  %v88 = vld [vmem:[%s1 + $0x24] sm:$0xf]
  %v89 = vld [vmem:[%s1 + $0x28] sm:$0xf]
  %v90 = vld [vmem:[%s1 + $0x2c] sm:$0xf]
  %v91 = vld [vmem:[%s1 + $0x30] sm:$0xf]
  %v92 = vld [vmem:[%s1 + $0x34] sm:$0xf]
  %v93 = vld [vmem:[%s1 + $0x38] sm:$0xf]
  %v94 = vld [vmem:[%s1 + $0x3c] sm:$0xf]
  %v95 = vld [vmem:[%s1 + $0x40] sm:$0xf]
  %v96 = vld [vmem:[%s1 + $0x44] sm:$0xf]
  %v97 = vld [vmem:[%s2] sm:$0x1]
  %v99 = vlaneseq
  %v100 = vshrl.u32 %v99, 7
  %v101 = vsub.s32 0, %v100
  %v102 = vrot.slane %v97, %v101
  %v168 = vunpack.c.l.b16 %v15
  %v169 = vunpack.c.h.b16 %v15
  %v170 = vunpack.c.l.b16 %v16
  %v171 = vunpack.c.h.b16 %v16
  %v172 = vunpack.c.l.b16 %v17
  %v173 = vunpack.c.h.b16 %v17
  %v174 = vunpack.c.l.b16 %v18
  %v175 = vunpack.c.h.b16 %v18
  %v176 = vunpack.c.l.b16 %v19
  %v177 = vunpack.c.h.b16 %v19
  %v178 = vunpack.c.l.b16 %v20
  %v179 = vunpack.c.h.b16 %v20
  %v180 = vunpack.c.l.b16 %v21
  %v181 = vunpack.c.h.b16 %v21
  %v182 = vunpack.c.l.b16 %v22
  %v183 = vunpack.c.h.b16 %v22
  %v184 = vunpack.c.l.b16 %v23
  %v185 = vunpack.c.h.b16 %v23
  %v186 = vunpack.c.l.b16 %v24
  %v187 = vunpack.c.h.b16 %v24
  %v188 = vunpack.c.l.b16 %v25
  %v189 = vunpack.c.h.b16 %v25
  %v190 = vunpack.c.l.b16 %v26
  %v191 = vunpack.c.h.b16 %v26
  %v192 = vunpack.c.l.b16 %v27
  %v193 = vunpack.c.h.b16 %v27
  %v194 = vunpack.c.l.b16 %v28
  %v195 = vunpack.c.h.b16 %v28
  %v196 = vunpack.c.l.b16 %v29
  %v197 = vunpack.c.h.b16 %v29
  %v198 = vunpack.c.l.b16 %v30
  %v199 = vunpack.c.h.b16 %v30
  %v200 = vunpack.c.l.b16 %v31
  %v201 = vunpack.c.h.b16 %v31
  %v202 = vunpack.c.l.b16 %v32
  %v203 = vunpack.c.h.b16 %v32
  %v204 = vunpack.c.l.b16 %v33
  %v205 = vunpack.c.h.b16 %v33
  %v206 = vunpack.c.l.b16 %v34
  %v207 = vunpack.c.h.b16 %v34
  %v208 = vunpack.c.l.b16 %v35
  %v209 = vunpack.c.h.b16 %v35
  %v210 = vunpack.c.l.b16 %v36
  %v211 = vunpack.c.h.b16 %v36
  %v212 = vunpack.c.l.b16 %v37
  %v213 = vunpack.c.h.b16 %v37
  %v214 = vunpack.c.l.b16 %v38
  %v215 = vunpack.c.h.b16 %v38
  %v216 = vunpack.c.l.b16 %v39
  %v217 = vunpack.c.h.b16 %v39
  %v218 = vunpack.c.l.b16 %v40
  %v219 = vunpack.c.h.b16 %v40
  %v220 = vunpack.c.l.b16 %v41
  %v221 = vunpack.c.h.b16 %v41
  %v222 = vunpack.c.l.b16 %v42
  %v223 = vunpack.c.h.b16 %v42
  %v224 = vunpack.c.l.b16 %v43
  %v225 = vunpack.c.h.b16 %v43
  %v226 = vunpack.c.l.b16 %v44
  %v227 = vunpack.c.h.b16 %v44
  %v228 = vunpack.c.l.b16 %v45
  %v229 = vunpack.c.h.b16 %v45
  %v230 = vunpack.c.l.b16 %v46
  %v231 = vunpack.c.h.b16 %v46
  %v232 = vunpack.c.l.b16 %v47
  %v233 = vunpack.c.h.b16 %v47
  %v234 = vunpack.c.l.b16 %v48
  %v235 = vunpack.c.h.b16 %v48
  %v236 = vunpack.c.l.b16 %v49
  %v237 = vunpack.c.h.b16 %v49
  %v238 = vunpack.c.l.b16 %v50
  %v239 = vunpack.c.h.b16 %v50
  %v240 = vunpack.c.l.b16 %v51
  %v241 = vunpack.c.h.b16 %v51
  %v242 = vunpack.c.l.b16 %v52
  %v243 = vunpack.c.h.b16 %v52
  %v244 = vunpack.c.l.b16 %v53
  %v245 = vunpack.c.h.b16 %v53
  %v246 = vunpack.c.l.b16 %v54
  %v247 = vunpack.c.h.b16 %v54
  %v248 = vunpack.c.l.b16 %v55
  %v249 = vunpack.c.h.b16 %v55
  %v250 = vunpack.c.l.b16 %v56
  %v251 = vunpack.c.h.b16 %v56
  %v252 = vunpack.c.l.b16 %v57
  %v253 = vunpack.c.h.b16 %v57
  %v254 = vunpack.c.l.b16 %v58
  %v255 = vunpack.c.h.b16 %v58
  %v256 = vunpack.c.l.b16 %v59
  %v257 = vunpack.c.h.b16 %v59
  %v258 = vunpack.c.l.b16 %v60
  %v259 = vunpack.c.h.b16 %v60
  %v260 = vunpack.c.l.b16 %v61
  %v261 = vunpack.c.h.b16 %v61
  %v262 = vunpack.c.l.b16 %v62
  %v263 = vunpack.c.h.b16 %v62
  %v264 = vunpack.c.l.b16 %v63
  %v265 = vunpack.c.h.b16 %v63
  %v266 = vunpack.c.l.b16 %v64
  %v267 = vunpack.c.h.b16 %v64
  %v268 = vunpack.c.l.b16 %v65
  %v269 = vunpack.c.h.b16 %v65
  %v270 = vunpack.c.l.b16 %v66
  %v271 = vunpack.c.h.b16 %v66
  %v272 = vunpack.c.l.b16 %v67
  %v273 = vunpack.c.h.b16 %v67
  %v274 = vunpack.c.l.b16 %v68
  %v275 = vunpack.c.h.b16 %v68
  %v276 = vunpack.c.l.b16 %v69
  %v277 = vunpack.c.h.b16 %v69
  %v278 = vunpack.c.l.b16 %v70
  %v279 = vunpack.c.h.b16 %v70
  %v280 = vunpack.c.l.b16 %v71
  %v281 = vunpack.c.h.b16 %v71
  %v282 = vunpack.c.l.b16 %v72
  %v283 = vunpack.c.h.b16 %v72
  %v284 = vunpack.c.l.b16 %v73
  %v285 = vunpack.c.h.b16 %v73
  %v286 = vunpack.c.l.b16 %v74
  %v287 = vunpack.c.h.b16 %v74
  %v288 = vunpack.c.l.b16 %v75
  %v289 = vunpack.c.h.b16 %v75
  %v290 = vunpack.c.l.b16 %v76
  %v291 = vunpack.c.h.b16 %v76
  %v292 = vunpack.c.l.b16 %v77
  %v293 = vunpack.c.h.b16 %v77
  %v294 = vunpack.c.l.b16 %v78
  %v295 = vunpack.c.h.b16 %v78
  %v296 = vpack.c.b16 %v170, %v168
  %v297 = vpack.c.b16 %v171, %v169
  %v298 = vpack.c.b16 %v174, %v172
  %v299 = vpack.c.b16 %v175, %v173
  %v300 = vpack.c.b16 %v178, %v176
  %v301 = vpack.c.b16 %v179, %v177
  %v302 = vpack.c.b16 %v182, %v180
  %v303 = vpack.c.b16 %v183, %v181
  %v304 = vpack.c.b16 %v186, %v184
  %v305 = vpack.c.b16 %v187, %v185
  %v306 = vpack.c.b16 %v190, %v188
  %v307 = vpack.c.b16 %v191, %v189
  %v308 = vpack.c.b16 %v194, %v192
  %v309 = vpack.c.b16 %v195, %v193
  %v310 = vpack.c.b16 %v198, %v196
  %v311 = vpack.c.b16 %v199, %v197
  %v312 = vpack.c.b16 %v202, %v200
  %v313 = vpack.c.b16 %v203, %v201
  %v314 = vpack.c.b16 %v206, %v204
  %v315 = vpack.c.b16 %v207, %v205
  %v316 = vpack.c.b16 %v210, %v208
  %v317 = vpack.c.b16 %v211, %v209
  %v318 = vpack.c.b16 %v214, %v212
  %v319 = vpack.c.b16 %v215, %v213
  %v320 = vpack.c.b16 %v218, %v216
  %v321 = vpack.c.b16 %v219, %v217
  %v322 = vpack.c.b16 %v222, %v220
  %v323 = vpack.c.b16 %v223, %v221
  %v324 = vpack.c.b16 %v226, %v224
  %v325 = vpack.c.b16 %v227, %v225
  %v326 = vpack.c.b16 %v230, %v228
  %v327 = vpack.c.b16 %v231, %v229
  %v328 = vpack.c.b16 %v234, %v232
  %v329 = vpack.c.b16 %v235, %v233
  %v330 = vpack.c.b16 %v238, %v236
  %v331 = vpack.c.b16 %v239, %v237
  %v332 = vpack.c.b16 %v242, %v240
  %v333 = vpack.c.b16 %v243, %v241
  %v334 = vpack.c.b16 %v246, %v244
  %v335 = vpack.c.b16 %v247, %v245
  %v336 = vpack.c.b16 %v250, %v248
  %v337 = vpack.c.b16 %v251, %v249
  %v338 = vpack.c.b16 %v254, %v252
  %v339 = vpack.c.b16 %v255, %v253
  %v340 = vpack.c.b16 %v258, %v256
  %v341 = vpack.c.b16 %v259, %v257
  %v342 = vpack.c.b16 %v262, %v260
  %v343 = vpack.c.b16 %v263, %v261
  %v344 = vpack.c.b16 %v266, %v264
  %v345 = vpack.c.b16 %v267, %v265
  %v346 = vpack.c.b16 %v270, %v268
  %v347 = vpack.c.b16 %v271, %v269
  %v348 = vpack.c.b16 %v274, %v272
  %v349 = vpack.c.b16 %v275, %v273
  %v350 = vpack.c.b16 %v278, %v276
  %v351 = vpack.c.b16 %v279, %v277
  %v352 = vpack.c.b16 %v282, %v280
  %v353 = vpack.c.b16 %v283, %v281
  %v354 = vpack.c.b16 %v286, %v284
  %v355 = vpack.c.b16 %v287, %v285
  %v356 = vpack.c.b16 %v290, %v288
  %v357 = vpack.c.b16 %v291, %v289
  %v358 = vpack.c.b16 %v294, %v292
  %v359 = vpack.c.b16 %v295, %v293
  %v410 = vunpack.c.l.b16 %v79
  %v411 = vunpack.c.l.b16 %v80
  %v412 = vunpack.c.l.b16 %v81
  %v413 = vunpack.c.l.b16 %v82
  %v414 = vunpack.c.l.b16 %v83
  %v415 = vunpack.c.l.b16 %v84
  %v416 = vunpack.c.l.b16 %v85
  %v417 = vunpack.c.l.b16 %v86
  %v418 = vunpack.c.l.b16 %v87
  %v419 = vunpack.c.l.b16 %v88
  %v420 = vunpack.c.l.b16 %v89
  %v421 = vunpack.c.l.b16 %v90
  %v422 = vunpack.c.l.b16 %v91
  %v423 = vunpack.c.l.b16 %v92
  %v424 = vunpack.c.l.b16 %v93
  %v425 = vunpack.c.l.b16 %v94
  %v426 = vunpack.c.l.b16 %v95
  %v427 = vunpack.c.l.b16 %v96
  %v428 = vpack.c.b16 %v411, %v410
  %v429 = vpack.c.b16 %v413, %v412
  %v430 = vpack.c.b16 %v415, %v414
  %v431 = vpack.c.b16 %v417, %v416
  %v432 = vpack.c.b16 %v419, %v418
  %v433 = vpack.c.b16 %v421, %v420
  %v434 = vpack.c.b16 %v423, %v422
  %v435 = vpack.c.b16 %v425, %v424
  %v436 = vpack.c.b16 %v427, %v426
  %vm446 = vcmask 130048
  %v448 = vsel %vm446, %v297, 0
  %v451 = vsel %vm446, %v299, 0
  %v454 = vsel %vm446, %v301, 0
  %v457 = vsel %vm446, %v303, 0
  %v460 = vsel %vm446, %v305, 0
  %v463 = vsel %vm446, %v307, 0
  %v466 = vsel %vm446, %v309, 0
  %v469 = vsel %vm446, %v311, 0
  %v472 = vsel %vm446, %v313, 0
  %v475 = vsel %vm446, %v315, 0
  %v478 = vsel %vm446, %v317, 0
  %v481 = vsel %vm446, %v319, 0
  %v484 = vsel %vm446, %v321, 0
  %v487 = vsel %vm446, %v323, 0
  %v490 = vsel %vm446, %v325, 0
  %v493 = vsel %vm446, %v327, 0
  %v496 = vsel %vm446, %v329, 0
  %v499 = vsel %vm446, %v331, 0
  %v502 = vsel %vm446, %v333, 0
  %v505 = vsel %vm446, %v335, 0
  %v508 = vsel %vm446, %v337, 0
  %v511 = vsel %vm446, %v339, 0
  %v514 = vsel %vm446, %v341, 0
  %v517 = vsel %vm446, %v343, 0
  %v520 = vsel %vm446, %v345, 0
  %v523 = vsel %vm446, %v347, 0
  %v526 = vsel %vm446, %v349, 0
  %v529 = vsel %vm446, %v351, 0
  %v532 = vsel %vm446, %v353, 0
  %v535 = vsel %vm446, %v355, 0
  %v538 = vsel %vm446, %v357, 0
  %v541 = vsel %vm446, %v359, 0
  %543 = vmatprep.subr.bf16.mxu0 0
  %544 = vmatpush1.bf16.msra.mxu0 %v428
  %545 = vmatprep.subr.bf16.mxu0 0
  %546 = vmatpush1.bf16.msra.mxu0 %v429
  %547 = vmatprep.subr.bf16.mxu0 0
  %548 = vmatpush1.bf16.msra.mxu0 %v430
  %549 = vmatprep.subr.bf16.mxu0 0
  %550 = vmatpush1.bf16.msra.mxu0 %v431
  %551 = vmatprep.subr.bf16.mxu0 0
  %552 = vmatpush1.bf16.msra.mxu0 %v432
  %553 = vmatprep.subr.bf16.mxu0 0
  %554 = vmatpush1.bf16.msra.mxu0 %v433
  %555 = vmatprep.subr.bf16.mxu0 0
  %556 = vmatpush1.bf16.msra.mxu0 %v434
  %557 = vmatprep.subr.bf16.mxu0 0
  %558 = vmatpush1.bf16.msra.mxu0 %v435
  %559 = vmatprep.subr.bf16.mxu0 0
  %560 = vmatpush1.bf16.msra.mxu0 %v436
  %561 = vmatprep.subr.bf16.mxu0 0
  %562 = vmatpush1.bf16.msra.mxu0 0
  %563 = vmatprep.subr.bf16.mxu0 0
  %564 = vmatpush1.bf16.msra.mxu0 0
  %565 = vmatprep.subr.bf16.mxu0 0
  %566 = vmatpush1.bf16.msra.mxu0 0
  %567 = vmatprep.subr.bf16.mxu0 0
  %568 = vmatpush1.bf16.msra.mxu0 0
  %569 = vmatprep.subr.bf16.mxu0 0
  %570 = vmatpush1.bf16.msra.mxu0 0
  %571 = vmatprep.subr.bf16.mxu0 0
  %572 = vmatpush1.bf16.msra.mxu0 0
  %573 = vmatprep.subr.bf16.mxu0 0
  %574 = vmatpush1.bf16.msra.mxu0 0
  %575 = vmatprep.mubr.bf16.mxu0 %v448
  %576 = vmatmul.mubr.bf16.gmra.mrb[0].mxu0 %v296
  %v577 = vpop.f32.mrb[0].mxu0
  %v578 = vadd.f32 %v102, %v577
  %v579 = vpop.f32.mrb[0].mxu0
  %v580 = vpop.f32.mrb[0].mxu0
  %v581 = vadd.f32 %v102, %v580
  %v582 = vpop.f32.mrb[0].mxu0
  %583 = vmatprep.mubr.bf16.mxu0 %v451
  %584 = vmatmul.mubr.bf16.gmra.mrb[0].mxu0 %v298
  %v585 = vpop.f32.mrb[0].mxu0
  %v586 = vadd.f32 %v102, %v585
  %v587 = vpop.f32.mrb[0].mxu0
  %v588 = vpop.f32.mrb[0].mxu0
  %v589 = vadd.f32 %v102, %v588
  %v590 = vpop.f32.mrb[0].mxu0
  %591 = vmatprep.mubr.bf16.mxu0 %v454
  %592 = vmatmul.mubr.bf16.gmra.mrb[0].mxu0 %v300
  %v593 = vpop.f32.mrb[0].mxu0
  %v594 = vadd.f32 %v102, %v593
  %v595 = vpop.f32.mrb[0].mxu0
  %v596 = vpop.f32.mrb[0].mxu0
  %v597 = vadd.f32 %v102, %v596
  %v598 = vpop.f32.mrb[0].mxu0
  %599 = vmatprep.mubr.bf16.mxu0 %v457
  %600 = vmatmul.mubr.bf16.gmra.mrb[0].mxu0 %v302
  %v601 = vpop.f32.mrb[0].mxu0
  %v602 = vadd.f32 %v102, %v601
  %v603 = vpop.f32.mrb[0].mxu0
  %v604 = vpop.f32.mrb[0].mxu0
  %v605 = vadd.f32 %v102, %v604
  %v606 = vpop.f32.mrb[0].mxu0
  %607 = vmatprep.mubr.bf16.mxu0 %v460
  %608 = vmatmul.mubr.bf16.gmra.mrb[0].mxu0 %v304
  %v609 = vpop.f32.mrb[0].mxu0
  %v610 = vadd.f32 %v102, %v609
  %v611 = vpop.f32.mrb[0].mxu0
  %v612 = vpop.f32.mrb[0].mxu0
  %v613 = vadd.f32 %v102, %v612
  %v614 = vpop.f32.mrb[0].mxu0
  %615 = vmatprep.mubr.bf16.mxu0 %v463
  %616 = vmatmul.mubr.bf16.gmra.mrb[0].mxu0 %v306
  %v617 = vpop.f32.mrb[0].mxu0
  %v618 = vadd.f32 %v102, %v617
  %v619 = vpop.f32.mrb[0].mxu0
  %v620 = vpop.f32.mrb[0].mxu0
  %v621 = vadd.f32 %v102, %v620
  %v622 = vpop.f32.mrb[0].mxu0
  %623 = vmatprep.mubr.bf16.mxu0 %v466
  %624 = vmatmul.mubr.bf16.gmra.mrb[0].mxu0 %v308
  %v625 = vpop.f32.mrb[0].mxu0
  %v626 = vadd.f32 %v102, %v625
  %v627 = vpop.f32.mrb[0].mxu0
  %v628 = vpop.f32.mrb[0].mxu0
  %v629 = vadd.f32 %v102, %v628
  %v630 = vpop.f32.mrb[0].mxu0
  %631 = vmatprep.mubr.bf16.mxu0 %v469
  %632 = vmatmul.mubr.bf16.gmra.mrb[0].mxu0 %v310
  %v633 = vpop.f32.mrb[0].mxu0
  %v634 = vadd.f32 %v102, %v633
  %v635 = vpop.f32.mrb[0].mxu0
  %v636 = vpop.f32.mrb[0].mxu0
  %v637 = vadd.f32 %v102, %v636
  %v638 = vpop.f32.mrb[0].mxu0
  %639 = vmatprep.mubr.bf16.mxu0 %v472
  %640 = vmatmul.mubr.bf16.gmra.mrb[0].mxu0 %v312
  %v641 = vpop.f32.mrb[0].mxu0
  %v642 = vadd.f32 %v102, %v641
  %v643 = vpop.f32.mrb[0].mxu0
  %v644 = vpop.f32.mrb[0].mxu0
  %v645 = vadd.f32 %v102, %v644
  %v646 = vpop.f32.mrb[0].mxu0
  %647 = vmatprep.mubr.bf16.mxu0 %v475
  %648 = vmatmul.mubr.bf16.gmra.mrb[0].mxu0 %v314
  %v649 = vpop.f32.mrb[0].mxu0
  %v650 = vadd.f32 %v102, %v649
  %v651 = vpop.f32.mrb[0].mxu0
  %v652 = vpop.f32.mrb[0].mxu0
  %v653 = vadd.f32 %v102, %v652
  %v654 = vpop.f32.mrb[0].mxu0
  %655 = vmatprep.mubr.bf16.mxu0 %v478
  %656 = vmatmul.mubr.bf16.gmra.mrb[0].mxu0 %v316
  %v657 = vpop.f32.mrb[0].mxu0
  %v658 = vadd.f32 %v102, %v657
  %v659 = vpop.f32.mrb[0].mxu0
  %v660 = vpop.f32.mrb[0].mxu0
  %v661 = vadd.f32 %v102, %v660
  %v662 = vpop.f32.mrb[0].mxu0
  %663 = vmatprep.mubr.bf16.mxu0 %v481
  %664 = vmatmul.mubr.bf16.gmra.mrb[0].mxu0 %v318
  %v665 = vpop.f32.mrb[0].mxu0
  %v666 = vadd.f32 %v102, %v665
  %v667 = vpop.f32.mrb[0].mxu0
  %v668 = vpop.f32.mrb[0].mxu0
  %v669 = vadd.f32 %v102, %v668
  %v670 = vpop.f32.mrb[0].mxu0
  %671 = vmatprep.mubr.bf16.mxu0 %v484
  %672 = vmatmul.mubr.bf16.gmra.mrb[0].mxu0 %v320
  %v673 = vpop.f32.mrb[0].mxu0
  %v674 = vadd.f32 %v102, %v673
  %v675 = vpop.f32.mrb[0].mxu0
  %v676 = vpop.f32.mrb[0].mxu0
  %v677 = vadd.f32 %v102, %v676
  %v678 = vpop.f32.mrb[0].mxu0
  %679 = vmatprep.mubr.bf16.mxu0 %v487
  %680 = vmatmul.mubr.bf16.gmra.mrb[0].mxu0 %v322
  %v681 = vpop.f32.mrb[0].mxu0
  %v682 = vadd.f32 %v102, %v681
  %v683 = vpop.f32.mrb[0].mxu0
  %v684 = vpop.f32.mrb[0].mxu0
  %v685 = vadd.f32 %v102, %v684
  %v686 = vpop.f32.mrb[0].mxu0
  %687 = vmatprep.mubr.bf16.mxu0 %v490
  %688 = vmatmul.mubr.bf16.gmra.mrb[0].mxu0 %v324
  %v689 = vpop.f32.mrb[0].mxu0
  %v690 = vadd.f32 %v102, %v689
  %v691 = vpop.f32.mrb[0].mxu0
  %v692 = vpop.f32.mrb[0].mxu0
  %v693 = vadd.f32 %v102, %v692
  %v694 = vpop.f32.mrb[0].mxu0
  %695 = vmatprep.mubr.bf16.mxu0 %v493
  %696 = vmatmul.mubr.bf16.gmra.mrb[0].mxu0 %v326
  %v697 = vpop.f32.mrb[0].mxu0
  %v698 = vadd.f32 %v102, %v697
  %v699 = vpop.f32.mrb[0].mxu0
  %v700 = vpop.f32.mrb[0].mxu0
  %v701 = vadd.f32 %v102, %v700
  %v702 = vpop.f32.mrb[0].mxu0
  %703 = vmatprep.mubr.bf16.mxu0 %v496
  %704 = vmatmul.mubr.bf16.gmra.mrb[0].mxu0 %v328
  %v705 = vpop.f32.mrb[0].mxu0
  %v706 = vadd.f32 %v102, %v705
  %v707 = vpop.f32.mrb[0].mxu0
  %v708 = vpop.f32.mrb[0].mxu0
  %v709 = vadd.f32 %v102, %v708
  %v710 = vpop.f32.mrb[0].mxu0
  %711 = vmatprep.mubr.bf16.mxu0 %v499
  %712 = vmatmul.mubr.bf16.gmra.mrb[0].mxu0 %v330
  %v713 = vpop.f32.mrb[0].mxu0
  %v714 = vadd.f32 %v102, %v713
  %v715 = vpop.f32.mrb[0].mxu0
  %v716 = vpop.f32.mrb[0].mxu0
  %v717 = vadd.f32 %v102, %v716
  %v718 = vpop.f32.mrb[0].mxu0
  %719 = vmatprep.mubr.bf16.mxu0 %v502
  %720 = vmatmul.mubr.bf16.gmra.mrb[0].mxu0 %v332
  %v721 = vpop.f32.mrb[0].mxu0
  %v722 = vadd.f32 %v102, %v721
  %v723 = vpop.f32.mrb[0].mxu0
  %v724 = vpop.f32.mrb[0].mxu0
  %v725 = vadd.f32 %v102, %v724
  %v726 = vpop.f32.mrb[0].mxu0
  %727 = vmatprep.mubr.bf16.mxu0 %v505
  %728 = vmatmul.mubr.bf16.gmra.mrb[0].mxu0 %v334
  %v729 = vpop.f32.mrb[0].mxu0
  %v730 = vadd.f32 %v102, %v729
  %v731 = vpop.f32.mrb[0].mxu0
  %v732 = vpop.f32.mrb[0].mxu0
  %v733 = vadd.f32 %v102, %v732
  %v734 = vpop.f32.mrb[0].mxu0
  %735 = vmatprep.mubr.bf16.mxu0 %v508
  %736 = vmatmul.mubr.bf16.gmra.mrb[0].mxu0 %v336
  %v737 = vpop.f32.mrb[0].mxu0
  %v738 = vadd.f32 %v102, %v737
  %v739 = vpop.f32.mrb[0].mxu0
  %v740 = vpop.f32.mrb[0].mxu0
  %v741 = vadd.f32 %v102, %v740
  %v742 = vpop.f32.mrb[0].mxu0
  %743 = vmatprep.mubr.bf16.mxu0 %v511
  %744 = vmatmul.mubr.bf16.gmra.mrb[0].mxu0 %v338
  %v745 = vpop.f32.mrb[0].mxu0
  %v746 = vadd.f32 %v102, %v745
  %v747 = vpop.f32.mrb[0].mxu0
  %v748 = vpop.f32.mrb[0].mxu0
  %v749 = vadd.f32 %v102, %v748
  %v750 = vpop.f32.mrb[0].mxu0
  %751 = vmatprep.mubr.bf16.mxu0 %v514
  %752 = vmatmul.mubr.bf16.gmra.mrb[0].mxu0 %v340
  %v753 = vpop.f32.mrb[0].mxu0
  %v754 = vadd.f32 %v102, %v753
  %v755 = vpop.f32.mrb[0].mxu0
  %v756 = vpop.f32.mrb[0].mxu0
  %v757 = vadd.f32 %v102, %v756
  %v758 = vpop.f32.mrb[0].mxu0
  %759 = vmatprep.mubr.bf16.mxu0 %v517
  %760 = vmatmul.mubr.bf16.gmra.mrb[0].mxu0 %v342
  %v761 = vpop.f32.mrb[0].mxu0
  %v762 = vadd.f32 %v102, %v761
  %v763 = vpop.f32.mrb[0].mxu0
  %v764 = vpop.f32.mrb[0].mxu0
  %v765 = vadd.f32 %v102, %v764
  %v766 = vpop.f32.mrb[0].mxu0
  %767 = vmatprep.mubr.bf16.mxu0 %v520
  %768 = vmatmul.mubr.bf16.gmra.mrb[0].mxu0 %v344
  %v769 = vpop.f32.mrb[0].mxu0
  %v770 = vadd.f32 %v102, %v769
  %v771 = vpop.f32.mrb[0].mxu0
  %v772 = vpop.f32.mrb[0].mxu0
  %v773 = vadd.f32 %v102, %v772
  %v774 = vpop.f32.mrb[0].mxu0
  %775 = vmatprep.mubr.bf16.mxu0 %v523
  %776 = vmatmul.mubr.bf16.gmra.mrb[0].mxu0 %v346
  %v777 = vpop.f32.mrb[0].mxu0
  %v778 = vadd.f32 %v102, %v777
  %v779 = vpop.f32.mrb[0].mxu0
  %v780 = vpop.f32.mrb[0].mxu0
  %v781 = vadd.f32 %v102, %v780
  %v782 = vpop.f32.mrb[0].mxu0
  %783 = vmatprep.mubr.bf16.mxu0 %v526
  %784 = vmatmul.mubr.bf16.gmra.mrb[0].mxu0 %v348
  %v785 = vpop.f32.mrb[0].mxu0
  %v786 = vadd.f32 %v102, %v785
  %v787 = vpop.f32.mrb[0].mxu0
  %v788 = vpop.f32.mrb[0].mxu0
  %v789 = vadd.f32 %v102, %v788
  %v790 = vpop.f32.mrb[0].mxu0
  %791 = vmatprep.mubr.bf16.mxu0 %v529
  %792 = vmatmul.mubr.bf16.gmra.mrb[0].mxu0 %v350
  %v793 = vpop.f32.mrb[0].mxu0
  %v794 = vadd.f32 %v102, %v793
  %v795 = vpop.f32.mrb[0].mxu0
  %v796 = vpop.f32.mrb[0].mxu0
  %v797 = vadd.f32 %v102, %v796
  %v798 = vpop.f32.mrb[0].mxu0
  %799 = vmatprep.mubr.bf16.mxu0 %v532
  %800 = vmatmul.mubr.bf16.gmra.mrb[0].mxu0 %v352
  %v801 = vpop.f32.mrb[0].mxu0
  %v802 = vadd.f32 %v102, %v801
  %v803 = vpop.f32.mrb[0].mxu0
  %v804 = vpop.f32.mrb[0].mxu0
  %v805 = vadd.f32 %v102, %v804
  %v806 = vpop.f32.mrb[0].mxu0
  %807 = vmatprep.mubr.bf16.mxu0 %v535
  %808 = vmatmul.mubr.bf16.gmra.mrb[0].mxu0 %v354
  %v809 = vpop.f32.mrb[0].mxu0
  %v810 = vadd.f32 %v102, %v809
  %v811 = vpop.f32.mrb[0].mxu0
  %v812 = vpop.f32.mrb[0].mxu0
  %v813 = vadd.f32 %v102, %v812
  %v814 = vpop.f32.mrb[0].mxu0
  %815 = vmatprep.mubr.bf16.mxu0 %v538
  %816 = vmatmul.mubr.bf16.gmra.mrb[0].mxu0 %v356
  %v817 = vpop.f32.mrb[0].mxu0
  %v818 = vadd.f32 %v102, %v817
  %v819 = vpop.f32.mrb[0].mxu0
  %v820 = vpop.f32.mrb[0].mxu0
  %v821 = vadd.f32 %v102, %v820
  %v822 = vpop.f32.mrb[0].mxu0
  %823 = vmatprep.mubr.bf16.mxu0 %v541
  %824 = vmatmul.mubr.bf16.gmra.mrb[0].mxu0 %v358
  %v825 = vpop.f32.mrb[0].mxu0
  %v826 = vadd.f32 %v102, %v825
  %v827 = vpop.f32.mrb[0].mxu0
  %v828 = vpop.f32.mrb[0].mxu0
  %v829 = vadd.f32 %v102, %v828
  %v830 = vpop.f32.mrb[0].mxu0
  %831 = vdwg.mxu0
  %v832 = vtanh.pop %v578
  %v833 = vtanh.pop %v581
  %v834 = vtanh.pop %v586
  %v835 = vtanh.pop %v589
  %v836 = vtanh.pop %v594
  %v837 = vtanh.pop %v597
  %v838 = vtanh.pop %v602
  %v839 = vtanh.pop %v605
  %v840 = vtanh.pop %v610
  %v841 = vtanh.pop %v613
  %v842 = vtanh.pop %v618
  %v843 = vtanh.pop %v621
  %v844 = vtanh.pop %v626
  %v845 = vtanh.pop %v629
  %v846 = vtanh.pop %v634
  %v847 = vtanh.pop %v637
  %v848 = vtanh.pop %v642
  %v849 = vtanh.pop %v645
  %v850 = vtanh.pop %v650
  %v851 = vtanh.pop %v653
  %v852 = vtanh.pop %v658
  %v853 = vtanh.pop %v661
  %v854 = vtanh.pop %v666
  %v855 = vtanh.pop %v669
  %v856 = vtanh.pop %v674
  %v857 = vtanh.pop %v677
  %v858 = vtanh.pop %v682
  %v859 = vtanh.pop %v685
  %v860 = vtanh.pop %v690
  %v861 = vtanh.pop %v693
  %v862 = vtanh.pop %v698
  %v863 = vtanh.pop %v701
  %v864 = vtanh.pop %v706
  %v865 = vtanh.pop %v709
  %v866 = vtanh.pop %v714
  %v867 = vtanh.pop %v717
  %v868 = vtanh.pop %v722
  %v869 = vtanh.pop %v725
  %v870 = vtanh.pop %v730
  %v871 = vtanh.pop %v733
  %v872 = vtanh.pop %v738
  %v873 = vtanh.pop %v741
  %v874 = vtanh.pop %v746
  %v875 = vtanh.pop %v749
  %v876 = vtanh.pop %v754
  %v877 = vtanh.pop %v757
  %v878 = vtanh.pop %v762
  %v879 = vtanh.pop %v765
  %v880 = vtanh.pop %v770
  %v881 = vtanh.pop %v773
  %v882 = vtanh.pop %v778
  %v883 = vtanh.pop %v781
  %v884 = vtanh.pop %v786
  %v885 = vtanh.pop %v789
  %v886 = vtanh.pop %v794
  %v887 = vtanh.pop %v797
  %v888 = vtanh.pop %v802
  %v889 = vtanh.pop %v805
  %v890 = vtanh.pop %v810
  %v891 = vtanh.pop %v813
  %v892 = vtanh.pop %v818
  %v893 = vtanh.pop %v821
  %v894 = vtanh.pop %v826
  %v895 = vtanh.pop %v829
  %vm896 = vcmask 97280
  %897 = vst.msk [vmem:[%s3] sm:$0xff] %vm896, %v832
  %898 = vst.msk [vmem:[%s3 + $0x8] sm:$0xff] %vm896, %v833
  %899 = vst.msk [vmem:[%s3 + $0x10] sm:$0xff] %vm896, %v834
  %900 = vst.msk [vmem:[%s3 + $0x18] sm:$0xff] %vm896, %v835
  %901 = vst.msk [vmem:[%s3 + $0x20] sm:$0xff] %vm896, %v836
  %902 = vst.msk [vmem:[%s3 + $0x28] sm:$0xff] %vm896, %v837
  %903 = vst.msk [vmem:[%s3 + $0x30] sm:$0xff] %vm896, %v838
  %904 = vst.msk [vmem:[%s3 + $0x38] sm:$0xff] %vm896, %v839
  %905 = vst.msk [vmem:[%s3 + $0x40] sm:$0xff] %vm896, %v840
  %906 = vst.msk [vmem:[%s3 + $0x48] sm:$0xff] %vm896, %v841
  %907 = vst.msk [vmem:[%s3 + $0x50] sm:$0xff] %vm896, %v842
  %908 = vst.msk [vmem:[%s3 + $0x58] sm:$0xff] %vm896, %v843
  %909 = vst.msk [vmem:[%s3 + $0x60] sm:$0xff] %vm896, %v844
  %910 = vst.msk [vmem:[%s3 + $0x68] sm:$0xff] %vm896, %v845
  %911 = vst.msk [vmem:[%s3 + $0x70] sm:$0xff] %vm896, %v846
  %912 = vst.msk [vmem:[%s3 + $0x78] sm:$0xff] %vm896, %v847
  %913 = vst.msk [vmem:[%s3 + $0x80] sm:$0xff] %vm896, %v848
  %914 = vst.msk [vmem:[%s3 + $0x88] sm:$0xff] %vm896, %v849
  %915 = vst.msk [vmem:[%s3 + $0x90] sm:$0xff] %vm896, %v850
  %916 = vst.msk [vmem:[%s3 + $0x98] sm:$0xff] %vm896, %v851
  %917 = vst.msk [vmem:[%s3 + $0xa0] sm:$0xff] %vm896, %v852
  %918 = vst.msk [vmem:[%s3 + $0xa8] sm:$0xff] %vm896, %v853
  %919 = vst.msk [vmem:[%s3 + $0xb0] sm:$0xff] %vm896, %v854
  %920 = vst.msk [vmem:[%s3 + $0xb8] sm:$0xff] %vm896, %v855
  %921 = vst.msk [vmem:[%s3 + $0xc0] sm:$0xff] %vm896, %v856
  %922 = vst.msk [vmem:[%s3 + $0xc8] sm:$0xff] %vm896, %v857
  %923 = vst.msk [vmem:[%s3 + $0xd0] sm:$0xff] %vm896, %v858
  %924 = vst.msk [vmem:[%s3 + $0xd8] sm:$0xff] %vm896, %v859
  %925 = vst.msk [vmem:[%s3 + $0xe0] sm:$0xff] %vm896, %v860
  %926 = vst.msk [vmem:[%s3 + $0xe8] sm:$0xff] %vm896, %v861
  %927 = vst.msk [vmem:[%s3 + $0xf0] sm:$0xff] %vm896, %v862
  %928 = vst.msk [vmem:[%s3 + $0xf8] sm:$0xff] %vm896, %v863
  %929 = vst.msk [vmem:[%s3 + $0x100] sm:$0xff] %vm896, %v864
  %930 = vst.msk [vmem:[%s3 + $0x108] sm:$0xff] %vm896, %v865
  %931 = vst.msk [vmem:[%s3 + $0x110] sm:$0xff] %vm896, %v866
  %932 = vst.msk [vmem:[%s3 + $0x118] sm:$0xff] %vm896, %v867
  %933 = vst.msk [vmem:[%s3 + $0x120] sm:$0xff] %vm896, %v868
  %934 = vst.msk [vmem:[%s3 + $0x128] sm:$0xff] %vm896, %v869
  %935 = vst.msk [vmem:[%s3 + $0x130] sm:$0xff] %vm896, %v870
  %936 = vst.msk [vmem:[%s3 + $0x138] sm:$0xff] %vm896, %v871
  %937 = vst.msk [vmem:[%s3 + $0x140] sm:$0xff] %vm896, %v872
  %938 = vst.msk [vmem:[%s3 + $0x148] sm:$0xff] %vm896, %v873
  %939 = vst.msk [vmem:[%s3 + $0x150] sm:$0xff] %vm896, %v874
  %940 = vst.msk [vmem:[%s3 + $0x158] sm:$0xff] %vm896, %v875
  %941 = vst.msk [vmem:[%s3 + $0x160] sm:$0xff] %vm896, %v876
  %942 = vst.msk [vmem:[%s3 + $0x168] sm:$0xff] %vm896, %v877
  %943 = vst.msk [vmem:[%s3 + $0x170] sm:$0xff] %vm896, %v878
  %944 = vst.msk [vmem:[%s3 + $0x178] sm:$0xff] %vm896, %v879
  %945 = vst.msk [vmem:[%s3 + $0x180] sm:$0xff] %vm896, %v880
  %946 = vst.msk [vmem:[%s3 + $0x188] sm:$0xff] %vm896, %v881
  %947 = vst.msk [vmem:[%s3 + $0x190] sm:$0xff] %vm896, %v882
  %948 = vst.msk [vmem:[%s3 + $0x198] sm:$0xff] %vm896, %v883
  %949 = vst.msk [vmem:[%s3 + $0x1a0] sm:$0xff] %vm896, %v884
  %950 = vst.msk [vmem:[%s3 + $0x1a8] sm:$0xff] %vm896, %v885
  %951 = vst.msk [vmem:[%s3 + $0x1b0] sm:$0xff] %vm896, %v886
  %952 = vst.msk [vmem:[%s3 + $0x1b8] sm:$0xff] %vm896, %v887
  %953 = vst.msk [vmem:[%s3 + $0x1c0] sm:$0xff] %vm896, %v888
  %954 = vst.msk [vmem:[%s3 + $0x1c8] sm:$0xff] %vm896, %v889
  %955 = vst.msk [vmem:[%s3 + $0x1d0] sm:$0xff] %vm896, %v890
  %956 = vst.msk [vmem:[%s3 + $0x1d8] sm:$0xff] %vm896, %v891
  %957 = vst.msk [vmem:[%s3 + $0x1e0] sm:$0xff] %vm896, %v892
  %958 = vst.msk [vmem:[%s3 + $0x1e8] sm:$0xff] %vm896, %v893
  %959 = vst.msk [vmem:[%s3 + $0x1f0] sm:$0xff] %vm896, %v894
  %960 = vst.msk [vmem:[%s3 + $0x1f8] sm:$0xff] %vm896, %v895
  // Predicated region
  $region14: #{vq_cvae_forward.17} parent=0 // pred_check
    _
  $region15: #{vq_cvae_forward.17} parent=0 // pred_check_branch
    %962 = sbr.rel (0) target = $region17
  $region16: #{vq_cvae_forward.17} parent=0 // pred_region
    _
  $region17: #{vq_cvae_forward.17} parent=0 // pred_fallthru
    _
  // Predicated region
  $region18: #{vq_cvae_forward.17} parent=0 // pred_check
    _
  $region19: #{vq_cvae_forward.17} parent=0 // pred_check_branch
    %964 = sbr.rel (0) target = $region21
  $region20: #{vq_cvae_forward.17} parent=0 // pred_region
    _
  $region21: #{vq_cvae_forward.17} parent=0 // pred_fallthru
    _

</llo_original>
